<compile_context>
chip_gen: v5e
topology: v5e:2x2
jax: 0.10.0
libtpu: 0.0.40
codegen_flags: <defaults>
</compile_context>

<pallas_src>
import functools

import jax
import jax.numpy as jnp
from jax.experimental import pallas as pl
from jax.experimental.pallas import tpu as pltpu


def _round_up(x, m):
    return (x + m - 1) // m * m


# --------------------------- fused decoder kernel ----------------------------
def _fused_decoder_kernel(x_ref, w0_ref, b0_ref, w1_ref, b1_ref,
                          fcw_ref, fcb_ref, out_ref):
    T, Bp, _ = x_ref.shape
    Hp = fcw_ref.shape[0]          # padded hidden size (multiple of 128)

    def lstm_cell(xin, c_prev, w_ref, b_ref):
        # xin: (Bp, in_pad + Hp); w: (in_pad + Hp, 4*Hp)  -> single fused MXU matmul
        gates = (jnp.dot(xin, w_ref[...], preferred_element_type=jnp.float32)
                 + b_ref[...])                              # (Bp, 4*Hp)
        # PyTorch gate order i, f, g, o; each gate block is a full-lane (Hp) slice.
        i = jax.nn.sigmoid(gates[:, 0 * Hp:1 * Hp])
        f = jax.nn.sigmoid(gates[:, 1 * Hp:2 * Hp])
        g = jnp.tanh(gates[:, 2 * Hp:3 * Hp])
        o = jax.nn.sigmoid(gates[:, 3 * Hp:4 * Hp])
        c = f * c_prev + i * g
        h = o * jnp.tanh(c)
        return h, c

    def step(t, state):
        h0, c0, h1, c1 = state
        x_t = x_ref[t]                                      # (Bp, Ep), contiguous load
        h0, c0 = lstm_cell(jnp.concatenate([x_t, h0], axis=1), c0, w0_ref, b0_ref)
        h1, c1 = lstm_cell(jnp.concatenate([h0, h1], axis=1), c1, w1_ref, b1_ref)
        # dropout: identity in eval mode; fc_out fused, lane-dense (Bp, Vp) store.
        out_ref[t] = (jnp.dot(h1, fcw_ref[...], preferred_element_type=jnp.float32)
                      + fcb_ref[...]).astype(out_ref.dtype)
        return h0, c0, h1, c1

    z = jnp.zeros((Bp, Hp), jnp.float32)
    jax.lax.fori_loop(0, T, step, (z, z, z, z), unroll=True)


def _decoder_pallas(x_tm, w0, b0, w1, b1, fcw, fcb):
    """x_tm: (T, Bp, Ep). Returns time-major padded logits (T, Bp, Vp)."""
    T, Bp, _ = x_tm.shape
    Vp = fcw.shape[1]
    # Single invocation (no grid): all operands are whole-array VMEM-resident blocks
    # (~1.2 MiB total at these sizes), so no per-step DMA or pipeline ramp.
    return pl.pallas_call(
        _fused_decoder_kernel,
        out_shape=jax.ShapeDtypeStruct((T, Bp, Vp), jnp.float32),
    )(x_tm, w0, b0, w1, b1, fcw, fcb)


# ------------------------------- full forward ---------------------------------
def decoder_forward(params, features, captions, *, vocab_size):
    emb_p = params["embed_p"]                       # (vocab, Ep), columns pre-padded
    B, E = features.shape
    Ep = emb_p.shape[1]
    Bp = max(8, _round_up(B, 8))

    caps = captions[:, :-1]                         # (B, L-1)
    # Pad batch; zero rows are harmless (batch rows are independent, sliced off later).
    feat_p = jnp.zeros((Bp, Ep), jnp.float32).at[:B, :E].set(features)
    caps_p = jnp.zeros((Bp, caps.shape[1]), caps.dtype).at[:B, :].set(caps)

    # Embedding lookup is a gather; kept as XLA glue. Indexing with caps_p.T yields the
    # time-major (T-1, Bp, Ep) layout directly -> no activation transpose on the input.
    emb_tm = jnp.take(emb_p, caps_p.T, axis=0)                      # (T-1, Bp, Ep)
    x_tm = jnp.concatenate([feat_p[None], emb_tm], axis=0)          # (T, Bp, Ep)

    out_tm = _decoder_pallas(x_tm, params["w0"], params["b0"],
                             params["w1"], params["b1"],
                             params["fcw"], params["fcb"])          # (T, Bp, Vp)
    # Crop padding and return batch-first logits, matching PyTorch (B, T, V).
    return jnp.transpose(out_tm[:, :B, :vocab_size], (1, 0, 2))


# ------------------------------ parameter prep --------------------------------
def init_params(key, embed_size, hidden_size, vocab_size, num_layers):
    """PyTorch-shaped params (weights stored transposed: (in, 4H) / (H, V))."""
    params = {}
    k = jax.random.split(key, 3 + 4 * num_layers)
    ki = iter(k)
    params["embed"] = 0.1 * jax.random.normal(
        next(ki), (vocab_size, embed_size), jnp.float32)
    in_sz = embed_size
    for l in range(num_layers):
        params[f"w_ih_{l}"] = 0.1 * jax.random.normal(
            next(ki), (in_sz, 4 * hidden_size), jnp.float32)
        params[f"w_hh_{l}"] = 0.1 * jax.random.normal(
            next(ki), (hidden_size, 4 * hidden_size), jnp.float32)
        b_ih = 0.1 * jax.random.normal(next(ki), (4 * hidden_size,), jnp.float32)
        b_hh = 0.1 * jax.random.normal(next(ki), (4 * hidden_size,), jnp.float32)
        params[f"b_{l}"] = (b_ih + b_hh).reshape(1, 4 * hidden_size)
        in_sz = hidden_size
    params["fc_w_t"] = 0.1 * jax.random.normal(
        next(ki), (hidden_size, vocab_size), jnp.float32)
    params["fc_b"] = jnp.full((1, vocab_size), 0.01, jnp.float32)
    return params


def prepare_params(raw, embed_size, hidden_size, vocab_size, num_layers):
    """Fuse [W_ih; W_hh], pad everything to lane/sublane-dense (128-lane) tiles."""
    assert num_layers == 2, "fused kernel is specialized to the module default (2 layers)"
    E, H, V = embed_size, hidden_size, vocab_size
    Ep, Hp, Vp = _round_up(E, 128), _round_up(H, 128), _round_up(V, 128)

    def fuse_lstm(w_ih, w_hh, b, in_dim, in_pad):
        W = jnp.zeros((in_pad + Hp, 4 * Hp), jnp.float32)
        Bv = jnp.zeros((1, 4 * Hp), jnp.float32)
        for g in range(4):  # place each gate's H columns into a full-lane Hp block
            W = W.at[:in_dim, g * Hp:g * Hp + H].set(w_ih[:, g * H:(g + 1) * H])
            W = W.at[in_pad:in_pad + H, g * Hp:g * Hp + H].set(w_hh[:, g * H:(g + 1) * H])
            Bv = Bv.at[0, g * Hp:g * Hp + H].set(b[0, g * H:(g + 1) * H])
        return W, Bv

    w0, b0 = fuse_lstm(raw["w_ih_0"], raw["w_hh_0"], raw["b_0"], E, Ep)
    w1, b1 = fuse_lstm(raw["w_ih_1"], raw["w_hh_1"], raw["b_1"], H, Hp)

    embed_p = jnp.zeros((V, Ep), jnp.float32).at[:, :E].set(raw["embed"])
    fcw = jnp.zeros((Hp, Vp), jnp.float32).at[:H, :V].set(raw["fc_w_t"])
    fcb = jnp.zeros((1, Vp), jnp.float32).at[0, :V].set(raw["fc_b"][0])

    return {"embed_p": embed_p, "w0": w0, "b0": b0, "w1": w1, "b1": b1,
            "fcw": fcw, "fcb": fcb}


if __name__ == "__main__":
    embed_size = 32
    hidden_size = 32
    vocab_size = 64
    num_layers = 2
    B = 2
    cap_len = 8          # T = 1 + (cap_len - 1) = 8

    root = jax.random.PRNGKey(0)
    kp, kf, kc = jax.random.split(root, 3)
    raw = init_params(kp, embed_size, hidden_size, vocab_size, num_layers)
    params = prepare_params(raw, embed_size, hidden_size, vocab_size, num_layers)
    features = jax.random.normal(kf, (B, embed_size), jnp.float32)
    captions = jax.random.randint(kc, (B, cap_len), 0, vocab_size, jnp.int32)

    fwd = jax.jit(functools.partial(decoder_forward, vocab_size=vocab_size))
    out = fwd(params, features, captions)
    jax.block_until_ready(out)
    assert out.shape == (B, cap_len, vocab_size), out.shape
    print("KERNEL_OK")
</pallas_src>

<mosaic_0001>
module attributes {stable_mosaic.version = 11 : i64} {
  func.func @_fused_decoder_kernel(%arg0: memref<8x8x128xf32, #tpu.memory_space<vmem>>, %arg1: memref<256x512xf32, #tpu.memory_space<vmem>>, %arg2: memref<1x512xf32, #tpu.memory_space<vmem>>, %arg3: memref<256x512xf32, #tpu.memory_space<vmem>>, %arg4: memref<1x512xf32, #tpu.memory_space<vmem>>, %arg5: memref<128x128xf32, #tpu.memory_space<vmem>>, %arg6: memref<1x128xf32, #tpu.memory_space<vmem>>, %arg7: memref<8x8x128xf32, #tpu.memory_space<vmem>>) attributes {dimension_semantics = [], scalar_prefetch = 0 : i64, scratch_operands = 0 : i64, tpu.core_type = #tpu.core_type<tc>} {
    %cst = arith.constant 0.000000e+00 : f32
    %0 = vector.broadcast %cst : f32 to vector<8x128xf32>
    %c0_i32 = arith.constant 0 : i32
    %1 = arith.index_cast %c0_i32 : i32 to index
    %c0 = arith.constant 0 : index
    %c0_0 = arith.constant 0 : index
    %2 = vector.load %arg0[%1, %c0, %c0_0] : memref<8x8x128xf32, #tpu.memory_space<vmem>>, vector<1x8x128xf32>
    %3 = vector.shape_cast %2 : vector<1x8x128xf32> to vector<8x128xf32>
    %4 = tpu.concatenate %3, %0 in 1 : vector<8x128xf32>, vector<8x128xf32> -> vector<8x256xf32>
    %c0_1 = arith.constant 0 : index
    %c0_2 = arith.constant 0 : index
    %5 = vector.load %arg1[%c0_1, %c0_2] : memref<256x512xf32, #tpu.memory_space<vmem>>, vector<256x512xf32>
    %cst_3 = arith.constant dense<0.000000e+00> : vector<8x512xf32>
    %6 = tpu.matmul %4, %5, %cst_3 {dimension_numbers = #tpu.dot_dimension_numbers<[1], [0], [0], [1], [0, 0, 1, 1], [], []>} : vector<8x256xf32>, vector<256x512xf32>, vector<8x512xf32> -> vector<8x512xf32>
    %c0_4 = arith.constant 0 : index
    %c0_5 = arith.constant 0 : index
    %7 = vector.load %arg2[%c0_4, %c0_5] : memref<1x512xf32, #tpu.memory_space<vmem>>, vector<1x512xf32>
    %8 = vector.broadcast %7 : vector<1x512xf32> to vector<8x512xf32>
    %9 = arith.addf %6, %8 : vector<8x512xf32>
    %10 = vector.extract_strided_slice %9 {offsets = [0, 0], sizes = [8, 128], strides = [1, 1]} : vector<8x512xf32> to vector<8x128xf32>
    %11 = arith.negf %10 : vector<8x128xf32>
    %12 = math.exp %11 : vector<8x128xf32>
    %cst_6 = arith.constant 1.000000e+00 : f32
    %13 = vector.broadcast %cst_6 : f32 to vector<8x128xf32>
    %14 = arith.addf %13, %12 : vector<8x128xf32>
    %15 = arith.divf %13, %14 : vector<8x128xf32>
    %16 = vector.extract_strided_slice %9 {offsets = [0, 128], sizes = [8, 128], strides = [1, 1]} : vector<8x512xf32> to vector<8x128xf32>
    %17 = arith.negf %16 : vector<8x128xf32>
    %18 = math.exp %17 : vector<8x128xf32>
    %cst_7 = arith.constant 1.000000e+00 : f32
    %19 = vector.broadcast %cst_7 : f32 to vector<8x128xf32>
    %20 = arith.addf %19, %18 : vector<8x128xf32>
    %21 = arith.divf %19, %20 : vector<8x128xf32>
    %22 = vector.extract_strided_slice %9 {offsets = [0, 256], sizes = [8, 128], strides = [1, 1]} : vector<8x512xf32> to vector<8x128xf32>
    %23 = math.tanh %22 : vector<8x128xf32>
    %24 = vector.extract_strided_slice %9 {offsets = [0, 384], sizes = [8, 128], strides = [1, 1]} : vector<8x512xf32> to vector<8x128xf32>
    %25 = arith.negf %24 : vector<8x128xf32>
    %26 = math.exp %25 : vector<8x128xf32>
    %cst_8 = arith.constant 1.000000e+00 : f32
    %27 = vector.broadcast %cst_8 : f32 to vector<8x128xf32>
    %28 = arith.addf %27, %26 : vector<8x128xf32>
    %29 = arith.divf %27, %28 : vector<8x128xf32>
    %30 = arith.mulf %21, %0 : vector<8x128xf32>
    %31 = arith.mulf %15, %23 : vector<8x128xf32>
    %32 = arith.addf %30, %31 : vector<8x128xf32>
    %33 = math.tanh %32 : vector<8x128xf32>
    %34 = arith.mulf %29, %33 : vector<8x128xf32>
    %35 = tpu.concatenate %34, %0 in 1 : vector<8x128xf32>, vector<8x128xf32> -> vector<8x256xf32>
    %c0_9 = arith.constant 0 : index
    %c0_10 = arith.constant 0 : index
    %36 = vector.load %arg3[%c0_9, %c0_10] : memref<256x512xf32, #tpu.memory_space<vmem>>, vector<256x512xf32>
    %cst_11 = arith.constant dense<0.000000e+00> : vector<8x512xf32>
    %37 = tpu.matmul %35, %36, %cst_11 {dimension_numbers = #tpu.dot_dimension_numbers<[1], [0], [0], [1], [0, 0, 1, 1], [], []>} : vector<8x256xf32>, vector<256x512xf32>, vector<8x512xf32> -> vector<8x512xf32>
    %c0_12 = arith.constant 0 : index
    %c0_13 = arith.constant 0 : index
    %38 = vector.load %arg4[%c0_12, %c0_13] : memref<1x512xf32, #tpu.memory_space<vmem>>, vector<1x512xf32>
    %39 = vector.broadcast %38 : vector<1x512xf32> to vector<8x512xf32>
    %40 = arith.addf %37, %39 : vector<8x512xf32>
    %41 = vector.extract_strided_slice %40 {offsets = [0, 0], sizes = [8, 128], strides = [1, 1]} : vector<8x512xf32> to vector<8x128xf32>
    %42 = arith.negf %41 : vector<8x128xf32>
    %43 = math.exp %42 : vector<8x128xf32>
    %cst_14 = arith.constant 1.000000e+00 : f32
    %44 = vector.broadcast %cst_14 : f32 to vector<8x128xf32>
    %45 = arith.addf %44, %43 : vector<8x128xf32>
    %46 = arith.divf %44, %45 : vector<8x128xf32>
    %47 = vector.extract_strided_slice %40 {offsets = [0, 128], sizes = [8, 128], strides = [1, 1]} : vector<8x512xf32> to vector<8x128xf32>
    %48 = arith.negf %47 : vector<8x128xf32>
    %49 = math.exp %48 : vector<8x128xf32>
    %cst_15 = arith.constant 1.000000e+00 : f32
    %50 = vector.broadcast %cst_15 : f32 to vector<8x128xf32>
    %51 = arith.addf %50, %49 : vector<8x128xf32>
    %52 = arith.divf %50, %51 : vector<8x128xf32>
    %53 = vector.extract_strided_slice %40 {offsets = [0, 256], sizes = [8, 128], strides = [1, 1]} : vector<8x512xf32> to vector<8x128xf32>
    %54 = math.tanh %53 : vector<8x128xf32>
    %55 = vector.extract_strided_slice %40 {offsets = [0, 384], sizes = [8, 128], strides = [1, 1]} : vector<8x512xf32> to vector<8x128xf32>
    %56 = arith.negf %55 : vector<8x128xf32>
    %57 = math.exp %56 : vector<8x128xf32>
    %cst_16 = arith.constant 1.000000e+00 : f32
    %58 = vector.broadcast %cst_16 : f32 to vector<8x128xf32>
    %59 = arith.addf %58, %57 : vector<8x128xf32>
    %60 = arith.divf %58, %59 : vector<8x128xf32>
    %61 = arith.mulf %52, %0 : vector<8x128xf32>
    %62 = arith.mulf %46, %54 : vector<8x128xf32>
    %63 = arith.addf %61, %62 : vector<8x128xf32>
    %64 = math.tanh %63 : vector<8x128xf32>
    %65 = arith.mulf %60, %64 : vector<8x128xf32>
    %c0_17 = arith.constant 0 : index
    %c0_18 = arith.constant 0 : index
    %66 = vector.load %arg5[%c0_17, %c0_18] : memref<128x128xf32, #tpu.memory_space<vmem>>, vector<128x128xf32>
    %cst_19 = arith.constant dense<0.000000e+00> : vector<8x128xf32>
    %67 = tpu.matmul %65, %66, %cst_19 {dimension_numbers = #tpu.dot_dimension_numbers<[1], [0], [0], [1], [0, 0, 1, 1], [], []>} : vector<8x128xf32>, vector<128x128xf32>, vector<8x128xf32> -> vector<8x128xf32>
    %c0_20 = arith.constant 0 : index
    %c0_21 = arith.constant 0 : index
    %68 = vector.load %arg6[%c0_20, %c0_21] : memref<1x128xf32, #tpu.memory_space<vmem>>, vector<1x128xf32>
    %69 = vector.broadcast %68 : vector<1x128xf32> to vector<8x128xf32>
    %70 = arith.addf %67, %69 : vector<8x128xf32>
    %71 = arith.index_cast %c0_i32 : i32 to index
    %c0_22 = arith.constant 0 : index
    %c0_23 = arith.constant 0 : index
    %72 = vector.load %arg7[%71, %c0_22, %c0_23] : memref<8x8x128xf32, #tpu.memory_space<vmem>>, vector<1x8x128xf32>
    %73 = vector.shape_cast %72 : vector<1x8x128xf32> to vector<8x128xf32>
    %74 = vector.shape_cast %70 : vector<8x128xf32> to vector<1x8x128xf32>
    tpu.vector_store %arg7[%71, %c0_22, %c0_23], %74 {strides = array<i32>} : memref<8x8x128xf32, #tpu.memory_space<vmem>>, vector<1x8x128xf32>,
    %c1_i32 = arith.constant 1 : i32
    %75 = arith.index_cast %c1_i32 : i32 to index
    %c0_24 = arith.constant 0 : index
    %c0_25 = arith.constant 0 : index
    %76 = vector.load %arg0[%75, %c0_24, %c0_25] : memref<8x8x128xf32, #tpu.memory_space<vmem>>, vector<1x8x128xf32>
    %77 = vector.shape_cast %76 : vector<1x8x128xf32> to vector<8x128xf32>
    %78 = tpu.concatenate %77, %34 in 1 : vector<8x128xf32>, vector<8x128xf32> -> vector<8x256xf32>
    %c0_26 = arith.constant 0 : index
    %c0_27 = arith.constant 0 : index
    %79 = vector.load %arg1[%c0_26, %c0_27] : memref<256x512xf32, #tpu.memory_space<vmem>>, vector<256x512xf32>
    %cst_28 = arith.constant dense<0.000000e+00> : vector<8x512xf32>
    %80 = tpu.matmul %78, %79, %cst_28 {dimension_numbers = #tpu.dot_dimension_numbers<[1], [0], [0], [1], [0, 0, 1, 1], [], []>} : vector<8x256xf32>, vector<256x512xf32>, vector<8x512xf32> -> vector<8x512xf32>
    %c0_29 = arith.constant 0 : index
    %c0_30 = arith.constant 0 : index
    %81 = vector.load %arg2[%c0_29, %c0_30] : memref<1x512xf32, #tpu.memory_space<vmem>>, vector<1x512xf32>
    %82 = vector.broadcast %81 : vector<1x512xf32> to vector<8x512xf32>
    %83 = arith.addf %80, %82 : vector<8x512xf32>
    %84 = vector.extract_strided_slice %83 {offsets = [0, 0], sizes = [8, 128], strides = [1, 1]} : vector<8x512xf32> to vector<8x128xf32>
    %85 = arith.negf %84 : vector<8x128xf32>
    %86 = math.exp %85 : vector<8x128xf32>
    %cst_31 = arith.constant 1.000000e+00 : f32
    %87 = vector.broadcast %cst_31 : f32 to vector<8x128xf32>
    %88 = arith.addf %87, %86 : vector<8x128xf32>
    %89 = arith.divf %87, %88 : vector<8x128xf32>
    %90 = vector.extract_strided_slice %83 {offsets = [0, 128], sizes = [8, 128], strides = [1, 1]} : vector<8x512xf32> to vector<8x128xf32>
    %91 = arith.negf %90 : vector<8x128xf32>
    %92 = math.exp %91 : vector<8x128xf32>
    %cst_32 = arith.constant 1.000000e+00 : f32
    %93 = vector.broadcast %cst_32 : f32 to vector<8x128xf32>
    %94 = arith.addf %93, %92 : vector<8x128xf32>
    %95 = arith.divf %93, %94 : vector<8x128xf32>
    %96 = vector.extract_strided_slice %83 {offsets = [0, 256], sizes = [8, 128], strides = [1, 1]} : vector<8x512xf32> to vector<8x128xf32>
    %97 = math.tanh %96 : vector<8x128xf32>
    %98 = vector.extract_strided_slice %83 {offsets = [0, 384], sizes = [8, 128], strides = [1, 1]} : vector<8x512xf32> to vector<8x128xf32>
    %99 = arith.negf %98 : vector<8x128xf32>
    %100 = math.exp %99 : vector<8x128xf32>
    %cst_33 = arith.constant 1.000000e+00 : f32
    %101 = vector.broadcast %cst_33 : f32 to vector<8x128xf32>
    %102 = arith.addf %101, %100 : vector<8x128xf32>
    %103 = arith.divf %101, %102 : vector<8x128xf32>
    %104 = arith.mulf %95, %32 : vector<8x128xf32>
    %105 = arith.mulf %89, %97 : vector<8x128xf32>
    %106 = arith.addf %104, %105 : vector<8x128xf32>
    %107 = math.tanh %106 : vector<8x128xf32>
    %108 = arith.mulf %103, %107 : vector<8x128xf32>
    %109 = tpu.concatenate %108, %65 in 1 : vector<8x128xf32>, vector<8x128xf32> -> vector<8x256xf32>
    %c0_34 = arith.constant 0 : index
    %c0_35 = arith.constant 0 : index
    %110 = vector.load %arg3[%c0_34, %c0_35] : memref<256x512xf32, #tpu.memory_space<vmem>>, vector<256x512xf32>
    %cst_36 = arith.constant dense<0.000000e+00> : vector<8x512xf32>
    %111 = tpu.matmul %109, %110, %cst_36 {dimension_numbers = #tpu.dot_dimension_numbers<[1], [0], [0], [1], [0, 0, 1, 1], [], []>} : vector<8x256xf32>, vector<256x512xf32>, vector<8x512xf32> -> vector<8x512xf32>
    %c0_37 = arith.constant 0 : index
    %c0_38 = arith.constant 0 : index
    %112 = vector.load %arg4[%c0_37, %c0_38] : memref<1x512xf32, #tpu.memory_space<vmem>>, vector<1x512xf32>
    %113 = vector.broadcast %112 : vector<1x512xf32> to vector<8x512xf32>
    %114 = arith.addf %111, %113 : vector<8x512xf32>
    %115 = vector.extract_strided_slice %114 {offsets = [0, 0], sizes = [8, 128], strides = [1, 1]} : vector<8x512xf32> to vector<8x128xf32>
    %116 = arith.negf %115 : vector<8x128xf32>
    %117 = math.exp %116 : vector<8x128xf32>
    %cst_39 = arith.constant 1.000000e+00 : f32
    %118 = vector.broadcast %cst_39 : f32 to vector<8x128xf32>
    %119 = arith.addf %118, %117 : vector<8x128xf32>
    %120 = arith.divf %118, %119 : vector<8x128xf32>
    %121 = vector.extract_strided_slice %114 {offsets = [0, 128], sizes = [8, 128], strides = [1, 1]} : vector<8x512xf32> to vector<8x128xf32>
    %122 = arith.negf %121 : vector<8x128xf32>
    %123 = math.exp %122 : vector<8x128xf32>
    %cst_40 = arith.constant 1.000000e+00 : f32
    %124 = vector.broadcast %cst_40 : f32 to vector<8x128xf32>
    %125 = arith.addf %124, %123 : vector<8x128xf32>
    %126 = arith.divf %124, %125 : vector<8x128xf32>
    %127 = vector.extract_strided_slice %114 {offsets = [0, 256], sizes = [8, 128], strides = [1, 1]} : vector<8x512xf32> to vector<8x128xf32>
    %128 = math.tanh %127 : vector<8x128xf32>
    %129 = vector.extract_strided_slice %114 {offsets = [0, 384], sizes = [8, 128], strides = [1, 1]} : vector<8x512xf32> to vector<8x128xf32>
    %130 = arith.negf %129 : vector<8x128xf32>
    %131 = math.exp %130 : vector<8x128xf32>
    %cst_41 = arith.constant 1.000000e+00 : f32
    %132 = vector.broadcast %cst_41 : f32 to vector<8x128xf32>
    %133 = arith.addf %132, %131 : vector<8x128xf32>
    %134 = arith.divf %132, %133 : vector<8x128xf32>
    %135 = arith.mulf %126, %63 : vector<8x128xf32>
    %136 = arith.mulf %120, %128 : vector<8x128xf32>
    %137 = arith.addf %135, %136 : vector<8x128xf32>
    %138 = math.tanh %137 : vector<8x128xf32>
    %139 = arith.mulf %134, %138 : vector<8x128xf32>
    %c0_42 = arith.constant 0 : index
    %c0_43 = arith.constant 0 : index
    %140 = vector.load %arg5[%c0_42, %c0_43] : memref<128x128xf32, #tpu.memory_space<vmem>>, vector<128x128xf32>
    %cst_44 = arith.constant dense<0.000000e+00> : vector<8x128xf32>
    %141 = tpu.matmul %139, %140, %cst_44 {dimension_numbers = #tpu.dot_dimension_numbers<[1], [0], [0], [1], [0, 0, 1, 1], [], []>} : vector<8x128xf32>, vector<128x128xf32>, vector<8x128xf32> -> vector<8x128xf32>
    %c0_45 = arith.constant 0 : index
    %c0_46 = arith.constant 0 : index
    %142 = vector.load %arg6[%c0_45, %c0_46] : memref<1x128xf32, #tpu.memory_space<vmem>>, vector<1x128xf32>
    %143 = vector.broadcast %142 : vector<1x128xf32> to vector<8x128xf32>
    %144 = arith.addf %141, %143 : vector<8x128xf32>
    %145 = arith.index_cast %c1_i32 : i32 to index
    %c0_47 = arith.constant 0 : index
    %c0_48 = arith.constant 0 : index
    %146 = vector.load %arg7[%145, %c0_47, %c0_48] : memref<8x8x128xf32, #tpu.memory_space<vmem>>, vector<1x8x128xf32>
    %147 = vector.shape_cast %146 : vector<1x8x128xf32> to vector<8x128xf32>
    %148 = vector.shape_cast %144 : vector<8x128xf32> to vector<1x8x128xf32>
    tpu.vector_store %arg7[%145, %c0_47, %c0_48], %148 {strides = array<i32>} : memref<8x8x128xf32, #tpu.memory_space<vmem>>, vector<1x8x128xf32>,
    %c2_i32 = arith.constant 2 : i32
    %149 = arith.index_cast %c2_i32 : i32 to index
    %c0_49 = arith.constant 0 : index
    %c0_50 = arith.constant 0 : index
    %150 = vector.load %arg0[%149, %c0_49, %c0_50] : memref<8x8x128xf32, #tpu.memory_space<vmem>>, vector<1x8x128xf32>
    %151 = vector.shape_cast %150 : vector<1x8x128xf32> to vector<8x128xf32>
    %152 = tpu.concatenate %151, %108 in 1 : vector<8x128xf32>, vector<8x128xf32> -> vector<8x256xf32>
    %c0_51 = arith.constant 0 : index
    %c0_52 = arith.constant 0 : index
    %153 = vector.load %arg1[%c0_51, %c0_52] : memref<256x512xf32, #tpu.memory_space<vmem>>, vector<256x512xf32>
    %cst_53 = arith.constant dense<0.000000e+00> : vector<8x512xf32>
    %154 = tpu.matmul %152, %153, %cst_53 {dimension_numbers = #tpu.dot_dimension_numbers<[1], [0], [0], [1], [0, 0, 1, 1], [], []>} : vector<8x256xf32>, vector<256x512xf32>, vector<8x512xf32> -> vector<8x512xf32>
    %c0_54 = arith.constant 0 : index
    %c0_55 = arith.constant 0 : index
    %155 = vector.load %arg2[%c0_54, %c0_55] : memref<1x512xf32, #tpu.memory_space<vmem>>, vector<1x512xf32>
    %156 = vector.broadcast %155 : vector<1x512xf32> to vector<8x512xf32>
    %157 = arith.addf %154, %156 : vector<8x512xf32>
    %158 = vector.extract_strided_slice %157 {offsets = [0, 0], sizes = [8, 128], strides = [1, 1]} : vector<8x512xf32> to vector<8x128xf32>
    %159 = arith.negf %158 : vector<8x128xf32>
    %160 = math.exp %159 : vector<8x128xf32>
    %cst_56 = arith.constant 1.000000e+00 : f32
    %161 = vector.broadcast %cst_56 : f32 to vector<8x128xf32>
    %162 = arith.addf %161, %160 : vector<8x128xf32>
    %163 = arith.divf %161, %162 : vector<8x128xf32>
    %164 = vector.extract_strided_slice %157 {offsets = [0, 128], sizes = [8, 128], strides = [1, 1]} : vector<8x512xf32> to vector<8x128xf32>
    %165 = arith.negf %164 : vector<8x128xf32>
    %166 = math.exp %165 : vector<8x128xf32>
    %cst_57 = arith.constant 1.000000e+00 : f32
    %167 = vector.broadcast %cst_57 : f32 to vector<8x128xf32>
    %168 = arith.addf %167, %166 : vector<8x128xf32>
    %169 = arith.divf %167, %168 : vector<8x128xf32>
    %170 = vector.extract_strided_slice %157 {offsets = [0, 256], sizes = [8, 128], strides = [1, 1]} : vector<8x512xf32> to vector<8x128xf32>
    %171 = math.tanh %170 : vector<8x128xf32>
    %172 = vector.extract_strided_slice %157 {offsets = [0, 384], sizes = [8, 128], strides = [1, 1]} : vector<8x512xf32> to vector<8x128xf32>
    %173 = arith.negf %172 : vector<8x128xf32>
    %174 = math.exp %173 : vector<8x128xf32>
    %cst_58 = arith.constant 1.000000e+00 : f32
    %175 = vector.broadcast %cst_58 : f32 to vector<8x128xf32>
    %176 = arith.addf %175, %174 : vector<8x128xf32>
    %177 = arith.divf %175, %176 : vector<8x128xf32>
    %178 = arith.mulf %169, %106 : vector<8x128xf32>
    %179 = arith.mulf %163, %171 : vector<8x128xf32>
    %180 = arith.addf %178, %179 : vector<8x128xf32>
    %181 = math.tanh %180 : vector<8x128xf32>
    %182 = arith.mulf %177, %181 : vector<8x128xf32>
    %183 = tpu.concatenate %182, %139 in 1 : vector<8x128xf32>, vector<8x128xf32> -> vector<8x256xf32>
    %c0_59 = arith.constant 0 : index
    %c0_60 = arith.constant 0 : index
    %184 = vector.load %arg3[%c0_59, %c0_60] : memref<256x512xf32, #tpu.memory_space<vmem>>, vector<256x512xf32>
    %cst_61 = arith.constant dense<0.000000e+00> : vector<8x512xf32>
    %185 = tpu.matmul %183, %184, %cst_61 {dimension_numbers = #tpu.dot_dimension_numbers<[1], [0], [0], [1], [0, 0, 1, 1], [], []>} : vector<8x256xf32>, vector<256x512xf32>, vector<8x512xf32> -> vector<8x512xf32>
    %c0_62 = arith.constant 0 : index
    %c0_63 = arith.constant 0 : index
    %186 = vector.load %arg4[%c0_62, %c0_63] : memref<1x512xf32, #tpu.memory_space<vmem>>, vector<1x512xf32>
    %187 = vector.broadcast %186 : vector<1x512xf32> to vector<8x512xf32>
    %188 = arith.addf %185, %187 : vector<8x512xf32>
    %189 = vector.extract_strided_slice %188 {offsets = [0, 0], sizes = [8, 128], strides = [1, 1]} : vector<8x512xf32> to vector<8x128xf32>
    %190 = arith.negf %189 : vector<8x128xf32>
    %191 = math.exp %190 : vector<8x128xf32>
    %cst_64 = arith.constant 1.000000e+00 : f32
    %192 = vector.broadcast %cst_64 : f32 to vector<8x128xf32>
    %193 = arith.addf %192, %191 : vector<8x128xf32>
    %194 = arith.divf %192, %193 : vector<8x128xf32>
    %195 = vector.extract_strided_slice %188 {offsets = [0, 128], sizes = [8, 128], strides = [1, 1]} : vector<8x512xf32> to vector<8x128xf32>
    %196 = arith.negf %195 : vector<8x128xf32>
    %197 = math.exp %196 : vector<8x128xf32>
    %cst_65 = arith.constant 1.000000e+00 : f32
    %198 = vector.broadcast %cst_65 : f32 to vector<8x128xf32>
    %199 = arith.addf %198, %197 : vector<8x128xf32>
    %200 = arith.divf %198, %199 : vector<8x128xf32>
    %201 = vector.extract_strided_slice %188 {offsets = [0, 256], sizes = [8, 128], strides = [1, 1]} : vector<8x512xf32> to vector<8x128xf32>
    %202 = math.tanh %201 : vector<8x128xf32>
    %203 = vector.extract_strided_slice %188 {offsets = [0, 384], sizes = [8, 128], strides = [1, 1]} : vector<8x512xf32> to vector<8x128xf32>
    %204 = arith.negf %203 : vector<8x128xf32>
    %205 = math.exp %204 : vector<8x128xf32>
    %cst_66 = arith.constant 1.000000e+00 : f32
    %206 = vector.broadcast %cst_66 : f32 to vector<8x128xf32>
    %207 = arith.addf %206, %205 : vector<8x128xf32>
    %208 = arith.divf %206, %207 : vector<8x128xf32>
    %209 = arith.mulf %200, %137 : vector<8x128xf32>
    %210 = arith.mulf %194, %202 : vector<8x128xf32>
    %211 = arith.addf %209, %210 : vector<8x128xf32>
    %212 = math.tanh %211 : vector<8x128xf32>
    %213 = arith.mulf %208, %212 : vector<8x128xf32>
    %c0_67 = arith.constant 0 : index
    %c0_68 = arith.constant 0 : index
    %214 = vector.load %arg5[%c0_67, %c0_68] : memref<128x128xf32, #tpu.memory_space<vmem>>, vector<128x128xf32>
    %cst_69 = arith.constant dense<0.000000e+00> : vector<8x128xf32>
    %215 = tpu.matmul %213, %214, %cst_69 {dimension_numbers = #tpu.dot_dimension_numbers<[1], [0], [0], [1], [0, 0, 1, 1], [], []>} : vector<8x128xf32>, vector<128x128xf32>, vector<8x128xf32> -> vector<8x128xf32>
    %c0_70 = arith.constant 0 : index
    %c0_71 = arith.constant 0 : index
    %216 = vector.load %arg6[%c0_70, %c0_71] : memref<1x128xf32, #tpu.memory_space<vmem>>, vector<1x128xf32>
    %217 = vector.broadcast %216 : vector<1x128xf32> to vector<8x128xf32>
    %218 = arith.addf %215, %217 : vector<8x128xf32>
    %219 = arith.index_cast %c2_i32 : i32 to index
    %c0_72 = arith.constant 0 : index
    %c0_73 = arith.constant 0 : index
    %220 = vector.load %arg7[%219, %c0_72, %c0_73] : memref<8x8x128xf32, #tpu.memory_space<vmem>>, vector<1x8x128xf32>
    %221 = vector.shape_cast %220 : vector<1x8x128xf32> to vector<8x128xf32>
    %222 = vector.shape_cast %218 : vector<8x128xf32> to vector<1x8x128xf32>
    tpu.vector_store %arg7[%219, %c0_72, %c0_73], %222 {strides = array<i32>} : memref<8x8x128xf32, #tpu.memory_space<vmem>>, vector<1x8x128xf32>,
    %c3_i32 = arith.constant 3 : i32
    %223 = arith.index_cast %c3_i32 : i32 to index
    %c0_74 = arith.constant 0 : index
    %c0_75 = arith.constant 0 : index
    %224 = vector.load %arg0[%223, %c0_74, %c0_75] : memref<8x8x128xf32, #tpu.memory_space<vmem>>, vector<1x8x128xf32>
    %225 = vector.shape_cast %224 : vector<1x8x128xf32> to vector<8x128xf32>
    %226 = tpu.concatenate %225, %182 in 1 : vector<8x128xf32>, vector<8x128xf32> -> vector<8x256xf32>
    %c0_76 = arith.constant 0 : index
    %c0_77 = arith.constant 0 : index
    %227 = vector.load %arg1[%c0_76, %c0_77] : memref<256x512xf32, #tpu.memory_space<vmem>>, vector<256x512xf32>
    %cst_78 = arith.constant dense<0.000000e+00> : vector<8x512xf32>
    %228 = tpu.matmul %226, %227, %cst_78 {dimension_numbers = #tpu.dot_dimension_numbers<[1], [0], [0], [1], [0, 0, 1, 1], [], []>} : vector<8x256xf32>, vector<256x512xf32>, vector<8x512xf32> -> vector<8x512xf32>
    %c0_79 = arith.constant 0 : index
    %c0_80 = arith.constant 0 : index
    %229 = vector.load %arg2[%c0_79, %c0_80] : memref<1x512xf32, #tpu.memory_space<vmem>>, vector<1x512xf32>
    %230 = vector.broadcast %229 : vector<1x512xf32> to vector<8x512xf32>
    %231 = arith.addf %228, %230 : vector<8x512xf32>
    %232 = vector.extract_strided_slice %231 {offsets = [0, 0], sizes = [8, 128], strides = [1, 1]} : vector<8x512xf32> to vector<8x128xf32>
    %233 = arith.negf %232 : vector<8x128xf32>
    %234 = math.exp %233 : vector<8x128xf32>
    %cst_81 = arith.constant 1.000000e+00 : f32
    %235 = vector.broadcast %cst_81 : f32 to vector<8x128xf32>
    %236 = arith.addf %235, %234 : vector<8x128xf32>
    %237 = arith.divf %235, %236 : vector<8x128xf32>
    %238 = vector.extract_strided_slice %231 {offsets = [0, 128], sizes = [8, 128], strides = [1, 1]} : vector<8x512xf32> to vector<8x128xf32>
    %239 = arith.negf %238 : vector<8x128xf32>
    %240 = math.exp %239 : vector<8x128xf32>
    %cst_82 = arith.constant 1.000000e+00 : f32
    %241 = vector.broadcast %cst_82 : f32 to vector<8x128xf32>
    %242 = arith.addf %241, %240 : vector<8x128xf32>
    %243 = arith.divf %241, %242 : vector<8x128xf32>
    %244 = vector.extract_strided_slice %231 {offsets = [0, 256], sizes = [8, 128], strides = [1, 1]} : vector<8x512xf32> to vector<8x128xf32>
    %245 = math.tanh %244 : vector<8x128xf32>
    %246 = vector.extract_strided_slice %231 {offsets = [0, 384], sizes = [8, 128], strides = [1, 1]} : vector<8x512xf32> to vector<8x128xf32>
    %247 = arith.negf %246 : vector<8x128xf32>
    %248 = math.exp %247 : vector<8x128xf32>
    %cst_83 = arith.constant 1.000000e+00 : f32
    %249 = vector.broadcast %cst_83 : f32 to vector<8x128xf32>
    %250 = arith.addf %249, %248 : vector<8x128xf32>
    %251 = arith.divf %249, %250 : vector<8x128xf32>
    %252 = arith.mulf %243, %180 : vector<8x128xf32>
    %253 = arith.mulf %237, %245 : vector<8x128xf32>
    %254 = arith.addf %252, %253 : vector<8x128xf32>
    %255 = math.tanh %254 : vector<8x128xf32>
    %256 = arith.mulf %251, %255 : vector<8x128xf32>
    %257 = tpu.concatenate %256, %213 in 1 : vector<8x128xf32>, vector<8x128xf32> -> vector<8x256xf32>
    %c0_84 = arith.constant 0 : index
    %c0_85 = arith.constant 0 : index
    %258 = vector.load %arg3[%c0_84, %c0_85] : memref<256x512xf32, #tpu.memory_space<vmem>>, vector<256x512xf32>
    %cst_86 = arith.constant dense<0.000000e+00> : vector<8x512xf32>
    %259 = tpu.matmul %257, %258, %cst_86 {dimension_numbers = #tpu.dot_dimension_numbers<[1], [0], [0], [1], [0, 0, 1, 1], [], []>} : vector<8x256xf32>, vector<256x512xf32>, vector<8x512xf32> -> vector<8x512xf32>
    %c0_87 = arith.constant 0 : index
    %c0_88 = arith.constant 0 : index
    %260 = vector.load %arg4[%c0_87, %c0_88] : memref<1x512xf32, #tpu.memory_space<vmem>>, vector<1x512xf32>
    %261 = vector.broadcast %260 : vector<1x512xf32> to vector<8x512xf32>
    %262 = arith.addf %259, %261 : vector<8x512xf32>
    %263 = vector.extract_strided_slice %262 {offsets = [0, 0], sizes = [8, 128], strides = [1, 1]} : vector<8x512xf32> to vector<8x128xf32>
    %264 = arith.negf %263 : vector<8x128xf32>
    %265 = math.exp %264 : vector<8x128xf32>
    %cst_89 = arith.constant 1.000000e+00 : f32
    %266 = vector.broadcast %cst_89 : f32 to vector<8x128xf32>
    %267 = arith.addf %266, %265 : vector<8x128xf32>
    %268 = arith.divf %266, %267 : vector<8x128xf32>
    %269 = vector.extract_strided_slice %262 {offsets = [0, 128], sizes = [8, 128], strides = [1, 1]} : vector<8x512xf32> to vector<8x128xf32>
    %270 = arith.negf %269 : vector<8x128xf32>
    %271 = math.exp %270 : vector<8x128xf32>
    %cst_90 = arith.constant 1.000000e+00 : f32
    %272 = vector.broadcast %cst_90 : f32 to vector<8x128xf32>
    %273 = arith.addf %272, %271 : vector<8x128xf32>
    %274 = arith.divf %272, %273 : vector<8x128xf32>
    %275 = vector.extract_strided_slice %262 {offsets = [0, 256], sizes = [8, 128], strides = [1, 1]} : vector<8x512xf32> to vector<8x128xf32>
    %276 = math.tanh %275 : vector<8x128xf32>
    %277 = vector.extract_strided_slice %262 {offsets = [0, 384], sizes = [8, 128], strides = [1, 1]} : vector<8x512xf32> to vector<8x128xf32>
    %278 = arith.negf %277 : vector<8x128xf32>
    %279 = math.exp %278 : vector<8x128xf32>
    %cst_91 = arith.constant 1.000000e+00 : f32
    %280 = vector.broadcast %cst_91 : f32 to vector<8x128xf32>
    %281 = arith.addf %280, %279 : vector<8x128xf32>
    %282 = arith.divf %280, %281 : vector<8x128xf32>
    %283 = arith.mulf %274, %211 : vector<8x128xf32>
    %284 = arith.mulf %268, %276 : vector<8x128xf32>
    %285 = arith.addf %283, %284 : vector<8x128xf32>
    %286 = math.tanh %285 : vector<8x128xf32>
    %287 = arith.mulf %282, %286 : vector<8x128xf32>
    %c0_92 = arith.constant 0 : index
    %c0_93 = arith.constant 0 : index
    %288 = vector.load %arg5[%c0_92, %c0_93] : memref<128x128xf32, #tpu.memory_space<vmem>>, vector<128x128xf32>
    %cst_94 = arith.constant dense<0.000000e+00> : vector<8x128xf32>
    %289 = tpu.matmul %287, %288, %cst_94 {dimension_numbers = #tpu.dot_dimension_numbers<[1], [0], [0], [1], [0, 0, 1, 1], [], []>} : vector<8x128xf32>, vector<128x128xf32>, vector<8x128xf32> -> vector<8x128xf32>
    %c0_95 = arith.constant 0 : index
    %c0_96 = arith.constant 0 : index
    %290 = vector.load %arg6[%c0_95, %c0_96] : memref<1x128xf32, #tpu.memory_space<vmem>>, vector<1x128xf32>
    %291 = vector.broadcast %290 : vector<1x128xf32> to vector<8x128xf32>
    %292 = arith.addf %289, %291 : vector<8x128xf32>
    %293 = arith.index_cast %c3_i32 : i32 to index
    %c0_97 = arith.constant 0 : index
    %c0_98 = arith.constant 0 : index
    %294 = vector.load %arg7[%293, %c0_97, %c0_98] : memref<8x8x128xf32, #tpu.memory_space<vmem>>, vector<1x8x128xf32>
    %295 = vector.shape_cast %294 : vector<1x8x128xf32> to vector<8x128xf32>
    %296 = vector.shape_cast %292 : vector<8x128xf32> to vector<1x8x128xf32>
    tpu.vector_store %arg7[%293, %c0_97, %c0_98], %296 {strides = array<i32>} : memref<8x8x128xf32, #tpu.memory_space<vmem>>, vector<1x8x128xf32>,
    %c4_i32 = arith.constant 4 : i32
    %297 = arith.index_cast %c4_i32 : i32 to index
    %c0_99 = arith.constant 0 : index
    %c0_100 = arith.constant 0 : index
    %298 = vector.load %arg0[%297, %c0_99, %c0_100] : memref<8x8x128xf32, #tpu.memory_space<vmem>>, vector<1x8x128xf32>
    %299 = vector.shape_cast %298 : vector<1x8x128xf32> to vector<8x128xf32>
    %300 = tpu.concatenate %299, %256 in 1 : vector<8x128xf32>, vector<8x128xf32> -> vector<8x256xf32>
    %c0_101 = arith.constant 0 : index
    %c0_102 = arith.constant 0 : index
    %301 = vector.load %arg1[%c0_101, %c0_102] : memref<256x512xf32, #tpu.memory_space<vmem>>, vector<256x512xf32>
    %cst_103 = arith.constant dense<0.000000e+00> : vector<8x512xf32>
    %302 = tpu.matmul %300, %301, %cst_103 {dimension_numbers = #tpu.dot_dimension_numbers<[1], [0], [0], [1], [0, 0, 1, 1], [], []>} : vector<8x256xf32>, vector<256x512xf32>, vector<8x512xf32> -> vector<8x512xf32>
    %c0_104 = arith.constant 0 : index
    %c0_105 = arith.constant 0 : index
    %303 = vector.load %arg2[%c0_104, %c0_105] : memref<1x512xf32, #tpu.memory_space<vmem>>, vector<1x512xf32>
    %304 = vector.broadcast %303 : vector<1x512xf32> to vector<8x512xf32>
    %305 = arith.addf %302, %304 : vector<8x512xf32>
    %306 = vector.extract_strided_slice %305 {offsets = [0, 0], sizes = [8, 128], strides = [1, 1]} : vector<8x512xf32> to vector<8x128xf32>
    %307 = arith.negf %306 : vector<8x128xf32>
    %308 = math.exp %307 : vector<8x128xf32>
    %cst_106 = arith.constant 1.000000e+00 : f32
    %309 = vector.broadcast %cst_106 : f32 to vector<8x128xf32>
    %310 = arith.addf %309, %308 : vector<8x128xf32>
    %311 = arith.divf %309, %310 : vector<8x128xf32>
    %312 = vector.extract_strided_slice %305 {offsets = [0, 128], sizes = [8, 128], strides = [1, 1]} : vector<8x512xf32> to vector<8x128xf32>
    %313 = arith.negf %312 : vector<8x128xf32>
    %314 = math.exp %313 : vector<8x128xf32>
    %cst_107 = arith.constant 1.000000e+00 : f32
    %315 = vector.broadcast %cst_107 : f32 to vector<8x128xf32>
    %316 = arith.addf %315, %314 : vector<8x128xf32>
    %317 = arith.divf %315, %316 : vector<8x128xf32>
    %318 = vector.extract_strided_slice %305 {offsets = [0, 256], sizes = [8, 128], strides = [1, 1]} : vector<8x512xf32> to vector<8x128xf32>
    %319 = math.tanh %318 : vector<8x128xf32>
    %320 = vector.extract_strided_slice %305 {offsets = [0, 384], sizes = [8, 128], strides = [1, 1]} : vector<8x512xf32> to vector<8x128xf32>
    %321 = arith.negf %320 : vector<8x128xf32>
    %322 = math.exp %321 : vector<8x128xf32>
    %cst_108 = arith.constant 1.000000e+00 : f32
    %323 = vector.broadcast %cst_108 : f32 to vector<8x128xf32>
    %324 = arith.addf %323, %322 : vector<8x128xf32>
    %325 = arith.divf %323, %324 : vector<8x128xf32>
    %326 = arith.mulf %317, %254 : vector<8x128xf32>
    %327 = arith.mulf %311, %319 : vector<8x128xf32>
    %328 = arith.addf %326, %327 : vector<8x128xf32>
    %329 = math.tanh %328 : vector<8x128xf32>
    %330 = arith.mulf %325, %329 : vector<8x128xf32>
    %331 = tpu.concatenate %330, %287 in 1 : vector<8x128xf32>, vector<8x128xf32> -> vector<8x256xf32>
    %c0_109 = arith.constant 0 : index
    %c0_110 = arith.constant 0 : index
    %332 = vector.load %arg3[%c0_109, %c0_110] : memref<256x512xf32, #tpu.memory_space<vmem>>, vector<256x512xf32>
    %cst_111 = arith.constant dense<0.000000e+00> : vector<8x512xf32>
    %333 = tpu.matmul %331, %332, %cst_111 {dimension_numbers = #tpu.dot_dimension_numbers<[1], [0], [0], [1], [0, 0, 1, 1], [], []>} : vector<8x256xf32>, vector<256x512xf32>, vector<8x512xf32> -> vector<8x512xf32>
    %c0_112 = arith.constant 0 : index
    %c0_113 = arith.constant 0 : index
    %334 = vector.load %arg4[%c0_112, %c0_113] : memref<1x512xf32, #tpu.memory_space<vmem>>, vector<1x512xf32>
    %335 = vector.broadcast %334 : vector<1x512xf32> to vector<8x512xf32>
    %336 = arith.addf %333, %335 : vector<8x512xf32>
    %337 = vector.extract_strided_slice %336 {offsets = [0, 0], sizes = [8, 128], strides = [1, 1]} : vector<8x512xf32> to vector<8x128xf32>
    %338 = arith.negf %337 : vector<8x128xf32>
    %339 = math.exp %338 : vector<8x128xf32>
    %cst_114 = arith.constant 1.000000e+00 : f32
    %340 = vector.broadcast %cst_114 : f32 to vector<8x128xf32>
    %341 = arith.addf %340, %339 : vector<8x128xf32>
    %342 = arith.divf %340, %341 : vector<8x128xf32>
    %343 = vector.extract_strided_slice %336 {offsets = [0, 128], sizes = [8, 128], strides = [1, 1]} : vector<8x512xf32> to vector<8x128xf32>
    %344 = arith.negf %343 : vector<8x128xf32>
    %345 = math.exp %344 : vector<8x128xf32>
    %cst_115 = arith.constant 1.000000e+00 : f32
    %346 = vector.broadcast %cst_115 : f32 to vector<8x128xf32>
    %347 = arith.addf %346, %345 : vector<8x128xf32>
    %348 = arith.divf %346, %347 : vector<8x128xf32>
    %349 = vector.extract_strided_slice %336 {offsets = [0, 256], sizes = [8, 128], strides = [1, 1]} : vector<8x512xf32> to vector<8x128xf32>
    %350 = math.tanh %349 : vector<8x128xf32>
    %351 = vector.extract_strided_slice %336 {offsets = [0, 384], sizes = [8, 128], strides = [1, 1]} : vector<8x512xf32> to vector<8x128xf32>
    %352 = arith.negf %351 : vector<8x128xf32>
    %353 = math.exp %352 : vector<8x128xf32>
    %cst_116 = arith.constant 1.000000e+00 : f32
    %354 = vector.broadcast %cst_116 : f32 to vector<8x128xf32>
    %355 = arith.addf %354, %353 : vector<8x128xf32>
    %356 = arith.divf %354, %355 : vector<8x128xf32>
    %357 = arith.mulf %348, %285 : vector<8x128xf32>
    %358 = arith.mulf %342, %350 : vector<8x128xf32>
    %359 = arith.addf %357, %358 : vector<8x128xf32>
    %360 = math.tanh %359 : vector<8x128xf32>
    %361 = arith.mulf %356, %360 : vector<8x128xf32>
    %c0_117 = arith.constant 0 : index
    %c0_118 = arith.constant 0 : index
    %362 = vector.load %arg5[%c0_117, %c0_118] : memref<128x128xf32, #tpu.memory_space<vmem>>, vector<128x128xf32>
    %cst_119 = arith.constant dense<0.000000e+00> : vector<8x128xf32>
    %363 = tpu.matmul %361, %362, %cst_119 {dimension_numbers = #tpu.dot_dimension_numbers<[1], [0], [0], [1], [0, 0, 1, 1], [], []>} : vector<8x128xf32>, vector<128x128xf32>, vector<8x128xf32> -> vector<8x128xf32>
    %c0_120 = arith.constant 0 : index
    %c0_121 = arith.constant 0 : index
    %364 = vector.load %arg6[%c0_120, %c0_121] : memref<1x128xf32, #tpu.memory_space<vmem>>, vector<1x128xf32>
    %365 = vector.broadcast %364 : vector<1x128xf32> to vector<8x128xf32>
    %366 = arith.addf %363, %365 : vector<8x128xf32>
    %367 = arith.index_cast %c4_i32 : i32 to index
    %c0_122 = arith.constant 0 : index
    %c0_123 = arith.constant 0 : index
    %368 = vector.load %arg7[%367, %c0_122, %c0_123] : memref<8x8x128xf32, #tpu.memory_space<vmem>>, vector<1x8x128xf32>
    %369 = vector.shape_cast %368 : vector<1x8x128xf32> to vector<8x128xf32>
    %370 = vector.shape_cast %366 : vector<8x128xf32> to vector<1x8x128xf32>
    tpu.vector_store %arg7[%367, %c0_122, %c0_123], %370 {strides = array<i32>} : memref<8x8x128xf32, #tpu.memory_space<vmem>>, vector<1x8x128xf32>,
    %c5_i32 = arith.constant 5 : i32
    %371 = arith.index_cast %c5_i32 : i32 to index
    %c0_124 = arith.constant 0 : index
    %c0_125 = arith.constant 0 : index
    %372 = vector.load %arg0[%371, %c0_124, %c0_125] : memref<8x8x128xf32, #tpu.memory_space<vmem>>, vector<1x8x128xf32>
    %373 = vector.shape_cast %372 : vector<1x8x128xf32> to vector<8x128xf32>
    %374 = tpu.concatenate %373, %330 in 1 : vector<8x128xf32>, vector<8x128xf32> -> vector<8x256xf32>
    %c0_126 = arith.constant 0 : index
    %c0_127 = arith.constant 0 : index
    %375 = vector.load %arg1[%c0_126, %c0_127] : memref<256x512xf32, #tpu.memory_space<vmem>>, vector<256x512xf32>
    %cst_128 = arith.constant dense<0.000000e+00> : vector<8x512xf32>
    %376 = tpu.matmul %374, %375, %cst_128 {dimension_numbers = #tpu.dot_dimension_numbers<[1], [0], [0], [1], [0, 0, 1, 1], [], []>} : vector<8x256xf32>, vector<256x512xf32>, vector<8x512xf32> -> vector<8x512xf32>
    %c0_129 = arith.constant 0 : index
    %c0_130 = arith.constant 0 : index
    %377 = vector.load %arg2[%c0_129, %c0_130] : memref<1x512xf32, #tpu.memory_space<vmem>>, vector<1x512xf32>
    %378 = vector.broadcast %377 : vector<1x512xf32> to vector<8x512xf32>
    %379 = arith.addf %376, %378 : vector<8x512xf32>
    %380 = vector.extract_strided_slice %379 {offsets = [0, 0], sizes = [8, 128], strides = [1, 1]} : vector<8x512xf32> to vector<8x128xf32>
    %381 = arith.negf %380 : vector<8x128xf32>
    %382 = math.exp %381 : vector<8x128xf32>
    %cst_131 = arith.constant 1.000000e+00 : f32
    %383 = vector.broadcast %cst_131 : f32 to vector<8x128xf32>
    %384 = arith.addf %383, %382 : vector<8x128xf32>
    %385 = arith.divf %383, %384 : vector<8x128xf32>
    %386 = vector.extract_strided_slice %379 {offsets = [0, 128], sizes = [8, 128], strides = [1, 1]} : vector<8x512xf32> to vector<8x128xf32>
    %387 = arith.negf %386 : vector<8x128xf32>
    %388 = math.exp %387 : vector<8x128xf32>
    %cst_132 = arith.constant 1.000000e+00 : f32
    %389 = vector.broadcast %cst_132 : f32 to vector<8x128xf32>
    %390 = arith.addf %389, %388 : vector<8x128xf32>
    %391 = arith.divf %389, %390 : vector<8x128xf32>
    %392 = vector.extract_strided_slice %379 {offsets = [0, 256], sizes = [8, 128], strides = [1, 1]} : vector<8x512xf32> to vector<8x128xf32>
    %393 = math.tanh %392 : vector<8x128xf32>
    %394 = vector.extract_strided_slice %379 {offsets = [0, 384], sizes = [8, 128], strides = [1, 1]} : vector<8x512xf32> to vector<8x128xf32>
    %395 = arith.negf %394 : vector<8x128xf32>
    %396 = math.exp %395 : vector<8x128xf32>
    %cst_133 = arith.constant 1.000000e+00 : f32
    %397 = vector.broadcast %cst_133 : f32 to vector<8x128xf32>
    %398 = arith.addf %397, %396 : vector<8x128xf32>
    %399 = arith.divf %397, %398 : vector<8x128xf32>
    %400 = arith.mulf %391, %328 : vector<8x128xf32>
    %401 = arith.mulf %385, %393 : vector<8x128xf32>
    %402 = arith.addf %400, %401 : vector<8x128xf32>
    %403 = math.tanh %402 : vector<8x128xf32>
    %404 = arith.mulf %399, %403 : vector<8x128xf32>
    %405 = tpu.concatenate %404, %361 in 1 : vector<8x128xf32>, vector<8x128xf32> -> vector<8x256xf32>
    %c0_134 = arith.constant 0 : index
    %c0_135 = arith.constant 0 : index
    %406 = vector.load %arg3[%c0_134, %c0_135] : memref<256x512xf32, #tpu.memory_space<vmem>>, vector<256x512xf32>
    %cst_136 = arith.constant dense<0.000000e+00> : vector<8x512xf32>
    %407 = tpu.matmul %405, %406, %cst_136 {dimension_numbers = #tpu.dot_dimension_numbers<[1], [0], [0], [1], [0, 0, 1, 1], [], []>} : vector<8x256xf32>, vector<256x512xf32>, vector<8x512xf32> -> vector<8x512xf32>
    %c0_137 = arith.constant 0 : index
    %c0_138 = arith.constant 0 : index
    %408 = vector.load %arg4[%c0_137, %c0_138] : memref<1x512xf32, #tpu.memory_space<vmem>>, vector<1x512xf32>
    %409 = vector.broadcast %408 : vector<1x512xf32> to vector<8x512xf32>
    %410 = arith.addf %407, %409 : vector<8x512xf32>
    %411 = vector.extract_strided_slice %410 {offsets = [0, 0], sizes = [8, 128], strides = [1, 1]} : vector<8x512xf32> to vector<8x128xf32>
    %412 = arith.negf %411 : vector<8x128xf32>
    %413 = math.exp %412 : vector<8x128xf32>
    %cst_139 = arith.constant 1.000000e+00 : f32
    %414 = vector.broadcast %cst_139 : f32 to vector<8x128xf32>
    %415 = arith.addf %414, %413 : vector<8x128xf32>
    %416 = arith.divf %414, %415 : vector<8x128xf32>
    %417 = vector.extract_strided_slice %410 {offsets = [0, 128], sizes = [8, 128], strides = [1, 1]} : vector<8x512xf32> to vector<8x128xf32>
    %418 = arith.negf %417 : vector<8x128xf32>
    %419 = math.exp %418 : vector<8x128xf32>
    %cst_140 = arith.constant 1.000000e+00 : f32
    %420 = vector.broadcast %cst_140 : f32 to vector<8x128xf32>
    %421 = arith.addf %420, %419 : vector<8x128xf32>
    %422 = arith.divf %420, %421 : vector<8x128xf32>
    %423 = vector.extract_strided_slice %410 {offsets = [0, 256], sizes = [8, 128], strides = [1, 1]} : vector<8x512xf32> to vector<8x128xf32>
    %424 = math.tanh %423 : vector<8x128xf32>
    %425 = vector.extract_strided_slice %410 {offsets = [0, 384], sizes = [8, 128], strides = [1, 1]} : vector<8x512xf32> to vector<8x128xf32>
    %426 = arith.negf %425 : vector<8x128xf32>
    %427 = math.exp %426 : vector<8x128xf32>
    %cst_141 = arith.constant 1.000000e+00 : f32
    %428 = vector.broadcast %cst_141 : f32 to vector<8x128xf32>
    %429 = arith.addf %428, %427 : vector<8x128xf32>
    %430 = arith.divf %428, %429 : vector<8x128xf32>
    %431 = arith.mulf %422, %359 : vector<8x128xf32>
    %432 = arith.mulf %416, %424 : vector<8x128xf32>
    %433 = arith.addf %431, %432 : vector<8x128xf32>
    %434 = math.tanh %433 : vector<8x128xf32>
    %435 = arith.mulf %430, %434 : vector<8x128xf32>
    %c0_142 = arith.constant 0 : index
    %c0_143 = arith.constant 0 : index
    %436 = vector.load %arg5[%c0_142, %c0_143] : memref<128x128xf32, #tpu.memory_space<vmem>>, vector<128x128xf32>
    %cst_144 = arith.constant dense<0.000000e+00> : vector<8x128xf32>
    %437 = tpu.matmul %435, %436, %cst_144 {dimension_numbers = #tpu.dot_dimension_numbers<[1], [0], [0], [1], [0, 0, 1, 1], [], []>} : vector<8x128xf32>, vector<128x128xf32>, vector<8x128xf32> -> vector<8x128xf32>
    %c0_145 = arith.constant 0 : index
    %c0_146 = arith.constant 0 : index
    %438 = vector.load %arg6[%c0_145, %c0_146] : memref<1x128xf32, #tpu.memory_space<vmem>>, vector<1x128xf32>
    %439 = vector.broadcast %438 : vector<1x128xf32> to vector<8x128xf32>
    %440 = arith.addf %437, %439 : vector<8x128xf32>
    %441 = arith.index_cast %c5_i32 : i32 to index
    %c0_147 = arith.constant 0 : index
    %c0_148 = arith.constant 0 : index
    %442 = vector.load %arg7[%441, %c0_147, %c0_148] : memref<8x8x128xf32, #tpu.memory_space<vmem>>, vector<1x8x128xf32>
    %443 = vector.shape_cast %442 : vector<1x8x128xf32> to vector<8x128xf32>
    %444 = vector.shape_cast %440 : vector<8x128xf32> to vector<1x8x128xf32>
    tpu.vector_store %arg7[%441, %c0_147, %c0_148], %444 {strides = array<i32>} : memref<8x8x128xf32, #tpu.memory_space<vmem>>, vector<1x8x128xf32>,
    %c6_i32 = arith.constant 6 : i32
    %445 = arith.index_cast %c6_i32 : i32 to index
    %c0_149 = arith.constant 0 : index
    %c0_150 = arith.constant 0 : index
    %446 = vector.load %arg0[%445, %c0_149, %c0_150] : memref<8x8x128xf32, #tpu.memory_space<vmem>>, vector<1x8x128xf32>
    %447 = vector.shape_cast %446 : vector<1x8x128xf32> to vector<8x128xf32>
    %448 = tpu.concatenate %447, %404 in 1 : vector<8x128xf32>, vector<8x128xf32> -> vector<8x256xf32>
    %c0_151 = arith.constant 0 : index
    %c0_152 = arith.constant 0 : index
    %449 = vector.load %arg1[%c0_151, %c0_152] : memref<256x512xf32, #tpu.memory_space<vmem>>, vector<256x512xf32>
    %cst_153 = arith.constant dense<0.000000e+00> : vector<8x512xf32>
    %450 = tpu.matmul %448, %449, %cst_153 {dimension_numbers = #tpu.dot_dimension_numbers<[1], [0], [0], [1], [0, 0, 1, 1], [], []>} : vector<8x256xf32>, vector<256x512xf32>, vector<8x512xf32> -> vector<8x512xf32>
    %c0_154 = arith.constant 0 : index
    %c0_155 = arith.constant 0 : index
    %451 = vector.load %arg2[%c0_154, %c0_155] : memref<1x512xf32, #tpu.memory_space<vmem>>, vector<1x512xf32>
    %452 = vector.broadcast %451 : vector<1x512xf32> to vector<8x512xf32>
    %453 = arith.addf %450, %452 : vector<8x512xf32>
    %454 = vector.extract_strided_slice %453 {offsets = [0, 0], sizes = [8, 128], strides = [1, 1]} : vector<8x512xf32> to vector<8x128xf32>
    %455 = arith.negf %454 : vector<8x128xf32>
    %456 = math.exp %455 : vector<8x128xf32>
    %cst_156 = arith.constant 1.000000e+00 : f32
    %457 = vector.broadcast %cst_156 : f32 to vector<8x128xf32>
    %458 = arith.addf %457, %456 : vector<8x128xf32>
    %459 = arith.divf %457, %458 : vector<8x128xf32>
    %460 = vector.extract_strided_slice %453 {offsets = [0, 128], sizes = [8, 128], strides = [1, 1]} : vector<8x512xf32> to vector<8x128xf32>
    %461 = arith.negf %460 : vector<8x128xf32>
    %462 = math.exp %461 : vector<8x128xf32>
    %cst_157 = arith.constant 1.000000e+00 : f32
    %463 = vector.broadcast %cst_157 : f32 to vector<8x128xf32>
    %464 = arith.addf %463, %462 : vector<8x128xf32>
    %465 = arith.divf %463, %464 : vector<8x128xf32>
    %466 = vector.extract_strided_slice %453 {offsets = [0, 256], sizes = [8, 128], strides = [1, 1]} : vector<8x512xf32> to vector<8x128xf32>
    %467 = math.tanh %466 : vector<8x128xf32>
    %468 = vector.extract_strided_slice %453 {offsets = [0, 384], sizes = [8, 128], strides = [1, 1]} : vector<8x512xf32> to vector<8x128xf32>
    %469 = arith.negf %468 : vector<8x128xf32>
    %470 = math.exp %469 : vector<8x128xf32>
    %cst_158 = arith.constant 1.000000e+00 : f32
    %471 = vector.broadcast %cst_158 : f32 to vector<8x128xf32>
    %472 = arith.addf %471, %470 : vector<8x128xf32>
    %473 = arith.divf %471, %472 : vector<8x128xf32>
    %474 = arith.mulf %465, %402 : vector<8x128xf32>
    %475 = arith.mulf %459, %467 : vector<8x128xf32>
    %476 = arith.addf %474, %475 : vector<8x128xf32>
    %477 = math.tanh %476 : vector<8x128xf32>
    %478 = arith.mulf %473, %477 : vector<8x128xf32>
    %479 = tpu.concatenate %478, %435 in 1 : vector<8x128xf32>, vector<8x128xf32> -> vector<8x256xf32>
    %c0_159 = arith.constant 0 : index
    %c0_160 = arith.constant 0 : index
    %480 = vector.load %arg3[%c0_159, %c0_160] : memref<256x512xf32, #tpu.memory_space<vmem>>, vector<256x512xf32>
    %cst_161 = arith.constant dense<0.000000e+00> : vector<8x512xf32>
    %481 = tpu.matmul %479, %480, %cst_161 {dimension_numbers = #tpu.dot_dimension_numbers<[1], [0], [0], [1], [0, 0, 1, 1], [], []>} : vector<8x256xf32>, vector<256x512xf32>, vector<8x512xf32> -> vector<8x512xf32>
    %c0_162 = arith.constant 0 : index
    %c0_163 = arith.constant 0 : index
    %482 = vector.load %arg4[%c0_162, %c0_163] : memref<1x512xf32, #tpu.memory_space<vmem>>, vector<1x512xf32>
    %483 = vector.broadcast %482 : vector<1x512xf32> to vector<8x512xf32>
    %484 = arith.addf %481, %483 : vector<8x512xf32>
    %485 = vector.extract_strided_slice %484 {offsets = [0, 0], sizes = [8, 128], strides = [1, 1]} : vector<8x512xf32> to vector<8x128xf32>
    %486 = arith.negf %485 : vector<8x128xf32>
    %487 = math.exp %486 : vector<8x128xf32>
    %cst_164 = arith.constant 1.000000e+00 : f32
    %488 = vector.broadcast %cst_164 : f32 to vector<8x128xf32>
    %489 = arith.addf %488, %487 : vector<8x128xf32>
    %490 = arith.divf %488, %489 : vector<8x128xf32>
    %491 = vector.extract_strided_slice %484 {offsets = [0, 128], sizes = [8, 128], strides = [1, 1]} : vector<8x512xf32> to vector<8x128xf32>
    %492 = arith.negf %491 : vector<8x128xf32>
    %493 = math.exp %492 : vector<8x128xf32>
    %cst_165 = arith.constant 1.000000e+00 : f32
    %494 = vector.broadcast %cst_165 : f32 to vector<8x128xf32>
    %495 = arith.addf %494, %493 : vector<8x128xf32>
    %496 = arith.divf %494, %495 : vector<8x128xf32>
    %497 = vector.extract_strided_slice %484 {offsets = [0, 256], sizes = [8, 128], strides = [1, 1]} : vector<8x512xf32> to vector<8x128xf32>
    %498 = math.tanh %497 : vector<8x128xf32>
    %499 = vector.extract_strided_slice %484 {offsets = [0, 384], sizes = [8, 128], strides = [1, 1]} : vector<8x512xf32> to vector<8x128xf32>
    %500 = arith.negf %499 : vector<8x128xf32>
    %501 = math.exp %500 : vector<8x128xf32>
    %cst_166 = arith.constant 1.000000e+00 : f32
    %502 = vector.broadcast %cst_166 : f32 to vector<8x128xf32>
    %503 = arith.addf %502, %501 : vector<8x128xf32>
    %504 = arith.divf %502, %503 : vector<8x128xf32>
    %505 = arith.mulf %496, %433 : vector<8x128xf32>
    %506 = arith.mulf %490, %498 : vector<8x128xf32>
    %507 = arith.addf %505, %506 : vector<8x128xf32>
    %508 = math.tanh %507 : vector<8x128xf32>
    %509 = arith.mulf %504, %508 : vector<8x128xf32>
    %c0_167 = arith.constant 0 : index
    %c0_168 = arith.constant 0 : index
    %510 = vector.load %arg5[%c0_167, %c0_168] : memref<128x128xf32, #tpu.memory_space<vmem>>, vector<128x128xf32>
    %cst_169 = arith.constant dense<0.000000e+00> : vector<8x128xf32>
    %511 = tpu.matmul %509, %510, %cst_169 {dimension_numbers = #tpu.dot_dimension_numbers<[1], [0], [0], [1], [0, 0, 1, 1], [], []>} : vector<8x128xf32>, vector<128x128xf32>, vector<8x128xf32> -> vector<8x128xf32>
    %c0_170 = arith.constant 0 : index
    %c0_171 = arith.constant 0 : index
    %512 = vector.load %arg6[%c0_170, %c0_171] : memref<1x128xf32, #tpu.memory_space<vmem>>, vector<1x128xf32>
    %513 = vector.broadcast %512 : vector<1x128xf32> to vector<8x128xf32>
    %514 = arith.addf %511, %513 : vector<8x128xf32>
    %515 = arith.index_cast %c6_i32 : i32 to index
    %c0_172 = arith.constant 0 : index
    %c0_173 = arith.constant 0 : index
    %516 = vector.load %arg7[%515, %c0_172, %c0_173] : memref<8x8x128xf32, #tpu.memory_space<vmem>>, vector<1x8x128xf32>
    %517 = vector.shape_cast %516 : vector<1x8x128xf32> to vector<8x128xf32>
    %518 = vector.shape_cast %514 : vector<8x128xf32> to vector<1x8x128xf32>
    tpu.vector_store %arg7[%515, %c0_172, %c0_173], %518 {strides = array<i32>} : memref<8x8x128xf32, #tpu.memory_space<vmem>>, vector<1x8x128xf32>,
    %c7_i32 = arith.constant 7 : i32
    %519 = arith.index_cast %c7_i32 : i32 to index
    %c0_174 = arith.constant 0 : index
    %c0_175 = arith.constant 0 : index
    %520 = vector.load %arg0[%519, %c0_174, %c0_175] : memref<8x8x128xf32, #tpu.memory_space<vmem>>, vector<1x8x128xf32>
    %521 = vector.shape_cast %520 : vector<1x8x128xf32> to vector<8x128xf32>
    %522 = tpu.concatenate %521, %478 in 1 : vector<8x128xf32>, vector<8x128xf32> -> vector<8x256xf32>
    %c0_176 = arith.constant 0 : index
    %c0_177 = arith.constant 0 : index
    %523 = vector.load %arg1[%c0_176, %c0_177] : memref<256x512xf32, #tpu.memory_space<vmem>>, vector<256x512xf32>
    %cst_178 = arith.constant dense<0.000000e+00> : vector<8x512xf32>
    %524 = tpu.matmul %522, %523, %cst_178 {dimension_numbers = #tpu.dot_dimension_numbers<[1], [0], [0], [1], [0, 0, 1, 1], [], []>} : vector<8x256xf32>, vector<256x512xf32>, vector<8x512xf32> -> vector<8x512xf32>
    %c0_179 = arith.constant 0 : index
    %c0_180 = arith.constant 0 : index
    %525 = vector.load %arg2[%c0_179, %c0_180] : memref<1x512xf32, #tpu.memory_space<vmem>>, vector<1x512xf32>
    %526 = vector.broadcast %525 : vector<1x512xf32> to vector<8x512xf32>
    %527 = arith.addf %524, %526 : vector<8x512xf32>
    %528 = vector.extract_strided_slice %527 {offsets = [0, 0], sizes = [8, 128], strides = [1, 1]} : vector<8x512xf32> to vector<8x128xf32>
    %529 = arith.negf %528 : vector<8x128xf32>
    %530 = math.exp %529 : vector<8x128xf32>
    %cst_181 = arith.constant 1.000000e+00 : f32
    %531 = vector.broadcast %cst_181 : f32 to vector<8x128xf32>
    %532 = arith.addf %531, %530 : vector<8x128xf32>
    %533 = arith.divf %531, %532 : vector<8x128xf32>
    %534 = vector.extract_strided_slice %527 {offsets = [0, 128], sizes = [8, 128], strides = [1, 1]} : vector<8x512xf32> to vector<8x128xf32>
    %535 = arith.negf %534 : vector<8x128xf32>
    %536 = math.exp %535 : vector<8x128xf32>
    %cst_182 = arith.constant 1.000000e+00 : f32
    %537 = vector.broadcast %cst_182 : f32 to vector<8x128xf32>
    %538 = arith.addf %537, %536 : vector<8x128xf32>
    %539 = arith.divf %537, %538 : vector<8x128xf32>
    %540 = vector.extract_strided_slice %527 {offsets = [0, 256], sizes = [8, 128], strides = [1, 1]} : vector<8x512xf32> to vector<8x128xf32>
    %541 = math.tanh %540 : vector<8x128xf32>
    %542 = vector.extract_strided_slice %527 {offsets = [0, 384], sizes = [8, 128], strides = [1, 1]} : vector<8x512xf32> to vector<8x128xf32>
    %543 = arith.negf %542 : vector<8x128xf32>
    %544 = math.exp %543 : vector<8x128xf32>
    %cst_183 = arith.constant 1.000000e+00 : f32
    %545 = vector.broadcast %cst_183 : f32 to vector<8x128xf32>
    %546 = arith.addf %545, %544 : vector<8x128xf32>
    %547 = arith.divf %545, %546 : vector<8x128xf32>
    %548 = arith.mulf %539, %476 : vector<8x128xf32>
    %549 = arith.mulf %533, %541 : vector<8x128xf32>
    %550 = arith.addf %548, %549 : vector<8x128xf32>
    %551 = math.tanh %550 : vector<8x128xf32>
    %552 = arith.mulf %547, %551 : vector<8x128xf32>
    %553 = tpu.concatenate %552, %509 in 1 : vector<8x128xf32>, vector<8x128xf32> -> vector<8x256xf32>
    %c0_184 = arith.constant 0 : index
    %c0_185 = arith.constant 0 : index
    %554 = vector.load %arg3[%c0_184, %c0_185] : memref<256x512xf32, #tpu.memory_space<vmem>>, vector<256x512xf32>
    %cst_186 = arith.constant dense<0.000000e+00> : vector<8x512xf32>
    %555 = tpu.matmul %553, %554, %cst_186 {dimension_numbers = #tpu.dot_dimension_numbers<[1], [0], [0], [1], [0, 0, 1, 1], [], []>} : vector<8x256xf32>, vector<256x512xf32>, vector<8x512xf32> -> vector<8x512xf32>
    %c0_187 = arith.constant 0 : index
    %c0_188 = arith.constant 0 : index
    %556 = vector.load %arg4[%c0_187, %c0_188] : memref<1x512xf32, #tpu.memory_space<vmem>>, vector<1x512xf32>
    %557 = vector.broadcast %556 : vector<1x512xf32> to vector<8x512xf32>
    %558 = arith.addf %555, %557 : vector<8x512xf32>
    %559 = vector.extract_strided_slice %558 {offsets = [0, 0], sizes = [8, 128], strides = [1, 1]} : vector<8x512xf32> to vector<8x128xf32>
    %560 = arith.negf %559 : vector<8x128xf32>
    %561 = math.exp %560 : vector<8x128xf32>
    %cst_189 = arith.constant 1.000000e+00 : f32
    %562 = vector.broadcast %cst_189 : f32 to vector<8x128xf32>
    %563 = arith.addf %562, %561 : vector<8x128xf32>
    %564 = arith.divf %562, %563 : vector<8x128xf32>
    %565 = vector.extract_strided_slice %558 {offsets = [0, 128], sizes = [8, 128], strides = [1, 1]} : vector<8x512xf32> to vector<8x128xf32>
    %566 = arith.negf %565 : vector<8x128xf32>
    %567 = math.exp %566 : vector<8x128xf32>
    %cst_190 = arith.constant 1.000000e+00 : f32
    %568 = vector.broadcast %cst_190 : f32 to vector<8x128xf32>
    %569 = arith.addf %568, %567 : vector<8x128xf32>
    %570 = arith.divf %568, %569 : vector<8x128xf32>
    %571 = vector.extract_strided_slice %558 {offsets = [0, 256], sizes = [8, 128], strides = [1, 1]} : vector<8x512xf32> to vector<8x128xf32>
    %572 = math.tanh %571 : vector<8x128xf32>
    %573 = vector.extract_strided_slice %558 {offsets = [0, 384], sizes = [8, 128], strides = [1, 1]} : vector<8x512xf32> to vector<8x128xf32>
    %574 = arith.negf %573 : vector<8x128xf32>
    %575 = math.exp %574 : vector<8x128xf32>
    %cst_191 = arith.constant 1.000000e+00 : f32
    %576 = vector.broadcast %cst_191 : f32 to vector<8x128xf32>
    %577 = arith.addf %576, %575 : vector<8x128xf32>
    %578 = arith.divf %576, %577 : vector<8x128xf32>
    %579 = arith.mulf %570, %507 : vector<8x128xf32>
    %580 = arith.mulf %564, %572 : vector<8x128xf32>
    %581 = arith.addf %579, %580 : vector<8x128xf32>
    %582 = math.tanh %581 : vector<8x128xf32>
    %583 = arith.mulf %578, %582 : vector<8x128xf32>
    %c0_192 = arith.constant 0 : index
    %c0_193 = arith.constant 0 : index
    %584 = vector.load %arg5[%c0_192, %c0_193] : memref<128x128xf32, #tpu.memory_space<vmem>>, vector<128x128xf32>
    %cst_194 = arith.constant dense<0.000000e+00> : vector<8x128xf32>
    %585 = tpu.matmul %583, %584, %cst_194 {dimension_numbers = #tpu.dot_dimension_numbers<[1], [0], [0], [1], [0, 0, 1, 1], [], []>} : vector<8x128xf32>, vector<128x128xf32>, vector<8x128xf32> -> vector<8x128xf32>
    %c0_195 = arith.constant 0 : index
    %c0_196 = arith.constant 0 : index
    %586 = vector.load %arg6[%c0_195, %c0_196] : memref<1x128xf32, #tpu.memory_space<vmem>>, vector<1x128xf32>
    %587 = vector.broadcast %586 : vector<1x128xf32> to vector<8x128xf32>
    %588 = arith.addf %585, %587 : vector<8x128xf32>
    %589 = arith.index_cast %c7_i32 : i32 to index
    %c0_197 = arith.constant 0 : index
    %c0_198 = arith.constant 0 : index
    %590 = vector.load %arg7[%589, %c0_197, %c0_198] : memref<8x8x128xf32, #tpu.memory_space<vmem>>, vector<1x8x128xf32>
    %591 = vector.shape_cast %590 : vector<1x8x128xf32> to vector<8x128xf32>
    %592 = vector.shape_cast %588 : vector<8x128xf32> to vector<1x8x128xf32>
    tpu.vector_store %arg7[%589, %c0_197, %c0_198], %592 {strides = array<i32>} : memref<8x8x128xf32, #tpu.memory_space<vmem>>, vector<1x8x128xf32>,
    %c8_i32 = arith.constant 8 : i32
    return
  }
}

</mosaic_0001>

<llo_original>
// kernel: decoder_forward.1
$region0: #{decoder_forward.1}
  #allocation0 [shape = 'u32[]', space=smem, size = 0x4, offset = 0x4, fixed_abs, tag = 'smem constant byte address 0x4 - core index']
  #allocation1 [shape = 'u32[72,128]{1,0:T(1,128)}', space=vmem, size = 0x9000, scoped, tag = 'internal scratch']
  %s0 = inlined_call_operand.vmem [shape: f32[8,8,128], index: 0, kind: input, shape index: {}]
  %s1 = inlined_call_operand.hbm [shape: f32[256,512], index: 1, kind: input, shape index: {}]
  %s2 = inlined_call_operand.vmem [shape: f32[1,512], index: 2, kind: input, shape index: {}]
  %s3 = inlined_call_operand.hbm [shape: f32[256,512], index: 3, kind: input, shape index: {}]
  %s4 = inlined_call_operand.vmem [shape: f32[1,512], index: 4, kind: input, shape index: {}]
  %s5 = inlined_call_operand.vmem [shape: f32[128,128], index: 5, kind: input, shape index: {}]
  %s6 = inlined_call_operand.vmem [shape: f32[1,128], index: 6, kind: input, shape index: {}]
  %s7 = inlined_call_operand.vmem [shape: f32[8,8,128], index: 7, kind: output, shape index: {}]
  %s8 = sld [smem:[#allocation0]]
  $region46: #{decoder_forward.1} parent=0
    _
  %s10 = ssub.s32 1, %s8
  %s11 = scalar_select 0, %s10, %s8
  $region1: #{decoder_forward.1} parent=0
    #allocation2 [shape = 'u8[524288]{0}', space=vmem, size = 0x80000, scoped, tag = 'input window, operand 1, single buffered']
    #allocation3 [shape = 's32[1]{0}', space=sflag, size = 0x4, scoped, tag = 'scoped memory for decoder_forward.1']
    #allocation4 [shape = 'u8[524288]{0}', space=vmem, size = 0x80000, scoped, tag = 'input window, operand 3, single buffered']
    #allocation5 [shape = 's32[1]{0}', space=sflag, size = 0x4, scoped, tag = 'scoped memory for decoder_forward.1']
    %12 = vsyncpa [#allocation3], 0
    %13 = vsyncpa [#allocation5], 0
    // Predicated region
    $region2: #{decoder_forward.1} parent=1 // pred_check
      _
    $region3: #{decoder_forward.1} parent=1 // pred_check_branch
      %15 = sbr.rel (0) target = $region5
    $region4: #{decoder_forward.1} parent=1 // pred_region
      _
    $region5: #{decoder_forward.1} parent=1 // pred_fallthru
      _
    // Predicated region
    $region6: #{decoder_forward.1} parent=1 // pred_check
      _
    $region7: #{decoder_forward.1} parent=1 // pred_check_branch
      %17 = sbr.rel (0) target = $region9
    $region8: #{decoder_forward.1} parent=1 // pred_region
      %19 = vsyncadd [#allocation3], 0
      %s20 = sshll.u32 %s1, 4
      %s21 = int_to_ptr.hbm [resolvable:$true] %s20
      %s22 = sshll.u32 [#allocation2], 4
      %s23 = int_to_ptr.vmem [resolvable:$true] %s22
      %28 = dma.hbm_to_vmem [thread:$0]  %s21, 16384, %s23, [#allocation3], 512, 512, 32
    $region9: #{decoder_forward.1} parent=1 // pred_fallthru
      _
    // Predicated region
    $region10: #{decoder_forward.1} parent=1 // pred_check
      _
    $region11: #{decoder_forward.1} parent=1 // pred_check_branch
      %30 = sbr.rel (0) target = $region13
    $region12: #{decoder_forward.1} parent=1 // pred_region
      _
    $region13: #{decoder_forward.1} parent=1 // pred_fallthru
      _
    // Predicated region
    $region14: #{decoder_forward.1} parent=1 // pred_check
      _
    $region15: #{decoder_forward.1} parent=1 // pred_check_branch
      %32 = sbr.rel (0) target = $region17
    $region16: #{decoder_forward.1} parent=1 // pred_region
      %34 = vsyncadd [#allocation5], 0
      %s35 = sshll.u32 %s3, 4
      %s36 = int_to_ptr.hbm [resolvable:$true] %s35
      %s37 = sshll.u32 [#allocation4], 4
      %s38 = int_to_ptr.vmem [resolvable:$true] %s37
      %43 = dma.hbm_to_vmem [thread:$0]  %s36, 16384, %s38, [#allocation5], 512, 512, 32
    $region17: #{decoder_forward.1} parent=1 // pred_fallthru
      _
    // Predicated region
    $region18: #{decoder_forward.1} parent=1 // pred_check
      _
    $region19: #{decoder_forward.1} parent=1 // pred_check_branch
      %45 = sbr.rel (0) target = $region21
    $region20: #{decoder_forward.1} parent=1 // pred_region
      _
    $region21: #{decoder_forward.1} parent=1 // pred_fallthru
      _
    // Predicated region
    $region22: #{decoder_forward.1} parent=1 // pred_check
      _
    $region23: #{decoder_forward.1} parent=1 // pred_check_branch
      %47 = sbr.rel (0) target = $region25
    $region24: #{decoder_forward.1} parent=1 // pred_region
      _
    $region25: #{decoder_forward.1} parent=1 // pred_fallthru
      _
    // Predicated region
    $region26: #{decoder_forward.1} parent=1 // pred_check
      _
    $region27: #{decoder_forward.1} parent=1 // pred_check_branch
      %49 = sbr.rel (0) target = $region29
    $region28: #{decoder_forward.1} parent=1 // pred_region
      _
    $region29: #{decoder_forward.1} parent=1 // pred_fallthru
      _
    // Predicated region
    $region30: #{decoder_forward.1} parent=1 // pred_check
      _
    $region31: #{decoder_forward.1} parent=1 // pred_check_branch
      %51 = sbr.rel (0) target = $region33
    $region32: #{decoder_forward.1} parent=1 // pred_region
      %53 = dma.done [#allocation3], 16384
    $region33: #{decoder_forward.1} parent=1 // pred_fallthru
      _
    // Predicated region
    $region34: #{decoder_forward.1} parent=1 // pred_check
      _
    $region35: #{decoder_forward.1} parent=1 // pred_check_branch
      %55 = sbr.rel (0) target = $region37
    $region36: #{decoder_forward.1} parent=1 // pred_region
      %57 = dma.done [#allocation5], 16384
    $region37: #{decoder_forward.1} parent=1 // pred_fallthru
      _
    %v58 = vld [vmem:[%s0] sm:$0xff]
    %v59 = vld [vmem:[#allocation2] sm:$0xff]
    %v60 = vld [vmem:[#allocation2 + $0x8] sm:$0xff]
    %v61 = vld [vmem:[#allocation2 + $0x10] sm:$0xff]
    %v62 = vld [vmem:[#allocation2 + $0x18] sm:$0xff]
    %v63 = vld [vmem:[#allocation2 + $0x20] sm:$0xff]
    %v64 = vld [vmem:[#allocation2 + $0x28] sm:$0xff]
    %v65 = vld [vmem:[#allocation2 + $0x30] sm:$0xff]
    %v66 = vld [vmem:[#allocation2 + $0x38] sm:$0xff]
    %v67 = vld [vmem:[#allocation2 + $0x40] sm:$0xff]
    %v68 = vld [vmem:[#allocation2 + $0x48] sm:$0xff]
    %v69 = vld [vmem:[#allocation2 + $0x50] sm:$0xff]
    %v70 = vld [vmem:[#allocation2 + $0x58] sm:$0xff]
    %v71 = vld [vmem:[#allocation2 + $0x60] sm:$0xff]
    %v72 = vld [vmem:[#allocation2 + $0x68] sm:$0xff]
    %v73 = vld [vmem:[#allocation2 + $0x70] sm:$0xff]
    %v74 = vld [vmem:[#allocation2 + $0x78] sm:$0xff]
    %v75 = vld [vmem:[#allocation2 + $0x80] sm:$0xff]
    %v76 = vld [vmem:[#allocation2 + $0x88] sm:$0xff]
    %v77 = vld [vmem:[#allocation2 + $0x90] sm:$0xff]
    %v78 = vld [vmem:[#allocation2 + $0x98] sm:$0xff]
    %v79 = vld [vmem:[#allocation2 + $0xa0] sm:$0xff]
    %v80 = vld [vmem:[#allocation2 + $0xa8] sm:$0xff]
    %v81 = vld [vmem:[#allocation2 + $0xb0] sm:$0xff]
    %v82 = vld [vmem:[#allocation2 + $0xb8] sm:$0xff]
    %v83 = vld [vmem:[#allocation2 + $0xc0] sm:$0xff]
    %v84 = vld [vmem:[#allocation2 + $0xc8] sm:$0xff]
    %v85 = vld [vmem:[#allocation2 + $0xd0] sm:$0xff]
    %v86 = vld [vmem:[#allocation2 + $0xd8] sm:$0xff]
    %v87 = vld [vmem:[#allocation2 + $0xe0] sm:$0xff]
    %v88 = vld [vmem:[#allocation2 + $0xe8] sm:$0xff]
    %v89 = vld [vmem:[#allocation2 + $0xf0] sm:$0xff]
    %v90 = vld [vmem:[#allocation2 + $0xf8] sm:$0xff]
    %v91 = vld [vmem:[#allocation2 + $0x100] sm:$0xff]
    %v92 = vld [vmem:[#allocation2 + $0x108] sm:$0xff]
    %v93 = vld [vmem:[#allocation2 + $0x110] sm:$0xff]
    %v94 = vld [vmem:[#allocation2 + $0x118] sm:$0xff]
    %v95 = vld [vmem:[#allocation2 + $0x120] sm:$0xff]
    %v96 = vld [vmem:[#allocation2 + $0x128] sm:$0xff]
    %v97 = vld [vmem:[#allocation2 + $0x130] sm:$0xff]
    %v98 = vld [vmem:[#allocation2 + $0x138] sm:$0xff]
    %v99 = vld [vmem:[#allocation2 + $0x140] sm:$0xff]
    %v100 = vld [vmem:[#allocation2 + $0x148] sm:$0xff]
    %v101 = vld [vmem:[#allocation2 + $0x150] sm:$0xff]
    %v102 = vld [vmem:[#allocation2 + $0x158] sm:$0xff]
    %v103 = vld [vmem:[#allocation2 + $0x160] sm:$0xff]
    %v104 = vld [vmem:[#allocation2 + $0x168] sm:$0xff]
    %v105 = vld [vmem:[#allocation2 + $0x170] sm:$0xff]
    %v106 = vld [vmem:[#allocation2 + $0x178] sm:$0xff]
    %v107 = vld [vmem:[#allocation2 + $0x180] sm:$0xff]
    %v108 = vld [vmem:[#allocation2 + $0x188] sm:$0xff]
    %v109 = vld [vmem:[#allocation2 + $0x190] sm:$0xff]
    %v110 = vld [vmem:[#allocation2 + $0x198] sm:$0xff]
    %v111 = vld [vmem:[#allocation2 + $0x1a0] sm:$0xff]
    %v112 = vld [vmem:[#allocation2 + $0x1a8] sm:$0xff]
    %v113 = vld [vmem:[#allocation2 + $0x1b0] sm:$0xff]
    %v114 = vld [vmem:[#allocation2 + $0x1b8] sm:$0xff]
    %v115 = vld [vmem:[#allocation2 + $0x1c0] sm:$0xff]
    %v116 = vld [vmem:[#allocation2 + $0x1c8] sm:$0xff]
    %v117 = vld [vmem:[#allocation2 + $0x1d0] sm:$0xff]
    %v118 = vld [vmem:[#allocation2 + $0x1d8] sm:$0xff]
    %v119 = vld [vmem:[#allocation2 + $0x1e0] sm:$0xff]
    %v120 = vld [vmem:[#allocation2 + $0x1e8] sm:$0xff]
    %v121 = vld [vmem:[#allocation2 + $0x1f0] sm:$0xff]
    %v122 = vld [vmem:[#allocation2 + $0x1f8] sm:$0xff]
    %v123 = vld [vmem:[#allocation2 + $0x200] sm:$0xff]
    %v124 = vld [vmem:[#allocation2 + $0x208] sm:$0xff]
    %v125 = vld [vmem:[#allocation2 + $0x210] sm:$0xff]
    %v126 = vld [vmem:[#allocation2 + $0x218] sm:$0xff]
    %v127 = vld [vmem:[#allocation2 + $0x220] sm:$0xff]
    %v128 = vld [vmem:[#allocation2 + $0x228] sm:$0xff]
    %v129 = vld [vmem:[#allocation2 + $0x230] sm:$0xff]
    %v130 = vld [vmem:[#allocation2 + $0x238] sm:$0xff]
    %v131 = vld [vmem:[#allocation2 + $0x240] sm:$0xff]
    %v132 = vld [vmem:[#allocation2 + $0x248] sm:$0xff]
    %v133 = vld [vmem:[#allocation2 + $0x250] sm:$0xff]
    %v134 = vld [vmem:[#allocation2 + $0x258] sm:$0xff]
    %v135 = vld [vmem:[#allocation2 + $0x260] sm:$0xff]
    %v136 = vld [vmem:[#allocation2 + $0x268] sm:$0xff]
    %v137 = vld [vmem:[#allocation2 + $0x270] sm:$0xff]
    %v138 = vld [vmem:[#allocation2 + $0x278] sm:$0xff]
    %v139 = vld [vmem:[#allocation2 + $0x280] sm:$0xff]
    %v140 = vld [vmem:[#allocation2 + $0x288] sm:$0xff]
    %v141 = vld [vmem:[#allocation2 + $0x290] sm:$0xff]
    %v142 = vld [vmem:[#allocation2 + $0x298] sm:$0xff]
    %v143 = vld [vmem:[#allocation2 + $0x2a0] sm:$0xff]
    %v144 = vld [vmem:[#allocation2 + $0x2a8] sm:$0xff]
    %v145 = vld [vmem:[#allocation2 + $0x2b0] sm:$0xff]
    %v146 = vld [vmem:[#allocation2 + $0x2b8] sm:$0xff]
    %v147 = vld [vmem:[#allocation2 + $0x2c0] sm:$0xff]
    %v148 = vld [vmem:[#allocation2 + $0x2c8] sm:$0xff]
    %v149 = vld [vmem:[#allocation2 + $0x2d0] sm:$0xff]
    %v150 = vld [vmem:[#allocation2 + $0x2d8] sm:$0xff]
    %v151 = vld [vmem:[#allocation2 + $0x2e0] sm:$0xff]
    %v152 = vld [vmem:[#allocation2 + $0x2e8] sm:$0xff]
    %v153 = vld [vmem:[#allocation2 + $0x2f0] sm:$0xff]
    %v154 = vld [vmem:[#allocation2 + $0x2f8] sm:$0xff]
    %v155 = vld [vmem:[#allocation2 + $0x300] sm:$0xff]
    %v156 = vld [vmem:[#allocation2 + $0x308] sm:$0xff]
    %v157 = vld [vmem:[#allocation2 + $0x310] sm:$0xff]
    %v158 = vld [vmem:[#allocation2 + $0x318] sm:$0xff]
    %v159 = vld [vmem:[#allocation2 + $0x320] sm:$0xff]
    %v160 = vld [vmem:[#allocation2 + $0x328] sm:$0xff]
    %v161 = vld [vmem:[#allocation2 + $0x330] sm:$0xff]
    %v162 = vld [vmem:[#allocation2 + $0x338] sm:$0xff]
    %v163 = vld [vmem:[#allocation2 + $0x340] sm:$0xff]
    %v164 = vld [vmem:[#allocation2 + $0x348] sm:$0xff]
    %v165 = vld [vmem:[#allocation2 + $0x350] sm:$0xff]
    %v166 = vld [vmem:[#allocation2 + $0x358] sm:$0xff]
    %v167 = vld [vmem:[#allocation2 + $0x360] sm:$0xff]
    %v168 = vld [vmem:[#allocation2 + $0x368] sm:$0xff]
    %v169 = vld [vmem:[#allocation2 + $0x370] sm:$0xff]
    %v170 = vld [vmem:[#allocation2 + $0x378] sm:$0xff]
    %v171 = vld [vmem:[#allocation2 + $0x380] sm:$0xff]
    %v172 = vld [vmem:[#allocation2 + $0x388] sm:$0xff]
    %v173 = vld [vmem:[#allocation2 + $0x390] sm:$0xff]
    %v174 = vld [vmem:[#allocation2 + $0x398] sm:$0xff]
    %v175 = vld [vmem:[#allocation2 + $0x3a0] sm:$0xff]
    %v176 = vld [vmem:[#allocation2 + $0x3a8] sm:$0xff]
    %v177 = vld [vmem:[#allocation2 + $0x3b0] sm:$0xff]
    %v178 = vld [vmem:[#allocation2 + $0x3b8] sm:$0xff]
    %v179 = vld [vmem:[#allocation2 + $0x3c0] sm:$0xff]
    %v180 = vld [vmem:[#allocation2 + $0x3c8] sm:$0xff]
    %v181 = vld [vmem:[#allocation2 + $0x3d0] sm:$0xff]
    %v182 = vld [vmem:[#allocation2 + $0x3d8] sm:$0xff]
    %v183 = vld [vmem:[#allocation2 + $0x3e0] sm:$0xff]
    %v184 = vld [vmem:[#allocation2 + $0x3e8] sm:$0xff]
    %v185 = vld [vmem:[#allocation2 + $0x3f0] sm:$0xff]
    %v186 = vld [vmem:[#allocation2 + $0x3f8] sm:$0xff]
    %v187 = vld [vmem:[%s2] sm:$0xf]
    %v189 = vperm.slane %v187, 0
    %v190 = vperm.slane %v187, 1
    %v191 = vperm.slane %v187, 2
    %v192 = vperm.slane %v187, 3
    %197 = vmatpush.msra.mxu0 %v119
    %198 = vmatpush.msra.mxu0 %v115
    %199 = vmatpush.msra.mxu0 %v111
    %200 = vmatpush.msra.mxu0 %v107
    %201 = vmatpush.msra.mxu0 %v103
    %202 = vmatpush.msra.mxu0 %v99
    %203 = vmatpush.msra.mxu0 %v95
    %204 = vmatpush.msra.mxu0 %v91
    %205 = vmatpush.msra.mxu0 %v87
    %206 = vmatpush.msra.mxu0 %v83
    %207 = vmatpush.msra.mxu0 %v79
    %208 = vmatpush.msra.mxu0 %v75
    %209 = vmatpush.msra.mxu0 %v71
    %210 = vmatpush.msra.mxu0 %v67
    %211 = vmatpush.msra.mxu0 %v63
    %212 = vmatpush.msra.mxu0 %v59
    %213 = vmatmul.f32.gmra.mxu0 %v58
    %v214 = vpop.f32.mrf.mxu0
    %v215 = vadd.f32 %v189, %v214
    %216 = vdwg.mxu0
    %217 = vmatpush.msra.mxu0 %v183
    %218 = vmatpush.msra.mxu0 %v179
    %219 = vmatpush.msra.mxu0 %v175
    %220 = vmatpush.msra.mxu0 %v171
    %221 = vmatpush.msra.mxu0 %v167
    %222 = vmatpush.msra.mxu0 %v163
    %223 = vmatpush.msra.mxu0 %v159
    %224 = vmatpush.msra.mxu0 %v155
    %225 = vmatpush.msra.mxu0 %v151
    %226 = vmatpush.msra.mxu0 %v147
    %227 = vmatpush.msra.mxu0 %v143
    %228 = vmatpush.msra.mxu0 %v139
    %229 = vmatpush.msra.mxu0 %v135
    %230 = vmatpush.msra.mxu0 %v131
    %231 = vmatpush.msra.mxu0 %v127
    %232 = vmatpush.msra.mxu0 %v123
    %233 = vmatmul.f32.gmra.mxu0 0.0
    %v234 = vpop.f32.mrf.mxu0
    %v235 = vadd.f32 %v215, %v234
    %236 = vdwg.mxu0
    %237 = vmatpush.msra.mxu0 %v120
    %238 = vmatpush.msra.mxu0 %v116
    %239 = vmatpush.msra.mxu0 %v112
    %240 = vmatpush.msra.mxu0 %v108
    %241 = vmatpush.msra.mxu0 %v104
    %242 = vmatpush.msra.mxu0 %v100
    %243 = vmatpush.msra.mxu0 %v96
    %244 = vmatpush.msra.mxu0 %v92
    %245 = vmatpush.msra.mxu0 %v88
    %246 = vmatpush.msra.mxu0 %v84
    %247 = vmatpush.msra.mxu0 %v80
    %248 = vmatpush.msra.mxu0 %v76
    %249 = vmatpush.msra.mxu0 %v72
    %250 = vmatpush.msra.mxu0 %v68
    %251 = vmatpush.msra.mxu0 %v64
    %252 = vmatpush.msra.mxu0 %v60
    %253 = vmatmul.f32.gmra.mxu0 %v58
    %v254 = vpop.f32.mrf.mxu0
    %v255 = vadd.f32 %v190, %v254
    %256 = vdwg.mxu0
    %257 = vmatpush.msra.mxu0 %v184
    %258 = vmatpush.msra.mxu0 %v180
    %259 = vmatpush.msra.mxu0 %v176
    %260 = vmatpush.msra.mxu0 %v172
    %261 = vmatpush.msra.mxu0 %v168
    %262 = vmatpush.msra.mxu0 %v164
    %263 = vmatpush.msra.mxu0 %v160
    %264 = vmatpush.msra.mxu0 %v156
    %265 = vmatpush.msra.mxu0 %v152
    %266 = vmatpush.msra.mxu0 %v148
    %267 = vmatpush.msra.mxu0 %v144
    %268 = vmatpush.msra.mxu0 %v140
    %269 = vmatpush.msra.mxu0 %v136
    %270 = vmatpush.msra.mxu0 %v132
    %271 = vmatpush.msra.mxu0 %v128
    %272 = vmatpush.msra.mxu0 %v124
    %273 = vmatmul.f32.gmra.mxu0 0.0
    %v274 = vpop.f32.mrf.mxu0
    %v275 = vadd.f32 %v255, %v274
    %276 = vdwg.mxu0
    %277 = vmatpush.msra.mxu0 %v121
    %278 = vmatpush.msra.mxu0 %v117
    %279 = vmatpush.msra.mxu0 %v113
    %280 = vmatpush.msra.mxu0 %v109
    %281 = vmatpush.msra.mxu0 %v105
    %282 = vmatpush.msra.mxu0 %v101
    %283 = vmatpush.msra.mxu0 %v97
    %284 = vmatpush.msra.mxu0 %v93
    %285 = vmatpush.msra.mxu0 %v89
    %286 = vmatpush.msra.mxu0 %v85
    %287 = vmatpush.msra.mxu0 %v81
    %288 = vmatpush.msra.mxu0 %v77
    %289 = vmatpush.msra.mxu0 %v73
    %290 = vmatpush.msra.mxu0 %v69
    %291 = vmatpush.msra.mxu0 %v65
    %292 = vmatpush.msra.mxu0 %v61
    %293 = vmatmul.f32.gmra.mxu0 %v58
    %v294 = vpop.f32.mrf.mxu0
    %v295 = vadd.f32 %v191, %v294
    %296 = vdwg.mxu0
    %297 = vmatpush.msra.mxu0 %v185
    %298 = vmatpush.msra.mxu0 %v181
    %299 = vmatpush.msra.mxu0 %v177
    %300 = vmatpush.msra.mxu0 %v173
    %301 = vmatpush.msra.mxu0 %v169
    %302 = vmatpush.msra.mxu0 %v165
    %303 = vmatpush.msra.mxu0 %v161
    %304 = vmatpush.msra.mxu0 %v157
    %305 = vmatpush.msra.mxu0 %v153
    %306 = vmatpush.msra.mxu0 %v149
    %307 = vmatpush.msra.mxu0 %v145
    %308 = vmatpush.msra.mxu0 %v141
    %309 = vmatpush.msra.mxu0 %v137
    %310 = vmatpush.msra.mxu0 %v133
    %311 = vmatpush.msra.mxu0 %v129
    %312 = vmatpush.msra.mxu0 %v125
    %313 = vmatmul.f32.gmra.mxu0 0.0
    %v314 = vpop.f32.mrf.mxu0
    %v315 = vadd.f32 %v295, %v314
    %316 = vdwg.mxu0
    %317 = vmatpush.msra.mxu0 %v122
    %318 = vmatpush.msra.mxu0 %v118
    %319 = vmatpush.msra.mxu0 %v114
    %320 = vmatpush.msra.mxu0 %v110
    %321 = vmatpush.msra.mxu0 %v106
    %322 = vmatpush.msra.mxu0 %v102
    %323 = vmatpush.msra.mxu0 %v98
    %324 = vmatpush.msra.mxu0 %v94
    %325 = vmatpush.msra.mxu0 %v90
    %326 = vmatpush.msra.mxu0 %v86
    %327 = vmatpush.msra.mxu0 %v82
    %328 = vmatpush.msra.mxu0 %v78
    %329 = vmatpush.msra.mxu0 %v74
    %330 = vmatpush.msra.mxu0 %v70
    %331 = vmatpush.msra.mxu0 %v66
    %332 = vmatpush.msra.mxu0 %v62
    %333 = vmatmul.f32.gmra.mxu0 %v58
    %v334 = vpop.f32.mrf.mxu0
    %v335 = vadd.f32 %v192, %v334
    %336 = vdwg.mxu0
    %337 = vmatpush.msra.mxu0 %v186
    %338 = vmatpush.msra.mxu0 %v182
    %339 = vmatpush.msra.mxu0 %v178
    %340 = vmatpush.msra.mxu0 %v174
    %341 = vmatpush.msra.mxu0 %v170
    %342 = vmatpush.msra.mxu0 %v166
    %343 = vmatpush.msra.mxu0 %v162
    %344 = vmatpush.msra.mxu0 %v158
    %345 = vmatpush.msra.mxu0 %v154
    %346 = vmatpush.msra.mxu0 %v150
    %347 = vmatpush.msra.mxu0 %v146
    %348 = vmatpush.msra.mxu0 %v142
    %349 = vmatpush.msra.mxu0 %v138
    %350 = vmatpush.msra.mxu0 %v134
    %351 = vmatpush.msra.mxu0 %v130
    %352 = vmatpush.msra.mxu0 %v126
    %353 = vmatmul.f32.gmra.mxu0 0.0
    %v354 = vpop.f32.mrf.mxu0
    %v355 = vadd.f32 %v335, %v354
    %356 = vdwg.mxu0
    %v357 = vxor.u32 %v235, 2147483648
    %v358 = vmul.f32 %v357, 1.442695
    %v359 = vpow.pop %v358
    %v360 = vadd.f32 %v359, 1.0
    %v361 = vrcp.pop %v360
    %v362 = vmul.f32 %v360, %v361
    %v363 = vsub.f32 1.0, %v362
    %v364 = vmul.f32 %v361, %v363
    %v365 = vadd.f32 %v361, %v364
    %vm366 = vweird.f32 %v360
    %vm367 = vweird.f32 %v361
    %vm368 = vmor %vm366, %vm367
    %v369 = vsel %vm368, %v361, %v365
    %v370 = vand.u32 2147483647, %v360
    %vm371 = vcmp.eq.f32.partialorder %v370, 8.507059e+37
    %v372 = vand.u32 %v360, 2147483648
    %v373 = vor.u32 1.1754944e-38, %v372
    %v374 = vsel %vm371, %v373, %v369
    %v375 = vmul.f32 1.0, %v374
    %v376 = vxor.u32 %v275, 2147483648
    %v377 = vmul.f32 %v376, 1.442695
    %v378 = vpow.pop %v377
    %v379 = vadd.f32 %v378, 1.0
    %v380 = vrcp.pop %v379
    %v381 = vmul.f32 %v379, %v380
    %v382 = vsub.f32 1.0, %v381
    %v383 = vmul.f32 %v380, %v382
    %v384 = vadd.f32 %v380, %v383
    %vm385 = vweird.f32 %v379
    %vm386 = vweird.f32 %v380
    %vm387 = vmor %vm385, %vm386
    %v388 = vsel %vm387, %v380, %v384
    %v389 = vand.u32 2147483647, %v379
    %vm390 = vcmp.eq.f32.partialorder %v389, 8.507059e+37
    %v391 = vand.u32 %v379, 2147483648
    %v392 = vor.u32 1.1754944e-38, %v391
    %v393 = vsel %vm390, %v392, %v388
    %v394 = vmul.f32 1.0, %v393
    %v395 = vtanh.pop %v315
    %v396 = vxor.u32 %v355, 2147483648
    %v397 = vmul.f32 %v396, 1.442695
    %v398 = vpow.pop %v397
    %v399 = vadd.f32 %v398, 1.0
    %v400 = vrcp.pop %v399
    %v401 = vmul.f32 %v399, %v400
    %v402 = vsub.f32 1.0, %v401
    %v403 = vmul.f32 %v400, %v402
    %v404 = vadd.f32 %v400, %v403
    %vm405 = vweird.f32 %v399
    %vm406 = vweird.f32 %v400
    %vm407 = vmor %vm405, %vm406
    %v408 = vsel %vm407, %v400, %v404
    %v409 = vand.u32 2147483647, %v399
    %vm410 = vcmp.eq.f32.partialorder %v409, 8.507059e+37
    %v411 = vand.u32 %v399, 2147483648
    %v412 = vor.u32 1.1754944e-38, %v411
    %v413 = vsel %vm410, %v412, %v408
    %v414 = vmul.f32 1.0, %v413
    %v415 = vmul.f32 %v394, 0.0
    %v416 = vmul.f32 %v375, %v395
    %v417 = vadd.f32 %v415, %v416
    %v418 = vtanh.pop %v417
    %v419 = vmul.f32 %v414, %v418
    %v420 = vld [vmem:[#allocation4] sm:$0xff]
    %v421 = vld [vmem:[#allocation4 + $0x8] sm:$0xff]
    %v422 = vld [vmem:[#allocation4 + $0x10] sm:$0xff]
    %v423 = vld [vmem:[#allocation4 + $0x18] sm:$0xff]
    %v424 = vld [vmem:[#allocation4 + $0x20] sm:$0xff]
    %v425 = vld [vmem:[#allocation4 + $0x28] sm:$0xff]
    %v426 = vld [vmem:[#allocation4 + $0x30] sm:$0xff]
    %v427 = vld [vmem:[#allocation4 + $0x38] sm:$0xff]
    %v428 = vld [vmem:[#allocation4 + $0x40] sm:$0xff]
    %v429 = vld [vmem:[#allocation4 + $0x48] sm:$0xff]
    %v430 = vld [vmem:[#allocation4 + $0x50] sm:$0xff]
    %v431 = vld [vmem:[#allocation4 + $0x58] sm:$0xff]
    %v432 = vld [vmem:[#allocation4 + $0x60] sm:$0xff]
    %v433 = vld [vmem:[#allocation4 + $0x68] sm:$0xff]
    %v434 = vld [vmem:[#allocation4 + $0x70] sm:$0xff]
    %v435 = vld [vmem:[#allocation4 + $0x78] sm:$0xff]
    %v436 = vld [vmem:[#allocation4 + $0x80] sm:$0xff]
    %v437 = vld [vmem:[#allocation4 + $0x88] sm:$0xff]
    %v438 = vld [vmem:[#allocation4 + $0x90] sm:$0xff]
    %v439 = vld [vmem:[#allocation4 + $0x98] sm:$0xff]
    %v440 = vld [vmem:[#allocation4 + $0xa0] sm:$0xff]
    %v441 = vld [vmem:[#allocation4 + $0xa8] sm:$0xff]
    %v442 = vld [vmem:[#allocation4 + $0xb0] sm:$0xff]
    %v443 = vld [vmem:[#allocation4 + $0xb8] sm:$0xff]
    %v444 = vld [vmem:[#allocation4 + $0xc0] sm:$0xff]
    %v445 = vld [vmem:[#allocation4 + $0xc8] sm:$0xff]
    %v446 = vld [vmem:[#allocation4 + $0xd0] sm:$0xff]
    %v447 = vld [vmem:[#allocation4 + $0xd8] sm:$0xff]
    %v448 = vld [vmem:[#allocation4 + $0xe0] sm:$0xff]
    %v449 = vld [vmem:[#allocation4 + $0xe8] sm:$0xff]
    %v450 = vld [vmem:[#allocation4 + $0xf0] sm:$0xff]
    %v451 = vld [vmem:[#allocation4 + $0xf8] sm:$0xff]
    %v452 = vld [vmem:[#allocation4 + $0x100] sm:$0xff]
    %v453 = vld [vmem:[#allocation4 + $0x108] sm:$0xff]
    %v454 = vld [vmem:[#allocation4 + $0x110] sm:$0xff]
    %v455 = vld [vmem:[#allocation4 + $0x118] sm:$0xff]
    %v456 = vld [vmem:[#allocation4 + $0x120] sm:$0xff]
    %v457 = vld [vmem:[#allocation4 + $0x128] sm:$0xff]
    %v458 = vld [vmem:[#allocation4 + $0x130] sm:$0xff]
    %v459 = vld [vmem:[#allocation4 + $0x138] sm:$0xff]
    %v460 = vld [vmem:[#allocation4 + $0x140] sm:$0xff]
    %v461 = vld [vmem:[#allocation4 + $0x148] sm:$0xff]
    %v462 = vld [vmem:[#allocation4 + $0x150] sm:$0xff]
    %v463 = vld [vmem:[#allocation4 + $0x158] sm:$0xff]
    %v464 = vld [vmem:[#allocation4 + $0x160] sm:$0xff]
    %v465 = vld [vmem:[#allocation4 + $0x168] sm:$0xff]
    %v466 = vld [vmem:[#allocation4 + $0x170] sm:$0xff]
    %v467 = vld [vmem:[#allocation4 + $0x178] sm:$0xff]
    %v468 = vld [vmem:[#allocation4 + $0x180] sm:$0xff]
    %v469 = vld [vmem:[#allocation4 + $0x188] sm:$0xff]
    %v470 = vld [vmem:[#allocation4 + $0x190] sm:$0xff]
    %v471 = vld [vmem:[#allocation4 + $0x198] sm:$0xff]
    %v472 = vld [vmem:[#allocation4 + $0x1a0] sm:$0xff]
    %v473 = vld [vmem:[#allocation4 + $0x1a8] sm:$0xff]
    %v474 = vld [vmem:[#allocation4 + $0x1b0] sm:$0xff]
    %v475 = vld [vmem:[#allocation4 + $0x1b8] sm:$0xff]
    %v476 = vld [vmem:[#allocation4 + $0x1c0] sm:$0xff]
    %v477 = vld [vmem:[#allocation4 + $0x1c8] sm:$0xff]
    %v478 = vld [vmem:[#allocation4 + $0x1d0] sm:$0xff]
    %v479 = vld [vmem:[#allocation4 + $0x1d8] sm:$0xff]
    %v480 = vld [vmem:[#allocation4 + $0x1e0] sm:$0xff]
    %v481 = vld [vmem:[#allocation4 + $0x1e8] sm:$0xff]
    %v482 = vld [vmem:[#allocation4 + $0x1f0] sm:$0xff]
    %v483 = vld [vmem:[#allocation4 + $0x1f8] sm:$0xff]
    %v484 = vld [vmem:[#allocation4 + $0x200] sm:$0xff]
    %v485 = vld [vmem:[#allocation4 + $0x208] sm:$0xff]
    %v486 = vld [vmem:[#allocation4 + $0x210] sm:$0xff]
    %v487 = vld [vmem:[#allocation4 + $0x218] sm:$0xff]
    %v488 = vld [vmem:[#allocation4 + $0x220] sm:$0xff]
    %v489 = vld [vmem:[#allocation4 + $0x228] sm:$0xff]
    %v490 = vld [vmem:[#allocation4 + $0x230] sm:$0xff]
    %v491 = vld [vmem:[#allocation4 + $0x238] sm:$0xff]
    %v492 = vld [vmem:[#allocation4 + $0x240] sm:$0xff]
    %v493 = vld [vmem:[#allocation4 + $0x248] sm:$0xff]
    %v494 = vld [vmem:[#allocation4 + $0x250] sm:$0xff]
    %v495 = vld [vmem:[#allocation4 + $0x258] sm:$0xff]
    %v496 = vld [vmem:[#allocation4 + $0x260] sm:$0xff]
    %v497 = vld [vmem:[#allocation4 + $0x268] sm:$0xff]
    %v498 = vld [vmem:[#allocation4 + $0x270] sm:$0xff]
    %v499 = vld [vmem:[#allocation4 + $0x278] sm:$0xff]
    %v500 = vld [vmem:[#allocation4 + $0x280] sm:$0xff]
    %v501 = vld [vmem:[#allocation4 + $0x288] sm:$0xff]
    %v502 = vld [vmem:[#allocation4 + $0x290] sm:$0xff]
    %v503 = vld [vmem:[#allocation4 + $0x298] sm:$0xff]
    %v504 = vld [vmem:[#allocation4 + $0x2a0] sm:$0xff]
    %v505 = vld [vmem:[#allocation4 + $0x2a8] sm:$0xff]
    %v506 = vld [vmem:[#allocation4 + $0x2b0] sm:$0xff]
    %v507 = vld [vmem:[#allocation4 + $0x2b8] sm:$0xff]
    %v508 = vld [vmem:[#allocation4 + $0x2c0] sm:$0xff]
    %v509 = vld [vmem:[#allocation4 + $0x2c8] sm:$0xff]
    %v510 = vld [vmem:[#allocation4 + $0x2d0] sm:$0xff]
    %v511 = vld [vmem:[#allocation4 + $0x2d8] sm:$0xff]
    %v512 = vld [vmem:[#allocation4 + $0x2e0] sm:$0xff]
    %v513 = vld [vmem:[#allocation4 + $0x2e8] sm:$0xff]
    %v514 = vld [vmem:[#allocation4 + $0x2f0] sm:$0xff]
    %v515 = vld [vmem:[#allocation4 + $0x2f8] sm:$0xff]
    %v516 = vld [vmem:[#allocation4 + $0x300] sm:$0xff]
    %v517 = vld [vmem:[#allocation4 + $0x308] sm:$0xff]
    %v518 = vld [vmem:[#allocation4 + $0x310] sm:$0xff]
    %v519 = vld [vmem:[#allocation4 + $0x318] sm:$0xff]
    %v520 = vld [vmem:[#allocation4 + $0x320] sm:$0xff]
    %v521 = vld [vmem:[#allocation4 + $0x328] sm:$0xff]
    %v522 = vld [vmem:[#allocation4 + $0x330] sm:$0xff]
    %v523 = vld [vmem:[#allocation4 + $0x338] sm:$0xff]
    %v524 = vld [vmem:[#allocation4 + $0x340] sm:$0xff]
    %v525 = vld [vmem:[#allocation4 + $0x348] sm:$0xff]
    %v526 = vld [vmem:[#allocation4 + $0x350] sm:$0xff]
    %v527 = vld [vmem:[#allocation4 + $0x358] sm:$0xff]
    %v528 = vld [vmem:[#allocation4 + $0x360] sm:$0xff]
    %v529 = vld [vmem:[#allocation4 + $0x368] sm:$0xff]
    %v530 = vld [vmem:[#allocation4 + $0x370] sm:$0xff]
    %v531 = vld [vmem:[#allocation4 + $0x378] sm:$0xff]
    %v532 = vld [vmem:[#allocation4 + $0x380] sm:$0xff]
    %v533 = vld [vmem:[#allocation4 + $0x388] sm:$0xff]
    %v534 = vld [vmem:[#allocation4 + $0x390] sm:$0xff]
    %v535 = vld [vmem:[#allocation4 + $0x398] sm:$0xff]
    %v536 = vld [vmem:[#allocation4 + $0x3a0] sm:$0xff]
    %v537 = vld [vmem:[#allocation4 + $0x3a8] sm:$0xff]
    %v538 = vld [vmem:[#allocation4 + $0x3b0] sm:$0xff]
    %v539 = vld [vmem:[#allocation4 + $0x3b8] sm:$0xff]
    %v540 = vld [vmem:[#allocation4 + $0x3c0] sm:$0xff]
    %v541 = vld [vmem:[#allocation4 + $0x3c8] sm:$0xff]
    %v542 = vld [vmem:[#allocation4 + $0x3d0] sm:$0xff]
    %v543 = vld [vmem:[#allocation4 + $0x3d8] sm:$0xff]
    %v544 = vld [vmem:[#allocation4 + $0x3e0] sm:$0xff]
    %v545 = vld [vmem:[#allocation4 + $0x3e8] sm:$0xff]
    %v546 = vld [vmem:[#allocation4 + $0x3f0] sm:$0xff]
    %v547 = vld [vmem:[#allocation4 + $0x3f8] sm:$0xff]
    %v548 = vld [vmem:[%s4] sm:$0xf]
    %v550 = vperm.slane %v548, 0
    %v551 = vperm.slane %v548, 1
    %v552 = vperm.slane %v548, 2
    %v553 = vperm.slane %v548, 3
    %558 = vmatpush.msra.mxu0 %v480
    %559 = vmatpush.msra.mxu0 %v476
    %560 = vmatpush.msra.mxu0 %v472
    %561 = vmatpush.msra.mxu0 %v468
    %562 = vmatpush.msra.mxu0 %v464
    %563 = vmatpush.msra.mxu0 %v460
    %564 = vmatpush.msra.mxu0 %v456
    %565 = vmatpush.msra.mxu0 %v452
    %566 = vmatpush.msra.mxu0 %v448
    %567 = vmatpush.msra.mxu0 %v444
    %568 = vmatpush.msra.mxu0 %v440
    %569 = vmatpush.msra.mxu0 %v436
    %570 = vmatpush.msra.mxu0 %v432
    %571 = vmatpush.msra.mxu0 %v428
    %572 = vmatpush.msra.mxu0 %v424
    %573 = vmatpush.msra.mxu0 %v420
    %574 = vmatmul.f32.gmra.mxu0 %v419
    %v575 = vpop.f32.mrf.mxu0
    %v576 = vadd.f32 %v550, %v575
    %577 = vdwg.mxu0
    %578 = vmatpush.msra.mxu0 %v544
    %579 = vmatpush.msra.mxu0 %v540
    %580 = vmatpush.msra.mxu0 %v536
    %581 = vmatpush.msra.mxu0 %v532
    %582 = vmatpush.msra.mxu0 %v528
    %583 = vmatpush.msra.mxu0 %v524
    %584 = vmatpush.msra.mxu0 %v520
    %585 = vmatpush.msra.mxu0 %v516
    %586 = vmatpush.msra.mxu0 %v512
    %587 = vmatpush.msra.mxu0 %v508
    %588 = vmatpush.msra.mxu0 %v504
    %589 = vmatpush.msra.mxu0 %v500
    %590 = vmatpush.msra.mxu0 %v496
    %591 = vmatpush.msra.mxu0 %v492
    %592 = vmatpush.msra.mxu0 %v488
    %593 = vmatpush.msra.mxu0 %v484
    %594 = vmatmul.f32.gmra.mxu0 0.0
    %v595 = vpop.f32.mrf.mxu0
    %v596 = vadd.f32 %v576, %v595
    %597 = vdwg.mxu0
    %598 = vmatpush.msra.mxu0 %v481
    %599 = vmatpush.msra.mxu0 %v477
    %600 = vmatpush.msra.mxu0 %v473
    %601 = vmatpush.msra.mxu0 %v469
    %602 = vmatpush.msra.mxu0 %v465
    %603 = vmatpush.msra.mxu0 %v461
    %604 = vmatpush.msra.mxu0 %v457
    %605 = vmatpush.msra.mxu0 %v453
    %606 = vmatpush.msra.mxu0 %v449
    %607 = vmatpush.msra.mxu0 %v445
    %608 = vmatpush.msra.mxu0 %v441
    %609 = vmatpush.msra.mxu0 %v437
    %610 = vmatpush.msra.mxu0 %v433
    %611 = vmatpush.msra.mxu0 %v429
    %612 = vmatpush.msra.mxu0 %v425
    %613 = vmatpush.msra.mxu0 %v421
    %614 = vmatmul.f32.gmra.mxu0 %v419
    %v615 = vpop.f32.mrf.mxu0
    %v616 = vadd.f32 %v551, %v615
    %617 = vdwg.mxu0
    %618 = vmatpush.msra.mxu0 %v545
    %619 = vmatpush.msra.mxu0 %v541
    %620 = vmatpush.msra.mxu0 %v537
    %621 = vmatpush.msra.mxu0 %v533
    %622 = vmatpush.msra.mxu0 %v529
    %623 = vmatpush.msra.mxu0 %v525
    %624 = vmatpush.msra.mxu0 %v521
    %625 = vmatpush.msra.mxu0 %v517
    %626 = vmatpush.msra.mxu0 %v513
    %627 = vmatpush.msra.mxu0 %v509
    %628 = vmatpush.msra.mxu0 %v505
    %629 = vmatpush.msra.mxu0 %v501
    %630 = vmatpush.msra.mxu0 %v497
    %631 = vmatpush.msra.mxu0 %v493
    %632 = vmatpush.msra.mxu0 %v489
    %633 = vmatpush.msra.mxu0 %v485
    %634 = vmatmul.f32.gmra.mxu0 0.0
    %v635 = vpop.f32.mrf.mxu0
    %v636 = vadd.f32 %v616, %v635
    %637 = vdwg.mxu0
    %638 = vmatpush.msra.mxu0 %v482
    %639 = vmatpush.msra.mxu0 %v478
    %640 = vmatpush.msra.mxu0 %v474
    %641 = vmatpush.msra.mxu0 %v470
    %642 = vmatpush.msra.mxu0 %v466
    %643 = vmatpush.msra.mxu0 %v462
    %644 = vmatpush.msra.mxu0 %v458
    %645 = vmatpush.msra.mxu0 %v454
    %646 = vmatpush.msra.mxu0 %v450
    %647 = vmatpush.msra.mxu0 %v446
    %648 = vmatpush.msra.mxu0 %v442
    %649 = vmatpush.msra.mxu0 %v438
    %650 = vmatpush.msra.mxu0 %v434
    %651 = vmatpush.msra.mxu0 %v430
    %652 = vmatpush.msra.mxu0 %v426
    %653 = vmatpush.msra.mxu0 %v422
    %654 = vmatmul.f32.gmra.mxu0 %v419
    %v655 = vpop.f32.mrf.mxu0
    %v656 = vadd.f32 %v552, %v655
    %657 = vdwg.mxu0
    %658 = vmatpush.msra.mxu0 %v546
    %659 = vmatpush.msra.mxu0 %v542
    %660 = vmatpush.msra.mxu0 %v538
    %661 = vmatpush.msra.mxu0 %v534
    %662 = vmatpush.msra.mxu0 %v530
    %663 = vmatpush.msra.mxu0 %v526
    %664 = vmatpush.msra.mxu0 %v522
    %665 = vmatpush.msra.mxu0 %v518
    %666 = vmatpush.msra.mxu0 %v514
    %667 = vmatpush.msra.mxu0 %v510
    %668 = vmatpush.msra.mxu0 %v506
    %669 = vmatpush.msra.mxu0 %v502
    %670 = vmatpush.msra.mxu0 %v498
    %671 = vmatpush.msra.mxu0 %v494
    %672 = vmatpush.msra.mxu0 %v490
    %673 = vmatpush.msra.mxu0 %v486
    %674 = vmatmul.f32.gmra.mxu0 0.0
    %v675 = vpop.f32.mrf.mxu0
    %v676 = vadd.f32 %v656, %v675
    %677 = vdwg.mxu0
    %678 = vmatpush.msra.mxu0 %v483
    %679 = vmatpush.msra.mxu0 %v479
    %680 = vmatpush.msra.mxu0 %v475
    %681 = vmatpush.msra.mxu0 %v471
    %682 = vmatpush.msra.mxu0 %v467
    %683 = vmatpush.msra.mxu0 %v463
    %684 = vmatpush.msra.mxu0 %v459
    %685 = vmatpush.msra.mxu0 %v455
    %686 = vmatpush.msra.mxu0 %v451
    %687 = vmatpush.msra.mxu0 %v447
    %688 = vmatpush.msra.mxu0 %v443
    %689 = vmatpush.msra.mxu0 %v439
    %690 = vmatpush.msra.mxu0 %v435
    %691 = vmatpush.msra.mxu0 %v431
    %692 = vmatpush.msra.mxu0 %v427
    %693 = vmatpush.msra.mxu0 %v423
    %694 = vmatmul.f32.gmra.mxu0 %v419
    %v695 = vpop.f32.mrf.mxu0
    %v696 = vadd.f32 %v553, %v695
    %697 = vdwg.mxu0
    %698 = vmatpush.msra.mxu0 %v547
    %699 = vmatpush.msra.mxu0 %v543
    %700 = vmatpush.msra.mxu0 %v539
    %701 = vmatpush.msra.mxu0 %v535
    %702 = vmatpush.msra.mxu0 %v531
    %703 = vmatpush.msra.mxu0 %v527
    %704 = vmatpush.msra.mxu0 %v523
    %705 = vmatpush.msra.mxu0 %v519
    %706 = vmatpush.msra.mxu0 %v515
    %707 = vmatpush.msra.mxu0 %v511
    %708 = vmatpush.msra.mxu0 %v507
    %709 = vmatpush.msra.mxu0 %v503
    %710 = vmatpush.msra.mxu0 %v499
    %711 = vmatpush.msra.mxu0 %v495
    %712 = vmatpush.msra.mxu0 %v491
    %713 = vmatpush.msra.mxu0 %v487
    %714 = vmatmul.f32.gmra.mxu0 0.0
    %v715 = vpop.f32.mrf.mxu0
    %v716 = vadd.f32 %v696, %v715
    %717 = vdwg.mxu0
    %v718 = vxor.u32 %v596, 2147483648
    %v719 = vmul.f32 %v718, 1.442695
    %v720 = vpow.pop %v719
    %v721 = vadd.f32 %v720, 1.0
    %v722 = vrcp.pop %v721
    %v723 = vmul.f32 %v721, %v722
    %v724 = vsub.f32 1.0, %v723
    %v725 = vmul.f32 %v722, %v724
    %v726 = vadd.f32 %v722, %v725
    %vm727 = vweird.f32 %v721
    %vm728 = vweird.f32 %v722
    %vm729 = vmor %vm727, %vm728
    %v730 = vsel %vm729, %v722, %v726
    %v731 = vand.u32 2147483647, %v721
    %vm732 = vcmp.eq.f32.partialorder %v731, 8.507059e+37
    %v733 = vand.u32 %v721, 2147483648
    %v734 = vor.u32 1.1754944e-38, %v733
    %v735 = vsel %vm732, %v734, %v730
    %v736 = vmul.f32 1.0, %v735
    %v737 = vxor.u32 %v636, 2147483648
    %v738 = vmul.f32 %v737, 1.442695
    %v739 = vpow.pop %v738
    %v740 = vadd.f32 %v739, 1.0
    %v741 = vrcp.pop %v740
    %v742 = vmul.f32 %v740, %v741
    %v743 = vsub.f32 1.0, %v742
    %v744 = vmul.f32 %v741, %v743
    %v745 = vadd.f32 %v741, %v744
    %vm746 = vweird.f32 %v740
    %vm747 = vweird.f32 %v741
    %vm748 = vmor %vm746, %vm747
    %v749 = vsel %vm748, %v741, %v745
    %v750 = vand.u32 2147483647, %v740
    %vm751 = vcmp.eq.f32.partialorder %v750, 8.507059e+37
    %v752 = vand.u32 %v740, 2147483648
    %v753 = vor.u32 1.1754944e-38, %v752
    %v754 = vsel %vm751, %v753, %v749
    %v755 = vmul.f32 1.0, %v754
    %v756 = vtanh.pop %v676
    %v757 = vxor.u32 %v716, 2147483648
    %v758 = vmul.f32 %v757, 1.442695
    %v759 = vpow.pop %v758
    %v760 = vadd.f32 %v759, 1.0
    %v761 = vrcp.pop %v760
    %v762 = vmul.f32 %v760, %v761
    %v763 = vsub.f32 1.0, %v762
    %v764 = vmul.f32 %v761, %v763
    %v765 = vadd.f32 %v761, %v764
    %vm766 = vweird.f32 %v760
    %vm767 = vweird.f32 %v761
    %vm768 = vmor %vm766, %vm767
    %v769 = vsel %vm768, %v761, %v765
    %v770 = vand.u32 2147483647, %v760
    %vm771 = vcmp.eq.f32.partialorder %v770, 8.507059e+37
    %v772 = vand.u32 %v760, 2147483648
    %v773 = vor.u32 1.1754944e-38, %v772
    %v774 = vsel %vm771, %v773, %v769
    %v775 = vmul.f32 1.0, %v774
    %v776 = vmul.f32 %v755, 0.0
    %v777 = vmul.f32 %v736, %v756
    %v778 = vadd.f32 %v776, %v777
    %v779 = vtanh.pop %v778
    %v780 = vmul.f32 %v775, %v779
    %v781 = vld [vmem:[%s5] sm:$0xff]
    %v782 = vld [vmem:[%s5 + $0x8] sm:$0xff]
    %v783 = vld [vmem:[%s5 + $0x10] sm:$0xff]
    %v784 = vld [vmem:[%s5 + $0x18] sm:$0xff]
    %v785 = vld [vmem:[%s5 + $0x20] sm:$0xff]
    %v786 = vld [vmem:[%s5 + $0x28] sm:$0xff]
    %v787 = vld [vmem:[%s5 + $0x30] sm:$0xff]
    %v788 = vld [vmem:[%s5 + $0x38] sm:$0xff]
    %v789 = vld [vmem:[%s5 + $0x40] sm:$0xff]
    %v790 = vld [vmem:[%s5 + $0x48] sm:$0xff]
    %v791 = vld [vmem:[%s5 + $0x50] sm:$0xff]
    %v792 = vld [vmem:[%s5 + $0x58] sm:$0xff]
    %v793 = vld [vmem:[%s5 + $0x60] sm:$0xff]
    %v794 = vld [vmem:[%s5 + $0x68] sm:$0xff]
    %v795 = vld [vmem:[%s5 + $0x70] sm:$0xff]
    %v796 = vld [vmem:[%s5 + $0x78] sm:$0xff]
    %v797 = vld [vmem:[%s6] sm:$0x1]
    %v799 = vperm.slane %v797, 0
    %801 = vmatpush.msra.mxu0 %v796
    %802 = vmatpush.msra.mxu0 %v795
    %803 = vmatpush.msra.mxu0 %v794
    %804 = vmatpush.msra.mxu0 %v793
    %805 = vmatpush.msra.mxu0 %v792
    %806 = vmatpush.msra.mxu0 %v791
    %807 = vmatpush.msra.mxu0 %v790
    %808 = vmatpush.msra.mxu0 %v789
    %809 = vmatpush.msra.mxu0 %v788
    %810 = vmatpush.msra.mxu0 %v787
    %811 = vmatpush.msra.mxu0 %v786
    %812 = vmatpush.msra.mxu0 %v785
    %813 = vmatpush.msra.mxu0 %v784
    %814 = vmatpush.msra.mxu0 %v783
    %815 = vmatpush.msra.mxu0 %v782
    %816 = vmatpush.msra.mxu0 %v781
    %817 = vmatmul.f32.gmra.mxu0 %v780
    %v818 = vpop.f32.mrf.mxu0
    %v819 = vadd.f32 %v799, %v818
    %820 = vdwg.mxu0
    %821 = vst [vmem:[%s7] sm:$0xff] %v819
    %s822 = scalar_lea.vmem %s0, 8
    %v823 = vld [vmem:[%s822] sm:$0xff]
    %v824 = vld [vmem:[#allocation2] sm:$0xff]
    %v825 = vld [vmem:[#allocation2 + $0x8] sm:$0xff]
    %v826 = vld [vmem:[#allocation2 + $0x10] sm:$0xff]
    %v827 = vld [vmem:[#allocation2 + $0x18] sm:$0xff]
    %v828 = vld [vmem:[#allocation2 + $0x20] sm:$0xff]
    %v829 = vld [vmem:[#allocation2 + $0x28] sm:$0xff]
    %v830 = vld [vmem:[#allocation2 + $0x30] sm:$0xff]
    %v831 = vld [vmem:[#allocation2 + $0x38] sm:$0xff]
    %v832 = vld [vmem:[#allocation2 + $0x40] sm:$0xff]
    %v833 = vld [vmem:[#allocation2 + $0x48] sm:$0xff]
    %v834 = vld [vmem:[#allocation2 + $0x50] sm:$0xff]
    %v835 = vld [vmem:[#allocation2 + $0x58] sm:$0xff]
    %v836 = vld [vmem:[#allocation2 + $0x60] sm:$0xff]
    %v837 = vld [vmem:[#allocation2 + $0x68] sm:$0xff]
    %v838 = vld [vmem:[#allocation2 + $0x70] sm:$0xff]
    %v839 = vld [vmem:[#allocation2 + $0x78] sm:$0xff]
    %v840 = vld [vmem:[#allocation2 + $0x80] sm:$0xff]
    %v841 = vld [vmem:[#allocation2 + $0x88] sm:$0xff]
    %v842 = vld [vmem:[#allocation2 + $0x90] sm:$0xff]
    %v843 = vld [vmem:[#allocation2 + $0x98] sm:$0xff]
    %v844 = vld [vmem:[#allocation2 + $0xa0] sm:$0xff]
    %v845 = vld [vmem:[#allocation2 + $0xa8] sm:$0xff]
    %v846 = vld [vmem:[#allocation2 + $0xb0] sm:$0xff]
    %v847 = vld [vmem:[#allocation2 + $0xb8] sm:$0xff]
    %v848 = vld [vmem:[#allocation2 + $0xc0] sm:$0xff]
    %v849 = vld [vmem:[#allocation2 + $0xc8] sm:$0xff]
    %v850 = vld [vmem:[#allocation2 + $0xd0] sm:$0xff]
    %v851 = vld [vmem:[#allocation2 + $0xd8] sm:$0xff]
    %v852 = vld [vmem:[#allocation2 + $0xe0] sm:$0xff]
    %v853 = vld [vmem:[#allocation2 + $0xe8] sm:$0xff]
    %v854 = vld [vmem:[#allocation2 + $0xf0] sm:$0xff]
    %v855 = vld [vmem:[#allocation2 + $0xf8] sm:$0xff]
    %v856 = vld [vmem:[#allocation2 + $0x100] sm:$0xff]
    %v857 = vld [vmem:[#allocation2 + $0x108] sm:$0xff]
    %v858 = vld [vmem:[#allocation2 + $0x110] sm:$0xff]
    %v859 = vld [vmem:[#allocation2 + $0x118] sm:$0xff]
    %v860 = vld [vmem:[#allocation2 + $0x120] sm:$0xff]
    %v861 = vld [vmem:[#allocation2 + $0x128] sm:$0xff]
    %v862 = vld [vmem:[#allocation2 + $0x130] sm:$0xff]
    %v863 = vld [vmem:[#allocation2 + $0x138] sm:$0xff]
    %v864 = vld [vmem:[#allocation2 + $0x140] sm:$0xff]
    %v865 = vld [vmem:[#allocation2 + $0x148] sm:$0xff]
    %v866 = vld [vmem:[#allocation2 + $0x150] sm:$0xff]
    %v867 = vld [vmem:[#allocation2 + $0x158] sm:$0xff]
    %v868 = vld [vmem:[#allocation2 + $0x160] sm:$0xff]
    %v869 = vld [vmem:[#allocation2 + $0x168] sm:$0xff]
    %v870 = vld [vmem:[#allocation2 + $0x170] sm:$0xff]
    %v871 = vld [vmem:[#allocation2 + $0x178] sm:$0xff]
    %v872 = vld [vmem:[#allocation2 + $0x180] sm:$0xff]
    %v873 = vld [vmem:[#allocation2 + $0x188] sm:$0xff]
    %v874 = vld [vmem:[#allocation2 + $0x190] sm:$0xff]
    %v875 = vld [vmem:[#allocation2 + $0x198] sm:$0xff]
    %v876 = vld [vmem:[#allocation2 + $0x1a0] sm:$0xff]
    %v877 = vld [vmem:[#allocation2 + $0x1a8] sm:$0xff]
    %v878 = vld [vmem:[#allocation2 + $0x1b0] sm:$0xff]
    %v879 = vld [vmem:[#allocation2 + $0x1b8] sm:$0xff]
    %v880 = vld [vmem:[#allocation2 + $0x1c0] sm:$0xff]
    %v881 = vld [vmem:[#allocation2 + $0x1c8] sm:$0xff]
    %v882 = vld [vmem:[#allocation2 + $0x1d0] sm:$0xff]
    %v883 = vld [vmem:[#allocation2 + $0x1d8] sm:$0xff]
    %v884 = vld [vmem:[#allocation2 + $0x1e0] sm:$0xff]
    %v885 = vld [vmem:[#allocation2 + $0x1e8] sm:$0xff]
    %v886 = vld [vmem:[#allocation2 + $0x1f0] sm:$0xff]
    %v887 = vld [vmem:[#allocation2 + $0x1f8] sm:$0xff]
    %v888 = vld [vmem:[#allocation2 + $0x200] sm:$0xff]
    %v889 = vld [vmem:[#allocation2 + $0x208] sm:$0xff]
    %v890 = vld [vmem:[#allocation2 + $0x210] sm:$0xff]
    %v891 = vld [vmem:[#allocation2 + $0x218] sm:$0xff]
    %v892 = vld [vmem:[#allocation2 + $0x220] sm:$0xff]
    %v893 = vld [vmem:[#allocation2 + $0x228] sm:$0xff]
    %v894 = vld [vmem:[#allocation2 + $0x230] sm:$0xff]
    %v895 = vld [vmem:[#allocation2 + $0x238] sm:$0xff]
    %v896 = vld [vmem:[#allocation2 + $0x240] sm:$0xff]
    %v897 = vld [vmem:[#allocation2 + $0x248] sm:$0xff]
    %v898 = vld [vmem:[#allocation2 + $0x250] sm:$0xff]
    %v899 = vld [vmem:[#allocation2 + $0x258] sm:$0xff]
    %v900 = vld [vmem:[#allocation2 + $0x260] sm:$0xff]
    %v901 = vld [vmem:[#allocation2 + $0x268] sm:$0xff]
    %v902 = vld [vmem:[#allocation2 + $0x270] sm:$0xff]
    %v903 = vld [vmem:[#allocation2 + $0x278] sm:$0xff]
    %v904 = vld [vmem:[#allocation2 + $0x280] sm:$0xff]
    %v905 = vld [vmem:[#allocation2 + $0x288] sm:$0xff]
    %v906 = vld [vmem:[#allocation2 + $0x290] sm:$0xff]
    %v907 = vld [vmem:[#allocation2 + $0x298] sm:$0xff]
    %v908 = vld [vmem:[#allocation2 + $0x2a0] sm:$0xff]
    %v909 = vld [vmem:[#allocation2 + $0x2a8] sm:$0xff]
    %v910 = vld [vmem:[#allocation2 + $0x2b0] sm:$0xff]
    %v911 = vld [vmem:[#allocation2 + $0x2b8] sm:$0xff]
    %v912 = vld [vmem:[#allocation2 + $0x2c0] sm:$0xff]
    %v913 = vld [vmem:[#allocation2 + $0x2c8] sm:$0xff]
    %v914 = vld [vmem:[#allocation2 + $0x2d0] sm:$0xff]
    %v915 = vld [vmem:[#allocation2 + $0x2d8] sm:$0xff]
    %v916 = vld [vmem:[#allocation2 + $0x2e0] sm:$0xff]
    %v917 = vld [vmem:[#allocation2 + $0x2e8] sm:$0xff]
    %v918 = vld [vmem:[#allocation2 + $0x2f0] sm:$0xff]
    %v919 = vld [vmem:[#allocation2 + $0x2f8] sm:$0xff]
    %v920 = vld [vmem:[#allocation2 + $0x300] sm:$0xff]
    %v921 = vld [vmem:[#allocation2 + $0x308] sm:$0xff]
    %v922 = vld [vmem:[#allocation2 + $0x310] sm:$0xff]
    %v923 = vld [vmem:[#allocation2 + $0x318] sm:$0xff]
    %v924 = vld [vmem:[#allocation2 + $0x320] sm:$0xff]
    %v925 = vld [vmem:[#allocation2 + $0x328] sm:$0xff]
    %v926 = vld [vmem:[#allocation2 + $0x330] sm:$0xff]
    %v927 = vld [vmem:[#allocation2 + $0x338] sm:$0xff]
    %v928 = vld [vmem:[#allocation2 + $0x340] sm:$0xff]
    %v929 = vld [vmem:[#allocation2 + $0x348] sm:$0xff]
    %v930 = vld [vmem:[#allocation2 + $0x350] sm:$0xff]
    %v931 = vld [vmem:[#allocation2 + $0x358] sm:$0xff]
    %v932 = vld [vmem:[#allocation2 + $0x360] sm:$0xff]
    %v933 = vld [vmem:[#allocation2 + $0x368] sm:$0xff]
    %v934 = vld [vmem:[#allocation2 + $0x370] sm:$0xff]
    %v935 = vld [vmem:[#allocation2 + $0x378] sm:$0xff]
    %v936 = vld [vmem:[#allocation2 + $0x380] sm:$0xff]
    %v937 = vld [vmem:[#allocation2 + $0x388] sm:$0xff]
    %v938 = vld [vmem:[#allocation2 + $0x390] sm:$0xff]
    %v939 = vld [vmem:[#allocation2 + $0x398] sm:$0xff]
    %v940 = vld [vmem:[#allocation2 + $0x3a0] sm:$0xff]
    %v941 = vld [vmem:[#allocation2 + $0x3a8] sm:$0xff]
    %v942 = vld [vmem:[#allocation2 + $0x3b0] sm:$0xff]
    %v943 = vld [vmem:[#allocation2 + $0x3b8] sm:$0xff]
    %v944 = vld [vmem:[#allocation2 + $0x3c0] sm:$0xff]
    %v945 = vld [vmem:[#allocation2 + $0x3c8] sm:$0xff]
    %v946 = vld [vmem:[#allocation2 + $0x3d0] sm:$0xff]
    %v947 = vld [vmem:[#allocation2 + $0x3d8] sm:$0xff]
    %v948 = vld [vmem:[#allocation2 + $0x3e0] sm:$0xff]
    %v949 = vld [vmem:[#allocation2 + $0x3e8] sm:$0xff]
    %v950 = vld [vmem:[#allocation2 + $0x3f0] sm:$0xff]
    %v951 = vld [vmem:[#allocation2 + $0x3f8] sm:$0xff]
    %v952 = vld [vmem:[%s2] sm:$0xf]
    %v954 = vperm.slane %v952, 0
    %v955 = vperm.slane %v952, 1
    %v956 = vperm.slane %v952, 2
    %v957 = vperm.slane %v952, 3
    %962 = vmatpush.msra.mxu0 %v884
    %963 = vmatpush.msra.mxu0 %v880
    %964 = vmatpush.msra.mxu0 %v876
    %965 = vmatpush.msra.mxu0 %v872
    %966 = vmatpush.msra.mxu0 %v868
    %967 = vmatpush.msra.mxu0 %v864
    %968 = vmatpush.msra.mxu0 %v860
    %969 = vmatpush.msra.mxu0 %v856
    %970 = vmatpush.msra.mxu0 %v852
    %971 = vmatpush.msra.mxu0 %v848
    %972 = vmatpush.msra.mxu0 %v844
    %973 = vmatpush.msra.mxu0 %v840
    %974 = vmatpush.msra.mxu0 %v836
    %975 = vmatpush.msra.mxu0 %v832
    %976 = vmatpush.msra.mxu0 %v828
    %977 = vmatpush.msra.mxu0 %v824
    %978 = vmatmul.f32.gmra.mxu0 %v823
    %v979 = vpop.f32.mrf.mxu0
    %v980 = vadd.f32 %v954, %v979
    %981 = vdwg.mxu0
    %982 = vmatpush.msra.mxu0 %v948
    %983 = vmatpush.msra.mxu0 %v944
    %984 = vmatpush.msra.mxu0 %v940
    %985 = vmatpush.msra.mxu0 %v936
    %986 = vmatpush.msra.mxu0 %v932
    %987 = vmatpush.msra.mxu0 %v928
    %988 = vmatpush.msra.mxu0 %v924
    %989 = vmatpush.msra.mxu0 %v920
    %990 = vmatpush.msra.mxu0 %v916
    %991 = vmatpush.msra.mxu0 %v912
    %992 = vmatpush.msra.mxu0 %v908
    %993 = vmatpush.msra.mxu0 %v904
    %994 = vmatpush.msra.mxu0 %v900
    %995 = vmatpush.msra.mxu0 %v896
    %996 = vmatpush.msra.mxu0 %v892
    %997 = vmatpush.msra.mxu0 %v888
    %998 = vmatmul.f32.gmra.mxu0 %v419
    %v999 = vpop.f32.mrf.mxu0
    %v1000 = vadd.f32 %v980, %v999
    %1001 = vdwg.mxu0
    %1002 = vmatpush.msra.mxu0 %v885
    %1003 = vmatpush.msra.mxu0 %v881
    %1004 = vmatpush.msra.mxu0 %v877
    %1005 = vmatpush.msra.mxu0 %v873
    %1006 = vmatpush.msra.mxu0 %v869
    %1007 = vmatpush.msra.mxu0 %v865
    %1008 = vmatpush.msra.mxu0 %v861
    %1009 = vmatpush.msra.mxu0 %v857
    %1010 = vmatpush.msra.mxu0 %v853
    %1011 = vmatpush.msra.mxu0 %v849
    %1012 = vmatpush.msra.mxu0 %v845
    %1013 = vmatpush.msra.mxu0 %v841
    %1014 = vmatpush.msra.mxu0 %v837
    %1015 = vmatpush.msra.mxu0 %v833
    %1016 = vmatpush.msra.mxu0 %v829
    %1017 = vmatpush.msra.mxu0 %v825
    %1018 = vmatmul.f32.gmra.mxu0 %v823
    %v1019 = vpop.f32.mrf.mxu0
    %v1020 = vadd.f32 %v955, %v1019
    %1021 = vdwg.mxu0
    %1022 = vmatpush.msra.mxu0 %v949
    %1023 = vmatpush.msra.mxu0 %v945
    %1024 = vmatpush.msra.mxu0 %v941
    %1025 = vmatpush.msra.mxu0 %v937
    %1026 = vmatpush.msra.mxu0 %v933
    %1027 = vmatpush.msra.mxu0 %v929
    %1028 = vmatpush.msra.mxu0 %v925
    %1029 = vmatpush.msra.mxu0 %v921
    %1030 = vmatpush.msra.mxu0 %v917
    %1031 = vmatpush.msra.mxu0 %v913
    %1032 = vmatpush.msra.mxu0 %v909
    %1033 = vmatpush.msra.mxu0 %v905
    %1034 = vmatpush.msra.mxu0 %v901
    %1035 = vmatpush.msra.mxu0 %v897
    %1036 = vmatpush.msra.mxu0 %v893
    %1037 = vmatpush.msra.mxu0 %v889
    %1038 = vmatmul.f32.gmra.mxu0 %v419
    %v1039 = vpop.f32.mrf.mxu0
    %v1040 = vadd.f32 %v1020, %v1039
    %1041 = vdwg.mxu0
    %1042 = vmatpush.msra.mxu0 %v886
    %1043 = vmatpush.msra.mxu0 %v882
    %1044 = vmatpush.msra.mxu0 %v878
    %1045 = vmatpush.msra.mxu0 %v874
    %1046 = vmatpush.msra.mxu0 %v870
    %1047 = vmatpush.msra.mxu0 %v866
    %1048 = vmatpush.msra.mxu0 %v862
    %1049 = vmatpush.msra.mxu0 %v858
    %1050 = vmatpush.msra.mxu0 %v854
    %1051 = vmatpush.msra.mxu0 %v850
    %1052 = vmatpush.msra.mxu0 %v846
    %1053 = vmatpush.msra.mxu0 %v842
    %1054 = vmatpush.msra.mxu0 %v838
    %1055 = vmatpush.msra.mxu0 %v834
    %1056 = vmatpush.msra.mxu0 %v830
    %1057 = vmatpush.msra.mxu0 %v826
    %1058 = vmatmul.f32.gmra.mxu0 %v823
    %v1059 = vpop.f32.mrf.mxu0
    %v1060 = vadd.f32 %v956, %v1059
    %1061 = vdwg.mxu0
    %1062 = vmatpush.msra.mxu0 %v950
    %1063 = vmatpush.msra.mxu0 %v946
    %1064 = vmatpush.msra.mxu0 %v942
    %1065 = vmatpush.msra.mxu0 %v938
    %1066 = vmatpush.msra.mxu0 %v934
    %1067 = vmatpush.msra.mxu0 %v930
    %1068 = vmatpush.msra.mxu0 %v926
    %1069 = vmatpush.msra.mxu0 %v922
    %1070 = vmatpush.msra.mxu0 %v918
    %1071 = vmatpush.msra.mxu0 %v914
    %1072 = vmatpush.msra.mxu0 %v910
    %1073 = vmatpush.msra.mxu0 %v906
    %1074 = vmatpush.msra.mxu0 %v902
    %1075 = vmatpush.msra.mxu0 %v898
    %1076 = vmatpush.msra.mxu0 %v894
    %1077 = vmatpush.msra.mxu0 %v890
    %1078 = vmatmul.f32.gmra.mxu0 %v419
    %v1079 = vpop.f32.mrf.mxu0
    %v1080 = vadd.f32 %v1060, %v1079
    %1081 = vdwg.mxu0
    %1082 = vmatpush.msra.mxu0 %v887
    %1083 = vmatpush.msra.mxu0 %v883
    %1084 = vmatpush.msra.mxu0 %v879
    %1085 = vmatpush.msra.mxu0 %v875
    %1086 = vmatpush.msra.mxu0 %v871
    %1087 = vmatpush.msra.mxu0 %v867
    %1088 = vmatpush.msra.mxu0 %v863
    %1089 = vmatpush.msra.mxu0 %v859
    %1090 = vmatpush.msra.mxu0 %v855
    %1091 = vmatpush.msra.mxu0 %v851
    %1092 = vmatpush.msra.mxu0 %v847
    %1093 = vmatpush.msra.mxu0 %v843
    %1094 = vmatpush.msra.mxu0 %v839
    %1095 = vmatpush.msra.mxu0 %v835
    %1096 = vmatpush.msra.mxu0 %v831
    %1097 = vmatpush.msra.mxu0 %v827
    %1098 = vmatmul.f32.gmra.mxu0 %v823
    %v1099 = vpop.f32.mrf.mxu0
    %v1100 = vadd.f32 %v957, %v1099
    %1101 = vdwg.mxu0
    %1102 = vmatpush.msra.mxu0 %v951
    %1103 = vmatpush.msra.mxu0 %v947
    %1104 = vmatpush.msra.mxu0 %v943
    %1105 = vmatpush.msra.mxu0 %v939
    %1106 = vmatpush.msra.mxu0 %v935
    %1107 = vmatpush.msra.mxu0 %v931
    %1108 = vmatpush.msra.mxu0 %v927
    %1109 = vmatpush.msra.mxu0 %v923
    %1110 = vmatpush.msra.mxu0 %v919
    %1111 = vmatpush.msra.mxu0 %v915
    %1112 = vmatpush.msra.mxu0 %v911
    %1113 = vmatpush.msra.mxu0 %v907
    %1114 = vmatpush.msra.mxu0 %v903
    %1115 = vmatpush.msra.mxu0 %v899
    %1116 = vmatpush.msra.mxu0 %v895
    %1117 = vmatpush.msra.mxu0 %v891
    %1118 = vmatmul.f32.gmra.mxu0 %v419
    %v1119 = vpop.f32.mrf.mxu0
    %v1120 = vadd.f32 %v1100, %v1119
    %1121 = vdwg.mxu0
    %v1122 = vxor.u32 %v1000, 2147483648
    %v1123 = vmul.f32 %v1122, 1.442695
    %v1124 = vpow.pop %v1123
    %v1125 = vadd.f32 %v1124, 1.0
    %v1126 = vrcp.pop %v1125
    %v1127 = vmul.f32 %v1125, %v1126
    %v1128 = vsub.f32 1.0, %v1127
    %v1129 = vmul.f32 %v1126, %v1128
    %v1130 = vadd.f32 %v1126, %v1129
    %vm1131 = vweird.f32 %v1125
    %vm1132 = vweird.f32 %v1126
    %vm1133 = vmor %vm1131, %vm1132
    %v1134 = vsel %vm1133, %v1126, %v1130
    %v1135 = vand.u32 2147483647, %v1125
    %vm1136 = vcmp.eq.f32.partialorder %v1135, 8.507059e+37
    %v1137 = vand.u32 %v1125, 2147483648
    %v1138 = vor.u32 1.1754944e-38, %v1137
    %v1139 = vsel %vm1136, %v1138, %v1134
    %v1140 = vmul.f32 1.0, %v1139
    %v1141 = vxor.u32 %v1040, 2147483648
    %v1142 = vmul.f32 %v1141, 1.442695
    %v1143 = vpow.pop %v1142
    %v1144 = vadd.f32 %v1143, 1.0
    %v1145 = vrcp.pop %v1144
    %v1146 = vmul.f32 %v1144, %v1145
    %v1147 = vsub.f32 1.0, %v1146
    %v1148 = vmul.f32 %v1145, %v1147
    %v1149 = vadd.f32 %v1145, %v1148
    %vm1150 = vweird.f32 %v1144
    %vm1151 = vweird.f32 %v1145
    %vm1152 = vmor %vm1150, %vm1151
    %v1153 = vsel %vm1152, %v1145, %v1149
    %v1154 = vand.u32 2147483647, %v1144
    %vm1155 = vcmp.eq.f32.partialorder %v1154, 8.507059e+37
    %v1156 = vand.u32 %v1144, 2147483648
    %v1157 = vor.u32 1.1754944e-38, %v1156
    %v1158 = vsel %vm1155, %v1157, %v1153
    %v1159 = vmul.f32 1.0, %v1158
    %v1160 = vtanh.pop %v1080
    %v1161 = vxor.u32 %v1120, 2147483648
    %v1162 = vmul.f32 %v1161, 1.442695
    %v1163 = vpow.pop %v1162
    %v1164 = vadd.f32 %v1163, 1.0
    %v1165 = vrcp.pop %v1164
    %v1166 = vmul.f32 %v1164, %v1165
    %v1167 = vsub.f32 1.0, %v1166
    %v1168 = vmul.f32 %v1165, %v1167
    %v1169 = vadd.f32 %v1165, %v1168
    %vm1170 = vweird.f32 %v1164
    %vm1171 = vweird.f32 %v1165
    %vm1172 = vmor %vm1170, %vm1171
    %v1173 = vsel %vm1172, %v1165, %v1169
    %v1174 = vand.u32 2147483647, %v1164
    %vm1175 = vcmp.eq.f32.partialorder %v1174, 8.507059e+37
    %v1176 = vand.u32 %v1164, 2147483648
    %v1177 = vor.u32 1.1754944e-38, %v1176
    %v1178 = vsel %vm1175, %v1177, %v1173
    %v1179 = vmul.f32 1.0, %v1178
    %v1180 = vmul.f32 %v1159, %v417
    %v1181 = vmul.f32 %v1140, %v1160
    %v1182 = vadd.f32 %v1180, %v1181
    %v1183 = vtanh.pop %v1182
    %v1184 = vmul.f32 %v1179, %v1183
    %v1185 = vld [vmem:[#allocation4] sm:$0xff]
    %v1186 = vld [vmem:[#allocation4 + $0x8] sm:$0xff]
    %v1187 = vld [vmem:[#allocation4 + $0x10] sm:$0xff]
    %v1188 = vld [vmem:[#allocation4 + $0x18] sm:$0xff]
    %v1189 = vld [vmem:[#allocation4 + $0x20] sm:$0xff]
    %v1190 = vld [vmem:[#allocation4 + $0x28] sm:$0xff]
    %v1191 = vld [vmem:[#allocation4 + $0x30] sm:$0xff]
    %v1192 = vld [vmem:[#allocation4 + $0x38] sm:$0xff]
    %v1193 = vld [vmem:[#allocation4 + $0x40] sm:$0xff]
    %v1194 = vld [vmem:[#allocation4 + $0x48] sm:$0xff]
    %v1195 = vld [vmem:[#allocation4 + $0x50] sm:$0xff]
    %v1196 = vld [vmem:[#allocation4 + $0x58] sm:$0xff]
    %v1197 = vld [vmem:[#allocation4 + $0x60] sm:$0xff]
    %v1198 = vld [vmem:[#allocation4 + $0x68] sm:$0xff]
    %v1199 = vld [vmem:[#allocation4 + $0x70] sm:$0xff]
    %v1200 = vld [vmem:[#allocation4 + $0x78] sm:$0xff]
    %v1201 = vld [vmem:[#allocation4 + $0x80] sm:$0xff]
    %v1202 = vld [vmem:[#allocation4 + $0x88] sm:$0xff]
    %v1203 = vld [vmem:[#allocation4 + $0x90] sm:$0xff]
    %v1204 = vld [vmem:[#allocation4 + $0x98] sm:$0xff]
    %v1205 = vld [vmem:[#allocation4 + $0xa0] sm:$0xff]
    %v1206 = vld [vmem:[#allocation4 + $0xa8] sm:$0xff]
    %v1207 = vld [vmem:[#allocation4 + $0xb0] sm:$0xff]
    %v1208 = vld [vmem:[#allocation4 + $0xb8] sm:$0xff]
    %v1209 = vld [vmem:[#allocation4 + $0xc0] sm:$0xff]
    %v1210 = vld [vmem:[#allocation4 + $0xc8] sm:$0xff]
    %v1211 = vld [vmem:[#allocation4 + $0xd0] sm:$0xff]
    %v1212 = vld [vmem:[#allocation4 + $0xd8] sm:$0xff]
    %v1213 = vld [vmem:[#allocation4 + $0xe0] sm:$0xff]
    %v1214 = vld [vmem:[#allocation4 + $0xe8] sm:$0xff]
    %v1215 = vld [vmem:[#allocation4 + $0xf0] sm:$0xff]
    %v1216 = vld [vmem:[#allocation4 + $0xf8] sm:$0xff]
    %v1217 = vld [vmem:[#allocation4 + $0x100] sm:$0xff]
    %v1218 = vld [vmem:[#allocation4 + $0x108] sm:$0xff]
    %v1219 = vld [vmem:[#allocation4 + $0x110] sm:$0xff]
    %v1220 = vld [vmem:[#allocation4 + $0x118] sm:$0xff]
    %v1221 = vld [vmem:[#allocation4 + $0x120] sm:$0xff]
    %v1222 = vld [vmem:[#allocation4 + $0x128] sm:$0xff]
    %v1223 = vld [vmem:[#allocation4 + $0x130] sm:$0xff]
    %v1224 = vld [vmem:[#allocation4 + $0x138] sm:$0xff]
    %v1225 = vld [vmem:[#allocation4 + $0x140] sm:$0xff]
    %v1226 = vld [vmem:[#allocation4 + $0x148] sm:$0xff]
    %v1227 = vld [vmem:[#allocation4 + $0x150] sm:$0xff]
    %v1228 = vld [vmem:[#allocation4 + $0x158] sm:$0xff]
    %v1229 = vld [vmem:[#allocation4 + $0x160] sm:$0xff]
    %v1230 = vld [vmem:[#allocation4 + $0x168] sm:$0xff]
    %v1231 = vld [vmem:[#allocation4 + $0x170] sm:$0xff]
    %v1232 = vld [vmem:[#allocation4 + $0x178] sm:$0xff]
    %v1233 = vld [vmem:[#allocation4 + $0x180] sm:$0xff]
    %v1234 = vld [vmem:[#allocation4 + $0x188] sm:$0xff]
    %v1235 = vld [vmem:[#allocation4 + $0x190] sm:$0xff]
    %v1236 = vld [vmem:[#allocation4 + $0x198] sm:$0xff]
    %v1237 = vld [vmem:[#allocation4 + $0x1a0] sm:$0xff]
    %v1238 = vld [vmem:[#allocation4 + $0x1a8] sm:$0xff]
    %v1239 = vld [vmem:[#allocation4 + $0x1b0] sm:$0xff]
    %v1240 = vld [vmem:[#allocation4 + $0x1b8] sm:$0xff]
    %v1241 = vld [vmem:[#allocation4 + $0x1c0] sm:$0xff]
    %v1242 = vld [vmem:[#allocation4 + $0x1c8] sm:$0xff]
    %v1243 = vld [vmem:[#allocation4 + $0x1d0] sm:$0xff]
    %v1244 = vld [vmem:[#allocation4 + $0x1d8] sm:$0xff]
    %v1245 = vld [vmem:[#allocation4 + $0x1e0] sm:$0xff]
    %v1246 = vld [vmem:[#allocation4 + $0x1e8] sm:$0xff]
    %v1247 = vld [vmem:[#allocation4 + $0x1f0] sm:$0xff]
    %v1248 = vld [vmem:[#allocation4 + $0x1f8] sm:$0xff]
    %v1249 = vld [vmem:[#allocation4 + $0x200] sm:$0xff]
    %v1250 = vld [vmem:[#allocation4 + $0x208] sm:$0xff]
    %v1251 = vld [vmem:[#allocation4 + $0x210] sm:$0xff]
    %v1252 = vld [vmem:[#allocation4 + $0x218] sm:$0xff]
    %v1253 = vld [vmem:[#allocation4 + $0x220] sm:$0xff]
    %v1254 = vld [vmem:[#allocation4 + $0x228] sm:$0xff]
    %v1255 = vld [vmem:[#allocation4 + $0x230] sm:$0xff]
    %v1256 = vld [vmem:[#allocation4 + $0x238] sm:$0xff]
    %v1257 = vld [vmem:[#allocation4 + $0x240] sm:$0xff]
    %v1258 = vld [vmem:[#allocation4 + $0x248] sm:$0xff]
    %v1259 = vld [vmem:[#allocation4 + $0x250] sm:$0xff]
    %v1260 = vld [vmem:[#allocation4 + $0x258] sm:$0xff]
    %v1261 = vld [vmem:[#allocation4 + $0x260] sm:$0xff]
    %v1262 = vld [vmem:[#allocation4 + $0x268] sm:$0xff]
    %v1263 = vld [vmem:[#allocation4 + $0x270] sm:$0xff]
    %v1264 = vld [vmem:[#allocation4 + $0x278] sm:$0xff]
    %v1265 = vld [vmem:[#allocation4 + $0x280] sm:$0xff]
    %v1266 = vld [vmem:[#allocation4 + $0x288] sm:$0xff]
    %v1267 = vld [vmem:[#allocation4 + $0x290] sm:$0xff]
    %v1268 = vld [vmem:[#allocation4 + $0x298] sm:$0xff]
    %v1269 = vld [vmem:[#allocation4 + $0x2a0] sm:$0xff]
    %v1270 = vld [vmem:[#allocation4 + $0x2a8] sm:$0xff]
    %v1271 = vld [vmem:[#allocation4 + $0x2b0] sm:$0xff]
    %v1272 = vld [vmem:[#allocation4 + $0x2b8] sm:$0xff]
    %v1273 = vld [vmem:[#allocation4 + $0x2c0] sm:$0xff]
    %v1274 = vld [vmem:[#allocation4 + $0x2c8] sm:$0xff]
    %v1275 = vld [vmem:[#allocation4 + $0x2d0] sm:$0xff]
    %v1276 = vld [vmem:[#allocation4 + $0x2d8] sm:$0xff]
    %v1277 = vld [vmem:[#allocation4 + $0x2e0] sm:$0xff]
    %v1278 = vld [vmem:[#allocation4 + $0x2e8] sm:$0xff]
    %v1279 = vld [vmem:[#allocation4 + $0x2f0] sm:$0xff]
    %v1280 = vld [vmem:[#allocation4 + $0x2f8] sm:$0xff]
    %v1281 = vld [vmem:[#allocation4 + $0x300] sm:$0xff]
    %v1282 = vld [vmem:[#allocation4 + $0x308] sm:$0xff]
    %v1283 = vld [vmem:[#allocation4 + $0x310] sm:$0xff]
    %v1284 = vld [vmem:[#allocation4 + $0x318] sm:$0xff]
    %v1285 = vld [vmem:[#allocation4 + $0x320] sm:$0xff]
    %v1286 = vld [vmem:[#allocation4 + $0x328] sm:$0xff]
    %v1287 = vld [vmem:[#allocation4 + $0x330] sm:$0xff]
    %v1288 = vld [vmem:[#allocation4 + $0x338] sm:$0xff]
    %v1289 = vld [vmem:[#allocation4 + $0x340] sm:$0xff]
    %v1290 = vld [vmem:[#allocation4 + $0x348] sm:$0xff]
    %v1291 = vld [vmem:[#allocation4 + $0x350] sm:$0xff]
    %v1292 = vld [vmem:[#allocation4 + $0x358] sm:$0xff]
    %v1293 = vld [vmem:[#allocation4 + $0x360] sm:$0xff]
    %v1294 = vld [vmem:[#allocation4 + $0x368] sm:$0xff]
    %v1295 = vld [vmem:[#allocation4 + $0x370] sm:$0xff]
    %v1296 = vld [vmem:[#allocation4 + $0x378] sm:$0xff]
    %v1297 = vld [vmem:[#allocation4 + $0x380] sm:$0xff]
    %v1298 = vld [vmem:[#allocation4 + $0x388] sm:$0xff]
    %v1299 = vld [vmem:[#allocation4 + $0x390] sm:$0xff]
    %v1300 = vld [vmem:[#allocation4 + $0x398] sm:$0xff]
    %v1301 = vld [vmem:[#allocation4 + $0x3a0] sm:$0xff]
    %v1302 = vld [vmem:[#allocation4 + $0x3a8] sm:$0xff]
    %v1303 = vld [vmem:[#allocation4 + $0x3b0] sm:$0xff]
    %v1304 = vld [vmem:[#allocation4 + $0x3b8] sm:$0xff]
    %v1305 = vld [vmem:[#allocation4 + $0x3c0] sm:$0xff]
    %v1306 = vld [vmem:[#allocation4 + $0x3c8] sm:$0xff]
    %v1307 = vld [vmem:[#allocation4 + $0x3d0] sm:$0xff]
    %v1308 = vld [vmem:[#allocation4 + $0x3d8] sm:$0xff]
    %v1309 = vld [vmem:[#allocation4 + $0x3e0] sm:$0xff]
    %v1310 = vld [vmem:[#allocation4 + $0x3e8] sm:$0xff]
    %v1311 = vld [vmem:[#allocation4 + $0x3f0] sm:$0xff]
    %v1312 = vld [vmem:[#allocation4 + $0x3f8] sm:$0xff]
    %v1313 = vld [vmem:[%s4] sm:$0xf]
    %v1315 = vperm.slane %v1313, 0
    %v1316 = vperm.slane %v1313, 1
    %v1317 = vperm.slane %v1313, 2
    %v1318 = vperm.slane %v1313, 3
    %1323 = vmatpush.msra.mxu0 %v1245
    %1324 = vmatpush.msra.mxu0 %v1241
    %1325 = vmatpush.msra.mxu0 %v1237
    %1326 = vmatpush.msra.mxu0 %v1233
    %1327 = vmatpush.msra.mxu0 %v1229
    %1328 = vmatpush.msra.mxu0 %v1225
    %1329 = vmatpush.msra.mxu0 %v1221
    %1330 = vmatpush.msra.mxu0 %v1217
    %1331 = vmatpush.msra.mxu0 %v1213
    %1332 = vmatpush.msra.mxu0 %v1209
    %1333 = vmatpush.msra.mxu0 %v1205
    %1334 = vmatpush.msra.mxu0 %v1201
    %1335 = vmatpush.msra.mxu0 %v1197
    %1336 = vmatpush.msra.mxu0 %v1193
    %1337 = vmatpush.msra.mxu0 %v1189
    %1338 = vmatpush.msra.mxu0 %v1185
    %1339 = vmatmul.f32.gmra.mxu0 %v1184
    %v1340 = vpop.f32.mrf.mxu0
    %v1341 = vadd.f32 %v1315, %v1340
    %1342 = vdwg.mxu0
    %1343 = vmatpush.msra.mxu0 %v1309
    %1344 = vmatpush.msra.mxu0 %v1305
    %1345 = vmatpush.msra.mxu0 %v1301
    %1346 = vmatpush.msra.mxu0 %v1297
    %1347 = vmatpush.msra.mxu0 %v1293
    %1348 = vmatpush.msra.mxu0 %v1289
    %1349 = vmatpush.msra.mxu0 %v1285
    %1350 = vmatpush.msra.mxu0 %v1281
    %1351 = vmatpush.msra.mxu0 %v1277
    %1352 = vmatpush.msra.mxu0 %v1273
    %1353 = vmatpush.msra.mxu0 %v1269
    %1354 = vmatpush.msra.mxu0 %v1265
    %1355 = vmatpush.msra.mxu0 %v1261
    %1356 = vmatpush.msra.mxu0 %v1257
    %1357 = vmatpush.msra.mxu0 %v1253
    %1358 = vmatpush.msra.mxu0 %v1249
    %1359 = vmatmul.f32.gmra.mxu0 %v780
    %v1360 = vpop.f32.mrf.mxu0
    %v1361 = vadd.f32 %v1341, %v1360
    %1362 = vdwg.mxu0
    %1363 = vmatpush.msra.mxu0 %v1246
    %1364 = vmatpush.msra.mxu0 %v1242
    %1365 = vmatpush.msra.mxu0 %v1238
    %1366 = vmatpush.msra.mxu0 %v1234
    %1367 = vmatpush.msra.mxu0 %v1230
    %1368 = vmatpush.msra.mxu0 %v1226
    %1369 = vmatpush.msra.mxu0 %v1222
    %1370 = vmatpush.msra.mxu0 %v1218
    %1371 = vmatpush.msra.mxu0 %v1214
    %1372 = vmatpush.msra.mxu0 %v1210
    %1373 = vmatpush.msra.mxu0 %v1206
    %1374 = vmatpush.msra.mxu0 %v1202
    %1375 = vmatpush.msra.mxu0 %v1198
    %1376 = vmatpush.msra.mxu0 %v1194
    %1377 = vmatpush.msra.mxu0 %v1190
    %1378 = vmatpush.msra.mxu0 %v1186
    %1379 = vmatmul.f32.gmra.mxu0 %v1184
    %v1380 = vpop.f32.mrf.mxu0
    %v1381 = vadd.f32 %v1316, %v1380
    %1382 = vdwg.mxu0
    %1383 = vmatpush.msra.mxu0 %v1310
    %1384 = vmatpush.msra.mxu0 %v1306
    %1385 = vmatpush.msra.mxu0 %v1302
    %1386 = vmatpush.msra.mxu0 %v1298
    %1387 = vmatpush.msra.mxu0 %v1294
    %1388 = vmatpush.msra.mxu0 %v1290
    %1389 = vmatpush.msra.mxu0 %v1286
    %1390 = vmatpush.msra.mxu0 %v1282
    %1391 = vmatpush.msra.mxu0 %v1278
    %1392 = vmatpush.msra.mxu0 %v1274
    %1393 = vmatpush.msra.mxu0 %v1270
    %1394 = vmatpush.msra.mxu0 %v1266
    %1395 = vmatpush.msra.mxu0 %v1262
    %1396 = vmatpush.msra.mxu0 %v1258
    %1397 = vmatpush.msra.mxu0 %v1254
    %1398 = vmatpush.msra.mxu0 %v1250
    %1399 = vmatmul.f32.gmra.mxu0 %v780
    %v1400 = vpop.f32.mrf.mxu0
    %v1401 = vadd.f32 %v1381, %v1400
    %1402 = vdwg.mxu0
    %1403 = vmatpush.msra.mxu0 %v1247
    %1404 = vmatpush.msra.mxu0 %v1243
    %1405 = vmatpush.msra.mxu0 %v1239
    %1406 = vmatpush.msra.mxu0 %v1235
    %1407 = vmatpush.msra.mxu0 %v1231
    %1408 = vmatpush.msra.mxu0 %v1227
    %1409 = vmatpush.msra.mxu0 %v1223
    %1410 = vmatpush.msra.mxu0 %v1219
    %1411 = vmatpush.msra.mxu0 %v1215
    %1412 = vmatpush.msra.mxu0 %v1211
    %1413 = vmatpush.msra.mxu0 %v1207
    %1414 = vmatpush.msra.mxu0 %v1203
    %1415 = vmatpush.msra.mxu0 %v1199
    %1416 = vmatpush.msra.mxu0 %v1195
    %1417 = vmatpush.msra.mxu0 %v1191
    %1418 = vmatpush.msra.mxu0 %v1187
    %1419 = vmatmul.f32.gmra.mxu0 %v1184
    %v1420 = vpop.f32.mrf.mxu0
    %v1421 = vadd.f32 %v1317, %v1420
    %1422 = vdwg.mxu0
    %1423 = vmatpush.msra.mxu0 %v1311
    %1424 = vmatpush.msra.mxu0 %v1307
    %1425 = vmatpush.msra.mxu0 %v1303
    %1426 = vmatpush.msra.mxu0 %v1299
    %1427 = vmatpush.msra.mxu0 %v1295
    %1428 = vmatpush.msra.mxu0 %v1291
    %1429 = vmatpush.msra.mxu0 %v1287
    %1430 = vmatpush.msra.mxu0 %v1283
    %1431 = vmatpush.msra.mxu0 %v1279
    %1432 = vmatpush.msra.mxu0 %v1275
    %1433 = vmatpush.msra.mxu0 %v1271
    %1434 = vmatpush.msra.mxu0 %v1267
    %1435 = vmatpush.msra.mxu0 %v1263
    %1436 = vmatpush.msra.mxu0 %v1259
    %1437 = vmatpush.msra.mxu0 %v1255
    %1438 = vmatpush.msra.mxu0 %v1251
    %1439 = vmatmul.f32.gmra.mxu0 %v780
    %v1440 = vpop.f32.mrf.mxu0
    %v1441 = vadd.f32 %v1421, %v1440
    %1442 = vdwg.mxu0
    %1443 = vmatpush.msra.mxu0 %v1248
    %1444 = vmatpush.msra.mxu0 %v1244
    %1445 = vmatpush.msra.mxu0 %v1240
    %1446 = vmatpush.msra.mxu0 %v1236
    %1447 = vmatpush.msra.mxu0 %v1232
    %1448 = vmatpush.msra.mxu0 %v1228
    %1449 = vmatpush.msra.mxu0 %v1224
    %1450 = vmatpush.msra.mxu0 %v1220
    %1451 = vmatpush.msra.mxu0 %v1216
    %1452 = vmatpush.msra.mxu0 %v1212
    %1453 = vmatpush.msra.mxu0 %v1208
    %1454 = vmatpush.msra.mxu0 %v1204
    %1455 = vmatpush.msra.mxu0 %v1200
    %1456 = vmatpush.msra.mxu0 %v1196
    %1457 = vmatpush.msra.mxu0 %v1192
    %1458 = vmatpush.msra.mxu0 %v1188
    %1459 = vmatmul.f32.gmra.mxu0 %v1184
    %v1460 = vpop.f32.mrf.mxu0
    %v1461 = vadd.f32 %v1318, %v1460
    %1462 = vdwg.mxu0
    %1463 = vmatpush.msra.mxu0 %v1312
    %1464 = vmatpush.msra.mxu0 %v1308
    %1465 = vmatpush.msra.mxu0 %v1304
    %1466 = vmatpush.msra.mxu0 %v1300
    %1467 = vmatpush.msra.mxu0 %v1296
    %1468 = vmatpush.msra.mxu0 %v1292
    %1469 = vmatpush.msra.mxu0 %v1288
    %1470 = vmatpush.msra.mxu0 %v1284
    %1471 = vmatpush.msra.mxu0 %v1280
    %1472 = vmatpush.msra.mxu0 %v1276
    %1473 = vmatpush.msra.mxu0 %v1272
    %1474 = vmatpush.msra.mxu0 %v1268
    %1475 = vmatpush.msra.mxu0 %v1264
    %1476 = vmatpush.msra.mxu0 %v1260
    %1477 = vmatpush.msra.mxu0 %v1256
    %1478 = vmatpush.msra.mxu0 %v1252
    %1479 = vmatmul.f32.gmra.mxu0 %v780
    %v1480 = vpop.f32.mrf.mxu0
    %v1481 = vadd.f32 %v1461, %v1480
    %1482 = vdwg.mxu0
    %v1483 = vxor.u32 %v1361, 2147483648
    %v1484 = vmul.f32 %v1483, 1.442695
    %v1485 = vpow.pop %v1484
    %v1486 = vadd.f32 %v1485, 1.0
    %v1487 = vrcp.pop %v1486
    %v1488 = vmul.f32 %v1486, %v1487
    %v1489 = vsub.f32 1.0, %v1488
    %v1490 = vmul.f32 %v1487, %v1489
    %v1491 = vadd.f32 %v1487, %v1490
    %vm1492 = vweird.f32 %v1486
    %vm1493 = vweird.f32 %v1487
    %vm1494 = vmor %vm1492, %vm1493
    %v1495 = vsel %vm1494, %v1487, %v1491
    %v1496 = vand.u32 2147483647, %v1486
    %vm1497 = vcmp.eq.f32.partialorder %v1496, 8.507059e+37
    %v1498 = vand.u32 %v1486, 2147483648
    %v1499 = vor.u32 1.1754944e-38, %v1498
    %v1500 = vsel %vm1497, %v1499, %v1495
    %v1501 = vmul.f32 1.0, %v1500
    %v1502 = vxor.u32 %v1401, 2147483648
    %v1503 = vmul.f32 %v1502, 1.442695
    %v1504 = vpow.pop %v1503
    %v1505 = vadd.f32 %v1504, 1.0
    %v1506 = vrcp.pop %v1505
    %v1507 = vmul.f32 %v1505, %v1506
    %v1508 = vsub.f32 1.0, %v1507
    %v1509 = vmul.f32 %v1506, %v1508
    %v1510 = vadd.f32 %v1506, %v1509
    %vm1511 = vweird.f32 %v1505
    %vm1512 = vweird.f32 %v1506
    %vm1513 = vmor %vm1511, %vm1512
    %v1514 = vsel %vm1513, %v1506, %v1510
    %v1515 = vand.u32 2147483647, %v1505
    %vm1516 = vcmp.eq.f32.partialorder %v1515, 8.507059e+37
    %v1517 = vand.u32 %v1505, 2147483648
    %v1518 = vor.u32 1.1754944e-38, %v1517
    %v1519 = vsel %vm1516, %v1518, %v1514
    %v1520 = vmul.f32 1.0, %v1519
    %v1521 = vtanh.pop %v1441
    %v1522 = vxor.u32 %v1481, 2147483648
    %v1523 = vmul.f32 %v1522, 1.442695
    %v1524 = vpow.pop %v1523
    %v1525 = vadd.f32 %v1524, 1.0
    %v1526 = vrcp.pop %v1525
    %v1527 = vmul.f32 %v1525, %v1526
    %v1528 = vsub.f32 1.0, %v1527
    %v1529 = vmul.f32 %v1526, %v1528
    %v1530 = vadd.f32 %v1526, %v1529
    %vm1531 = vweird.f32 %v1525
    %vm1532 = vweird.f32 %v1526
    %vm1533 = vmor %vm1531, %vm1532
    %v1534 = vsel %vm1533, %v1526, %v1530
    %v1535 = vand.u32 2147483647, %v1525
    %vm1536 = vcmp.eq.f32.partialorder %v1535, 8.507059e+37
    %v1537 = vand.u32 %v1525, 2147483648
    %v1538 = vor.u32 1.1754944e-38, %v1537
    %v1539 = vsel %vm1536, %v1538, %v1534
    %v1540 = vmul.f32 1.0, %v1539
    %v1541 = vmul.f32 %v1520, %v778
    %v1542 = vmul.f32 %v1501, %v1521
    %v1543 = vadd.f32 %v1541, %v1542
    %v1544 = vtanh.pop %v1543
    %v1545 = vmul.f32 %v1540, %v1544
    %v1546 = vld [vmem:[%s5] sm:$0xff]
    %v1547 = vld [vmem:[%s5 + $0x8] sm:$0xff]
    %v1548 = vld [vmem:[%s5 + $0x10] sm:$0xff]
    %v1549 = vld [vmem:[%s5 + $0x18] sm:$0xff]
    %v1550 = vld [vmem:[%s5 + $0x20] sm:$0xff]
    %v1551 = vld [vmem:[%s5 + $0x28] sm:$0xff]
    %v1552 = vld [vmem:[%s5 + $0x30] sm:$0xff]
    %v1553 = vld [vmem:[%s5 + $0x38] sm:$0xff]
    %v1554 = vld [vmem:[%s5 + $0x40] sm:$0xff]
    %v1555 = vld [vmem:[%s5 + $0x48] sm:$0xff]
    %v1556 = vld [vmem:[%s5 + $0x50] sm:$0xff]
    %v1557 = vld [vmem:[%s5 + $0x58] sm:$0xff]
    %v1558 = vld [vmem:[%s5 + $0x60] sm:$0xff]
    %v1559 = vld [vmem:[%s5 + $0x68] sm:$0xff]
    %v1560 = vld [vmem:[%s5 + $0x70] sm:$0xff]
    %v1561 = vld [vmem:[%s5 + $0x78] sm:$0xff]
    %v1562 = vld [vmem:[%s6] sm:$0x1]
    %v1564 = vperm.slane %v1562, 0
    %1566 = vmatpush.msra.mxu0 %v1561
    %1567 = vmatpush.msra.mxu0 %v1560
    %1568 = vmatpush.msra.mxu0 %v1559
    %1569 = vmatpush.msra.mxu0 %v1558
    %1570 = vmatpush.msra.mxu0 %v1557
    %1571 = vmatpush.msra.mxu0 %v1556
    %1572 = vmatpush.msra.mxu0 %v1555
    %1573 = vmatpush.msra.mxu0 %v1554
    %1574 = vmatpush.msra.mxu0 %v1553
    %1575 = vmatpush.msra.mxu0 %v1552
    %1576 = vmatpush.msra.mxu0 %v1551
    %1577 = vmatpush.msra.mxu0 %v1550
    %1578 = vmatpush.msra.mxu0 %v1549
    %1579 = vmatpush.msra.mxu0 %v1548
    %1580 = vmatpush.msra.mxu0 %v1547
    %1581 = vmatpush.msra.mxu0 %v1546
    %1582 = vmatmul.f32.gmra.mxu0 %v1545
    %v1583 = vpop.f32.mrf.mxu0
    %v1584 = vadd.f32 %v1564, %v1583
    %1585 = vdwg.mxu0
    %s1586 = scalar_lea.vmem %s7, 8
    %1587 = vst [vmem:[%s1586] sm:$0xff] %v1584
    %s1588 = scalar_lea.vmem %s0, 16
    %v1589 = vld [vmem:[%s1588] sm:$0xff]
    %v1590 = vld [vmem:[#allocation2] sm:$0xff]
    %v1591 = vld [vmem:[#allocation2 + $0x8] sm:$0xff]
    %v1592 = vld [vmem:[#allocation2 + $0x10] sm:$0xff]
    %v1593 = vld [vmem:[#allocation2 + $0x18] sm:$0xff]
    %v1594 = vld [vmem:[#allocation2 + $0x20] sm:$0xff]
    %v1595 = vld [vmem:[#allocation2 + $0x28] sm:$0xff]
    %v1596 = vld [vmem:[#allocation2 + $0x30] sm:$0xff]
    %v1597 = vld [vmem:[#allocation2 + $0x38] sm:$0xff]
    %v1598 = vld [vmem:[#allocation2 + $0x40] sm:$0xff]
    %v1599 = vld [vmem:[#allocation2 + $0x48] sm:$0xff]
    %v1600 = vld [vmem:[#allocation2 + $0x50] sm:$0xff]
    %v1601 = vld [vmem:[#allocation2 + $0x58] sm:$0xff]
    %v1602 = vld [vmem:[#allocation2 + $0x60] sm:$0xff]
    %v1603 = vld [vmem:[#allocation2 + $0x68] sm:$0xff]
    %v1604 = vld [vmem:[#allocation2 + $0x70] sm:$0xff]
    %v1605 = vld [vmem:[#allocation2 + $0x78] sm:$0xff]
    %v1606 = vld [vmem:[#allocation2 + $0x80] sm:$0xff]
    %v1607 = vld [vmem:[#allocation2 + $0x88] sm:$0xff]
    %v1608 = vld [vmem:[#allocation2 + $0x90] sm:$0xff]
    %v1609 = vld [vmem:[#allocation2 + $0x98] sm:$0xff]
    %v1610 = vld [vmem:[#allocation2 + $0xa0] sm:$0xff]
    %v1611 = vld [vmem:[#allocation2 + $0xa8] sm:$0xff]
    %v1612 = vld [vmem:[#allocation2 + $0xb0] sm:$0xff]
    %v1613 = vld [vmem:[#allocation2 + $0xb8] sm:$0xff]
    %v1614 = vld [vmem:[#allocation2 + $0xc0] sm:$0xff]
    %v1615 = vld [vmem:[#allocation2 + $0xc8] sm:$0xff]
    %v1616 = vld [vmem:[#allocation2 + $0xd0] sm:$0xff]
    %v1617 = vld [vmem:[#allocation2 + $0xd8] sm:$0xff]
    %v1618 = vld [vmem:[#allocation2 + $0xe0] sm:$0xff]
    %v1619 = vld [vmem:[#allocation2 + $0xe8] sm:$0xff]
    %v1620 = vld [vmem:[#allocation2 + $0xf0] sm:$0xff]
    %v1621 = vld [vmem:[#allocation2 + $0xf8] sm:$0xff]
    %v1622 = vld [vmem:[#allocation2 + $0x100] sm:$0xff]
    %v1623 = vld [vmem:[#allocation2 + $0x108] sm:$0xff]
    %v1624 = vld [vmem:[#allocation2 + $0x110] sm:$0xff]
    %v1625 = vld [vmem:[#allocation2 + $0x118] sm:$0xff]
    %v1626 = vld [vmem:[#allocation2 + $0x120] sm:$0xff]
    %v1627 = vld [vmem:[#allocation2 + $0x128] sm:$0xff]
    %v1628 = vld [vmem:[#allocation2 + $0x130] sm:$0xff]
    %v1629 = vld [vmem:[#allocation2 + $0x138] sm:$0xff]
    %v1630 = vld [vmem:[#allocation2 + $0x140] sm:$0xff]
    %v1631 = vld [vmem:[#allocation2 + $0x148] sm:$0xff]
    %v1632 = vld [vmem:[#allocation2 + $0x150] sm:$0xff]
    %v1633 = vld [vmem:[#allocation2 + $0x158] sm:$0xff]
    %v1634 = vld [vmem:[#allocation2 + $0x160] sm:$0xff]
    %v1635 = vld [vmem:[#allocation2 + $0x168] sm:$0xff]
    %v1636 = vld [vmem:[#allocation2 + $0x170] sm:$0xff]
    %v1637 = vld [vmem:[#allocation2 + $0x178] sm:$0xff]
    %v1638 = vld [vmem:[#allocation2 + $0x180] sm:$0xff]
    %v1639 = vld [vmem:[#allocation2 + $0x188] sm:$0xff]
    %v1640 = vld [vmem:[#allocation2 + $0x190] sm:$0xff]
    %v1641 = vld [vmem:[#allocation2 + $0x198] sm:$0xff]
    %v1642 = vld [vmem:[#allocation2 + $0x1a0] sm:$0xff]
    %v1643 = vld [vmem:[#allocation2 + $0x1a8] sm:$0xff]
    %v1644 = vld [vmem:[#allocation2 + $0x1b0] sm:$0xff]
    %v1645 = vld [vmem:[#allocation2 + $0x1b8] sm:$0xff]
    %v1646 = vld [vmem:[#allocation2 + $0x1c0] sm:$0xff]
    %v1647 = vld [vmem:[#allocation2 + $0x1c8] sm:$0xff]
    %v1648 = vld [vmem:[#allocation2 + $0x1d0] sm:$0xff]
    %v1649 = vld [vmem:[#allocation2 + $0x1d8] sm:$0xff]
    %v1650 = vld [vmem:[#allocation2 + $0x1e0] sm:$0xff]
    %v1651 = vld [vmem:[#allocation2 + $0x1e8] sm:$0xff]
    %v1652 = vld [vmem:[#allocation2 + $0x1f0] sm:$0xff]
    %v1653 = vld [vmem:[#allocation2 + $0x1f8] sm:$0xff]
    %v1654 = vld [vmem:[#allocation2 + $0x200] sm:$0xff]
    %v1655 = vld [vmem:[#allocation2 + $0x208] sm:$0xff]
    %v1656 = vld [vmem:[#allocation2 + $0x210] sm:$0xff]
    %v1657 = vld [vmem:[#allocation2 + $0x218] sm:$0xff]
    %v1658 = vld [vmem:[#allocation2 + $0x220] sm:$0xff]
    %v1659 = vld [vmem:[#allocation2 + $0x228] sm:$0xff]
    %v1660 = vld [vmem:[#allocation2 + $0x230] sm:$0xff]
    %v1661 = vld [vmem:[#allocation2 + $0x238] sm:$0xff]
    %v1662 = vld [vmem:[#allocation2 + $0x240] sm:$0xff]
    %v1663 = vld [vmem:[#allocation2 + $0x248] sm:$0xff]
    %v1664 = vld [vmem:[#allocation2 + $0x250] sm:$0xff]
    %v1665 = vld [vmem:[#allocation2 + $0x258] sm:$0xff]
    %v1666 = vld [vmem:[#allocation2 + $0x260] sm:$0xff]
    %v1667 = vld [vmem:[#allocation2 + $0x268] sm:$0xff]
    %v1668 = vld [vmem:[#allocation2 + $0x270] sm:$0xff]
    %v1669 = vld [vmem:[#allocation2 + $0x278] sm:$0xff]
    %v1670 = vld [vmem:[#allocation2 + $0x280] sm:$0xff]
    %v1671 = vld [vmem:[#allocation2 + $0x288] sm:$0xff]
    %v1672 = vld [vmem:[#allocation2 + $0x290] sm:$0xff]
    %v1673 = vld [vmem:[#allocation2 + $0x298] sm:$0xff]
    %v1674 = vld [vmem:[#allocation2 + $0x2a0] sm:$0xff]
    %v1675 = vld [vmem:[#allocation2 + $0x2a8] sm:$0xff]
    %v1676 = vld [vmem:[#allocation2 + $0x2b0] sm:$0xff]
    %v1677 = vld [vmem:[#allocation2 + $0x2b8] sm:$0xff]
    %v1678 = vld [vmem:[#allocation2 + $0x2c0] sm:$0xff]
    %v1679 = vld [vmem:[#allocation2 + $0x2c8] sm:$0xff]
    %v1680 = vld [vmem:[#allocation2 + $0x2d0] sm:$0xff]
    %v1681 = vld [vmem:[#allocation2 + $0x2d8] sm:$0xff]
    %v1682 = vld [vmem:[#allocation2 + $0x2e0] sm:$0xff]
    %v1683 = vld [vmem:[#allocation2 + $0x2e8] sm:$0xff]
    %v1684 = vld [vmem:[#allocation2 + $0x2f0] sm:$0xff]
    %v1685 = vld [vmem:[#allocation2 + $0x2f8] sm:$0xff]
    %v1686 = vld [vmem:[#allocation2 + $0x300] sm:$0xff]
    %v1687 = vld [vmem:[#allocation2 + $0x308] sm:$0xff]
    %v1688 = vld [vmem:[#allocation2 + $0x310] sm:$0xff]
    %v1689 = vld [vmem:[#allocation2 + $0x318] sm:$0xff]
    %v1690 = vld [vmem:[#allocation2 + $0x320] sm:$0xff]
    %v1691 = vld [vmem:[#allocation2 + $0x328] sm:$0xff]
    %v1692 = vld [vmem:[#allocation2 + $0x330] sm:$0xff]
    %v1693 = vld [vmem:[#allocation2 + $0x338] sm:$0xff]
    %v1694 = vld [vmem:[#allocation2 + $0x340] sm:$0xff]
    %v1695 = vld [vmem:[#allocation2 + $0x348] sm:$0xff]
    %v1696 = vld [vmem:[#allocation2 + $0x350] sm:$0xff]
    %v1697 = vld [vmem:[#allocation2 + $0x358] sm:$0xff]
    %v1698 = vld [vmem:[#allocation2 + $0x360] sm:$0xff]
    %v1699 = vld [vmem:[#allocation2 + $0x368] sm:$0xff]
    %v1700 = vld [vmem:[#allocation2 + $0x370] sm:$0xff]
    %v1701 = vld [vmem:[#allocation2 + $0x378] sm:$0xff]
    %v1702 = vld [vmem:[#allocation2 + $0x380] sm:$0xff]
    %v1703 = vld [vmem:[#allocation2 + $0x388] sm:$0xff]
    %v1704 = vld [vmem:[#allocation2 + $0x390] sm:$0xff]
    %v1705 = vld [vmem:[#allocation2 + $0x398] sm:$0xff]
    %v1706 = vld [vmem:[#allocation2 + $0x3a0] sm:$0xff]
    %v1707 = vld [vmem:[#allocation2 + $0x3a8] sm:$0xff]
    %v1708 = vld [vmem:[#allocation2 + $0x3b0] sm:$0xff]
    %v1709 = vld [vmem:[#allocation2 + $0x3b8] sm:$0xff]
    %v1710 = vld [vmem:[#allocation2 + $0x3c0] sm:$0xff]
    %v1711 = vld [vmem:[#allocation2 + $0x3c8] sm:$0xff]
    %v1712 = vld [vmem:[#allocation2 + $0x3d0] sm:$0xff]
    %v1713 = vld [vmem:[#allocation2 + $0x3d8] sm:$0xff]
    %v1714 = vld [vmem:[#allocation2 + $0x3e0] sm:$0xff]
    %v1715 = vld [vmem:[#allocation2 + $0x3e8] sm:$0xff]
    %v1716 = vld [vmem:[#allocation2 + $0x3f0] sm:$0xff]
    %v1717 = vld [vmem:[#allocation2 + $0x3f8] sm:$0xff]
    %v1718 = vld [vmem:[%s2] sm:$0xf]
    %v1720 = vperm.slane %v1718, 0
    %v1721 = vperm.slane %v1718, 1
    %v1722 = vperm.slane %v1718, 2
    %v1723 = vperm.slane %v1718, 3
    %1728 = vmatpush.msra.mxu0 %v1650
    %1729 = vmatpush.msra.mxu0 %v1646
    %1730 = vmatpush.msra.mxu0 %v1642
    %1731 = vmatpush.msra.mxu0 %v1638
    %1732 = vmatpush.msra.mxu0 %v1634
    %1733 = vmatpush.msra.mxu0 %v1630
    %1734 = vmatpush.msra.mxu0 %v1626
    %1735 = vmatpush.msra.mxu0 %v1622
    %1736 = vmatpush.msra.mxu0 %v1618
    %1737 = vmatpush.msra.mxu0 %v1614
    %1738 = vmatpush.msra.mxu0 %v1610
    %1739 = vmatpush.msra.mxu0 %v1606
    %1740 = vmatpush.msra.mxu0 %v1602
    %1741 = vmatpush.msra.mxu0 %v1598
    %1742 = vmatpush.msra.mxu0 %v1594
    %1743 = vmatpush.msra.mxu0 %v1590
    %1744 = vmatmul.f32.gmra.mxu0 %v1589
    %v1745 = vpop.f32.mrf.mxu0
    %v1746 = vadd.f32 %v1720, %v1745
    %1747 = vdwg.mxu0
    %1748 = vmatpush.msra.mxu0 %v1714
    %1749 = vmatpush.msra.mxu0 %v1710
    %1750 = vmatpush.msra.mxu0 %v1706
    %1751 = vmatpush.msra.mxu0 %v1702
    %1752 = vmatpush.msra.mxu0 %v1698
    %1753 = vmatpush.msra.mxu0 %v1694
    %1754 = vmatpush.msra.mxu0 %v1690
    %1755 = vmatpush.msra.mxu0 %v1686
    %1756 = vmatpush.msra.mxu0 %v1682
    %1757 = vmatpush.msra.mxu0 %v1678
    %1758 = vmatpush.msra.mxu0 %v1674
    %1759 = vmatpush.msra.mxu0 %v1670
    %1760 = vmatpush.msra.mxu0 %v1666
    %1761 = vmatpush.msra.mxu0 %v1662
    %1762 = vmatpush.msra.mxu0 %v1658
    %1763 = vmatpush.msra.mxu0 %v1654
    %1764 = vmatmul.f32.gmra.mxu0 %v1184
    %v1765 = vpop.f32.mrf.mxu0
    %v1766 = vadd.f32 %v1746, %v1765
    %1767 = vdwg.mxu0
    %1768 = vmatpush.msra.mxu0 %v1651
    %1769 = vmatpush.msra.mxu0 %v1647
    %1770 = vmatpush.msra.mxu0 %v1643
    %1771 = vmatpush.msra.mxu0 %v1639
    %1772 = vmatpush.msra.mxu0 %v1635
    %1773 = vmatpush.msra.mxu0 %v1631
    %1774 = vmatpush.msra.mxu0 %v1627
    %1775 = vmatpush.msra.mxu0 %v1623
    %1776 = vmatpush.msra.mxu0 %v1619
    %1777 = vmatpush.msra.mxu0 %v1615
    %1778 = vmatpush.msra.mxu0 %v1611
    %1779 = vmatpush.msra.mxu0 %v1607
    %1780 = vmatpush.msra.mxu0 %v1603
    %1781 = vmatpush.msra.mxu0 %v1599
    %1782 = vmatpush.msra.mxu0 %v1595
    %1783 = vmatpush.msra.mxu0 %v1591
    %1784 = vmatmul.f32.gmra.mxu0 %v1589
    %v1785 = vpop.f32.mrf.mxu0
    %v1786 = vadd.f32 %v1721, %v1785
    %1787 = vdwg.mxu0
    %1788 = vmatpush.msra.mxu0 %v1715
    %1789 = vmatpush.msra.mxu0 %v1711
    %1790 = vmatpush.msra.mxu0 %v1707
    %1791 = vmatpush.msra.mxu0 %v1703
    %1792 = vmatpush.msra.mxu0 %v1699
    %1793 = vmatpush.msra.mxu0 %v1695
    %1794 = vmatpush.msra.mxu0 %v1691
    %1795 = vmatpush.msra.mxu0 %v1687
    %1796 = vmatpush.msra.mxu0 %v1683
    %1797 = vmatpush.msra.mxu0 %v1679
    %1798 = vmatpush.msra.mxu0 %v1675
    %1799 = vmatpush.msra.mxu0 %v1671
    %1800 = vmatpush.msra.mxu0 %v1667
    %1801 = vmatpush.msra.mxu0 %v1663
    %1802 = vmatpush.msra.mxu0 %v1659
    %1803 = vmatpush.msra.mxu0 %v1655
    %1804 = vmatmul.f32.gmra.mxu0 %v1184
    %v1805 = vpop.f32.mrf.mxu0
    %v1806 = vadd.f32 %v1786, %v1805
    %1807 = vdwg.mxu0
    %1808 = vmatpush.msra.mxu0 %v1652
    %1809 = vmatpush.msra.mxu0 %v1648
    %1810 = vmatpush.msra.mxu0 %v1644
    %1811 = vmatpush.msra.mxu0 %v1640
    %1812 = vmatpush.msra.mxu0 %v1636
    %1813 = vmatpush.msra.mxu0 %v1632
    %1814 = vmatpush.msra.mxu0 %v1628
    %1815 = vmatpush.msra.mxu0 %v1624
    %1816 = vmatpush.msra.mxu0 %v1620
    %1817 = vmatpush.msra.mxu0 %v1616
    %1818 = vmatpush.msra.mxu0 %v1612
    %1819 = vmatpush.msra.mxu0 %v1608
    %1820 = vmatpush.msra.mxu0 %v1604
    %1821 = vmatpush.msra.mxu0 %v1600
    %1822 = vmatpush.msra.mxu0 %v1596
    %1823 = vmatpush.msra.mxu0 %v1592
    %1824 = vmatmul.f32.gmra.mxu0 %v1589
    %v1825 = vpop.f32.mrf.mxu0
    %v1826 = vadd.f32 %v1722, %v1825
    %1827 = vdwg.mxu0
    %1828 = vmatpush.msra.mxu0 %v1716
    %1829 = vmatpush.msra.mxu0 %v1712
    %1830 = vmatpush.msra.mxu0 %v1708
    %1831 = vmatpush.msra.mxu0 %v1704
    %1832 = vmatpush.msra.mxu0 %v1700
    %1833 = vmatpush.msra.mxu0 %v1696
    %1834 = vmatpush.msra.mxu0 %v1692
    %1835 = vmatpush.msra.mxu0 %v1688
    %1836 = vmatpush.msra.mxu0 %v1684
    %1837 = vmatpush.msra.mxu0 %v1680
    %1838 = vmatpush.msra.mxu0 %v1676
    %1839 = vmatpush.msra.mxu0 %v1672
    %1840 = vmatpush.msra.mxu0 %v1668
    %1841 = vmatpush.msra.mxu0 %v1664
    %1842 = vmatpush.msra.mxu0 %v1660
    %1843 = vmatpush.msra.mxu0 %v1656
    %1844 = vmatmul.f32.gmra.mxu0 %v1184
    %v1845 = vpop.f32.mrf.mxu0
    %v1846 = vadd.f32 %v1826, %v1845
    %1847 = vdwg.mxu0
    %1848 = vmatpush.msra.mxu0 %v1653
    %1849 = vmatpush.msra.mxu0 %v1649
    %1850 = vmatpush.msra.mxu0 %v1645
    %1851 = vmatpush.msra.mxu0 %v1641
    %1852 = vmatpush.msra.mxu0 %v1637
    %1853 = vmatpush.msra.mxu0 %v1633
    %1854 = vmatpush.msra.mxu0 %v1629
    %1855 = vmatpush.msra.mxu0 %v1625
    %1856 = vmatpush.msra.mxu0 %v1621
    %1857 = vmatpush.msra.mxu0 %v1617
    %1858 = vmatpush.msra.mxu0 %v1613
    %1859 = vmatpush.msra.mxu0 %v1609
    %1860 = vmatpush.msra.mxu0 %v1605
    %1861 = vmatpush.msra.mxu0 %v1601
    %1862 = vmatpush.msra.mxu0 %v1597
    %1863 = vmatpush.msra.mxu0 %v1593
    %1864 = vmatmul.f32.gmra.mxu0 %v1589
    %v1865 = vpop.f32.mrf.mxu0
    %v1866 = vadd.f32 %v1723, %v1865
    %1867 = vdwg.mxu0
    %1868 = vmatpush.msra.mxu0 %v1717
    %1869 = vmatpush.msra.mxu0 %v1713
    %1870 = vmatpush.msra.mxu0 %v1709
    %1871 = vmatpush.msra.mxu0 %v1705
    %1872 = vmatpush.msra.mxu0 %v1701
    %1873 = vmatpush.msra.mxu0 %v1697
    %1874 = vmatpush.msra.mxu0 %v1693
    %1875 = vmatpush.msra.mxu0 %v1689
    %1876 = vmatpush.msra.mxu0 %v1685
    %1877 = vmatpush.msra.mxu0 %v1681
    %1878 = vmatpush.msra.mxu0 %v1677
    %1879 = vmatpush.msra.mxu0 %v1673
    %1880 = vmatpush.msra.mxu0 %v1669
    %1881 = vmatpush.msra.mxu0 %v1665
    %1882 = vmatpush.msra.mxu0 %v1661
    %1883 = vmatpush.msra.mxu0 %v1657
    %1884 = vmatmul.f32.gmra.mxu0 %v1184
    %v1885 = vpop.f32.mrf.mxu0
    %v1886 = vadd.f32 %v1866, %v1885
    %1887 = vdwg.mxu0
    %v1888 = vxor.u32 %v1766, 2147483648
    %v1889 = vmul.f32 %v1888, 1.442695
    %v1890 = vpow.pop %v1889
    %v1891 = vadd.f32 %v1890, 1.0
    %v1892 = vrcp.pop %v1891
    %v1893 = vmul.f32 %v1891, %v1892
    %v1894 = vsub.f32 1.0, %v1893
    %v1895 = vmul.f32 %v1892, %v1894
    %v1896 = vadd.f32 %v1892, %v1895
    %vm1897 = vweird.f32 %v1891
    %vm1898 = vweird.f32 %v1892
    %vm1899 = vmor %vm1897, %vm1898
    %v1900 = vsel %vm1899, %v1892, %v1896
    %v1901 = vand.u32 2147483647, %v1891
    %vm1902 = vcmp.eq.f32.partialorder %v1901, 8.507059e+37
    %v1903 = vand.u32 %v1891, 2147483648
    %v1904 = vor.u32 1.1754944e-38, %v1903
    %v1905 = vsel %vm1902, %v1904, %v1900
    %v1906 = vmul.f32 1.0, %v1905
    %v1907 = vxor.u32 %v1806, 2147483648
    %v1908 = vmul.f32 %v1907, 1.442695
    %v1909 = vpow.pop %v1908
    %v1910 = vadd.f32 %v1909, 1.0
    %v1911 = vrcp.pop %v1910
    %v1912 = vmul.f32 %v1910, %v1911
    %v1913 = vsub.f32 1.0, %v1912
    %v1914 = vmul.f32 %v1911, %v1913
    %v1915 = vadd.f32 %v1911, %v1914
    %vm1916 = vweird.f32 %v1910
    %vm1917 = vweird.f32 %v1911
    %vm1918 = vmor %vm1916, %vm1917
    %v1919 = vsel %vm1918, %v1911, %v1915
    %v1920 = vand.u32 2147483647, %v1910
    %vm1921 = vcmp.eq.f32.partialorder %v1920, 8.507059e+37
    %v1922 = vand.u32 %v1910, 2147483648
    %v1923 = vor.u32 1.1754944e-38, %v1922
    %v1924 = vsel %vm1921, %v1923, %v1919
    %v1925 = vmul.f32 1.0, %v1924
    %v1926 = vtanh.pop %v1846
    %v1927 = vxor.u32 %v1886, 2147483648
    %v1928 = vmul.f32 %v1927, 1.442695
    %v1929 = vpow.pop %v1928
    %v1930 = vadd.f32 %v1929, 1.0
    %v1931 = vrcp.pop %v1930
    %v1932 = vmul.f32 %v1930, %v1931
    %v1933 = vsub.f32 1.0, %v1932
    %v1934 = vmul.f32 %v1931, %v1933
    %v1935 = vadd.f32 %v1931, %v1934
    %vm1936 = vweird.f32 %v1930
    %vm1937 = vweird.f32 %v1931
    %vm1938 = vmor %vm1936, %vm1937
    %v1939 = vsel %vm1938, %v1931, %v1935
    %v1940 = vand.u32 2147483647, %v1930
    %vm1941 = vcmp.eq.f32.partialorder %v1940, 8.507059e+37
    %v1942 = vand.u32 %v1930, 2147483648
    %v1943 = vor.u32 1.1754944e-38, %v1942
    %v1944 = vsel %vm1941, %v1943, %v1939
    %v1945 = vmul.f32 1.0, %v1944
    %v1946 = vmul.f32 %v1925, %v1182
    %v1947 = vmul.f32 %v1906, %v1926
    %v1948 = vadd.f32 %v1946, %v1947
    %v1949 = vtanh.pop %v1948
    %v1950 = vmul.f32 %v1945, %v1949
    %v1951 = vld [vmem:[#allocation4] sm:$0xff]
    %v1952 = vld [vmem:[#allocation4 + $0x8] sm:$0xff]
    %v1953 = vld [vmem:[#allocation4 + $0x10] sm:$0xff]
    %v1954 = vld [vmem:[#allocation4 + $0x18] sm:$0xff]
    %v1955 = vld [vmem:[#allocation4 + $0x20] sm:$0xff]
    %v1956 = vld [vmem:[#allocation4 + $0x28] sm:$0xff]
    %v1957 = vld [vmem:[#allocation4 + $0x30] sm:$0xff]
    %v1958 = vld [vmem:[#allocation4 + $0x38] sm:$0xff]
    %v1959 = vld [vmem:[#allocation4 + $0x40] sm:$0xff]
    %v1960 = vld [vmem:[#allocation4 + $0x48] sm:$0xff]
    %v1961 = vld [vmem:[#allocation4 + $0x50] sm:$0xff]
    %v1962 = vld [vmem:[#allocation4 + $0x58] sm:$0xff]
    %v1963 = vld [vmem:[#allocation4 + $0x60] sm:$0xff]
    %v1964 = vld [vmem:[#allocation4 + $0x68] sm:$0xff]
    %v1965 = vld [vmem:[#allocation4 + $0x70] sm:$0xff]
    %v1966 = vld [vmem:[#allocation4 + $0x78] sm:$0xff]
    %v1967 = vld [vmem:[#allocation4 + $0x80] sm:$0xff]
    %v1968 = vld [vmem:[#allocation4 + $0x88] sm:$0xff]
    %v1969 = vld [vmem:[#allocation4 + $0x90] sm:$0xff]
    %v1970 = vld [vmem:[#allocation4 + $0x98] sm:$0xff]
    %v1971 = vld [vmem:[#allocation4 + $0xa0] sm:$0xff]
    %v1972 = vld [vmem:[#allocation4 + $0xa8] sm:$0xff]
    %v1973 = vld [vmem:[#allocation4 + $0xb0] sm:$0xff]
    %v1974 = vld [vmem:[#allocation4 + $0xb8] sm:$0xff]
    %v1975 = vld [vmem:[#allocation4 + $0xc0] sm:$0xff]
    %v1976 = vld [vmem:[#allocation4 + $0xc8] sm:$0xff]
    %v1977 = vld [vmem:[#allocation4 + $0xd0] sm:$0xff]
    %v1978 = vld [vmem:[#allocation4 + $0xd8] sm:$0xff]
    %v1979 = vld [vmem:[#allocation4 + $0xe0] sm:$0xff]
    %v1980 = vld [vmem:[#allocation4 + $0xe8] sm:$0xff]
    %v1981 = vld [vmem:[#allocation4 + $0xf0] sm:$0xff]
    %v1982 = vld [vmem:[#allocation4 + $0xf8] sm:$0xff]
    %v1983 = vld [vmem:[#allocation4 + $0x100] sm:$0xff]
    %v1984 = vld [vmem:[#allocation4 + $0x108] sm:$0xff]
    %v1985 = vld [vmem:[#allocation4 + $0x110] sm:$0xff]
    %v1986 = vld [vmem:[#allocation4 + $0x118] sm:$0xff]
    %v1987 = vld [vmem:[#allocation4 + $0x120] sm:$0xff]
    %v1988 = vld [vmem:[#allocation4 + $0x128] sm:$0xff]
    %v1989 = vld [vmem:[#allocation4 + $0x130] sm:$0xff]
    %v1990 = vld [vmem:[#allocation4 + $0x138] sm:$0xff]
    %v1991 = vld [vmem:[#allocation4 + $0x140] sm:$0xff]
    %v1992 = vld [vmem:[#allocation4 + $0x148] sm:$0xff]
    %v1993 = vld [vmem:[#allocation4 + $0x150] sm:$0xff]
    %v1994 = vld [vmem:[#allocation4 + $0x158] sm:$0xff]
    %v1995 = vld [vmem:[#allocation4 + $0x160] sm:$0xff]
    %v1996 = vld [vmem:[#allocation4 + $0x168] sm:$0xff]
    %v1997 = vld [vmem:[#allocation4 + $0x170] sm:$0xff]
    %v1998 = vld [vmem:[#allocation4 + $0x178] sm:$0xff]
    %v1999 = vld [vmem:[#allocation4 + $0x180] sm:$0xff]
    %v2000 = vld [vmem:[#allocation4 + $0x188] sm:$0xff]
    %v2001 = vld [vmem:[#allocation4 + $0x190] sm:$0xff]
    %v2002 = vld [vmem:[#allocation4 + $0x198] sm:$0xff]
    %v2003 = vld [vmem:[#allocation4 + $0x1a0] sm:$0xff]
    %v2004 = vld [vmem:[#allocation4 + $0x1a8] sm:$0xff]
    %v2005 = vld [vmem:[#allocation4 + $0x1b0] sm:$0xff]
    %v2006 = vld [vmem:[#allocation4 + $0x1b8] sm:$0xff]
    %v2007 = vld [vmem:[#allocation4 + $0x1c0] sm:$0xff]
    %v2008 = vld [vmem:[#allocation4 + $0x1c8] sm:$0xff]
    %v2009 = vld [vmem:[#allocation4 + $0x1d0] sm:$0xff]
    %v2010 = vld [vmem:[#allocation4 + $0x1d8] sm:$0xff]
    %v2011 = vld [vmem:[#allocation4 + $0x1e0] sm:$0xff]
    %v2012 = vld [vmem:[#allocation4 + $0x1e8] sm:$0xff]
    %v2013 = vld [vmem:[#allocation4 + $0x1f0] sm:$0xff]
    %v2014 = vld [vmem:[#allocation4 + $0x1f8] sm:$0xff]
    %v2015 = vld [vmem:[#allocation4 + $0x200] sm:$0xff]
    %v2016 = vld [vmem:[#allocation4 + $0x208] sm:$0xff]
    %v2017 = vld [vmem:[#allocation4 + $0x210] sm:$0xff]
    %v2018 = vld [vmem:[#allocation4 + $0x218] sm:$0xff]
    %v2019 = vld [vmem:[#allocation4 + $0x220] sm:$0xff]
    %v2020 = vld [vmem:[#allocation4 + $0x228] sm:$0xff]
    %v2021 = vld [vmem:[#allocation4 + $0x230] sm:$0xff]
    %v2022 = vld [vmem:[#allocation4 + $0x238] sm:$0xff]
    %v2023 = vld [vmem:[#allocation4 + $0x240] sm:$0xff]
    %v2024 = vld [vmem:[#allocation4 + $0x248] sm:$0xff]
    %v2025 = vld [vmem:[#allocation4 + $0x250] sm:$0xff]
    %v2026 = vld [vmem:[#allocation4 + $0x258] sm:$0xff]
    %v2027 = vld [vmem:[#allocation4 + $0x260] sm:$0xff]
    %v2028 = vld [vmem:[#allocation4 + $0x268] sm:$0xff]
    %v2029 = vld [vmem:[#allocation4 + $0x270] sm:$0xff]
    %v2030 = vld [vmem:[#allocation4 + $0x278] sm:$0xff]
    %v2031 = vld [vmem:[#allocation4 + $0x280] sm:$0xff]
    %v2032 = vld [vmem:[#allocation4 + $0x288] sm:$0xff]
    %v2033 = vld [vmem:[#allocation4 + $0x290] sm:$0xff]
    %v2034 = vld [vmem:[#allocation4 + $0x298] sm:$0xff]
    %v2035 = vld [vmem:[#allocation4 + $0x2a0] sm:$0xff]
    %v2036 = vld [vmem:[#allocation4 + $0x2a8] sm:$0xff]
    %v2037 = vld [vmem:[#allocation4 + $0x2b0] sm:$0xff]
    %v2038 = vld [vmem:[#allocation4 + $0x2b8] sm:$0xff]
    %v2039 = vld [vmem:[#allocation4 + $0x2c0] sm:$0xff]
    %v2040 = vld [vmem:[#allocation4 + $0x2c8] sm:$0xff]
    %v2041 = vld [vmem:[#allocation4 + $0x2d0] sm:$0xff]
    %v2042 = vld [vmem:[#allocation4 + $0x2d8] sm:$0xff]
    %v2043 = vld [vmem:[#allocation4 + $0x2e0] sm:$0xff]
    %v2044 = vld [vmem:[#allocation4 + $0x2e8] sm:$0xff]
    %v2045 = vld [vmem:[#allocation4 + $0x2f0] sm:$0xff]
    %v2046 = vld [vmem:[#allocation4 + $0x2f8] sm:$0xff]
    %v2047 = vld [vmem:[#allocation4 + $0x300] sm:$0xff]
    %v2048 = vld [vmem:[#allocation4 + $0x308] sm:$0xff]
    %v2049 = vld [vmem:[#allocation4 + $0x310] sm:$0xff]
    %v2050 = vld [vmem:[#allocation4 + $0x318] sm:$0xff]
    %v2051 = vld [vmem:[#allocation4 + $0x320] sm:$0xff]
    %v2052 = vld [vmem:[#allocation4 + $0x328] sm:$0xff]
    %v2053 = vld [vmem:[#allocation4 + $0x330] sm:$0xff]
    %v2054 = vld [vmem:[#allocation4 + $0x338] sm:$0xff]
    %v2055 = vld [vmem:[#allocation4 + $0x340] sm:$0xff]
    %v2056 = vld [vmem:[#allocation4 + $0x348] sm:$0xff]
    %v2057 = vld [vmem:[#allocation4 + $0x350] sm:$0xff]
    %v2058 = vld [vmem:[#allocation4 + $0x358] sm:$0xff]
    %v2059 = vld [vmem:[#allocation4 + $0x360] sm:$0xff]
    %v2060 = vld [vmem:[#allocation4 + $0x368] sm:$0xff]
    %v2061 = vld [vmem:[#allocation4 + $0x370] sm:$0xff]
    %v2062 = vld [vmem:[#allocation4 + $0x378] sm:$0xff]
    %v2063 = vld [vmem:[#allocation4 + $0x380] sm:$0xff]
    %v2064 = vld [vmem:[#allocation4 + $0x388] sm:$0xff]
    %v2065 = vld [vmem:[#allocation4 + $0x390] sm:$0xff]
    %v2066 = vld [vmem:[#allocation4 + $0x398] sm:$0xff]
    %v2067 = vld [vmem:[#allocation4 + $0x3a0] sm:$0xff]
    %v2068 = vld [vmem:[#allocation4 + $0x3a8] sm:$0xff]
    %v2069 = vld [vmem:[#allocation4 + $0x3b0] sm:$0xff]
    %v2070 = vld [vmem:[#allocation4 + $0x3b8] sm:$0xff]
    %v2071 = vld [vmem:[#allocation4 + $0x3c0] sm:$0xff]
    %v2072 = vld [vmem:[#allocation4 + $0x3c8] sm:$0xff]
    %v2073 = vld [vmem:[#allocation4 + $0x3d0] sm:$0xff]
    %v2074 = vld [vmem:[#allocation4 + $0x3d8] sm:$0xff]
    %v2075 = vld [vmem:[#allocation4 + $0x3e0] sm:$0xff]
    %v2076 = vld [vmem:[#allocation4 + $0x3e8] sm:$0xff]
    %v2077 = vld [vmem:[#allocation4 + $0x3f0] sm:$0xff]
    %v2078 = vld [vmem:[#allocation4 + $0x3f8] sm:$0xff]
    %v2079 = vld [vmem:[%s4] sm:$0xf]
    %v2081 = vperm.slane %v2079, 0
    %v2082 = vperm.slane %v2079, 1
    %v2083 = vperm.slane %v2079, 2
    %v2084 = vperm.slane %v2079, 3
    %2089 = vmatpush.msra.mxu0 %v2011
    %2090 = vmatpush.msra.mxu0 %v2007
    %2091 = vmatpush.msra.mxu0 %v2003
    %2092 = vmatpush.msra.mxu0 %v1999
    %2093 = vmatpush.msra.mxu0 %v1995
    %2094 = vmatpush.msra.mxu0 %v1991
    %2095 = vmatpush.msra.mxu0 %v1987
    %2096 = vmatpush.msra.mxu0 %v1983
    %2097 = vmatpush.msra.mxu0 %v1979
    %2098 = vmatpush.msra.mxu0 %v1975
    %2099 = vmatpush.msra.mxu0 %v1971
    %2100 = vmatpush.msra.mxu0 %v1967
    %2101 = vmatpush.msra.mxu0 %v1963
    %2102 = vmatpush.msra.mxu0 %v1959
    %2103 = vmatpush.msra.mxu0 %v1955
    %2104 = vmatpush.msra.mxu0 %v1951
    %2105 = vmatmul.f32.gmra.mxu0 %v1950
    %v2106 = vpop.f32.mrf.mxu0
    %v2107 = vadd.f32 %v2081, %v2106
    %2108 = vdwg.mxu0
    %2109 = vmatpush.msra.mxu0 %v2075
    %2110 = vmatpush.msra.mxu0 %v2071
    %2111 = vmatpush.msra.mxu0 %v2067
    %2112 = vmatpush.msra.mxu0 %v2063
    %2113 = vmatpush.msra.mxu0 %v2059
    %2114 = vmatpush.msra.mxu0 %v2055
    %2115 = vmatpush.msra.mxu0 %v2051
    %2116 = vmatpush.msra.mxu0 %v2047
    %2117 = vmatpush.msra.mxu0 %v2043
    %2118 = vmatpush.msra.mxu0 %v2039
    %2119 = vmatpush.msra.mxu0 %v2035
    %2120 = vmatpush.msra.mxu0 %v2031
    %2121 = vmatpush.msra.mxu0 %v2027
    %2122 = vmatpush.msra.mxu0 %v2023
    %2123 = vmatpush.msra.mxu0 %v2019
    %2124 = vmatpush.msra.mxu0 %v2015
    %2125 = vmatmul.f32.gmra.mxu0 %v1545
    %v2126 = vpop.f32.mrf.mxu0
    %v2127 = vadd.f32 %v2107, %v2126
    %2128 = vdwg.mxu0
    %2129 = vmatpush.msra.mxu0 %v2012
    %2130 = vmatpush.msra.mxu0 %v2008
    %2131 = vmatpush.msra.mxu0 %v2004
    %2132 = vmatpush.msra.mxu0 %v2000
    %2133 = vmatpush.msra.mxu0 %v1996
    %2134 = vmatpush.msra.mxu0 %v1992
    %2135 = vmatpush.msra.mxu0 %v1988
    %2136 = vmatpush.msra.mxu0 %v1984
    %2137 = vmatpush.msra.mxu0 %v1980
    %2138 = vmatpush.msra.mxu0 %v1976
    %2139 = vmatpush.msra.mxu0 %v1972
    %2140 = vmatpush.msra.mxu0 %v1968
    %2141 = vmatpush.msra.mxu0 %v1964
    %2142 = vmatpush.msra.mxu0 %v1960
    %2143 = vmatpush.msra.mxu0 %v1956
    %2144 = vmatpush.msra.mxu0 %v1952
    %2145 = vmatmul.f32.gmra.mxu0 %v1950
    %v2146 = vpop.f32.mrf.mxu0
    %v2147 = vadd.f32 %v2082, %v2146
    %2148 = vdwg.mxu0
    %2149 = vmatpush.msra.mxu0 %v2076
    %2150 = vmatpush.msra.mxu0 %v2072
    %2151 = vmatpush.msra.mxu0 %v2068
    %2152 = vmatpush.msra.mxu0 %v2064
    %2153 = vmatpush.msra.mxu0 %v2060
    %2154 = vmatpush.msra.mxu0 %v2056
    %2155 = vmatpush.msra.mxu0 %v2052
    %2156 = vmatpush.msra.mxu0 %v2048
    %2157 = vmatpush.msra.mxu0 %v2044
    %2158 = vmatpush.msra.mxu0 %v2040
    %2159 = vmatpush.msra.mxu0 %v2036
    %2160 = vmatpush.msra.mxu0 %v2032
    %2161 = vmatpush.msra.mxu0 %v2028
    %2162 = vmatpush.msra.mxu0 %v2024
    %2163 = vmatpush.msra.mxu0 %v2020
    %2164 = vmatpush.msra.mxu0 %v2016
    %2165 = vmatmul.f32.gmra.mxu0 %v1545
    %v2166 = vpop.f32.mrf.mxu0
    %v2167 = vadd.f32 %v2147, %v2166
    %2168 = vdwg.mxu0
    %2169 = vmatpush.msra.mxu0 %v2013
    %2170 = vmatpush.msra.mxu0 %v2009
    %2171 = vmatpush.msra.mxu0 %v2005
    %2172 = vmatpush.msra.mxu0 %v2001
    %2173 = vmatpush.msra.mxu0 %v1997
    %2174 = vmatpush.msra.mxu0 %v1993
    %2175 = vmatpush.msra.mxu0 %v1989
    %2176 = vmatpush.msra.mxu0 %v1985
    %2177 = vmatpush.msra.mxu0 %v1981
    %2178 = vmatpush.msra.mxu0 %v1977
    %2179 = vmatpush.msra.mxu0 %v1973
    %2180 = vmatpush.msra.mxu0 %v1969
    %2181 = vmatpush.msra.mxu0 %v1965
    %2182 = vmatpush.msra.mxu0 %v1961
    %2183 = vmatpush.msra.mxu0 %v1957
    %2184 = vmatpush.msra.mxu0 %v1953
    %2185 = vmatmul.f32.gmra.mxu0 %v1950
    %v2186 = vpop.f32.mrf.mxu0
    %v2187 = vadd.f32 %v2083, %v2186
    %2188 = vdwg.mxu0
    %2189 = vmatpush.msra.mxu0 %v2077
    %2190 = vmatpush.msra.mxu0 %v2073
    %2191 = vmatpush.msra.mxu0 %v2069
    %2192 = vmatpush.msra.mxu0 %v2065
    %2193 = vmatpush.msra.mxu0 %v2061
    %2194 = vmatpush.msra.mxu0 %v2057
    %2195 = vmatpush.msra.mxu0 %v2053
    %2196 = vmatpush.msra.mxu0 %v2049
    %2197 = vmatpush.msra.mxu0 %v2045
    %2198 = vmatpush.msra.mxu0 %v2041
    %2199 = vmatpush.msra.mxu0 %v2037
    %2200 = vmatpush.msra.mxu0 %v2033
    %2201 = vmatpush.msra.mxu0 %v2029
    %2202 = vmatpush.msra.mxu0 %v2025
    %2203 = vmatpush.msra.mxu0 %v2021
    %2204 = vmatpush.msra.mxu0 %v2017
    %2205 = vmatmul.f32.gmra.mxu0 %v1545
    %v2206 = vpop.f32.mrf.mxu0
    %v2207 = vadd.f32 %v2187, %v2206
    %2208 = vdwg.mxu0
    %2209 = vmatpush.msra.mxu0 %v2014
    %2210 = vmatpush.msra.mxu0 %v2010
    %2211 = vmatpush.msra.mxu0 %v2006
    %2212 = vmatpush.msra.mxu0 %v2002
    %2213 = vmatpush.msra.mxu0 %v1998
    %2214 = vmatpush.msra.mxu0 %v1994
    %2215 = vmatpush.msra.mxu0 %v1990
    %2216 = vmatpush.msra.mxu0 %v1986
    %2217 = vmatpush.msra.mxu0 %v1982
    %2218 = vmatpush.msra.mxu0 %v1978
    %2219 = vmatpush.msra.mxu0 %v1974
    %2220 = vmatpush.msra.mxu0 %v1970
    %2221 = vmatpush.msra.mxu0 %v1966
    %2222 = vmatpush.msra.mxu0 %v1962
    %2223 = vmatpush.msra.mxu0 %v1958
    %2224 = vmatpush.msra.mxu0 %v1954
    %2225 = vmatmul.f32.gmra.mxu0 %v1950
    %v2226 = vpop.f32.mrf.mxu0
    %v2227 = vadd.f32 %v2084, %v2226
    %2228 = vdwg.mxu0
    %2229 = vmatpush.msra.mxu0 %v2078
    %2230 = vmatpush.msra.mxu0 %v2074
    %2231 = vmatpush.msra.mxu0 %v2070
    %2232 = vmatpush.msra.mxu0 %v2066
    %2233 = vmatpush.msra.mxu0 %v2062
    %2234 = vmatpush.msra.mxu0 %v2058
    %2235 = vmatpush.msra.mxu0 %v2054
    %2236 = vmatpush.msra.mxu0 %v2050
    %2237 = vmatpush.msra.mxu0 %v2046
    %2238 = vmatpush.msra.mxu0 %v2042
    %2239 = vmatpush.msra.mxu0 %v2038
    %2240 = vmatpush.msra.mxu0 %v2034
    %2241 = vmatpush.msra.mxu0 %v2030
    %2242 = vmatpush.msra.mxu0 %v2026
    %2243 = vmatpush.msra.mxu0 %v2022
    %2244 = vmatpush.msra.mxu0 %v2018
    %2245 = vmatmul.f32.gmra.mxu0 %v1545
    %v2246 = vpop.f32.mrf.mxu0
    %v2247 = vadd.f32 %v2227, %v2246
    %2248 = vdwg.mxu0
    %v2249 = vxor.u32 %v2127, 2147483648
    %v2250 = vmul.f32 %v2249, 1.442695
    %v2251 = vpow.pop %v2250
    %v2252 = vadd.f32 %v2251, 1.0
    %v2253 = vrcp.pop %v2252
    %v2254 = vmul.f32 %v2252, %v2253
    %v2255 = vsub.f32 1.0, %v2254
    %v2256 = vmul.f32 %v2253, %v2255
    %v2257 = vadd.f32 %v2253, %v2256
    %vm2258 = vweird.f32 %v2252
    %vm2259 = vweird.f32 %v2253
    %vm2260 = vmor %vm2258, %vm2259
    %v2261 = vsel %vm2260, %v2253, %v2257
    %v2262 = vand.u32 2147483647, %v2252
    %vm2263 = vcmp.eq.f32.partialorder %v2262, 8.507059e+37
    %v2264 = vand.u32 %v2252, 2147483648
    %v2265 = vor.u32 1.1754944e-38, %v2264
    %v2266 = vsel %vm2263, %v2265, %v2261
    %v2267 = vmul.f32 1.0, %v2266
    %v2268 = vxor.u32 %v2167, 2147483648
    %v2269 = vmul.f32 %v2268, 1.442695
    %v2270 = vpow.pop %v2269
    %v2271 = vadd.f32 %v2270, 1.0
    %v2272 = vrcp.pop %v2271
    %v2273 = vmul.f32 %v2271, %v2272
    %v2274 = vsub.f32 1.0, %v2273
    %v2275 = vmul.f32 %v2272, %v2274
    %v2276 = vadd.f32 %v2272, %v2275
    %vm2277 = vweird.f32 %v2271
    %vm2278 = vweird.f32 %v2272
    %vm2279 = vmor %vm2277, %vm2278
    %v2280 = vsel %vm2279, %v2272, %v2276
    %v2281 = vand.u32 2147483647, %v2271
    %vm2282 = vcmp.eq.f32.partialorder %v2281, 8.507059e+37
    %v2283 = vand.u32 %v2271, 2147483648
    %v2284 = vor.u32 1.1754944e-38, %v2283
    %v2285 = vsel %vm2282, %v2284, %v2280
    %v2286 = vmul.f32 1.0, %v2285
    %v2287 = vtanh.pop %v2207
    %v2288 = vxor.u32 %v2247, 2147483648
    %v2289 = vmul.f32 %v2288, 1.442695
    %v2290 = vpow.pop %v2289
    %v2291 = vadd.f32 %v2290, 1.0
    %v2292 = vrcp.pop %v2291
    %v2293 = vmul.f32 %v2291, %v2292
    %v2294 = vsub.f32 1.0, %v2293
    %v2295 = vmul.f32 %v2292, %v2294
    %v2296 = vadd.f32 %v2292, %v2295
    %vm2297 = vweird.f32 %v2291
    %vm2298 = vweird.f32 %v2292
    %vm2299 = vmor %vm2297, %vm2298
    %v2300 = vsel %vm2299, %v2292, %v2296
    %v2301 = vand.u32 2147483647, %v2291
    %vm2302 = vcmp.eq.f32.partialorder %v2301, 8.507059e+37
    %v2303 = vand.u32 %v2291, 2147483648
    %v2304 = vor.u32 1.1754944e-38, %v2303
    %v2305 = vsel %vm2302, %v2304, %v2300
    %v2306 = vmul.f32 1.0, %v2305
    %v2307 = vmul.f32 %v2286, %v1543
    %v2308 = vmul.f32 %v2267, %v2287
    %v2309 = vadd.f32 %v2307, %v2308
    %v2310 = vtanh.pop %v2309
    %v2311 = vmul.f32 %v2306, %v2310
    %v2312 = vld [vmem:[%s5] sm:$0xff]
    %v2313 = vld [vmem:[%s5 + $0x8] sm:$0xff]
    %v2314 = vld [vmem:[%s5 + $0x10] sm:$0xff]
    %v2315 = vld [vmem:[%s5 + $0x18] sm:$0xff]
    %v2316 = vld [vmem:[%s5 + $0x20] sm:$0xff]
    %v2317 = vld [vmem:[%s5 + $0x28] sm:$0xff]
    %v2318 = vld [vmem:[%s5 + $0x30] sm:$0xff]
    %v2319 = vld [vmem:[%s5 + $0x38] sm:$0xff]
    %v2320 = vld [vmem:[%s5 + $0x40] sm:$0xff]
    %v2321 = vld [vmem:[%s5 + $0x48] sm:$0xff]
    %v2322 = vld [vmem:[%s5 + $0x50] sm:$0xff]
    %v2323 = vld [vmem:[%s5 + $0x58] sm:$0xff]
    %v2324 = vld [vmem:[%s5 + $0x60] sm:$0xff]
    %v2325 = vld [vmem:[%s5 + $0x68] sm:$0xff]
    %v2326 = vld [vmem:[%s5 + $0x70] sm:$0xff]
    %v2327 = vld [vmem:[%s5 + $0x78] sm:$0xff]
    %v2328 = vld [vmem:[%s6] sm:$0x1]
    %v2330 = vperm.slane %v2328, 0
    %2332 = vmatpush.msra.mxu0 %v2327
    %2333 = vmatpush.msra.mxu0 %v2326
    %2334 = vmatpush.msra.mxu0 %v2325
    %2335 = vmatpush.msra.mxu0 %v2324
    %2336 = vmatpush.msra.mxu0 %v2323
    %2337 = vmatpush.msra.mxu0 %v2322
    %2338 = vmatpush.msra.mxu0 %v2321
    %2339 = vmatpush.msra.mxu0 %v2320
    %2340 = vmatpush.msra.mxu0 %v2319
    %2341 = vmatpush.msra.mxu0 %v2318
    %2342 = vmatpush.msra.mxu0 %v2317
    %2343 = vmatpush.msra.mxu0 %v2316
    %2344 = vmatpush.msra.mxu0 %v2315
    %2345 = vmatpush.msra.mxu0 %v2314
    %2346 = vmatpush.msra.mxu0 %v2313
    %2347 = vmatpush.msra.mxu0 %v2312
    %2348 = vmatmul.f32.gmra.mxu0 %v2311
    %v2349 = vpop.f32.mrf.mxu0
    %v2350 = vadd.f32 %v2330, %v2349
    %2351 = vdwg.mxu0
    %s2352 = scalar_lea.vmem %s7, 16
    %2353 = vst [vmem:[%s2352] sm:$0xff] %v2350
    %s2354 = scalar_lea.vmem %s0, 24
    %v2355 = vld [vmem:[%s2354] sm:$0xff]
    %v2356 = vld [vmem:[#allocation2] sm:$0xff]
    %v2357 = vld [vmem:[#allocation2 + $0x8] sm:$0xff]
    %v2358 = vld [vmem:[#allocation2 + $0x10] sm:$0xff]
    %v2359 = vld [vmem:[#allocation2 + $0x18] sm:$0xff]
    %v2360 = vld [vmem:[#allocation2 + $0x20] sm:$0xff]
    %v2361 = vld [vmem:[#allocation2 + $0x28] sm:$0xff]
    %v2362 = vld [vmem:[#allocation2 + $0x30] sm:$0xff]
    %v2363 = vld [vmem:[#allocation2 + $0x38] sm:$0xff]
    %v2364 = vld [vmem:[#allocation2 + $0x40] sm:$0xff]
    %v2365 = vld [vmem:[#allocation2 + $0x48] sm:$0xff]
    %v2366 = vld [vmem:[#allocation2 + $0x50] sm:$0xff]
    %v2367 = vld [vmem:[#allocation2 + $0x58] sm:$0xff]
    %v2368 = vld [vmem:[#allocation2 + $0x60] sm:$0xff]
    %v2369 = vld [vmem:[#allocation2 + $0x68] sm:$0xff]
    %v2370 = vld [vmem:[#allocation2 + $0x70] sm:$0xff]
    %v2371 = vld [vmem:[#allocation2 + $0x78] sm:$0xff]
    %v2372 = vld [vmem:[#allocation2 + $0x80] sm:$0xff]
    %v2373 = vld [vmem:[#allocation2 + $0x88] sm:$0xff]
    %v2374 = vld [vmem:[#allocation2 + $0x90] sm:$0xff]
    %v2375 = vld [vmem:[#allocation2 + $0x98] sm:$0xff]
    %v2376 = vld [vmem:[#allocation2 + $0xa0] sm:$0xff]
    %v2377 = vld [vmem:[#allocation2 + $0xa8] sm:$0xff]
    %v2378 = vld [vmem:[#allocation2 + $0xb0] sm:$0xff]
    %v2379 = vld [vmem:[#allocation2 + $0xb8] sm:$0xff]
    %v2380 = vld [vmem:[#allocation2 + $0xc0] sm:$0xff]
    %v2381 = vld [vmem:[#allocation2 + $0xc8] sm:$0xff]
    %v2382 = vld [vmem:[#allocation2 + $0xd0] sm:$0xff]
    %v2383 = vld [vmem:[#allocation2 + $0xd8] sm:$0xff]
    %v2384 = vld [vmem:[#allocation2 + $0xe0] sm:$0xff]
    %v2385 = vld [vmem:[#allocation2 + $0xe8] sm:$0xff]
    %v2386 = vld [vmem:[#allocation2 + $0xf0] sm:$0xff]
    %v2387 = vld [vmem:[#allocation2 + $0xf8] sm:$0xff]
    %v2388 = vld [vmem:[#allocation2 + $0x100] sm:$0xff]
    %v2389 = vld [vmem:[#allocation2 + $0x108] sm:$0xff]
    %v2390 = vld [vmem:[#allocation2 + $0x110] sm:$0xff]
    %v2391 = vld [vmem:[#allocation2 + $0x118] sm:$0xff]
    %v2392 = vld [vmem:[#allocation2 + $0x120] sm:$0xff]
    %v2393 = vld [vmem:[#allocation2 + $0x128] sm:$0xff]
    %v2394 = vld [vmem:[#allocation2 + $0x130] sm:$0xff]
    %v2395 = vld [vmem:[#allocation2 + $0x138] sm:$0xff]
    %v2396 = vld [vmem:[#allocation2 + $0x140] sm:$0xff]
    %v2397 = vld [vmem:[#allocation2 + $0x148] sm:$0xff]
    %v2398 = vld [vmem:[#allocation2 + $0x150] sm:$0xff]
    %v2399 = vld [vmem:[#allocation2 + $0x158] sm:$0xff]
    %v2400 = vld [vmem:[#allocation2 + $0x160] sm:$0xff]
    %v2401 = vld [vmem:[#allocation2 + $0x168] sm:$0xff]
    %v2402 = vld [vmem:[#allocation2 + $0x170] sm:$0xff]
    %v2403 = vld [vmem:[#allocation2 + $0x178] sm:$0xff]
    %v2404 = vld [vmem:[#allocation2 + $0x180] sm:$0xff]
    %v2405 = vld [vmem:[#allocation2 + $0x188] sm:$0xff]
    %v2406 = vld [vmem:[#allocation2 + $0x190] sm:$0xff]
    %v2407 = vld [vmem:[#allocation2 + $0x198] sm:$0xff]
    %v2408 = vld [vmem:[#allocation2 + $0x1a0] sm:$0xff]
    %v2409 = vld [vmem:[#allocation2 + $0x1a8] sm:$0xff]
    %v2410 = vld [vmem:[#allocation2 + $0x1b0] sm:$0xff]
    %v2411 = vld [vmem:[#allocation2 + $0x1b8] sm:$0xff]
    %v2412 = vld [vmem:[#allocation2 + $0x1c0] sm:$0xff]
    %v2413 = vld [vmem:[#allocation2 + $0x1c8] sm:$0xff]
    %v2414 = vld [vmem:[#allocation2 + $0x1d0] sm:$0xff]
    %v2415 = vld [vmem:[#allocation2 + $0x1d8] sm:$0xff]
    %v2416 = vld [vmem:[#allocation2 + $0x1e0] sm:$0xff]
    %v2417 = vld [vmem:[#allocation2 + $0x1e8] sm:$0xff]
    %v2418 = vld [vmem:[#allocation2 + $0x1f0] sm:$0xff]
    %v2419 = vld [vmem:[#allocation2 + $0x1f8] sm:$0xff]
    %v2420 = vld [vmem:[#allocation2 + $0x200] sm:$0xff]
    %v2421 = vld [vmem:[#allocation2 + $0x208] sm:$0xff]
    %v2422 = vld [vmem:[#allocation2 + $0x210] sm:$0xff]
    %v2423 = vld [vmem:[#allocation2 + $0x218] sm:$0xff]
    %v2424 = vld [vmem:[#allocation2 + $0x220] sm:$0xff]
    %v2425 = vld [vmem:[#allocation2 + $0x228] sm:$0xff]
    %v2426 = vld [vmem:[#allocation2 + $0x230] sm:$0xff]
    %v2427 = vld [vmem:[#allocation2 + $0x238] sm:$0xff]
    %v2428 = vld [vmem:[#allocation2 + $0x240] sm:$0xff]
    %v2429 = vld [vmem:[#allocation2 + $0x248] sm:$0xff]
    %v2430 = vld [vmem:[#allocation2 + $0x250] sm:$0xff]
    %v2431 = vld [vmem:[#allocation2 + $0x258] sm:$0xff]
    %v2432 = vld [vmem:[#allocation2 + $0x260] sm:$0xff]
    %v2433 = vld [vmem:[#allocation2 + $0x268] sm:$0xff]
    %v2434 = vld [vmem:[#allocation2 + $0x270] sm:$0xff]
    %v2435 = vld [vmem:[#allocation2 + $0x278] sm:$0xff]
    %v2436 = vld [vmem:[#allocation2 + $0x280] sm:$0xff]
    %v2437 = vld [vmem:[#allocation2 + $0x288] sm:$0xff]
    %v2438 = vld [vmem:[#allocation2 + $0x290] sm:$0xff]
    %v2439 = vld [vmem:[#allocation2 + $0x298] sm:$0xff]
    %v2440 = vld [vmem:[#allocation2 + $0x2a0] sm:$0xff]
    %v2441 = vld [vmem:[#allocation2 + $0x2a8] sm:$0xff]
    %v2442 = vld [vmem:[#allocation2 + $0x2b0] sm:$0xff]
    %v2443 = vld [vmem:[#allocation2 + $0x2b8] sm:$0xff]
    %v2444 = vld [vmem:[#allocation2 + $0x2c0] sm:$0xff]
    %v2445 = vld [vmem:[#allocation2 + $0x2c8] sm:$0xff]
    %v2446 = vld [vmem:[#allocation2 + $0x2d0] sm:$0xff]
    %v2447 = vld [vmem:[#allocation2 + $0x2d8] sm:$0xff]
    %v2448 = vld [vmem:[#allocation2 + $0x2e0] sm:$0xff]
    %v2449 = vld [vmem:[#allocation2 + $0x2e8] sm:$0xff]
    %v2450 = vld [vmem:[#allocation2 + $0x2f0] sm:$0xff]
    %v2451 = vld [vmem:[#allocation2 + $0x2f8] sm:$0xff]
    %v2452 = vld [vmem:[#allocation2 + $0x300] sm:$0xff]
    %v2453 = vld [vmem:[#allocation2 + $0x308] sm:$0xff]
    %v2454 = vld [vmem:[#allocation2 + $0x310] sm:$0xff]
    %v2455 = vld [vmem:[#allocation2 + $0x318] sm:$0xff]
    %v2456 = vld [vmem:[#allocation2 + $0x320] sm:$0xff]
    %v2457 = vld [vmem:[#allocation2 + $0x328] sm:$0xff]
    %v2458 = vld [vmem:[#allocation2 + $0x330] sm:$0xff]
    %v2459 = vld [vmem:[#allocation2 + $0x338] sm:$0xff]
    %v2460 = vld [vmem:[#allocation2 + $0x340] sm:$0xff]
    %v2461 = vld [vmem:[#allocation2 + $0x348] sm:$0xff]
    %v2462 = vld [vmem:[#allocation2 + $0x350] sm:$0xff]
    %v2463 = vld [vmem:[#allocation2 + $0x358] sm:$0xff]
    %v2464 = vld [vmem:[#allocation2 + $0x360] sm:$0xff]
    %v2465 = vld [vmem:[#allocation2 + $0x368] sm:$0xff]
    %v2466 = vld [vmem:[#allocation2 + $0x370] sm:$0xff]
    %v2467 = vld [vmem:[#allocation2 + $0x378] sm:$0xff]
    %v2468 = vld [vmem:[#allocation2 + $0x380] sm:$0xff]
    %v2469 = vld [vmem:[#allocation2 + $0x388] sm:$0xff]
    %v2470 = vld [vmem:[#allocation2 + $0x390] sm:$0xff]
    %v2471 = vld [vmem:[#allocation2 + $0x398] sm:$0xff]
    %v2472 = vld [vmem:[#allocation2 + $0x3a0] sm:$0xff]
    %v2473 = vld [vmem:[#allocation2 + $0x3a8] sm:$0xff]
    %v2474 = vld [vmem:[#allocation2 + $0x3b0] sm:$0xff]
    %v2475 = vld [vmem:[#allocation2 + $0x3b8] sm:$0xff]
    %v2476 = vld [vmem:[#allocation2 + $0x3c0] sm:$0xff]
    %v2477 = vld [vmem:[#allocation2 + $0x3c8] sm:$0xff]
    %v2478 = vld [vmem:[#allocation2 + $0x3d0] sm:$0xff]
    %v2479 = vld [vmem:[#allocation2 + $0x3d8] sm:$0xff]
    %v2480 = vld [vmem:[#allocation2 + $0x3e0] sm:$0xff]
    %v2481 = vld [vmem:[#allocation2 + $0x3e8] sm:$0xff]
    %v2482 = vld [vmem:[#allocation2 + $0x3f0] sm:$0xff]
    %v2483 = vld [vmem:[#allocation2 + $0x3f8] sm:$0xff]
    %v2484 = vld [vmem:[%s2] sm:$0xf]
    %v2486 = vperm.slane %v2484, 0
    %v2487 = vperm.slane %v2484, 1
    %v2488 = vperm.slane %v2484, 2
    %v2489 = vperm.slane %v2484, 3
    %2494 = vmatpush.msra.mxu0 %v2416
    %2495 = vmatpush.msra.mxu0 %v2412
    %2496 = vmatpush.msra.mxu0 %v2408
    %2497 = vmatpush.msra.mxu0 %v2404
    %2498 = vmatpush.msra.mxu0 %v2400
    %2499 = vmatpush.msra.mxu0 %v2396
    %2500 = vmatpush.msra.mxu0 %v2392
    %2501 = vmatpush.msra.mxu0 %v2388
    %2502 = vmatpush.msra.mxu0 %v2384
    %2503 = vmatpush.msra.mxu0 %v2380
    %2504 = vmatpush.msra.mxu0 %v2376
    %2505 = vmatpush.msra.mxu0 %v2372
    %2506 = vmatpush.msra.mxu0 %v2368
    %2507 = vmatpush.msra.mxu0 %v2364
    %2508 = vmatpush.msra.mxu0 %v2360
    %2509 = vmatpush.msra.mxu0 %v2356
    %2510 = vmatmul.f32.gmra.mxu0 %v2355
    %v2511 = vpop.f32.mrf.mxu0
    %v2512 = vadd.f32 %v2486, %v2511
    %2513 = vdwg.mxu0
    %2514 = vmatpush.msra.mxu0 %v2480
    %2515 = vmatpush.msra.mxu0 %v2476
    %2516 = vmatpush.msra.mxu0 %v2472
    %2517 = vmatpush.msra.mxu0 %v2468
    %2518 = vmatpush.msra.mxu0 %v2464
    %2519 = vmatpush.msra.mxu0 %v2460
    %2520 = vmatpush.msra.mxu0 %v2456
    %2521 = vmatpush.msra.mxu0 %v2452
    %2522 = vmatpush.msra.mxu0 %v2448
    %2523 = vmatpush.msra.mxu0 %v2444
    %2524 = vmatpush.msra.mxu0 %v2440
    %2525 = vmatpush.msra.mxu0 %v2436
    %2526 = vmatpush.msra.mxu0 %v2432
    %2527 = vmatpush.msra.mxu0 %v2428
    %2528 = vmatpush.msra.mxu0 %v2424
    %2529 = vmatpush.msra.mxu0 %v2420
    %2530 = vmatmul.f32.gmra.mxu0 %v1950
    %v2531 = vpop.f32.mrf.mxu0
    %v2532 = vadd.f32 %v2512, %v2531
    %2533 = vdwg.mxu0
    %2534 = vmatpush.msra.mxu0 %v2417
    %2535 = vmatpush.msra.mxu0 %v2413
    %2536 = vmatpush.msra.mxu0 %v2409
    %2537 = vmatpush.msra.mxu0 %v2405
    %2538 = vmatpush.msra.mxu0 %v2401
    %2539 = vmatpush.msra.mxu0 %v2397
    %2540 = vmatpush.msra.mxu0 %v2393
    %2541 = vmatpush.msra.mxu0 %v2389
    %2542 = vmatpush.msra.mxu0 %v2385
    %2543 = vmatpush.msra.mxu0 %v2381
    %2544 = vmatpush.msra.mxu0 %v2377
    %2545 = vmatpush.msra.mxu0 %v2373
    %2546 = vmatpush.msra.mxu0 %v2369
    %2547 = vmatpush.msra.mxu0 %v2365
    %2548 = vmatpush.msra.mxu0 %v2361
    %2549 = vmatpush.msra.mxu0 %v2357
    %2550 = vmatmul.f32.gmra.mxu0 %v2355
    %v2551 = vpop.f32.mrf.mxu0
    %v2552 = vadd.f32 %v2487, %v2551
    %2553 = vdwg.mxu0
    %2554 = vmatpush.msra.mxu0 %v2481
    %2555 = vmatpush.msra.mxu0 %v2477
    %2556 = vmatpush.msra.mxu0 %v2473
    %2557 = vmatpush.msra.mxu0 %v2469
    %2558 = vmatpush.msra.mxu0 %v2465
    %2559 = vmatpush.msra.mxu0 %v2461
    %2560 = vmatpush.msra.mxu0 %v2457
    %2561 = vmatpush.msra.mxu0 %v2453
    %2562 = vmatpush.msra.mxu0 %v2449
    %2563 = vmatpush.msra.mxu0 %v2445
    %2564 = vmatpush.msra.mxu0 %v2441
    %2565 = vmatpush.msra.mxu0 %v2437
    %2566 = vmatpush.msra.mxu0 %v2433
    %2567 = vmatpush.msra.mxu0 %v2429
    %2568 = vmatpush.msra.mxu0 %v2425
    %2569 = vmatpush.msra.mxu0 %v2421
    %2570 = vmatmul.f32.gmra.mxu0 %v1950
    %v2571 = vpop.f32.mrf.mxu0
    %v2572 = vadd.f32 %v2552, %v2571
    %2573 = vdwg.mxu0
    %2574 = vmatpush.msra.mxu0 %v2418
    %2575 = vmatpush.msra.mxu0 %v2414
    %2576 = vmatpush.msra.mxu0 %v2410
    %2577 = vmatpush.msra.mxu0 %v2406
    %2578 = vmatpush.msra.mxu0 %v2402
    %2579 = vmatpush.msra.mxu0 %v2398
    %2580 = vmatpush.msra.mxu0 %v2394
    %2581 = vmatpush.msra.mxu0 %v2390
    %2582 = vmatpush.msra.mxu0 %v2386
    %2583 = vmatpush.msra.mxu0 %v2382
    %2584 = vmatpush.msra.mxu0 %v2378
    %2585 = vmatpush.msra.mxu0 %v2374
    %2586 = vmatpush.msra.mxu0 %v2370
    %2587 = vmatpush.msra.mxu0 %v2366
    %2588 = vmatpush.msra.mxu0 %v2362
    %2589 = vmatpush.msra.mxu0 %v2358
    %2590 = vmatmul.f32.gmra.mxu0 %v2355
    %v2591 = vpop.f32.mrf.mxu0
    %v2592 = vadd.f32 %v2488, %v2591
    %2593 = vdwg.mxu0
    %2594 = vmatpush.msra.mxu0 %v2482
    %2595 = vmatpush.msra.mxu0 %v2478
    %2596 = vmatpush.msra.mxu0 %v2474
    %2597 = vmatpush.msra.mxu0 %v2470
    %2598 = vmatpush.msra.mxu0 %v2466
    %2599 = vmatpush.msra.mxu0 %v2462
    %2600 = vmatpush.msra.mxu0 %v2458
    %2601 = vmatpush.msra.mxu0 %v2454
    %2602 = vmatpush.msra.mxu0 %v2450
    %2603 = vmatpush.msra.mxu0 %v2446
    %2604 = vmatpush.msra.mxu0 %v2442
    %2605 = vmatpush.msra.mxu0 %v2438
    %2606 = vmatpush.msra.mxu0 %v2434
    %2607 = vmatpush.msra.mxu0 %v2430
    %2608 = vmatpush.msra.mxu0 %v2426
    %2609 = vmatpush.msra.mxu0 %v2422
    %2610 = vmatmul.f32.gmra.mxu0 %v1950
    %v2611 = vpop.f32.mrf.mxu0
    %v2612 = vadd.f32 %v2592, %v2611
    %2613 = vdwg.mxu0
    %2614 = vmatpush.msra.mxu0 %v2419
    %2615 = vmatpush.msra.mxu0 %v2415
    %2616 = vmatpush.msra.mxu0 %v2411
    %2617 = vmatpush.msra.mxu0 %v2407
    %2618 = vmatpush.msra.mxu0 %v2403
    %2619 = vmatpush.msra.mxu0 %v2399
    %2620 = vmatpush.msra.mxu0 %v2395
    %2621 = vmatpush.msra.mxu0 %v2391
    %2622 = vmatpush.msra.mxu0 %v2387
    %2623 = vmatpush.msra.mxu0 %v2383
    %2624 = vmatpush.msra.mxu0 %v2379
    %2625 = vmatpush.msra.mxu0 %v2375
    %2626 = vmatpush.msra.mxu0 %v2371
    %2627 = vmatpush.msra.mxu0 %v2367
    %2628 = vmatpush.msra.mxu0 %v2363
    %2629 = vmatpush.msra.mxu0 %v2359
    %2630 = vmatmul.f32.gmra.mxu0 %v2355
    %v2631 = vpop.f32.mrf.mxu0
    %v2632 = vadd.f32 %v2489, %v2631
    %2633 = vdwg.mxu0
    %2634 = vmatpush.msra.mxu0 %v2483
    %2635 = vmatpush.msra.mxu0 %v2479
    %2636 = vmatpush.msra.mxu0 %v2475
    %2637 = vmatpush.msra.mxu0 %v2471
    %2638 = vmatpush.msra.mxu0 %v2467
    %2639 = vmatpush.msra.mxu0 %v2463
    %2640 = vmatpush.msra.mxu0 %v2459
    %2641 = vmatpush.msra.mxu0 %v2455
    %2642 = vmatpush.msra.mxu0 %v2451
    %2643 = vmatpush.msra.mxu0 %v2447
    %2644 = vmatpush.msra.mxu0 %v2443
    %2645 = vmatpush.msra.mxu0 %v2439
    %2646 = vmatpush.msra.mxu0 %v2435
    %2647 = vmatpush.msra.mxu0 %v2431
    %2648 = vmatpush.msra.mxu0 %v2427
    %2649 = vmatpush.msra.mxu0 %v2423
    %2650 = vmatmul.f32.gmra.mxu0 %v1950
    %v2651 = vpop.f32.mrf.mxu0
    %v2652 = vadd.f32 %v2632, %v2651
    %2653 = vdwg.mxu0
    %v2654 = vxor.u32 %v2532, 2147483648
    %v2655 = vmul.f32 %v2654, 1.442695
    %v2656 = vpow.pop %v2655
    %v2657 = vadd.f32 %v2656, 1.0
    %v2658 = vrcp.pop %v2657
    %v2659 = vmul.f32 %v2657, %v2658
    %v2660 = vsub.f32 1.0, %v2659
    %v2661 = vmul.f32 %v2658, %v2660
    %v2662 = vadd.f32 %v2658, %v2661
    %vm2663 = vweird.f32 %v2657
    %vm2664 = vweird.f32 %v2658
    %vm2665 = vmor %vm2663, %vm2664
    %v2666 = vsel %vm2665, %v2658, %v2662
    %v2667 = vand.u32 2147483647, %v2657
    %vm2668 = vcmp.eq.f32.partialorder %v2667, 8.507059e+37
    %v2669 = vand.u32 %v2657, 2147483648
    %v2670 = vor.u32 1.1754944e-38, %v2669
    %v2671 = vsel %vm2668, %v2670, %v2666
    %v2672 = vmul.f32 1.0, %v2671
    %v2673 = vxor.u32 %v2572, 2147483648
    %v2674 = vmul.f32 %v2673, 1.442695
    %v2675 = vpow.pop %v2674
    %v2676 = vadd.f32 %v2675, 1.0
    %v2677 = vrcp.pop %v2676
    %v2678 = vmul.f32 %v2676, %v2677
    %v2679 = vsub.f32 1.0, %v2678
    %v2680 = vmul.f32 %v2677, %v2679
    %v2681 = vadd.f32 %v2677, %v2680
    %vm2682 = vweird.f32 %v2676
    %vm2683 = vweird.f32 %v2677
    %vm2684 = vmor %vm2682, %vm2683
    %v2685 = vsel %vm2684, %v2677, %v2681
    %v2686 = vand.u32 2147483647, %v2676
    %vm2687 = vcmp.eq.f32.partialorder %v2686, 8.507059e+37
    %v2688 = vand.u32 %v2676, 2147483648
    %v2689 = vor.u32 1.1754944e-38, %v2688
    %v2690 = vsel %vm2687, %v2689, %v2685
    %v2691 = vmul.f32 1.0, %v2690
    %v2692 = vtanh.pop %v2612
    %v2693 = vxor.u32 %v2652, 2147483648
    %v2694 = vmul.f32 %v2693, 1.442695
    %v2695 = vpow.pop %v2694
    %v2696 = vadd.f32 %v2695, 1.0
    %v2697 = vrcp.pop %v2696
    %v2698 = vmul.f32 %v2696, %v2697
    %v2699 = vsub.f32 1.0, %v2698
    %v2700 = vmul.f32 %v2697, %v2699
    %v2701 = vadd.f32 %v2697, %v2700
    %vm2702 = vweird.f32 %v2696
    %vm2703 = vweird.f32 %v2697
    %vm2704 = vmor %vm2702, %vm2703
    %v2705 = vsel %vm2704, %v2697, %v2701
    %v2706 = vand.u32 2147483647, %v2696
    %vm2707 = vcmp.eq.f32.partialorder %v2706, 8.507059e+37
    %v2708 = vand.u32 %v2696, 2147483648
    %v2709 = vor.u32 1.1754944e-38, %v2708
    %v2710 = vsel %vm2707, %v2709, %v2705
    %v2711 = vmul.f32 1.0, %v2710
    %v2712 = vmul.f32 %v2691, %v1948
    %v2713 = vmul.f32 %v2672, %v2692
    %v2714 = vadd.f32 %v2712, %v2713
    %v2715 = vtanh.pop %v2714
    %v2716 = vmul.f32 %v2711, %v2715
    %v2717 = vld [vmem:[#allocation4] sm:$0xff]
    %v2718 = vld [vmem:[#allocation4 + $0x8] sm:$0xff]
    %v2719 = vld [vmem:[#allocation4 + $0x10] sm:$0xff]
    %v2720 = vld [vmem:[#allocation4 + $0x18] sm:$0xff]
    %v2721 = vld [vmem:[#allocation4 + $0x20] sm:$0xff]
    %v2722 = vld [vmem:[#allocation4 + $0x28] sm:$0xff]
    %v2723 = vld [vmem:[#allocation4 + $0x30] sm:$0xff]
    %v2724 = vld [vmem:[#allocation4 + $0x38] sm:$0xff]
    %v2725 = vld [vmem:[#allocation4 + $0x40] sm:$0xff]
    %v2726 = vld [vmem:[#allocation4 + $0x48] sm:$0xff]
    %v2727 = vld [vmem:[#allocation4 + $0x50] sm:$0xff]
    %v2728 = vld [vmem:[#allocation4 + $0x58] sm:$0xff]
    %v2729 = vld [vmem:[#allocation4 + $0x60] sm:$0xff]
    %v2730 = vld [vmem:[#allocation4 + $0x68] sm:$0xff]
    %v2731 = vld [vmem:[#allocation4 + $0x70] sm:$0xff]
    %v2732 = vld [vmem:[#allocation4 + $0x78] sm:$0xff]
    %v2733 = vld [vmem:[#allocation4 + $0x80] sm:$0xff]
    %v2734 = vld [vmem:[#allocation4 + $0x88] sm:$0xff]
    %v2735 = vld [vmem:[#allocation4 + $0x90] sm:$0xff]
    %v2736 = vld [vmem:[#allocation4 + $0x98] sm:$0xff]
    %v2737 = vld [vmem:[#allocation4 + $0xa0] sm:$0xff]
    %v2738 = vld [vmem:[#allocation4 + $0xa8] sm:$0xff]
    %v2739 = vld [vmem:[#allocation4 + $0xb0] sm:$0xff]
    %v2740 = vld [vmem:[#allocation4 + $0xb8] sm:$0xff]
    %v2741 = vld [vmem:[#allocation4 + $0xc0] sm:$0xff]
    %v2742 = vld [vmem:[#allocation4 + $0xc8] sm:$0xff]
    %v2743 = vld [vmem:[#allocation4 + $0xd0] sm:$0xff]
    %v2744 = vld [vmem:[#allocation4 + $0xd8] sm:$0xff]
    %v2745 = vld [vmem:[#allocation4 + $0xe0] sm:$0xff]
    %v2746 = vld [vmem:[#allocation4 + $0xe8] sm:$0xff]
    %v2747 = vld [vmem:[#allocation4 + $0xf0] sm:$0xff]
    %v2748 = vld [vmem:[#allocation4 + $0xf8] sm:$0xff]
    %v2749 = vld [vmem:[#allocation4 + $0x100] sm:$0xff]
    %v2750 = vld [vmem:[#allocation4 + $0x108] sm:$0xff]
    %v2751 = vld [vmem:[#allocation4 + $0x110] sm:$0xff]
    %v2752 = vld [vmem:[#allocation4 + $0x118] sm:$0xff]
    %v2753 = vld [vmem:[#allocation4 + $0x120] sm:$0xff]
    %v2754 = vld [vmem:[#allocation4 + $0x128] sm:$0xff]
    %v2755 = vld [vmem:[#allocation4 + $0x130] sm:$0xff]
    %v2756 = vld [vmem:[#allocation4 + $0x138] sm:$0xff]
    %v2757 = vld [vmem:[#allocation4 + $0x140] sm:$0xff]
    %v2758 = vld [vmem:[#allocation4 + $0x148] sm:$0xff]
    %v2759 = vld [vmem:[#allocation4 + $0x150] sm:$0xff]
    %v2760 = vld [vmem:[#allocation4 + $0x158] sm:$0xff]
    %v2761 = vld [vmem:[#allocation4 + $0x160] sm:$0xff]
    %v2762 = vld [vmem:[#allocation4 + $0x168] sm:$0xff]
    %v2763 = vld [vmem:[#allocation4 + $0x170] sm:$0xff]
    %v2764 = vld [vmem:[#allocation4 + $0x178] sm:$0xff]
    %v2765 = vld [vmem:[#allocation4 + $0x180] sm:$0xff]
    %v2766 = vld [vmem:[#allocation4 + $0x188] sm:$0xff]
    %v2767 = vld [vmem:[#allocation4 + $0x190] sm:$0xff]
    %v2768 = vld [vmem:[#allocation4 + $0x198] sm:$0xff]
    %v2769 = vld [vmem:[#allocation4 + $0x1a0] sm:$0xff]
    %v2770 = vld [vmem:[#allocation4 + $0x1a8] sm:$0xff]
    %v2771 = vld [vmem:[#allocation4 + $0x1b0] sm:$0xff]
    %v2772 = vld [vmem:[#allocation4 + $0x1b8] sm:$0xff]
    %v2773 = vld [vmem:[#allocation4 + $0x1c0] sm:$0xff]
    %v2774 = vld [vmem:[#allocation4 + $0x1c8] sm:$0xff]
    %v2775 = vld [vmem:[#allocation4 + $0x1d0] sm:$0xff]
    %v2776 = vld [vmem:[#allocation4 + $0x1d8] sm:$0xff]
    %v2777 = vld [vmem:[#allocation4 + $0x1e0] sm:$0xff]
    %v2778 = vld [vmem:[#allocation4 + $0x1e8] sm:$0xff]
    %v2779 = vld [vmem:[#allocation4 + $0x1f0] sm:$0xff]
    %v2780 = vld [vmem:[#allocation4 + $0x1f8] sm:$0xff]
    %v2781 = vld [vmem:[#allocation4 + $0x200] sm:$0xff]
    %v2782 = vld [vmem:[#allocation4 + $0x208] sm:$0xff]
    %v2783 = vld [vmem:[#allocation4 + $0x210] sm:$0xff]
    %v2784 = vld [vmem:[#allocation4 + $0x218] sm:$0xff]
    %v2785 = vld [vmem:[#allocation4 + $0x220] sm:$0xff]
    %v2786 = vld [vmem:[#allocation4 + $0x228] sm:$0xff]
    %v2787 = vld [vmem:[#allocation4 + $0x230] sm:$0xff]
    %v2788 = vld [vmem:[#allocation4 + $0x238] sm:$0xff]
    %v2789 = vld [vmem:[#allocation4 + $0x240] sm:$0xff]
    %v2790 = vld [vmem:[#allocation4 + $0x248] sm:$0xff]
    %v2791 = vld [vmem:[#allocation4 + $0x250] sm:$0xff]
    %v2792 = vld [vmem:[#allocation4 + $0x258] sm:$0xff]
    %v2793 = vld [vmem:[#allocation4 + $0x260] sm:$0xff]
    %v2794 = vld [vmem:[#allocation4 + $0x268] sm:$0xff]
    %v2795 = vld [vmem:[#allocation4 + $0x270] sm:$0xff]
    %v2796 = vld [vmem:[#allocation4 + $0x278] sm:$0xff]
    %v2797 = vld [vmem:[#allocation4 + $0x280] sm:$0xff]
    %v2798 = vld [vmem:[#allocation4 + $0x288] sm:$0xff]
    %v2799 = vld [vmem:[#allocation4 + $0x290] sm:$0xff]
    %v2800 = vld [vmem:[#allocation4 + $0x298] sm:$0xff]
    %v2801 = vld [vmem:[#allocation4 + $0x2a0] sm:$0xff]
    %v2802 = vld [vmem:[#allocation4 + $0x2a8] sm:$0xff]
    %v2803 = vld [vmem:[#allocation4 + $0x2b0] sm:$0xff]
    %v2804 = vld [vmem:[#allocation4 + $0x2b8] sm:$0xff]
    %v2805 = vld [vmem:[#allocation4 + $0x2c0] sm:$0xff]
    %v2806 = vld [vmem:[#allocation4 + $0x2c8] sm:$0xff]
    %v2807 = vld [vmem:[#allocation4 + $0x2d0] sm:$0xff]
    %v2808 = vld [vmem:[#allocation4 + $0x2d8] sm:$0xff]
    %v2809 = vld [vmem:[#allocation4 + $0x2e0] sm:$0xff]
    %v2810 = vld [vmem:[#allocation4 + $0x2e8] sm:$0xff]
    %v2811 = vld [vmem:[#allocation4 + $0x2f0] sm:$0xff]
    %v2812 = vld [vmem:[#allocation4 + $0x2f8] sm:$0xff]
    %v2813 = vld [vmem:[#allocation4 + $0x300] sm:$0xff]
    %v2814 = vld [vmem:[#allocation4 + $0x308] sm:$0xff]
    %v2815 = vld [vmem:[#allocation4 + $0x310] sm:$0xff]
    %v2816 = vld [vmem:[#allocation4 + $0x318] sm:$0xff]
    %v2817 = vld [vmem:[#allocation4 + $0x320] sm:$0xff]
    %v2818 = vld [vmem:[#allocation4 + $0x328] sm:$0xff]
    %v2819 = vld [vmem:[#allocation4 + $0x330] sm:$0xff]
    %v2820 = vld [vmem:[#allocation4 + $0x338] sm:$0xff]
    %v2821 = vld [vmem:[#allocation4 + $0x340] sm:$0xff]
    %v2822 = vld [vmem:[#allocation4 + $0x348] sm:$0xff]
    %v2823 = vld [vmem:[#allocation4 + $0x350] sm:$0xff]
    %v2824 = vld [vmem:[#allocation4 + $0x358] sm:$0xff]
    %v2825 = vld [vmem:[#allocation4 + $0x360] sm:$0xff]
    %v2826 = vld [vmem:[#allocation4 + $0x368] sm:$0xff]
    %v2827 = vld [vmem:[#allocation4 + $0x370] sm:$0xff]
    %v2828 = vld [vmem:[#allocation4 + $0x378] sm:$0xff]
    %v2829 = vld [vmem:[#allocation4 + $0x380] sm:$0xff]
    %v2830 = vld [vmem:[#allocation4 + $0x388] sm:$0xff]
    %v2831 = vld [vmem:[#allocation4 + $0x390] sm:$0xff]
    %v2832 = vld [vmem:[#allocation4 + $0x398] sm:$0xff]
    %v2833 = vld [vmem:[#allocation4 + $0x3a0] sm:$0xff]
    %v2834 = vld [vmem:[#allocation4 + $0x3a8] sm:$0xff]
    %v2835 = vld [vmem:[#allocation4 + $0x3b0] sm:$0xff]
    %v2836 = vld [vmem:[#allocation4 + $0x3b8] sm:$0xff]
    %v2837 = vld [vmem:[#allocation4 + $0x3c0] sm:$0xff]
    %v2838 = vld [vmem:[#allocation4 + $0x3c8] sm:$0xff]
    %v2839 = vld [vmem:[#allocation4 + $0x3d0] sm:$0xff]
    %v2840 = vld [vmem:[#allocation4 + $0x3d8] sm:$0xff]
    %v2841 = vld [vmem:[#allocation4 + $0x3e0] sm:$0xff]
    %v2842 = vld [vmem:[#allocation4 + $0x3e8] sm:$0xff]
    %v2843 = vld [vmem:[#allocation4 + $0x3f0] sm:$0xff]
    %v2844 = vld [vmem:[#allocation4 + $0x3f8] sm:$0xff]
    %v2845 = vld [vmem:[%s4] sm:$0xf]
    %v2847 = vperm.slane %v2845, 0
    %v2848 = vperm.slane %v2845, 1
    %v2849 = vperm.slane %v2845, 2
    %v2850 = vperm.slane %v2845, 3
    %2855 = vmatpush.msra.mxu0 %v2777
    %2856 = vmatpush.msra.mxu0 %v2773
    %2857 = vmatpush.msra.mxu0 %v2769
    %2858 = vmatpush.msra.mxu0 %v2765
    %2859 = vmatpush.msra.mxu0 %v2761
    %2860 = vmatpush.msra.mxu0 %v2757
    %2861 = vmatpush.msra.mxu0 %v2753
    %2862 = vmatpush.msra.mxu0 %v2749
    %2863 = vmatpush.msra.mxu0 %v2745
    %2864 = vmatpush.msra.mxu0 %v2741
    %2865 = vmatpush.msra.mxu0 %v2737
    %2866 = vmatpush.msra.mxu0 %v2733
    %2867 = vmatpush.msra.mxu0 %v2729
    %2868 = vmatpush.msra.mxu0 %v2725
    %2869 = vmatpush.msra.mxu0 %v2721
    %2870 = vmatpush.msra.mxu0 %v2717
    %2871 = vmatmul.f32.gmra.mxu0 %v2716
    %v2872 = vpop.f32.mrf.mxu0
    %v2873 = vadd.f32 %v2847, %v2872
    %2874 = vdwg.mxu0
    %2875 = vmatpush.msra.mxu0 %v2841
    %2876 = vmatpush.msra.mxu0 %v2837
    %2877 = vmatpush.msra.mxu0 %v2833
    %2878 = vmatpush.msra.mxu0 %v2829
    %2879 = vmatpush.msra.mxu0 %v2825
    %2880 = vmatpush.msra.mxu0 %v2821
    %2881 = vmatpush.msra.mxu0 %v2817
    %2882 = vmatpush.msra.mxu0 %v2813
    %2883 = vmatpush.msra.mxu0 %v2809
    %2884 = vmatpush.msra.mxu0 %v2805
    %2885 = vmatpush.msra.mxu0 %v2801
    %2886 = vmatpush.msra.mxu0 %v2797
    %2887 = vmatpush.msra.mxu0 %v2793
    %2888 = vmatpush.msra.mxu0 %v2789
    %2889 = vmatpush.msra.mxu0 %v2785
    %2890 = vmatpush.msra.mxu0 %v2781
    %2891 = vmatmul.f32.gmra.mxu0 %v2311
    %v2892 = vpop.f32.mrf.mxu0
    %v2893 = vadd.f32 %v2873, %v2892
    %2894 = vdwg.mxu0
    %2895 = vmatpush.msra.mxu0 %v2778
    %2896 = vmatpush.msra.mxu0 %v2774
    %2897 = vmatpush.msra.mxu0 %v2770
    %2898 = vmatpush.msra.mxu0 %v2766
    %2899 = vmatpush.msra.mxu0 %v2762
    %2900 = vmatpush.msra.mxu0 %v2758
    %2901 = vmatpush.msra.mxu0 %v2754
    %2902 = vmatpush.msra.mxu0 %v2750
    %2903 = vmatpush.msra.mxu0 %v2746
    %2904 = vmatpush.msra.mxu0 %v2742
    %2905 = vmatpush.msra.mxu0 %v2738
    %2906 = vmatpush.msra.mxu0 %v2734
    %2907 = vmatpush.msra.mxu0 %v2730
    %2908 = vmatpush.msra.mxu0 %v2726
    %2909 = vmatpush.msra.mxu0 %v2722
    %2910 = vmatpush.msra.mxu0 %v2718
    %2911 = vmatmul.f32.gmra.mxu0 %v2716
    %v2912 = vpop.f32.mrf.mxu0
    %v2913 = vadd.f32 %v2848, %v2912
    %2914 = vdwg.mxu0
    %2915 = vmatpush.msra.mxu0 %v2842
    %2916 = vmatpush.msra.mxu0 %v2838
    %2917 = vmatpush.msra.mxu0 %v2834
    %2918 = vmatpush.msra.mxu0 %v2830
    %2919 = vmatpush.msra.mxu0 %v2826
    %2920 = vmatpush.msra.mxu0 %v2822
    %2921 = vmatpush.msra.mxu0 %v2818
    %2922 = vmatpush.msra.mxu0 %v2814
    %2923 = vmatpush.msra.mxu0 %v2810
    %2924 = vmatpush.msra.mxu0 %v2806
    %2925 = vmatpush.msra.mxu0 %v2802
    %2926 = vmatpush.msra.mxu0 %v2798
    %2927 = vmatpush.msra.mxu0 %v2794
    %2928 = vmatpush.msra.mxu0 %v2790
    %2929 = vmatpush.msra.mxu0 %v2786
    %2930 = vmatpush.msra.mxu0 %v2782
    %2931 = vmatmul.f32.gmra.mxu0 %v2311
    %v2932 = vpop.f32.mrf.mxu0
    %v2933 = vadd.f32 %v2913, %v2932
    %2934 = vdwg.mxu0
    %2935 = vmatpush.msra.mxu0 %v2779
    %2936 = vmatpush.msra.mxu0 %v2775
    %2937 = vmatpush.msra.mxu0 %v2771
    %2938 = vmatpush.msra.mxu0 %v2767
    %2939 = vmatpush.msra.mxu0 %v2763
    %2940 = vmatpush.msra.mxu0 %v2759
    %2941 = vmatpush.msra.mxu0 %v2755
    %2942 = vmatpush.msra.mxu0 %v2751
    %2943 = vmatpush.msra.mxu0 %v2747
    %2944 = vmatpush.msra.mxu0 %v2743
    %2945 = vmatpush.msra.mxu0 %v2739
    %2946 = vmatpush.msra.mxu0 %v2735
    %2947 = vmatpush.msra.mxu0 %v2731
    %2948 = vmatpush.msra.mxu0 %v2727
    %2949 = vmatpush.msra.mxu0 %v2723
    %2950 = vmatpush.msra.mxu0 %v2719
    %2951 = vmatmul.f32.gmra.mxu0 %v2716
    %v2952 = vpop.f32.mrf.mxu0
    %v2953 = vadd.f32 %v2849, %v2952
    %2954 = vdwg.mxu0
    %2955 = vmatpush.msra.mxu0 %v2843
    %2956 = vmatpush.msra.mxu0 %v2839
    %2957 = vmatpush.msra.mxu0 %v2835
    %2958 = vmatpush.msra.mxu0 %v2831
    %2959 = vmatpush.msra.mxu0 %v2827
    %2960 = vmatpush.msra.mxu0 %v2823
    %2961 = vmatpush.msra.mxu0 %v2819
    %2962 = vmatpush.msra.mxu0 %v2815
    %2963 = vmatpush.msra.mxu0 %v2811
    %2964 = vmatpush.msra.mxu0 %v2807
    %2965 = vmatpush.msra.mxu0 %v2803
    %2966 = vmatpush.msra.mxu0 %v2799
    %2967 = vmatpush.msra.mxu0 %v2795
    %2968 = vmatpush.msra.mxu0 %v2791
    %2969 = vmatpush.msra.mxu0 %v2787
    %2970 = vmatpush.msra.mxu0 %v2783
    %2971 = vmatmul.f32.gmra.mxu0 %v2311
    %v2972 = vpop.f32.mrf.mxu0
    %v2973 = vadd.f32 %v2953, %v2972
    %2974 = vdwg.mxu0
    %2975 = vmatpush.msra.mxu0 %v2780
    %2976 = vmatpush.msra.mxu0 %v2776
    %2977 = vmatpush.msra.mxu0 %v2772
    %2978 = vmatpush.msra.mxu0 %v2768
    %2979 = vmatpush.msra.mxu0 %v2764
    %2980 = vmatpush.msra.mxu0 %v2760
    %2981 = vmatpush.msra.mxu0 %v2756
    %2982 = vmatpush.msra.mxu0 %v2752
    %2983 = vmatpush.msra.mxu0 %v2748
    %2984 = vmatpush.msra.mxu0 %v2744
    %2985 = vmatpush.msra.mxu0 %v2740
    %2986 = vmatpush.msra.mxu0 %v2736
    %2987 = vmatpush.msra.mxu0 %v2732
    %2988 = vmatpush.msra.mxu0 %v2728
    %2989 = vmatpush.msra.mxu0 %v2724
    %2990 = vmatpush.msra.mxu0 %v2720
    %2991 = vmatmul.f32.gmra.mxu0 %v2716
    %v2992 = vpop.f32.mrf.mxu0
    %v2993 = vadd.f32 %v2850, %v2992
    %2994 = vdwg.mxu0
    %2995 = vmatpush.msra.mxu0 %v2844
    %2996 = vmatpush.msra.mxu0 %v2840
    %2997 = vmatpush.msra.mxu0 %v2836
    %2998 = vmatpush.msra.mxu0 %v2832
    %2999 = vmatpush.msra.mxu0 %v2828
    %3000 = vmatpush.msra.mxu0 %v2824
    %3001 = vmatpush.msra.mxu0 %v2820
    %3002 = vmatpush.msra.mxu0 %v2816
    %3003 = vmatpush.msra.mxu0 %v2812
    %3004 = vmatpush.msra.mxu0 %v2808
    %3005 = vmatpush.msra.mxu0 %v2804
    %3006 = vmatpush.msra.mxu0 %v2800
    %3007 = vmatpush.msra.mxu0 %v2796
    %3008 = vmatpush.msra.mxu0 %v2792
    %3009 = vmatpush.msra.mxu0 %v2788
    %3010 = vmatpush.msra.mxu0 %v2784
    %3011 = vmatmul.f32.gmra.mxu0 %v2311
    %v3012 = vpop.f32.mrf.mxu0
    %v3013 = vadd.f32 %v2993, %v3012
    %3014 = vdwg.mxu0
    %v3015 = vxor.u32 %v2893, 2147483648
    %v3016 = vmul.f32 %v3015, 1.442695
    %v3017 = vpow.pop %v3016
    %v3018 = vadd.f32 %v3017, 1.0
    %v3019 = vrcp.pop %v3018
    %v3020 = vmul.f32 %v3018, %v3019
    %v3021 = vsub.f32 1.0, %v3020
    %v3022 = vmul.f32 %v3019, %v3021
    %v3023 = vadd.f32 %v3019, %v3022
    %vm3024 = vweird.f32 %v3018
    %vm3025 = vweird.f32 %v3019
    %vm3026 = vmor %vm3024, %vm3025
    %v3027 = vsel %vm3026, %v3019, %v3023
    %v3028 = vand.u32 2147483647, %v3018
    %vm3029 = vcmp.eq.f32.partialorder %v3028, 8.507059e+37
    %v3030 = vand.u32 %v3018, 2147483648
    %v3031 = vor.u32 1.1754944e-38, %v3030
    %v3032 = vsel %vm3029, %v3031, %v3027
    %v3033 = vmul.f32 1.0, %v3032
    %v3034 = vxor.u32 %v2933, 2147483648
    %v3035 = vmul.f32 %v3034, 1.442695
    %v3036 = vpow.pop %v3035
    %v3037 = vadd.f32 %v3036, 1.0
    %v3038 = vrcp.pop %v3037
    %v3039 = vmul.f32 %v3037, %v3038
    %v3040 = vsub.f32 1.0, %v3039
    %v3041 = vmul.f32 %v3038, %v3040
    %v3042 = vadd.f32 %v3038, %v3041
    %vm3043 = vweird.f32 %v3037
    %vm3044 = vweird.f32 %v3038
    %vm3045 = vmor %vm3043, %vm3044
    %v3046 = vsel %vm3045, %v3038, %v3042
    %v3047 = vand.u32 2147483647, %v3037
    %vm3048 = vcmp.eq.f32.partialorder %v3047, 8.507059e+37
    %v3049 = vand.u32 %v3037, 2147483648
    %v3050 = vor.u32 1.1754944e-38, %v3049
    %v3051 = vsel %vm3048, %v3050, %v3046
    %v3052 = vmul.f32 1.0, %v3051
    %v3053 = vtanh.pop %v2973
    %v3054 = vxor.u32 %v3013, 2147483648
    %v3055 = vmul.f32 %v3054, 1.442695
    %v3056 = vpow.pop %v3055
    %v3057 = vadd.f32 %v3056, 1.0
    %v3058 = vrcp.pop %v3057
    %v3059 = vmul.f32 %v3057, %v3058
    %v3060 = vsub.f32 1.0, %v3059
    %v3061 = vmul.f32 %v3058, %v3060
    %v3062 = vadd.f32 %v3058, %v3061
    %vm3063 = vweird.f32 %v3057
    %vm3064 = vweird.f32 %v3058
    %vm3065 = vmor %vm3063, %vm3064
    %v3066 = vsel %vm3065, %v3058, %v3062
    %v3067 = vand.u32 2147483647, %v3057
    %vm3068 = vcmp.eq.f32.partialorder %v3067, 8.507059e+37
    %v3069 = vand.u32 %v3057, 2147483648
    %v3070 = vor.u32 1.1754944e-38, %v3069
    %v3071 = vsel %vm3068, %v3070, %v3066
    %v3072 = vmul.f32 1.0, %v3071
    %v3073 = vmul.f32 %v3052, %v2309
    %v3074 = vmul.f32 %v3033, %v3053
    %v3075 = vadd.f32 %v3073, %v3074
    %v3076 = vtanh.pop %v3075
    %v3077 = vmul.f32 %v3072, %v3076
    %v3078 = vld [vmem:[%s5] sm:$0xff]
    %v3079 = vld [vmem:[%s5 + $0x8] sm:$0xff]
    %v3080 = vld [vmem:[%s5 + $0x10] sm:$0xff]
    %v3081 = vld [vmem:[%s5 + $0x18] sm:$0xff]
    %v3082 = vld [vmem:[%s5 + $0x20] sm:$0xff]
    %v3083 = vld [vmem:[%s5 + $0x28] sm:$0xff]
    %v3084 = vld [vmem:[%s5 + $0x30] sm:$0xff]
    %v3085 = vld [vmem:[%s5 + $0x38] sm:$0xff]
    %v3086 = vld [vmem:[%s5 + $0x40] sm:$0xff]
    %v3087 = vld [vmem:[%s5 + $0x48] sm:$0xff]
    %v3088 = vld [vmem:[%s5 + $0x50] sm:$0xff]
    %v3089 = vld [vmem:[%s5 + $0x58] sm:$0xff]
    %v3090 = vld [vmem:[%s5 + $0x60] sm:$0xff]
    %v3091 = vld [vmem:[%s5 + $0x68] sm:$0xff]
    %v3092 = vld [vmem:[%s5 + $0x70] sm:$0xff]
    %v3093 = vld [vmem:[%s5 + $0x78] sm:$0xff]
    %v3094 = vld [vmem:[%s6] sm:$0x1]
    %v3096 = vperm.slane %v3094, 0
    %3098 = vmatpush.msra.mxu0 %v3093
    %3099 = vmatpush.msra.mxu0 %v3092
    %3100 = vmatpush.msra.mxu0 %v3091
    %3101 = vmatpush.msra.mxu0 %v3090
    %3102 = vmatpush.msra.mxu0 %v3089
    %3103 = vmatpush.msra.mxu0 %v3088
    %3104 = vmatpush.msra.mxu0 %v3087
    %3105 = vmatpush.msra.mxu0 %v3086
    %3106 = vmatpush.msra.mxu0 %v3085
    %3107 = vmatpush.msra.mxu0 %v3084
    %3108 = vmatpush.msra.mxu0 %v3083
    %3109 = vmatpush.msra.mxu0 %v3082
    %3110 = vmatpush.msra.mxu0 %v3081
    %3111 = vmatpush.msra.mxu0 %v3080
    %3112 = vmatpush.msra.mxu0 %v3079
    %3113 = vmatpush.msra.mxu0 %v3078
    %3114 = vmatmul.f32.gmra.mxu0 %v3077
    %v3115 = vpop.f32.mrf.mxu0
    %v3116 = vadd.f32 %v3096, %v3115
    %3117 = vdwg.mxu0
    %s3118 = scalar_lea.vmem %s7, 24
    %3119 = vst [vmem:[%s3118] sm:$0xff] %v3116
    %s3120 = scalar_lea.vmem %s0, 32
    %v3121 = vld [vmem:[%s3120] sm:$0xff]
    %v3122 = vld [vmem:[#allocation2] sm:$0xff]
    %v3123 = vld [vmem:[#allocation2 + $0x8] sm:$0xff]
    %v3124 = vld [vmem:[#allocation2 + $0x10] sm:$0xff]
    %v3125 = vld [vmem:[#allocation2 + $0x18] sm:$0xff]
    %v3126 = vld [vmem:[#allocation2 + $0x20] sm:$0xff]
    %v3127 = vld [vmem:[#allocation2 + $0x28] sm:$0xff]
    %v3128 = vld [vmem:[#allocation2 + $0x30] sm:$0xff]
    %v3129 = vld [vmem:[#allocation2 + $0x38] sm:$0xff]
    %v3130 = vld [vmem:[#allocation2 + $0x40] sm:$0xff]
    %v3131 = vld [vmem:[#allocation2 + $0x48] sm:$0xff]
    %v3132 = vld [vmem:[#allocation2 + $0x50] sm:$0xff]
    %v3133 = vld [vmem:[#allocation2 + $0x58] sm:$0xff]
    %v3134 = vld [vmem:[#allocation2 + $0x60] sm:$0xff]
    %v3135 = vld [vmem:[#allocation2 + $0x68] sm:$0xff]
    %v3136 = vld [vmem:[#allocation2 + $0x70] sm:$0xff]
    %v3137 = vld [vmem:[#allocation2 + $0x78] sm:$0xff]
    %v3138 = vld [vmem:[#allocation2 + $0x80] sm:$0xff]
    %v3139 = vld [vmem:[#allocation2 + $0x88] sm:$0xff]
    %v3140 = vld [vmem:[#allocation2 + $0x90] sm:$0xff]
    %v3141 = vld [vmem:[#allocation2 + $0x98] sm:$0xff]
    %v3142 = vld [vmem:[#allocation2 + $0xa0] sm:$0xff]
    %v3143 = vld [vmem:[#allocation2 + $0xa8] sm:$0xff]
    %v3144 = vld [vmem:[#allocation2 + $0xb0] sm:$0xff]
    %v3145 = vld [vmem:[#allocation2 + $0xb8] sm:$0xff]
    %v3146 = vld [vmem:[#allocation2 + $0xc0] sm:$0xff]
    %v3147 = vld [vmem:[#allocation2 + $0xc8] sm:$0xff]
    %v3148 = vld [vmem:[#allocation2 + $0xd0] sm:$0xff]
    %v3149 = vld [vmem:[#allocation2 + $0xd8] sm:$0xff]
    %v3150 = vld [vmem:[#allocation2 + $0xe0] sm:$0xff]
    %v3151 = vld [vmem:[#allocation2 + $0xe8] sm:$0xff]
    %v3152 = vld [vmem:[#allocation2 + $0xf0] sm:$0xff]
    %v3153 = vld [vmem:[#allocation2 + $0xf8] sm:$0xff]
    %v3154 = vld [vmem:[#allocation2 + $0x100] sm:$0xff]
    %v3155 = vld [vmem:[#allocation2 + $0x108] sm:$0xff]
    %v3156 = vld [vmem:[#allocation2 + $0x110] sm:$0xff]
    %v3157 = vld [vmem:[#allocation2 + $0x118] sm:$0xff]
    %v3158 = vld [vmem:[#allocation2 + $0x120] sm:$0xff]
    %v3159 = vld [vmem:[#allocation2 + $0x128] sm:$0xff]
    %v3160 = vld [vmem:[#allocation2 + $0x130] sm:$0xff]
    %v3161 = vld [vmem:[#allocation2 + $0x138] sm:$0xff]
    %v3162 = vld [vmem:[#allocation2 + $0x140] sm:$0xff]
    %v3163 = vld [vmem:[#allocation2 + $0x148] sm:$0xff]
    %v3164 = vld [vmem:[#allocation2 + $0x150] sm:$0xff]
    %v3165 = vld [vmem:[#allocation2 + $0x158] sm:$0xff]
    %v3166 = vld [vmem:[#allocation2 + $0x160] sm:$0xff]
    %v3167 = vld [vmem:[#allocation2 + $0x168] sm:$0xff]
    %v3168 = vld [vmem:[#allocation2 + $0x170] sm:$0xff]
    %v3169 = vld [vmem:[#allocation2 + $0x178] sm:$0xff]
    %v3170 = vld [vmem:[#allocation2 + $0x180] sm:$0xff]
    %v3171 = vld [vmem:[#allocation2 + $0x188] sm:$0xff]
    %v3172 = vld [vmem:[#allocation2 + $0x190] sm:$0xff]
    %v3173 = vld [vmem:[#allocation2 + $0x198] sm:$0xff]
    %v3174 = vld [vmem:[#allocation2 + $0x1a0] sm:$0xff]
    %v3175 = vld [vmem:[#allocation2 + $0x1a8] sm:$0xff]
    %v3176 = vld [vmem:[#allocation2 + $0x1b0] sm:$0xff]
    %v3177 = vld [vmem:[#allocation2 + $0x1b8] sm:$0xff]
    %v3178 = vld [vmem:[#allocation2 + $0x1c0] sm:$0xff]
    %v3179 = vld [vmem:[#allocation2 + $0x1c8] sm:$0xff]
    %v3180 = vld [vmem:[#allocation2 + $0x1d0] sm:$0xff]
    %v3181 = vld [vmem:[#allocation2 + $0x1d8] sm:$0xff]
    %v3182 = vld [vmem:[#allocation2 + $0x1e0] sm:$0xff]
    %v3183 = vld [vmem:[#allocation2 + $0x1e8] sm:$0xff]
    %v3184 = vld [vmem:[#allocation2 + $0x1f0] sm:$0xff]
    %v3185 = vld [vmem:[#allocation2 + $0x1f8] sm:$0xff]
    %v3186 = vld [vmem:[#allocation2 + $0x200] sm:$0xff]
    %v3187 = vld [vmem:[#allocation2 + $0x208] sm:$0xff]
    %v3188 = vld [vmem:[#allocation2 + $0x210] sm:$0xff]
    %v3189 = vld [vmem:[#allocation2 + $0x218] sm:$0xff]
    %v3190 = vld [vmem:[#allocation2 + $0x220] sm:$0xff]
    %v3191 = vld [vmem:[#allocation2 + $0x228] sm:$0xff]
    %v3192 = vld [vmem:[#allocation2 + $0x230] sm:$0xff]
    %v3193 = vld [vmem:[#allocation2 + $0x238] sm:$0xff]
    %v3194 = vld [vmem:[#allocation2 + $0x240] sm:$0xff]
    %v3195 = vld [vmem:[#allocation2 + $0x248] sm:$0xff]
    %v3196 = vld [vmem:[#allocation2 + $0x250] sm:$0xff]
    %v3197 = vld [vmem:[#allocation2 + $0x258] sm:$0xff]
    %v3198 = vld [vmem:[#allocation2 + $0x260] sm:$0xff]
    %v3199 = vld [vmem:[#allocation2 + $0x268] sm:$0xff]
    %v3200 = vld [vmem:[#allocation2 + $0x270] sm:$0xff]
    %v3201 = vld [vmem:[#allocation2 + $0x278] sm:$0xff]
    %v3202 = vld [vmem:[#allocation2 + $0x280] sm:$0xff]
    %v3203 = vld [vmem:[#allocation2 + $0x288] sm:$0xff]
    %v3204 = vld [vmem:[#allocation2 + $0x290] sm:$0xff]
    %v3205 = vld [vmem:[#allocation2 + $0x298] sm:$0xff]
    %v3206 = vld [vmem:[#allocation2 + $0x2a0] sm:$0xff]
    %v3207 = vld [vmem:[#allocation2 + $0x2a8] sm:$0xff]
    %v3208 = vld [vmem:[#allocation2 + $0x2b0] sm:$0xff]
    %v3209 = vld [vmem:[#allocation2 + $0x2b8] sm:$0xff]
    %v3210 = vld [vmem:[#allocation2 + $0x2c0] sm:$0xff]
    %v3211 = vld [vmem:[#allocation2 + $0x2c8] sm:$0xff]
    %v3212 = vld [vmem:[#allocation2 + $0x2d0] sm:$0xff]
    %v3213 = vld [vmem:[#allocation2 + $0x2d8] sm:$0xff]
    %v3214 = vld [vmem:[#allocation2 + $0x2e0] sm:$0xff]
    %v3215 = vld [vmem:[#allocation2 + $0x2e8] sm:$0xff]
    %v3216 = vld [vmem:[#allocation2 + $0x2f0] sm:$0xff]
    %v3217 = vld [vmem:[#allocation2 + $0x2f8] sm:$0xff]
    %v3218 = vld [vmem:[#allocation2 + $0x300] sm:$0xff]
    %v3219 = vld [vmem:[#allocation2 + $0x308] sm:$0xff]
    %v3220 = vld [vmem:[#allocation2 + $0x310] sm:$0xff]
    %v3221 = vld [vmem:[#allocation2 + $0x318] sm:$0xff]
    %v3222 = vld [vmem:[#allocation2 + $0x320] sm:$0xff]
    %v3223 = vld [vmem:[#allocation2 + $0x328] sm:$0xff]
    %v3224 = vld [vmem:[#allocation2 + $0x330] sm:$0xff]
    %v3225 = vld [vmem:[#allocation2 + $0x338] sm:$0xff]
    %v3226 = vld [vmem:[#allocation2 + $0x340] sm:$0xff]
    %v3227 = vld [vmem:[#allocation2 + $0x348] sm:$0xff]
    %v3228 = vld [vmem:[#allocation2 + $0x350] sm:$0xff]
    %v3229 = vld [vmem:[#allocation2 + $0x358] sm:$0xff]
    %v3230 = vld [vmem:[#allocation2 + $0x360] sm:$0xff]
    %v3231 = vld [vmem:[#allocation2 + $0x368] sm:$0xff]
    %v3232 = vld [vmem:[#allocation2 + $0x370] sm:$0xff]
    %v3233 = vld [vmem:[#allocation2 + $0x378] sm:$0xff]
    %v3234 = vld [vmem:[#allocation2 + $0x380] sm:$0xff]
    %v3235 = vld [vmem:[#allocation2 + $0x388] sm:$0xff]
    %v3236 = vld [vmem:[#allocation2 + $0x390] sm:$0xff]
    %v3237 = vld [vmem:[#allocation2 + $0x398] sm:$0xff]
    %v3238 = vld [vmem:[#allocation2 + $0x3a0] sm:$0xff]
    %v3239 = vld [vmem:[#allocation2 + $0x3a8] sm:$0xff]
    %v3240 = vld [vmem:[#allocation2 + $0x3b0] sm:$0xff]
    %v3241 = vld [vmem:[#allocation2 + $0x3b8] sm:$0xff]
    %v3242 = vld [vmem:[#allocation2 + $0x3c0] sm:$0xff]
    %v3243 = vld [vmem:[#allocation2 + $0x3c8] sm:$0xff]
    %v3244 = vld [vmem:[#allocation2 + $0x3d0] sm:$0xff]
    %v3245 = vld [vmem:[#allocation2 + $0x3d8] sm:$0xff]
    %v3246 = vld [vmem:[#allocation2 + $0x3e0] sm:$0xff]
    %v3247 = vld [vmem:[#allocation2 + $0x3e8] sm:$0xff]
    %v3248 = vld [vmem:[#allocation2 + $0x3f0] sm:$0xff]
    %v3249 = vld [vmem:[#allocation2 + $0x3f8] sm:$0xff]
    %v3250 = vld [vmem:[%s2] sm:$0xf]
    %v3252 = vperm.slane %v3250, 0
    %v3253 = vperm.slane %v3250, 1
    %v3254 = vperm.slane %v3250, 2
    %v3255 = vperm.slane %v3250, 3
    %3260 = vmatpush.msra.mxu0 %v3182
    %3261 = vmatpush.msra.mxu0 %v3178
    %3262 = vmatpush.msra.mxu0 %v3174
    %3263 = vmatpush.msra.mxu0 %v3170
    %3264 = vmatpush.msra.mxu0 %v3166
    %3265 = vmatpush.msra.mxu0 %v3162
    %3266 = vmatpush.msra.mxu0 %v3158
    %3267 = vmatpush.msra.mxu0 %v3154
    %3268 = vmatpush.msra.mxu0 %v3150
    %3269 = vmatpush.msra.mxu0 %v3146
    %3270 = vmatpush.msra.mxu0 %v3142
    %3271 = vmatpush.msra.mxu0 %v3138
    %3272 = vmatpush.msra.mxu0 %v3134
    %3273 = vmatpush.msra.mxu0 %v3130
    %3274 = vmatpush.msra.mxu0 %v3126
    %3275 = vmatpush.msra.mxu0 %v3122
    %3276 = vmatmul.f32.gmra.mxu0 %v3121
    %v3277 = vpop.f32.mrf.mxu0
    %v3278 = vadd.f32 %v3252, %v3277
    %3279 = vdwg.mxu0
    %3280 = vmatpush.msra.mxu0 %v3246
    %3281 = vmatpush.msra.mxu0 %v3242
    %3282 = vmatpush.msra.mxu0 %v3238
    %3283 = vmatpush.msra.mxu0 %v3234
    %3284 = vmatpush.msra.mxu0 %v3230
    %3285 = vmatpush.msra.mxu0 %v3226
    %3286 = vmatpush.msra.mxu0 %v3222
    %3287 = vmatpush.msra.mxu0 %v3218
    %3288 = vmatpush.msra.mxu0 %v3214
    %3289 = vmatpush.msra.mxu0 %v3210
    %3290 = vmatpush.msra.mxu0 %v3206
    %3291 = vmatpush.msra.mxu0 %v3202
    %3292 = vmatpush.msra.mxu0 %v3198
    %3293 = vmatpush.msra.mxu0 %v3194
    %3294 = vmatpush.msra.mxu0 %v3190
    %3295 = vmatpush.msra.mxu0 %v3186
    %3296 = vmatmul.f32.gmra.mxu0 %v2716
    %v3297 = vpop.f32.mrf.mxu0
    %v3298 = vadd.f32 %v3278, %v3297
    %3299 = vdwg.mxu0
    %3300 = vmatpush.msra.mxu0 %v3183
    %3301 = vmatpush.msra.mxu0 %v3179
    %3302 = vmatpush.msra.mxu0 %v3175
    %3303 = vmatpush.msra.mxu0 %v3171
    %3304 = vmatpush.msra.mxu0 %v3167
    %3305 = vmatpush.msra.mxu0 %v3163
    %3306 = vmatpush.msra.mxu0 %v3159
    %3307 = vmatpush.msra.mxu0 %v3155
    %3308 = vmatpush.msra.mxu0 %v3151
    %3309 = vmatpush.msra.mxu0 %v3147
    %3310 = vmatpush.msra.mxu0 %v3143
    %3311 = vmatpush.msra.mxu0 %v3139
    %3312 = vmatpush.msra.mxu0 %v3135
    %3313 = vmatpush.msra.mxu0 %v3131
    %3314 = vmatpush.msra.mxu0 %v3127
    %3315 = vmatpush.msra.mxu0 %v3123
    %3316 = vmatmul.f32.gmra.mxu0 %v3121
    %v3317 = vpop.f32.mrf.mxu0
    %v3318 = vadd.f32 %v3253, %v3317
    %3319 = vdwg.mxu0
    %3320 = vmatpush.msra.mxu0 %v3247
    %3321 = vmatpush.msra.mxu0 %v3243
    %3322 = vmatpush.msra.mxu0 %v3239
    %3323 = vmatpush.msra.mxu0 %v3235
    %3324 = vmatpush.msra.mxu0 %v3231
    %3325 = vmatpush.msra.mxu0 %v3227
    %3326 = vmatpush.msra.mxu0 %v3223
    %3327 = vmatpush.msra.mxu0 %v3219
    %3328 = vmatpush.msra.mxu0 %v3215
    %3329 = vmatpush.msra.mxu0 %v3211
    %3330 = vmatpush.msra.mxu0 %v3207
    %3331 = vmatpush.msra.mxu0 %v3203
    %3332 = vmatpush.msra.mxu0 %v3199
    %3333 = vmatpush.msra.mxu0 %v3195
    %3334 = vmatpush.msra.mxu0 %v3191
    %3335 = vmatpush.msra.mxu0 %v3187
    %3336 = vmatmul.f32.gmra.mxu0 %v2716
    %v3337 = vpop.f32.mrf.mxu0
    %v3338 = vadd.f32 %v3318, %v3337
    %3339 = vdwg.mxu0
    %3340 = vmatpush.msra.mxu0 %v3184
    %3341 = vmatpush.msra.mxu0 %v3180
    %3342 = vmatpush.msra.mxu0 %v3176
    %3343 = vmatpush.msra.mxu0 %v3172
    %3344 = vmatpush.msra.mxu0 %v3168
    %3345 = vmatpush.msra.mxu0 %v3164
    %3346 = vmatpush.msra.mxu0 %v3160
    %3347 = vmatpush.msra.mxu0 %v3156
    %3348 = vmatpush.msra.mxu0 %v3152
    %3349 = vmatpush.msra.mxu0 %v3148
    %3350 = vmatpush.msra.mxu0 %v3144
    %3351 = vmatpush.msra.mxu0 %v3140
    %3352 = vmatpush.msra.mxu0 %v3136
    %3353 = vmatpush.msra.mxu0 %v3132
    %3354 = vmatpush.msra.mxu0 %v3128
    %3355 = vmatpush.msra.mxu0 %v3124
    %3356 = vmatmul.f32.gmra.mxu0 %v3121
    %v3357 = vpop.f32.mrf.mxu0
    %v3358 = vadd.f32 %v3254, %v3357
    %3359 = vdwg.mxu0
    %3360 = vmatpush.msra.mxu0 %v3248
    %3361 = vmatpush.msra.mxu0 %v3244
    %3362 = vmatpush.msra.mxu0 %v3240
    %3363 = vmatpush.msra.mxu0 %v3236
    %3364 = vmatpush.msra.mxu0 %v3232
    %3365 = vmatpush.msra.mxu0 %v3228
    %3366 = vmatpush.msra.mxu0 %v3224
    %3367 = vmatpush.msra.mxu0 %v3220
    %3368 = vmatpush.msra.mxu0 %v3216
    %3369 = vmatpush.msra.mxu0 %v3212
    %3370 = vmatpush.msra.mxu0 %v3208
    %3371 = vmatpush.msra.mxu0 %v3204
    %3372 = vmatpush.msra.mxu0 %v3200
    %3373 = vmatpush.msra.mxu0 %v3196
    %3374 = vmatpush.msra.mxu0 %v3192
    %3375 = vmatpush.msra.mxu0 %v3188
    %3376 = vmatmul.f32.gmra.mxu0 %v2716
    %v3377 = vpop.f32.mrf.mxu0
    %v3378 = vadd.f32 %v3358, %v3377
    %3379 = vdwg.mxu0
    %3380 = vmatpush.msra.mxu0 %v3185
    %3381 = vmatpush.msra.mxu0 %v3181
    %3382 = vmatpush.msra.mxu0 %v3177
    %3383 = vmatpush.msra.mxu0 %v3173
    %3384 = vmatpush.msra.mxu0 %v3169
    %3385 = vmatpush.msra.mxu0 %v3165
    %3386 = vmatpush.msra.mxu0 %v3161
    %3387 = vmatpush.msra.mxu0 %v3157
    %3388 = vmatpush.msra.mxu0 %v3153
    %3389 = vmatpush.msra.mxu0 %v3149
    %3390 = vmatpush.msra.mxu0 %v3145
    %3391 = vmatpush.msra.mxu0 %v3141
    %3392 = vmatpush.msra.mxu0 %v3137
    %3393 = vmatpush.msra.mxu0 %v3133
    %3394 = vmatpush.msra.mxu0 %v3129
    %3395 = vmatpush.msra.mxu0 %v3125
    %3396 = vmatmul.f32.gmra.mxu0 %v3121
    %v3397 = vpop.f32.mrf.mxu0
    %v3398 = vadd.f32 %v3255, %v3397
    %3399 = vdwg.mxu0
    %3400 = vmatpush.msra.mxu0 %v3249
    %3401 = vmatpush.msra.mxu0 %v3245
    %3402 = vmatpush.msra.mxu0 %v3241
    %3403 = vmatpush.msra.mxu0 %v3237
    %3404 = vmatpush.msra.mxu0 %v3233
    %3405 = vmatpush.msra.mxu0 %v3229
    %3406 = vmatpush.msra.mxu0 %v3225
    %3407 = vmatpush.msra.mxu0 %v3221
    %3408 = vmatpush.msra.mxu0 %v3217
    %3409 = vmatpush.msra.mxu0 %v3213
    %3410 = vmatpush.msra.mxu0 %v3209
    %3411 = vmatpush.msra.mxu0 %v3205
    %3412 = vmatpush.msra.mxu0 %v3201
    %3413 = vmatpush.msra.mxu0 %v3197
    %3414 = vmatpush.msra.mxu0 %v3193
    %3415 = vmatpush.msra.mxu0 %v3189
    %3416 = vmatmul.f32.gmra.mxu0 %v2716
    %v3417 = vpop.f32.mrf.mxu0
    %v3418 = vadd.f32 %v3398, %v3417
    %3419 = vdwg.mxu0
    %v3420 = vxor.u32 %v3298, 2147483648
    %v3421 = vmul.f32 %v3420, 1.442695
    %v3422 = vpow.pop %v3421
    %v3423 = vadd.f32 %v3422, 1.0
    %v3424 = vrcp.pop %v3423
    %v3425 = vmul.f32 %v3423, %v3424
    %v3426 = vsub.f32 1.0, %v3425
    %v3427 = vmul.f32 %v3424, %v3426
    %v3428 = vadd.f32 %v3424, %v3427
    %vm3429 = vweird.f32 %v3423
    %vm3430 = vweird.f32 %v3424
    %vm3431 = vmor %vm3429, %vm3430
    %v3432 = vsel %vm3431, %v3424, %v3428
    %v3433 = vand.u32 2147483647, %v3423
    %vm3434 = vcmp.eq.f32.partialorder %v3433, 8.507059e+37
    %v3435 = vand.u32 %v3423, 2147483648
    %v3436 = vor.u32 1.1754944e-38, %v3435
    %v3437 = vsel %vm3434, %v3436, %v3432
    %v3438 = vmul.f32 1.0, %v3437
    %v3439 = vxor.u32 %v3338, 2147483648
    %v3440 = vmul.f32 %v3439, 1.442695
    %v3441 = vpow.pop %v3440
    %v3442 = vadd.f32 %v3441, 1.0
    %v3443 = vrcp.pop %v3442
    %v3444 = vmul.f32 %v3442, %v3443
    %v3445 = vsub.f32 1.0, %v3444
    %v3446 = vmul.f32 %v3443, %v3445
    %v3447 = vadd.f32 %v3443, %v3446
    %vm3448 = vweird.f32 %v3442
    %vm3449 = vweird.f32 %v3443
    %vm3450 = vmor %vm3448, %vm3449
    %v3451 = vsel %vm3450, %v3443, %v3447
    %v3452 = vand.u32 2147483647, %v3442
    %vm3453 = vcmp.eq.f32.partialorder %v3452, 8.507059e+37
    %v3454 = vand.u32 %v3442, 2147483648
    %v3455 = vor.u32 1.1754944e-38, %v3454
    %v3456 = vsel %vm3453, %v3455, %v3451
    %v3457 = vmul.f32 1.0, %v3456
    %v3458 = vtanh.pop %v3378
    %v3459 = vxor.u32 %v3418, 2147483648
    %v3460 = vmul.f32 %v3459, 1.442695
    %v3461 = vpow.pop %v3460
    %v3462 = vadd.f32 %v3461, 1.0
    %v3463 = vrcp.pop %v3462
    %v3464 = vmul.f32 %v3462, %v3463
    %v3465 = vsub.f32 1.0, %v3464
    %v3466 = vmul.f32 %v3463, %v3465
    %v3467 = vadd.f32 %v3463, %v3466
    %vm3468 = vweird.f32 %v3462
    %vm3469 = vweird.f32 %v3463
    %vm3470 = vmor %vm3468, %vm3469
    %v3471 = vsel %vm3470, %v3463, %v3467
    %v3472 = vand.u32 2147483647, %v3462
    %vm3473 = vcmp.eq.f32.partialorder %v3472, 8.507059e+37
    %v3474 = vand.u32 %v3462, 2147483648
    %v3475 = vor.u32 1.1754944e-38, %v3474
    %v3476 = vsel %vm3473, %v3475, %v3471
    %v3477 = vmul.f32 1.0, %v3476
    %v3478 = vmul.f32 %v3457, %v2714
    %v3479 = vmul.f32 %v3438, %v3458
    %v3480 = vadd.f32 %v3478, %v3479
    %v3481 = vtanh.pop %v3480
    %v3482 = vmul.f32 %v3477, %v3481
    %v3483 = vld [vmem:[#allocation4] sm:$0xff]
    %v3484 = vld [vmem:[#allocation4 + $0x8] sm:$0xff]
    %v3485 = vld [vmem:[#allocation4 + $0x10] sm:$0xff]
    %v3486 = vld [vmem:[#allocation4 + $0x18] sm:$0xff]
    %v3487 = vld [vmem:[#allocation4 + $0x20] sm:$0xff]
    %v3488 = vld [vmem:[#allocation4 + $0x28] sm:$0xff]
    %v3489 = vld [vmem:[#allocation4 + $0x30] sm:$0xff]
    %v3490 = vld [vmem:[#allocation4 + $0x38] sm:$0xff]
    %v3491 = vld [vmem:[#allocation4 + $0x40] sm:$0xff]
    %v3492 = vld [vmem:[#allocation4 + $0x48] sm:$0xff]
    %v3493 = vld [vmem:[#allocation4 + $0x50] sm:$0xff]
    %v3494 = vld [vmem:[#allocation4 + $0x58] sm:$0xff]
    %v3495 = vld [vmem:[#allocation4 + $0x60] sm:$0xff]
    %v3496 = vld [vmem:[#allocation4 + $0x68] sm:$0xff]
    %v3497 = vld [vmem:[#allocation4 + $0x70] sm:$0xff]
    %v3498 = vld [vmem:[#allocation4 + $0x78] sm:$0xff]
    %v3499 = vld [vmem:[#allocation4 + $0x80] sm:$0xff]
    %v3500 = vld [vmem:[#allocation4 + $0x88] sm:$0xff]
    %v3501 = vld [vmem:[#allocation4 + $0x90] sm:$0xff]
    %v3502 = vld [vmem:[#allocation4 + $0x98] sm:$0xff]
    %v3503 = vld [vmem:[#allocation4 + $0xa0] sm:$0xff]
    %v3504 = vld [vmem:[#allocation4 + $0xa8] sm:$0xff]
    %v3505 = vld [vmem:[#allocation4 + $0xb0] sm:$0xff]
    %v3506 = vld [vmem:[#allocation4 + $0xb8] sm:$0xff]
    %v3507 = vld [vmem:[#allocation4 + $0xc0] sm:$0xff]
    %v3508 = vld [vmem:[#allocation4 + $0xc8] sm:$0xff]
    %v3509 = vld [vmem:[#allocation4 + $0xd0] sm:$0xff]
    %v3510 = vld [vmem:[#allocation4 + $0xd8] sm:$0xff]
    %v3511 = vld [vmem:[#allocation4 + $0xe0] sm:$0xff]
    %v3512 = vld [vmem:[#allocation4 + $0xe8] sm:$0xff]
    %v3513 = vld [vmem:[#allocation4 + $0xf0] sm:$0xff]
    %v3514 = vld [vmem:[#allocation4 + $0xf8] sm:$0xff]
    %v3515 = vld [vmem:[#allocation4 + $0x100] sm:$0xff]
    %v3516 = vld [vmem:[#allocation4 + $0x108] sm:$0xff]
    %v3517 = vld [vmem:[#allocation4 + $0x110] sm:$0xff]
    %v3518 = vld [vmem:[#allocation4 + $0x118] sm:$0xff]
    %v3519 = vld [vmem:[#allocation4 + $0x120] sm:$0xff]
    %v3520 = vld [vmem:[#allocation4 + $0x128] sm:$0xff]
    %v3521 = vld [vmem:[#allocation4 + $0x130] sm:$0xff]
    %v3522 = vld [vmem:[#allocation4 + $0x138] sm:$0xff]
    %v3523 = vld [vmem:[#allocation4 + $0x140] sm:$0xff]
    %v3524 = vld [vmem:[#allocation4 + $0x148] sm:$0xff]
    %v3525 = vld [vmem:[#allocation4 + $0x150] sm:$0xff]
    %v3526 = vld [vmem:[#allocation4 + $0x158] sm:$0xff]
    %v3527 = vld [vmem:[#allocation4 + $0x160] sm:$0xff]
    %v3528 = vld [vmem:[#allocation4 + $0x168] sm:$0xff]
    %v3529 = vld [vmem:[#allocation4 + $0x170] sm:$0xff]
    %v3530 = vld [vmem:[#allocation4 + $0x178] sm:$0xff]
    %v3531 = vld [vmem:[#allocation4 + $0x180] sm:$0xff]
    %v3532 = vld [vmem:[#allocation4 + $0x188] sm:$0xff]
    %v3533 = vld [vmem:[#allocation4 + $0x190] sm:$0xff]
    %v3534 = vld [vmem:[#allocation4 + $0x198] sm:$0xff]
    %v3535 = vld [vmem:[#allocation4 + $0x1a0] sm:$0xff]
    %v3536 = vld [vmem:[#allocation4 + $0x1a8] sm:$0xff]
    %v3537 = vld [vmem:[#allocation4 + $0x1b0] sm:$0xff]
    %v3538 = vld [vmem:[#allocation4 + $0x1b8] sm:$0xff]
    %v3539 = vld [vmem:[#allocation4 + $0x1c0] sm:$0xff]
    %v3540 = vld [vmem:[#allocation4 + $0x1c8] sm:$0xff]
    %v3541 = vld [vmem:[#allocation4 + $0x1d0] sm:$0xff]
    %v3542 = vld [vmem:[#allocation4 + $0x1d8] sm:$0xff]
    %v3543 = vld [vmem:[#allocation4 + $0x1e0] sm:$0xff]
    %v3544 = vld [vmem:[#allocation4 + $0x1e8] sm:$0xff]
    %v3545 = vld [vmem:[#allocation4 + $0x1f0] sm:$0xff]
    %v3546 = vld [vmem:[#allocation4 + $0x1f8] sm:$0xff]
    %v3547 = vld [vmem:[#allocation4 + $0x200] sm:$0xff]
    %v3548 = vld [vmem:[#allocation4 + $0x208] sm:$0xff]
    %v3549 = vld [vmem:[#allocation4 + $0x210] sm:$0xff]
    %v3550 = vld [vmem:[#allocation4 + $0x218] sm:$0xff]
    %v3551 = vld [vmem:[#allocation4 + $0x220] sm:$0xff]
    %v3552 = vld [vmem:[#allocation4 + $0x228] sm:$0xff]
    %v3553 = vld [vmem:[#allocation4 + $0x230] sm:$0xff]
    %v3554 = vld [vmem:[#allocation4 + $0x238] sm:$0xff]
    %v3555 = vld [vmem:[#allocation4 + $0x240] sm:$0xff]
    %v3556 = vld [vmem:[#allocation4 + $0x248] sm:$0xff]
    %v3557 = vld [vmem:[#allocation4 + $0x250] sm:$0xff]
    %v3558 = vld [vmem:[#allocation4 + $0x258] sm:$0xff]
    %v3559 = vld [vmem:[#allocation4 + $0x260] sm:$0xff]
    %v3560 = vld [vmem:[#allocation4 + $0x268] sm:$0xff]
    %v3561 = vld [vmem:[#allocation4 + $0x270] sm:$0xff]
    %v3562 = vld [vmem:[#allocation4 + $0x278] sm:$0xff]
    %v3563 = vld [vmem:[#allocation4 + $0x280] sm:$0xff]
    %v3564 = vld [vmem:[#allocation4 + $0x288] sm:$0xff]
    %v3565 = vld [vmem:[#allocation4 + $0x290] sm:$0xff]
    %v3566 = vld [vmem:[#allocation4 + $0x298] sm:$0xff]
    %v3567 = vld [vmem:[#allocation4 + $0x2a0] sm:$0xff]
    %v3568 = vld [vmem:[#allocation4 + $0x2a8] sm:$0xff]
    %v3569 = vld [vmem:[#allocation4 + $0x2b0] sm:$0xff]
    %v3570 = vld [vmem:[#allocation4 + $0x2b8] sm:$0xff]
    %v3571 = vld [vmem:[#allocation4 + $0x2c0] sm:$0xff]
    %v3572 = vld [vmem:[#allocation4 + $0x2c8] sm:$0xff]
    %v3573 = vld [vmem:[#allocation4 + $0x2d0] sm:$0xff]
    %v3574 = vld [vmem:[#allocation4 + $0x2d8] sm:$0xff]
    %v3575 = vld [vmem:[#allocation4 + $0x2e0] sm:$0xff]
    %v3576 = vld [vmem:[#allocation4 + $0x2e8] sm:$0xff]
    %v3577 = vld [vmem:[#allocation4 + $0x2f0] sm:$0xff]
    %v3578 = vld [vmem:[#allocation4 + $0x2f8] sm:$0xff]
    %v3579 = vld [vmem:[#allocation4 + $0x300] sm:$0xff]
    %v3580 = vld [vmem:[#allocation4 + $0x308] sm:$0xff]
    %v3581 = vld [vmem:[#allocation4 + $0x310] sm:$0xff]
    %v3582 = vld [vmem:[#allocation4 + $0x318] sm:$0xff]
    %v3583 = vld [vmem:[#allocation4 + $0x320] sm:$0xff]
    %v3584 = vld [vmem:[#allocation4 + $0x328] sm:$0xff]
    %v3585 = vld [vmem:[#allocation4 + $0x330] sm:$0xff]
    %v3586 = vld [vmem:[#allocation4 + $0x338] sm:$0xff]
    %v3587 = vld [vmem:[#allocation4 + $0x340] sm:$0xff]
    %v3588 = vld [vmem:[#allocation4 + $0x348] sm:$0xff]
    %v3589 = vld [vmem:[#allocation4 + $0x350] sm:$0xff]
    %v3590 = vld [vmem:[#allocation4 + $0x358] sm:$0xff]
    %v3591 = vld [vmem:[#allocation4 + $0x360] sm:$0xff]
    %v3592 = vld [vmem:[#allocation4 + $0x368] sm:$0xff]
    %v3593 = vld [vmem:[#allocation4 + $0x370] sm:$0xff]
    %v3594 = vld [vmem:[#allocation4 + $0x378] sm:$0xff]
    %v3595 = vld [vmem:[#allocation4 + $0x380] sm:$0xff]
    %v3596 = vld [vmem:[#allocation4 + $0x388] sm:$0xff]
    %v3597 = vld [vmem:[#allocation4 + $0x390] sm:$0xff]
    %v3598 = vld [vmem:[#allocation4 + $0x398] sm:$0xff]
    %v3599 = vld [vmem:[#allocation4 + $0x3a0] sm:$0xff]
    %v3600 = vld [vmem:[#allocation4 + $0x3a8] sm:$0xff]
    %v3601 = vld [vmem:[#allocation4 + $0x3b0] sm:$0xff]
    %v3602 = vld [vmem:[#allocation4 + $0x3b8] sm:$0xff]
    %v3603 = vld [vmem:[#allocation4 + $0x3c0] sm:$0xff]
    %v3604 = vld [vmem:[#allocation4 + $0x3c8] sm:$0xff]
    %v3605 = vld [vmem:[#allocation4 + $0x3d0] sm:$0xff]
    %v3606 = vld [vmem:[#allocation4 + $0x3d8] sm:$0xff]
    %v3607 = vld [vmem:[#allocation4 + $0x3e0] sm:$0xff]
    %v3608 = vld [vmem:[#allocation4 + $0x3e8] sm:$0xff]
    %v3609 = vld [vmem:[#allocation4 + $0x3f0] sm:$0xff]
    %v3610 = vld [vmem:[#allocation4 + $0x3f8] sm:$0xff]
    %v3611 = vld [vmem:[%s4] sm:$0xf]
    %v3613 = vperm.slane %v3611, 0
    %v3614 = vperm.slane %v3611, 1
    %v3615 = vperm.slane %v3611, 2
    %v3616 = vperm.slane %v3611, 3
    %3621 = vmatpush.msra.mxu0 %v3543
    %3622 = vmatpush.msra.mxu0 %v3539
    %3623 = vmatpush.msra.mxu0 %v3535
    %3624 = vmatpush.msra.mxu0 %v3531
    %3625 = vmatpush.msra.mxu0 %v3527
    %3626 = vmatpush.msra.mxu0 %v3523
    %3627 = vmatpush.msra.mxu0 %v3519
    %3628 = vmatpush.msra.mxu0 %v3515
    %3629 = vmatpush.msra.mxu0 %v3511
    %3630 = vmatpush.msra.mxu0 %v3507
    %3631 = vmatpush.msra.mxu0 %v3503
    %3632 = vmatpush.msra.mxu0 %v3499
    %3633 = vmatpush.msra.mxu0 %v3495
    %3634 = vmatpush.msra.mxu0 %v3491
    %3635 = vmatpush.msra.mxu0 %v3487
    %3636 = vmatpush.msra.mxu0 %v3483
    %3637 = vmatmul.f32.gmra.mxu0 %v3482
    %v3638 = vpop.f32.mrf.mxu0
    %v3639 = vadd.f32 %v3613, %v3638
    %3640 = vdwg.mxu0
    %3641 = vmatpush.msra.mxu0 %v3607
    %3642 = vmatpush.msra.mxu0 %v3603
    %3643 = vmatpush.msra.mxu0 %v3599
    %3644 = vmatpush.msra.mxu0 %v3595
    %3645 = vmatpush.msra.mxu0 %v3591
    %3646 = vmatpush.msra.mxu0 %v3587
    %3647 = vmatpush.msra.mxu0 %v3583
    %3648 = vmatpush.msra.mxu0 %v3579
    %3649 = vmatpush.msra.mxu0 %v3575
    %3650 = vmatpush.msra.mxu0 %v3571
    %3651 = vmatpush.msra.mxu0 %v3567
    %3652 = vmatpush.msra.mxu0 %v3563
    %3653 = vmatpush.msra.mxu0 %v3559
    %3654 = vmatpush.msra.mxu0 %v3555
    %3655 = vmatpush.msra.mxu0 %v3551
    %3656 = vmatpush.msra.mxu0 %v3547
    %3657 = vmatmul.f32.gmra.mxu0 %v3077
    %v3658 = vpop.f32.mrf.mxu0
    %v3659 = vadd.f32 %v3639, %v3658
    %3660 = vdwg.mxu0
    %3661 = vmatpush.msra.mxu0 %v3544
    %3662 = vmatpush.msra.mxu0 %v3540
    %3663 = vmatpush.msra.mxu0 %v3536
    %3664 = vmatpush.msra.mxu0 %v3532
    %3665 = vmatpush.msra.mxu0 %v3528
    %3666 = vmatpush.msra.mxu0 %v3524
    %3667 = vmatpush.msra.mxu0 %v3520
    %3668 = vmatpush.msra.mxu0 %v3516
    %3669 = vmatpush.msra.mxu0 %v3512
    %3670 = vmatpush.msra.mxu0 %v3508
    %3671 = vmatpush.msra.mxu0 %v3504
    %3672 = vmatpush.msra.mxu0 %v3500
    %3673 = vmatpush.msra.mxu0 %v3496
    %3674 = vmatpush.msra.mxu0 %v3492
    %3675 = vmatpush.msra.mxu0 %v3488
    %3676 = vmatpush.msra.mxu0 %v3484
    %3677 = vmatmul.f32.gmra.mxu0 %v3482
    %v3678 = vpop.f32.mrf.mxu0
    %v3679 = vadd.f32 %v3614, %v3678
    %3680 = vdwg.mxu0
    %3681 = vmatpush.msra.mxu0 %v3608
    %3682 = vmatpush.msra.mxu0 %v3604
    %3683 = vmatpush.msra.mxu0 %v3600
    %3684 = vmatpush.msra.mxu0 %v3596
    %3685 = vmatpush.msra.mxu0 %v3592
    %3686 = vmatpush.msra.mxu0 %v3588
    %3687 = vmatpush.msra.mxu0 %v3584
    %3688 = vmatpush.msra.mxu0 %v3580
    %3689 = vmatpush.msra.mxu0 %v3576
    %3690 = vmatpush.msra.mxu0 %v3572
    %3691 = vmatpush.msra.mxu0 %v3568
    %3692 = vmatpush.msra.mxu0 %v3564
    %3693 = vmatpush.msra.mxu0 %v3560
    %3694 = vmatpush.msra.mxu0 %v3556
    %3695 = vmatpush.msra.mxu0 %v3552
    %3696 = vmatpush.msra.mxu0 %v3548
    %3697 = vmatmul.f32.gmra.mxu0 %v3077
    %v3698 = vpop.f32.mrf.mxu0
    %v3699 = vadd.f32 %v3679, %v3698
    %3700 = vdwg.mxu0
    %3701 = vmatpush.msra.mxu0 %v3545
    %3702 = vmatpush.msra.mxu0 %v3541
    %3703 = vmatpush.msra.mxu0 %v3537
    %3704 = vmatpush.msra.mxu0 %v3533
    %3705 = vmatpush.msra.mxu0 %v3529
    %3706 = vmatpush.msra.mxu0 %v3525
    %3707 = vmatpush.msra.mxu0 %v3521
    %3708 = vmatpush.msra.mxu0 %v3517
    %3709 = vmatpush.msra.mxu0 %v3513
    %3710 = vmatpush.msra.mxu0 %v3509
    %3711 = vmatpush.msra.mxu0 %v3505
    %3712 = vmatpush.msra.mxu0 %v3501
    %3713 = vmatpush.msra.mxu0 %v3497
    %3714 = vmatpush.msra.mxu0 %v3493
    %3715 = vmatpush.msra.mxu0 %v3489
    %3716 = vmatpush.msra.mxu0 %v3485
    %3717 = vmatmul.f32.gmra.mxu0 %v3482
    %v3718 = vpop.f32.mrf.mxu0
    %v3719 = vadd.f32 %v3615, %v3718
    %3720 = vdwg.mxu0
    %3721 = vmatpush.msra.mxu0 %v3609
    %3722 = vmatpush.msra.mxu0 %v3605
    %3723 = vmatpush.msra.mxu0 %v3601
    %3724 = vmatpush.msra.mxu0 %v3597
    %3725 = vmatpush.msra.mxu0 %v3593
    %3726 = vmatpush.msra.mxu0 %v3589
    %3727 = vmatpush.msra.mxu0 %v3585
    %3728 = vmatpush.msra.mxu0 %v3581
    %3729 = vmatpush.msra.mxu0 %v3577
    %3730 = vmatpush.msra.mxu0 %v3573
    %3731 = vmatpush.msra.mxu0 %v3569
    %3732 = vmatpush.msra.mxu0 %v3565
    %3733 = vmatpush.msra.mxu0 %v3561
    %3734 = vmatpush.msra.mxu0 %v3557
    %3735 = vmatpush.msra.mxu0 %v3553
    %3736 = vmatpush.msra.mxu0 %v3549
    %3737 = vmatmul.f32.gmra.mxu0 %v3077
    %v3738 = vpop.f32.mrf.mxu0
    %v3739 = vadd.f32 %v3719, %v3738
    %3740 = vdwg.mxu0
    %3741 = vmatpush.msra.mxu0 %v3546
    %3742 = vmatpush.msra.mxu0 %v3542
    %3743 = vmatpush.msra.mxu0 %v3538
    %3744 = vmatpush.msra.mxu0 %v3534
    %3745 = vmatpush.msra.mxu0 %v3530
    %3746 = vmatpush.msra.mxu0 %v3526
    %3747 = vmatpush.msra.mxu0 %v3522
    %3748 = vmatpush.msra.mxu0 %v3518
    %3749 = vmatpush.msra.mxu0 %v3514
    %3750 = vmatpush.msra.mxu0 %v3510
    %3751 = vmatpush.msra.mxu0 %v3506
    %3752 = vmatpush.msra.mxu0 %v3502
    %3753 = vmatpush.msra.mxu0 %v3498
    %3754 = vmatpush.msra.mxu0 %v3494
    %3755 = vmatpush.msra.mxu0 %v3490
    %3756 = vmatpush.msra.mxu0 %v3486
    %3757 = vmatmul.f32.gmra.mxu0 %v3482
    %v3758 = vpop.f32.mrf.mxu0
    %v3759 = vadd.f32 %v3616, %v3758
    %3760 = vdwg.mxu0
    %3761 = vmatpush.msra.mxu0 %v3610
    %3762 = vmatpush.msra.mxu0 %v3606
    %3763 = vmatpush.msra.mxu0 %v3602
    %3764 = vmatpush.msra.mxu0 %v3598
    %3765 = vmatpush.msra.mxu0 %v3594
    %3766 = vmatpush.msra.mxu0 %v3590
    %3767 = vmatpush.msra.mxu0 %v3586
    %3768 = vmatpush.msra.mxu0 %v3582
    %3769 = vmatpush.msra.mxu0 %v3578
    %3770 = vmatpush.msra.mxu0 %v3574
    %3771 = vmatpush.msra.mxu0 %v3570
    %3772 = vmatpush.msra.mxu0 %v3566
    %3773 = vmatpush.msra.mxu0 %v3562
    %3774 = vmatpush.msra.mxu0 %v3558
    %3775 = vmatpush.msra.mxu0 %v3554
    %3776 = vmatpush.msra.mxu0 %v3550
    %3777 = vmatmul.f32.gmra.mxu0 %v3077
    %v3778 = vpop.f32.mrf.mxu0
    %v3779 = vadd.f32 %v3759, %v3778
    %3780 = vdwg.mxu0
    %v3781 = vxor.u32 %v3659, 2147483648
    %v3782 = vmul.f32 %v3781, 1.442695
    %v3783 = vpow.pop %v3782
    %v3784 = vadd.f32 %v3783, 1.0
    %v3785 = vrcp.pop %v3784
    %v3786 = vmul.f32 %v3784, %v3785
    %v3787 = vsub.f32 1.0, %v3786
    %v3788 = vmul.f32 %v3785, %v3787
    %v3789 = vadd.f32 %v3785, %v3788
    %vm3790 = vweird.f32 %v3784
    %vm3791 = vweird.f32 %v3785
    %vm3792 = vmor %vm3790, %vm3791
    %v3793 = vsel %vm3792, %v3785, %v3789
    %v3794 = vand.u32 2147483647, %v3784
    %vm3795 = vcmp.eq.f32.partialorder %v3794, 8.507059e+37
    %v3796 = vand.u32 %v3784, 2147483648
    %v3797 = vor.u32 1.1754944e-38, %v3796
    %v3798 = vsel %vm3795, %v3797, %v3793
    %v3799 = vmul.f32 1.0, %v3798
    %v3800 = vxor.u32 %v3699, 2147483648
    %v3801 = vmul.f32 %v3800, 1.442695
    %v3802 = vpow.pop %v3801
    %v3803 = vadd.f32 %v3802, 1.0
    %v3804 = vrcp.pop %v3803
    %v3805 = vmul.f32 %v3803, %v3804
    %v3806 = vsub.f32 1.0, %v3805
    %v3807 = vmul.f32 %v3804, %v3806
    %v3808 = vadd.f32 %v3804, %v3807
    %vm3809 = vweird.f32 %v3803
    %vm3810 = vweird.f32 %v3804
    %vm3811 = vmor %vm3809, %vm3810
    %v3812 = vsel %vm3811, %v3804, %v3808
    %v3813 = vand.u32 2147483647, %v3803
    %vm3814 = vcmp.eq.f32.partialorder %v3813, 8.507059e+37
    %v3815 = vand.u32 %v3803, 2147483648
    %v3816 = vor.u32 1.1754944e-38, %v3815
    %v3817 = vsel %vm3814, %v3816, %v3812
    %v3818 = vmul.f32 1.0, %v3817
    %v3819 = vtanh.pop %v3739
    %v3820 = vxor.u32 %v3779, 2147483648
    %v3821 = vmul.f32 %v3820, 1.442695
    %v3822 = vpow.pop %v3821
    %v3823 = vadd.f32 %v3822, 1.0
    %v3824 = vrcp.pop %v3823
    %v3825 = vmul.f32 %v3823, %v3824
    %v3826 = vsub.f32 1.0, %v3825
    %v3827 = vmul.f32 %v3824, %v3826
    %v3828 = vadd.f32 %v3824, %v3827
    %vm3829 = vweird.f32 %v3823
    %vm3830 = vweird.f32 %v3824
    %vm3831 = vmor %vm3829, %vm3830
    %v3832 = vsel %vm3831, %v3824, %v3828
    %v3833 = vand.u32 2147483647, %v3823
    %vm3834 = vcmp.eq.f32.partialorder %v3833, 8.507059e+37
    %v3835 = vand.u32 %v3823, 2147483648
    %v3836 = vor.u32 1.1754944e-38, %v3835
    %v3837 = vsel %vm3834, %v3836, %v3832
    %v3838 = vmul.f32 1.0, %v3837
    %v3839 = vmul.f32 %v3818, %v3075
    %v3840 = vmul.f32 %v3799, %v3819
    %v3841 = vadd.f32 %v3839, %v3840
    %v3842 = vtanh.pop %v3841
    %v3843 = vmul.f32 %v3838, %v3842
    %v3844 = vld [vmem:[%s5] sm:$0xff]
    %v3845 = vld [vmem:[%s5 + $0x8] sm:$0xff]
    %v3846 = vld [vmem:[%s5 + $0x10] sm:$0xff]
    %v3847 = vld [vmem:[%s5 + $0x18] sm:$0xff]
    %v3848 = vld [vmem:[%s5 + $0x20] sm:$0xff]
    %v3849 = vld [vmem:[%s5 + $0x28] sm:$0xff]
    %v3850 = vld [vmem:[%s5 + $0x30] sm:$0xff]
    %v3851 = vld [vmem:[%s5 + $0x38] sm:$0xff]
    %v3852 = vld [vmem:[%s5 + $0x40] sm:$0xff]
    %v3853 = vld [vmem:[%s5 + $0x48] sm:$0xff]
    %v3854 = vld [vmem:[%s5 + $0x50] sm:$0xff]
    %v3855 = vld [vmem:[%s5 + $0x58] sm:$0xff]
    %v3856 = vld [vmem:[%s5 + $0x60] sm:$0xff]
    %v3857 = vld [vmem:[%s5 + $0x68] sm:$0xff]
    %v3858 = vld [vmem:[%s5 + $0x70] sm:$0xff]
    %v3859 = vld [vmem:[%s5 + $0x78] sm:$0xff]
    %v3860 = vld [vmem:[%s6] sm:$0x1]
    %v3862 = vperm.slane %v3860, 0
    %3864 = vmatpush.msra.mxu0 %v3859
    %3865 = vmatpush.msra.mxu0 %v3858
    %3866 = vmatpush.msra.mxu0 %v3857
    %3867 = vmatpush.msra.mxu0 %v3856
    %3868 = vmatpush.msra.mxu0 %v3855
    %3869 = vmatpush.msra.mxu0 %v3854
    %3870 = vmatpush.msra.mxu0 %v3853
    %3871 = vmatpush.msra.mxu0 %v3852
    %3872 = vmatpush.msra.mxu0 %v3851
    %3873 = vmatpush.msra.mxu0 %v3850
    %3874 = vmatpush.msra.mxu0 %v3849
    %3875 = vmatpush.msra.mxu0 %v3848
    %3876 = vmatpush.msra.mxu0 %v3847
    %3877 = vmatpush.msra.mxu0 %v3846
    %3878 = vmatpush.msra.mxu0 %v3845
    %3879 = vmatpush.msra.mxu0 %v3844
    %3880 = vmatmul.f32.gmra.mxu0 %v3843
    %v3881 = vpop.f32.mrf.mxu0
    %v3882 = vadd.f32 %v3862, %v3881
    %3883 = vdwg.mxu0
    %s3884 = scalar_lea.vmem %s7, 32
    %3885 = vst [vmem:[%s3884] sm:$0xff] %v3882
    %s3886 = scalar_lea.vmem %s0, 40
    %v3887 = vld [vmem:[%s3886] sm:$0xff]
    %v3888 = vld [vmem:[#allocation2] sm:$0xff]
    %v3889 = vld [vmem:[#allocation2 + $0x8] sm:$0xff]
    %v3890 = vld [vmem:[#allocation2 + $0x10] sm:$0xff]
    %v3891 = vld [vmem:[#allocation2 + $0x18] sm:$0xff]
    %v3892 = vld [vmem:[#allocation2 + $0x20] sm:$0xff]
    %v3893 = vld [vmem:[#allocation2 + $0x28] sm:$0xff]
    %v3894 = vld [vmem:[#allocation2 + $0x30] sm:$0xff]
    %v3895 = vld [vmem:[#allocation2 + $0x38] sm:$0xff]
    %v3896 = vld [vmem:[#allocation2 + $0x40] sm:$0xff]
    %v3897 = vld [vmem:[#allocation2 + $0x48] sm:$0xff]
    %v3898 = vld [vmem:[#allocation2 + $0x50] sm:$0xff]
    %v3899 = vld [vmem:[#allocation2 + $0x58] sm:$0xff]
    %v3900 = vld [vmem:[#allocation2 + $0x60] sm:$0xff]
    %v3901 = vld [vmem:[#allocation2 + $0x68] sm:$0xff]
    %v3902 = vld [vmem:[#allocation2 + $0x70] sm:$0xff]
    %v3903 = vld [vmem:[#allocation2 + $0x78] sm:$0xff]
    %v3904 = vld [vmem:[#allocation2 + $0x80] sm:$0xff]
    %v3905 = vld [vmem:[#allocation2 + $0x88] sm:$0xff]
    %v3906 = vld [vmem:[#allocation2 + $0x90] sm:$0xff]
    %v3907 = vld [vmem:[#allocation2 + $0x98] sm:$0xff]
    %v3908 = vld [vmem:[#allocation2 + $0xa0] sm:$0xff]
    %v3909 = vld [vmem:[#allocation2 + $0xa8] sm:$0xff]
    %v3910 = vld [vmem:[#allocation2 + $0xb0] sm:$0xff]
    %v3911 = vld [vmem:[#allocation2 + $0xb8] sm:$0xff]
    %v3912 = vld [vmem:[#allocation2 + $0xc0] sm:$0xff]
    %v3913 = vld [vmem:[#allocation2 + $0xc8] sm:$0xff]
    %v3914 = vld [vmem:[#allocation2 + $0xd0] sm:$0xff]
    %v3915 = vld [vmem:[#allocation2 + $0xd8] sm:$0xff]
    %v3916 = vld [vmem:[#allocation2 + $0xe0] sm:$0xff]
    %v3917 = vld [vmem:[#allocation2 + $0xe8] sm:$0xff]
    %v3918 = vld [vmem:[#allocation2 + $0xf0] sm:$0xff]
    %v3919 = vld [vmem:[#allocation2 + $0xf8] sm:$0xff]
    %v3920 = vld [vmem:[#allocation2 + $0x100] sm:$0xff]
    %v3921 = vld [vmem:[#allocation2 + $0x108] sm:$0xff]
    %v3922 = vld [vmem:[#allocation2 + $0x110] sm:$0xff]
    %v3923 = vld [vmem:[#allocation2 + $0x118] sm:$0xff]
    %v3924 = vld [vmem:[#allocation2 + $0x120] sm:$0xff]
    %v3925 = vld [vmem:[#allocation2 + $0x128] sm:$0xff]
    %v3926 = vld [vmem:[#allocation2 + $0x130] sm:$0xff]
    %v3927 = vld [vmem:[#allocation2 + $0x138] sm:$0xff]
    %v3928 = vld [vmem:[#allocation2 + $0x140] sm:$0xff]
    %v3929 = vld [vmem:[#allocation2 + $0x148] sm:$0xff]
    %v3930 = vld [vmem:[#allocation2 + $0x150] sm:$0xff]
    %v3931 = vld [vmem:[#allocation2 + $0x158] sm:$0xff]
    %v3932 = vld [vmem:[#allocation2 + $0x160] sm:$0xff]
    %v3933 = vld [vmem:[#allocation2 + $0x168] sm:$0xff]
    %v3934 = vld [vmem:[#allocation2 + $0x170] sm:$0xff]
    %v3935 = vld [vmem:[#allocation2 + $0x178] sm:$0xff]
    %v3936 = vld [vmem:[#allocation2 + $0x180] sm:$0xff]
    %v3937 = vld [vmem:[#allocation2 + $0x188] sm:$0xff]
    %v3938 = vld [vmem:[#allocation2 + $0x190] sm:$0xff]
    %v3939 = vld [vmem:[#allocation2 + $0x198] sm:$0xff]
    %v3940 = vld [vmem:[#allocation2 + $0x1a0] sm:$0xff]
    %v3941 = vld [vmem:[#allocation2 + $0x1a8] sm:$0xff]
    %v3942 = vld [vmem:[#allocation2 + $0x1b0] sm:$0xff]
    %v3943 = vld [vmem:[#allocation2 + $0x1b8] sm:$0xff]
    %v3944 = vld [vmem:[#allocation2 + $0x1c0] sm:$0xff]
    %v3945 = vld [vmem:[#allocation2 + $0x1c8] sm:$0xff]
    %v3946 = vld [vmem:[#allocation2 + $0x1d0] sm:$0xff]
    %v3947 = vld [vmem:[#allocation2 + $0x1d8] sm:$0xff]
    %v3948 = vld [vmem:[#allocation2 + $0x1e0] sm:$0xff]
    %v3949 = vld [vmem:[#allocation2 + $0x1e8] sm:$0xff]
    %v3950 = vld [vmem:[#allocation2 + $0x1f0] sm:$0xff]
    %v3951 = vld [vmem:[#allocation2 + $0x1f8] sm:$0xff]
    %v3952 = vld [vmem:[#allocation2 + $0x200] sm:$0xff]
    %v3953 = vld [vmem:[#allocation2 + $0x208] sm:$0xff]
    %v3954 = vld [vmem:[#allocation2 + $0x210] sm:$0xff]
    %v3955 = vld [vmem:[#allocation2 + $0x218] sm:$0xff]
    %v3956 = vld [vmem:[#allocation2 + $0x220] sm:$0xff]
    %v3957 = vld [vmem:[#allocation2 + $0x228] sm:$0xff]
    %v3958 = vld [vmem:[#allocation2 + $0x230] sm:$0xff]
    %v3959 = vld [vmem:[#allocation2 + $0x238] sm:$0xff]
    %v3960 = vld [vmem:[#allocation2 + $0x240] sm:$0xff]
    %v3961 = vld [vmem:[#allocation2 + $0x248] sm:$0xff]
    %v3962 = vld [vmem:[#allocation2 + $0x250] sm:$0xff]
    %v3963 = vld [vmem:[#allocation2 + $0x258] sm:$0xff]
    %v3964 = vld [vmem:[#allocation2 + $0x260] sm:$0xff]
    %v3965 = vld [vmem:[#allocation2 + $0x268] sm:$0xff]
    %v3966 = vld [vmem:[#allocation2 + $0x270] sm:$0xff]
    %v3967 = vld [vmem:[#allocation2 + $0x278] sm:$0xff]
    %v3968 = vld [vmem:[#allocation2 + $0x280] sm:$0xff]
    %v3969 = vld [vmem:[#allocation2 + $0x288] sm:$0xff]
    %v3970 = vld [vmem:[#allocation2 + $0x290] sm:$0xff]
    %v3971 = vld [vmem:[#allocation2 + $0x298] sm:$0xff]
    %v3972 = vld [vmem:[#allocation2 + $0x2a0] sm:$0xff]
    %v3973 = vld [vmem:[#allocation2 + $0x2a8] sm:$0xff]
    %v3974 = vld [vmem:[#allocation2 + $0x2b0] sm:$0xff]
    %v3975 = vld [vmem:[#allocation2 + $0x2b8] sm:$0xff]
    %v3976 = vld [vmem:[#allocation2 + $0x2c0] sm:$0xff]
    %v3977 = vld [vmem:[#allocation2 + $0x2c8] sm:$0xff]
    %v3978 = vld [vmem:[#allocation2 + $0x2d0] sm:$0xff]
    %v3979 = vld [vmem:[#allocation2 + $0x2d8] sm:$0xff]
    %v3980 = vld [vmem:[#allocation2 + $0x2e0] sm:$0xff]
    %v3981 = vld [vmem:[#allocation2 + $0x2e8] sm:$0xff]
    %v3982 = vld [vmem:[#allocation2 + $0x2f0] sm:$0xff]
    %v3983 = vld [vmem:[#allocation2 + $0x2f8] sm:$0xff]
    %v3984 = vld [vmem:[#allocation2 + $0x300] sm:$0xff]
    %v3985 = vld [vmem:[#allocation2 + $0x308] sm:$0xff]
    %v3986 = vld [vmem:[#allocation2 + $0x310] sm:$0xff]
    %v3987 = vld [vmem:[#allocation2 + $0x318] sm:$0xff]
    %v3988 = vld [vmem:[#allocation2 + $0x320] sm:$0xff]
    %v3989 = vld [vmem:[#allocation2 + $0x328] sm:$0xff]
    %v3990 = vld [vmem:[#allocation2 + $0x330] sm:$0xff]
    %v3991 = vld [vmem:[#allocation2 + $0x338] sm:$0xff]
    %v3992 = vld [vmem:[#allocation2 + $0x340] sm:$0xff]
    %v3993 = vld [vmem:[#allocation2 + $0x348] sm:$0xff]
    %v3994 = vld [vmem:[#allocation2 + $0x350] sm:$0xff]
    %v3995 = vld [vmem:[#allocation2 + $0x358] sm:$0xff]
    %v3996 = vld [vmem:[#allocation2 + $0x360] sm:$0xff]
    %v3997 = vld [vmem:[#allocation2 + $0x368] sm:$0xff]
    %v3998 = vld [vmem:[#allocation2 + $0x370] sm:$0xff]
    %v3999 = vld [vmem:[#allocation2 + $0x378] sm:$0xff]
    %v4000 = vld [vmem:[#allocation2 + $0x380] sm:$0xff]
    %v4001 = vld [vmem:[#allocation2 + $0x388] sm:$0xff]
    %v4002 = vld [vmem:[#allocation2 + $0x390] sm:$0xff]
    %v4003 = vld [vmem:[#allocation2 + $0x398] sm:$0xff]
    %v4004 = vld [vmem:[#allocation2 + $0x3a0] sm:$0xff]
    %v4005 = vld [vmem:[#allocation2 + $0x3a8] sm:$0xff]
    %v4006 = vld [vmem:[#allocation2 + $0x3b0] sm:$0xff]
    %v4007 = vld [vmem:[#allocation2 + $0x3b8] sm:$0xff]
    %v4008 = vld [vmem:[#allocation2 + $0x3c0] sm:$0xff]
    %v4009 = vld [vmem:[#allocation2 + $0x3c8] sm:$0xff]
    %v4010 = vld [vmem:[#allocation2 + $0x3d0] sm:$0xff]
    %v4011 = vld [vmem:[#allocation2 + $0x3d8] sm:$0xff]
    %v4012 = vld [vmem:[#allocation2 + $0x3e0] sm:$0xff]
    %v4013 = vld [vmem:[#allocation2 + $0x3e8] sm:$0xff]
    %v4014 = vld [vmem:[#allocation2 + $0x3f0] sm:$0xff]
    %v4015 = vld [vmem:[#allocation2 + $0x3f8] sm:$0xff]
    %v4016 = vld [vmem:[%s2] sm:$0xf]
    %v4018 = vperm.slane %v4016, 0
    %v4019 = vperm.slane %v4016, 1
    %v4020 = vperm.slane %v4016, 2
    %v4021 = vperm.slane %v4016, 3
    %4026 = vmatpush.msra.mxu0 %v3948
    %4027 = vmatpush.msra.mxu0 %v3944
    %4028 = vmatpush.msra.mxu0 %v3940
    %4029 = vmatpush.msra.mxu0 %v3936
    %4030 = vmatpush.msra.mxu0 %v3932
    %4031 = vmatpush.msra.mxu0 %v3928
    %4032 = vmatpush.msra.mxu0 %v3924
    %4033 = vmatpush.msra.mxu0 %v3920
    %4034 = vmatpush.msra.mxu0 %v3916
    %4035 = vmatpush.msra.mxu0 %v3912
    %4036 = vmatpush.msra.mxu0 %v3908
    %4037 = vmatpush.msra.mxu0 %v3904
    %4038 = vmatpush.msra.mxu0 %v3900
    %4039 = vmatpush.msra.mxu0 %v3896
    %4040 = vmatpush.msra.mxu0 %v3892
    %4041 = vmatpush.msra.mxu0 %v3888
    %4042 = vmatmul.f32.gmra.mxu0 %v3887
    %v4043 = vpop.f32.mrf.mxu0
    %v4044 = vadd.f32 %v4018, %v4043
    %4045 = vdwg.mxu0
    %4046 = vmatpush.msra.mxu0 %v4012
    %4047 = vmatpush.msra.mxu0 %v4008
    %4048 = vmatpush.msra.mxu0 %v4004
    %4049 = vmatpush.msra.mxu0 %v4000
    %4050 = vmatpush.msra.mxu0 %v3996
    %4051 = vmatpush.msra.mxu0 %v3992
    %4052 = vmatpush.msra.mxu0 %v3988
    %4053 = vmatpush.msra.mxu0 %v3984
    %4054 = vmatpush.msra.mxu0 %v3980
    %4055 = vmatpush.msra.mxu0 %v3976
    %4056 = vmatpush.msra.mxu0 %v3972
    %4057 = vmatpush.msra.mxu0 %v3968
    %4058 = vmatpush.msra.mxu0 %v3964
    %4059 = vmatpush.msra.mxu0 %v3960
    %4060 = vmatpush.msra.mxu0 %v3956
    %4061 = vmatpush.msra.mxu0 %v3952
    %4062 = vmatmul.f32.gmra.mxu0 %v3482
    %v4063 = vpop.f32.mrf.mxu0
    %v4064 = vadd.f32 %v4044, %v4063
    %4065 = vdwg.mxu0
    %4066 = vmatpush.msra.mxu0 %v3949
    %4067 = vmatpush.msra.mxu0 %v3945
    %4068 = vmatpush.msra.mxu0 %v3941
    %4069 = vmatpush.msra.mxu0 %v3937
    %4070 = vmatpush.msra.mxu0 %v3933
    %4071 = vmatpush.msra.mxu0 %v3929
    %4072 = vmatpush.msra.mxu0 %v3925
    %4073 = vmatpush.msra.mxu0 %v3921
    %4074 = vmatpush.msra.mxu0 %v3917
    %4075 = vmatpush.msra.mxu0 %v3913
    %4076 = vmatpush.msra.mxu0 %v3909
    %4077 = vmatpush.msra.mxu0 %v3905
    %4078 = vmatpush.msra.mxu0 %v3901
    %4079 = vmatpush.msra.mxu0 %v3897
    %4080 = vmatpush.msra.mxu0 %v3893
    %4081 = vmatpush.msra.mxu0 %v3889
    %4082 = vmatmul.f32.gmra.mxu0 %v3887
    %v4083 = vpop.f32.mrf.mxu0
    %v4084 = vadd.f32 %v4019, %v4083
    %4085 = vdwg.mxu0
    %4086 = vmatpush.msra.mxu0 %v4013
    %4087 = vmatpush.msra.mxu0 %v4009
    %4088 = vmatpush.msra.mxu0 %v4005
    %4089 = vmatpush.msra.mxu0 %v4001
    %4090 = vmatpush.msra.mxu0 %v3997
    %4091 = vmatpush.msra.mxu0 %v3993
    %4092 = vmatpush.msra.mxu0 %v3989
    %4093 = vmatpush.msra.mxu0 %v3985
    %4094 = vmatpush.msra.mxu0 %v3981
    %4095 = vmatpush.msra.mxu0 %v3977
    %4096 = vmatpush.msra.mxu0 %v3973
    %4097 = vmatpush.msra.mxu0 %v3969
    %4098 = vmatpush.msra.mxu0 %v3965
    %4099 = vmatpush.msra.mxu0 %v3961
    %4100 = vmatpush.msra.mxu0 %v3957
    %4101 = vmatpush.msra.mxu0 %v3953
    %4102 = vmatmul.f32.gmra.mxu0 %v3482
    %v4103 = vpop.f32.mrf.mxu0
    %v4104 = vadd.f32 %v4084, %v4103
    %4105 = vdwg.mxu0
    %4106 = vmatpush.msra.mxu0 %v3950
    %4107 = vmatpush.msra.mxu0 %v3946
    %4108 = vmatpush.msra.mxu0 %v3942
    %4109 = vmatpush.msra.mxu0 %v3938
    %4110 = vmatpush.msra.mxu0 %v3934
    %4111 = vmatpush.msra.mxu0 %v3930
    %4112 = vmatpush.msra.mxu0 %v3926
    %4113 = vmatpush.msra.mxu0 %v3922
    %4114 = vmatpush.msra.mxu0 %v3918
    %4115 = vmatpush.msra.mxu0 %v3914
    %4116 = vmatpush.msra.mxu0 %v3910
    %4117 = vmatpush.msra.mxu0 %v3906
    %4118 = vmatpush.msra.mxu0 %v3902
    %4119 = vmatpush.msra.mxu0 %v3898
    %4120 = vmatpush.msra.mxu0 %v3894
    %4121 = vmatpush.msra.mxu0 %v3890
    %4122 = vmatmul.f32.gmra.mxu0 %v3887
    %v4123 = vpop.f32.mrf.mxu0
    %v4124 = vadd.f32 %v4020, %v4123
    %4125 = vdwg.mxu0
    %4126 = vmatpush.msra.mxu0 %v4014
    %4127 = vmatpush.msra.mxu0 %v4010
    %4128 = vmatpush.msra.mxu0 %v4006
    %4129 = vmatpush.msra.mxu0 %v4002
    %4130 = vmatpush.msra.mxu0 %v3998
    %4131 = vmatpush.msra.mxu0 %v3994
    %4132 = vmatpush.msra.mxu0 %v3990
    %4133 = vmatpush.msra.mxu0 %v3986
    %4134 = vmatpush.msra.mxu0 %v3982
    %4135 = vmatpush.msra.mxu0 %v3978
    %4136 = vmatpush.msra.mxu0 %v3974
    %4137 = vmatpush.msra.mxu0 %v3970
    %4138 = vmatpush.msra.mxu0 %v3966
    %4139 = vmatpush.msra.mxu0 %v3962
    %4140 = vmatpush.msra.mxu0 %v3958
    %4141 = vmatpush.msra.mxu0 %v3954
    %4142 = vmatmul.f32.gmra.mxu0 %v3482
    %v4143 = vpop.f32.mrf.mxu0
    %v4144 = vadd.f32 %v4124, %v4143
    %4145 = vdwg.mxu0
    %4146 = vmatpush.msra.mxu0 %v3951
    %4147 = vmatpush.msra.mxu0 %v3947
    %4148 = vmatpush.msra.mxu0 %v3943
    %4149 = vmatpush.msra.mxu0 %v3939
    %4150 = vmatpush.msra.mxu0 %v3935
    %4151 = vmatpush.msra.mxu0 %v3931
    %4152 = vmatpush.msra.mxu0 %v3927
    %4153 = vmatpush.msra.mxu0 %v3923
    %4154 = vmatpush.msra.mxu0 %v3919
    %4155 = vmatpush.msra.mxu0 %v3915
    %4156 = vmatpush.msra.mxu0 %v3911
    %4157 = vmatpush.msra.mxu0 %v3907
    %4158 = vmatpush.msra.mxu0 %v3903
    %4159 = vmatpush.msra.mxu0 %v3899
    %4160 = vmatpush.msra.mxu0 %v3895
    %4161 = vmatpush.msra.mxu0 %v3891
    %4162 = vmatmul.f32.gmra.mxu0 %v3887
    %v4163 = vpop.f32.mrf.mxu0
    %v4164 = vadd.f32 %v4021, %v4163
    %4165 = vdwg.mxu0
    %4166 = vmatpush.msra.mxu0 %v4015
    %4167 = vmatpush.msra.mxu0 %v4011
    %4168 = vmatpush.msra.mxu0 %v4007
    %4169 = vmatpush.msra.mxu0 %v4003
    %4170 = vmatpush.msra.mxu0 %v3999
    %4171 = vmatpush.msra.mxu0 %v3995
    %4172 = vmatpush.msra.mxu0 %v3991
    %4173 = vmatpush.msra.mxu0 %v3987
    %4174 = vmatpush.msra.mxu0 %v3983
    %4175 = vmatpush.msra.mxu0 %v3979
    %4176 = vmatpush.msra.mxu0 %v3975
    %4177 = vmatpush.msra.mxu0 %v3971
    %4178 = vmatpush.msra.mxu0 %v3967
    %4179 = vmatpush.msra.mxu0 %v3963
    %4180 = vmatpush.msra.mxu0 %v3959
    %4181 = vmatpush.msra.mxu0 %v3955
    %4182 = vmatmul.f32.gmra.mxu0 %v3482
    %v4183 = vpop.f32.mrf.mxu0
    %v4184 = vadd.f32 %v4164, %v4183
    %4185 = vdwg.mxu0
    %v4186 = vxor.u32 %v4064, 2147483648
    %v4187 = vmul.f32 %v4186, 1.442695
    %v4188 = vpow.pop %v4187
    %v4189 = vadd.f32 %v4188, 1.0
    %v4190 = vrcp.pop %v4189
    %v4191 = vmul.f32 %v4189, %v4190
    %v4192 = vsub.f32 1.0, %v4191
    %v4193 = vmul.f32 %v4190, %v4192
    %v4194 = vadd.f32 %v4190, %v4193
    %vm4195 = vweird.f32 %v4189
    %vm4196 = vweird.f32 %v4190
    %vm4197 = vmor %vm4195, %vm4196
    %v4198 = vsel %vm4197, %v4190, %v4194
    %v4199 = vand.u32 2147483647, %v4189
    %vm4200 = vcmp.eq.f32.partialorder %v4199, 8.507059e+37
    %v4201 = vand.u32 %v4189, 2147483648
    %v4202 = vor.u32 1.1754944e-38, %v4201
    %v4203 = vsel %vm4200, %v4202, %v4198
    %v4204 = vmul.f32 1.0, %v4203
    %v4205 = vxor.u32 %v4104, 2147483648
    %v4206 = vmul.f32 %v4205, 1.442695
    %v4207 = vpow.pop %v4206
    %v4208 = vadd.f32 %v4207, 1.0
    %v4209 = vrcp.pop %v4208
    %v4210 = vmul.f32 %v4208, %v4209
    %v4211 = vsub.f32 1.0, %v4210
    %v4212 = vmul.f32 %v4209, %v4211
    %v4213 = vadd.f32 %v4209, %v4212
    %vm4214 = vweird.f32 %v4208
    %vm4215 = vweird.f32 %v4209
    %vm4216 = vmor %vm4214, %vm4215
    %v4217 = vsel %vm4216, %v4209, %v4213
    %v4218 = vand.u32 2147483647, %v4208
    %vm4219 = vcmp.eq.f32.partialorder %v4218, 8.507059e+37
    %v4220 = vand.u32 %v4208, 2147483648
    %v4221 = vor.u32 1.1754944e-38, %v4220
    %v4222 = vsel %vm4219, %v4221, %v4217
    %v4223 = vmul.f32 1.0, %v4222
    %v4224 = vtanh.pop %v4144
    %v4225 = vxor.u32 %v4184, 2147483648
    %v4226 = vmul.f32 %v4225, 1.442695
    %v4227 = vpow.pop %v4226
    %v4228 = vadd.f32 %v4227, 1.0
    %v4229 = vrcp.pop %v4228
    %v4230 = vmul.f32 %v4228, %v4229
    %v4231 = vsub.f32 1.0, %v4230
    %v4232 = vmul.f32 %v4229, %v4231
    %v4233 = vadd.f32 %v4229, %v4232
    %vm4234 = vweird.f32 %v4228
    %vm4235 = vweird.f32 %v4229
    %vm4236 = vmor %vm4234, %vm4235
    %v4237 = vsel %vm4236, %v4229, %v4233
    %v4238 = vand.u32 2147483647, %v4228
    %vm4239 = vcmp.eq.f32.partialorder %v4238, 8.507059e+37
    %v4240 = vand.u32 %v4228, 2147483648
    %v4241 = vor.u32 1.1754944e-38, %v4240
    %v4242 = vsel %vm4239, %v4241, %v4237
    %v4243 = vmul.f32 1.0, %v4242
    %v4244 = vmul.f32 %v4223, %v3480
    %v4245 = vmul.f32 %v4204, %v4224
    %v4246 = vadd.f32 %v4244, %v4245
    %v4247 = vtanh.pop %v4246
    %v4248 = vmul.f32 %v4243, %v4247
    %v4249 = vld [vmem:[#allocation4] sm:$0xff]
    %v4250 = vld [vmem:[#allocation4 + $0x8] sm:$0xff]
    %v4251 = vld [vmem:[#allocation4 + $0x10] sm:$0xff]
    %v4252 = vld [vmem:[#allocation4 + $0x18] sm:$0xff]
    %v4253 = vld [vmem:[#allocation4 + $0x20] sm:$0xff]
    %v4254 = vld [vmem:[#allocation4 + $0x28] sm:$0xff]
    %v4255 = vld [vmem:[#allocation4 + $0x30] sm:$0xff]
    %v4256 = vld [vmem:[#allocation4 + $0x38] sm:$0xff]
    %v4257 = vld [vmem:[#allocation4 + $0x40] sm:$0xff]
    %v4258 = vld [vmem:[#allocation4 + $0x48] sm:$0xff]
    %v4259 = vld [vmem:[#allocation4 + $0x50] sm:$0xff]
    %v4260 = vld [vmem:[#allocation4 + $0x58] sm:$0xff]
    %v4261 = vld [vmem:[#allocation4 + $0x60] sm:$0xff]
    %v4262 = vld [vmem:[#allocation4 + $0x68] sm:$0xff]
    %v4263 = vld [vmem:[#allocation4 + $0x70] sm:$0xff]
    %v4264 = vld [vmem:[#allocation4 + $0x78] sm:$0xff]
    %v4265 = vld [vmem:[#allocation4 + $0x80] sm:$0xff]
    %v4266 = vld [vmem:[#allocation4 + $0x88] sm:$0xff]
    %v4267 = vld [vmem:[#allocation4 + $0x90] sm:$0xff]
    %v4268 = vld [vmem:[#allocation4 + $0x98] sm:$0xff]
    %v4269 = vld [vmem:[#allocation4 + $0xa0] sm:$0xff]
    %v4270 = vld [vmem:[#allocation4 + $0xa8] sm:$0xff]
    %v4271 = vld [vmem:[#allocation4 + $0xb0] sm:$0xff]
    %v4272 = vld [vmem:[#allocation4 + $0xb8] sm:$0xff]
    %v4273 = vld [vmem:[#allocation4 + $0xc0] sm:$0xff]
    %v4274 = vld [vmem:[#allocation4 + $0xc8] sm:$0xff]
    %v4275 = vld [vmem:[#allocation4 + $0xd0] sm:$0xff]
    %v4276 = vld [vmem:[#allocation4 + $0xd8] sm:$0xff]
    %v4277 = vld [vmem:[#allocation4 + $0xe0] sm:$0xff]
    %v4278 = vld [vmem:[#allocation4 + $0xe8] sm:$0xff]
    %v4279 = vld [vmem:[#allocation4 + $0xf0] sm:$0xff]
    %v4280 = vld [vmem:[#allocation4 + $0xf8] sm:$0xff]
    %v4281 = vld [vmem:[#allocation4 + $0x100] sm:$0xff]
    %v4282 = vld [vmem:[#allocation4 + $0x108] sm:$0xff]
    %v4283 = vld [vmem:[#allocation4 + $0x110] sm:$0xff]
    %v4284 = vld [vmem:[#allocation4 + $0x118] sm:$0xff]
    %v4285 = vld [vmem:[#allocation4 + $0x120] sm:$0xff]
    %v4286 = vld [vmem:[#allocation4 + $0x128] sm:$0xff]
    %v4287 = vld [vmem:[#allocation4 + $0x130] sm:$0xff]
    %v4288 = vld [vmem:[#allocation4 + $0x138] sm:$0xff]
    %v4289 = vld [vmem:[#allocation4 + $0x140] sm:$0xff]
    %v4290 = vld [vmem:[#allocation4 + $0x148] sm:$0xff]
    %v4291 = vld [vmem:[#allocation4 + $0x150] sm:$0xff]
    %v4292 = vld [vmem:[#allocation4 + $0x158] sm:$0xff]
    %v4293 = vld [vmem:[#allocation4 + $0x160] sm:$0xff]
    %v4294 = vld [vmem:[#allocation4 + $0x168] sm:$0xff]
    %v4295 = vld [vmem:[#allocation4 + $0x170] sm:$0xff]
    %v4296 = vld [vmem:[#allocation4 + $0x178] sm:$0xff]
    %v4297 = vld [vmem:[#allocation4 + $0x180] sm:$0xff]
    %v4298 = vld [vmem:[#allocation4 + $0x188] sm:$0xff]
    %v4299 = vld [vmem:[#allocation4 + $0x190] sm:$0xff]
    %v4300 = vld [vmem:[#allocation4 + $0x198] sm:$0xff]
    %v4301 = vld [vmem:[#allocation4 + $0x1a0] sm:$0xff]
    %v4302 = vld [vmem:[#allocation4 + $0x1a8] sm:$0xff]
    %v4303 = vld [vmem:[#allocation4 + $0x1b0] sm:$0xff]
    %v4304 = vld [vmem:[#allocation4 + $0x1b8] sm:$0xff]
    %v4305 = vld [vmem:[#allocation4 + $0x1c0] sm:$0xff]
    %v4306 = vld [vmem:[#allocation4 + $0x1c8] sm:$0xff]
    %v4307 = vld [vmem:[#allocation4 + $0x1d0] sm:$0xff]
    %v4308 = vld [vmem:[#allocation4 + $0x1d8] sm:$0xff]
    %v4309 = vld [vmem:[#allocation4 + $0x1e0] sm:$0xff]
    %v4310 = vld [vmem:[#allocation4 + $0x1e8] sm:$0xff]
    %v4311 = vld [vmem:[#allocation4 + $0x1f0] sm:$0xff]
    %v4312 = vld [vmem:[#allocation4 + $0x1f8] sm:$0xff]
    %v4313 = vld [vmem:[#allocation4 + $0x200] sm:$0xff]
    %v4314 = vld [vmem:[#allocation4 + $0x208] sm:$0xff]
    %v4315 = vld [vmem:[#allocation4 + $0x210] sm:$0xff]
    %v4316 = vld [vmem:[#allocation4 + $0x218] sm:$0xff]
    %v4317 = vld [vmem:[#allocation4 + $0x220] sm:$0xff]
    %v4318 = vld [vmem:[#allocation4 + $0x228] sm:$0xff]
    %v4319 = vld [vmem:[#allocation4 + $0x230] sm:$0xff]
    %v4320 = vld [vmem:[#allocation4 + $0x238] sm:$0xff]
    %v4321 = vld [vmem:[#allocation4 + $0x240] sm:$0xff]
    %v4322 = vld [vmem:[#allocation4 + $0x248] sm:$0xff]
    %v4323 = vld [vmem:[#allocation4 + $0x250] sm:$0xff]
    %v4324 = vld [vmem:[#allocation4 + $0x258] sm:$0xff]
    %v4325 = vld [vmem:[#allocation4 + $0x260] sm:$0xff]
    %v4326 = vld [vmem:[#allocation4 + $0x268] sm:$0xff]
    %v4327 = vld [vmem:[#allocation4 + $0x270] sm:$0xff]
    %v4328 = vld [vmem:[#allocation4 + $0x278] sm:$0xff]
    %v4329 = vld [vmem:[#allocation4 + $0x280] sm:$0xff]
    %v4330 = vld [vmem:[#allocation4 + $0x288] sm:$0xff]
    %v4331 = vld [vmem:[#allocation4 + $0x290] sm:$0xff]
    %v4332 = vld [vmem:[#allocation4 + $0x298] sm:$0xff]
    %v4333 = vld [vmem:[#allocation4 + $0x2a0] sm:$0xff]
    %v4334 = vld [vmem:[#allocation4 + $0x2a8] sm:$0xff]
    %v4335 = vld [vmem:[#allocation4 + $0x2b0] sm:$0xff]
    %v4336 = vld [vmem:[#allocation4 + $0x2b8] sm:$0xff]
    %v4337 = vld [vmem:[#allocation4 + $0x2c0] sm:$0xff]
    %v4338 = vld [vmem:[#allocation4 + $0x2c8] sm:$0xff]
    %v4339 = vld [vmem:[#allocation4 + $0x2d0] sm:$0xff]
    %v4340 = vld [vmem:[#allocation4 + $0x2d8] sm:$0xff]
    %v4341 = vld [vmem:[#allocation4 + $0x2e0] sm:$0xff]
    %v4342 = vld [vmem:[#allocation4 + $0x2e8] sm:$0xff]
    %v4343 = vld [vmem:[#allocation4 + $0x2f0] sm:$0xff]
    %v4344 = vld [vmem:[#allocation4 + $0x2f8] sm:$0xff]
    %v4345 = vld [vmem:[#allocation4 + $0x300] sm:$0xff]
    %v4346 = vld [vmem:[#allocation4 + $0x308] sm:$0xff]
    %v4347 = vld [vmem:[#allocation4 + $0x310] sm:$0xff]
    %v4348 = vld [vmem:[#allocation4 + $0x318] sm:$0xff]
    %v4349 = vld [vmem:[#allocation4 + $0x320] sm:$0xff]
    %v4350 = vld [vmem:[#allocation4 + $0x328] sm:$0xff]
    %v4351 = vld [vmem:[#allocation4 + $0x330] sm:$0xff]
    %v4352 = vld [vmem:[#allocation4 + $0x338] sm:$0xff]
    %v4353 = vld [vmem:[#allocation4 + $0x340] sm:$0xff]
    %v4354 = vld [vmem:[#allocation4 + $0x348] sm:$0xff]
    %v4355 = vld [vmem:[#allocation4 + $0x350] sm:$0xff]
    %v4356 = vld [vmem:[#allocation4 + $0x358] sm:$0xff]
    %v4357 = vld [vmem:[#allocation4 + $0x360] sm:$0xff]
    %v4358 = vld [vmem:[#allocation4 + $0x368] sm:$0xff]
    %v4359 = vld [vmem:[#allocation4 + $0x370] sm:$0xff]
    %v4360 = vld [vmem:[#allocation4 + $0x378] sm:$0xff]
    %v4361 = vld [vmem:[#allocation4 + $0x380] sm:$0xff]
    %v4362 = vld [vmem:[#allocation4 + $0x388] sm:$0xff]
    %v4363 = vld [vmem:[#allocation4 + $0x390] sm:$0xff]
    %v4364 = vld [vmem:[#allocation4 + $0x398] sm:$0xff]
    %v4365 = vld [vmem:[#allocation4 + $0x3a0] sm:$0xff]
    %v4366 = vld [vmem:[#allocation4 + $0x3a8] sm:$0xff]
    %v4367 = vld [vmem:[#allocation4 + $0x3b0] sm:$0xff]
    %v4368 = vld [vmem:[#allocation4 + $0x3b8] sm:$0xff]
    %v4369 = vld [vmem:[#allocation4 + $0x3c0] sm:$0xff]
    %v4370 = vld [vmem:[#allocation4 + $0x3c8] sm:$0xff]
    %v4371 = vld [vmem:[#allocation4 + $0x3d0] sm:$0xff]
    %v4372 = vld [vmem:[#allocation4 + $0x3d8] sm:$0xff]
    %v4373 = vld [vmem:[#allocation4 + $0x3e0] sm:$0xff]
    %v4374 = vld [vmem:[#allocation4 + $0x3e8] sm:$0xff]
    %v4375 = vld [vmem:[#allocation4 + $0x3f0] sm:$0xff]
    %v4376 = vld [vmem:[#allocation4 + $0x3f8] sm:$0xff]
    %v4377 = vld [vmem:[%s4] sm:$0xf]
    %v4379 = vperm.slane %v4377, 0
    %v4380 = vperm.slane %v4377, 1
    %v4381 = vperm.slane %v4377, 2
    %v4382 = vperm.slane %v4377, 3
    %4387 = vmatpush.msra.mxu0 %v4309
    %4388 = vmatpush.msra.mxu0 %v4305
    %4389 = vmatpush.msra.mxu0 %v4301
    %4390 = vmatpush.msra.mxu0 %v4297
    %4391 = vmatpush.msra.mxu0 %v4293
    %4392 = vmatpush.msra.mxu0 %v4289
    %4393 = vmatpush.msra.mxu0 %v4285
    %4394 = vmatpush.msra.mxu0 %v4281
    %4395 = vmatpush.msra.mxu0 %v4277
    %4396 = vmatpush.msra.mxu0 %v4273
    %4397 = vmatpush.msra.mxu0 %v4269
    %4398 = vmatpush.msra.mxu0 %v4265
    %4399 = vmatpush.msra.mxu0 %v4261
    %4400 = vmatpush.msra.mxu0 %v4257
    %4401 = vmatpush.msra.mxu0 %v4253
    %4402 = vmatpush.msra.mxu0 %v4249
    %4403 = vmatmul.f32.gmra.mxu0 %v4248
    %v4404 = vpop.f32.mrf.mxu0
    %v4405 = vadd.f32 %v4379, %v4404
    %4406 = vdwg.mxu0
    %4407 = vmatpush.msra.mxu0 %v4373
    %4408 = vmatpush.msra.mxu0 %v4369
    %4409 = vmatpush.msra.mxu0 %v4365
    %4410 = vmatpush.msra.mxu0 %v4361
    %4411 = vmatpush.msra.mxu0 %v4357
    %4412 = vmatpush.msra.mxu0 %v4353
    %4413 = vmatpush.msra.mxu0 %v4349
    %4414 = vmatpush.msra.mxu0 %v4345
    %4415 = vmatpush.msra.mxu0 %v4341
    %4416 = vmatpush.msra.mxu0 %v4337
    %4417 = vmatpush.msra.mxu0 %v4333
    %4418 = vmatpush.msra.mxu0 %v4329
    %4419 = vmatpush.msra.mxu0 %v4325
    %4420 = vmatpush.msra.mxu0 %v4321
    %4421 = vmatpush.msra.mxu0 %v4317
    %4422 = vmatpush.msra.mxu0 %v4313
    %4423 = vmatmul.f32.gmra.mxu0 %v3843
    %v4424 = vpop.f32.mrf.mxu0
    %v4425 = vadd.f32 %v4405, %v4424
    %4426 = vdwg.mxu0
    %4427 = vmatpush.msra.mxu0 %v4310
    %4428 = vmatpush.msra.mxu0 %v4306
    %4429 = vmatpush.msra.mxu0 %v4302
    %4430 = vmatpush.msra.mxu0 %v4298
    %4431 = vmatpush.msra.mxu0 %v4294
    %4432 = vmatpush.msra.mxu0 %v4290
    %4433 = vmatpush.msra.mxu0 %v4286
    %4434 = vmatpush.msra.mxu0 %v4282
    %4435 = vmatpush.msra.mxu0 %v4278
    %4436 = vmatpush.msra.mxu0 %v4274
    %4437 = vmatpush.msra.mxu0 %v4270
    %4438 = vmatpush.msra.mxu0 %v4266
    %4439 = vmatpush.msra.mxu0 %v4262
    %4440 = vmatpush.msra.mxu0 %v4258
    %4441 = vmatpush.msra.mxu0 %v4254
    %4442 = vmatpush.msra.mxu0 %v4250
    %4443 = vmatmul.f32.gmra.mxu0 %v4248
    %v4444 = vpop.f32.mrf.mxu0
    %v4445 = vadd.f32 %v4380, %v4444
    %4446 = vdwg.mxu0
    %4447 = vmatpush.msra.mxu0 %v4374
    %4448 = vmatpush.msra.mxu0 %v4370
    %4449 = vmatpush.msra.mxu0 %v4366
    %4450 = vmatpush.msra.mxu0 %v4362
    %4451 = vmatpush.msra.mxu0 %v4358
    %4452 = vmatpush.msra.mxu0 %v4354
    %4453 = vmatpush.msra.mxu0 %v4350
    %4454 = vmatpush.msra.mxu0 %v4346
    %4455 = vmatpush.msra.mxu0 %v4342
    %4456 = vmatpush.msra.mxu0 %v4338
    %4457 = vmatpush.msra.mxu0 %v4334
    %4458 = vmatpush.msra.mxu0 %v4330
    %4459 = vmatpush.msra.mxu0 %v4326
    %4460 = vmatpush.msra.mxu0 %v4322
    %4461 = vmatpush.msra.mxu0 %v4318
    %4462 = vmatpush.msra.mxu0 %v4314
    %4463 = vmatmul.f32.gmra.mxu0 %v3843
    %v4464 = vpop.f32.mrf.mxu0
    %v4465 = vadd.f32 %v4445, %v4464
    %4466 = vdwg.mxu0
    %4467 = vmatpush.msra.mxu0 %v4311
    %4468 = vmatpush.msra.mxu0 %v4307
    %4469 = vmatpush.msra.mxu0 %v4303
    %4470 = vmatpush.msra.mxu0 %v4299
    %4471 = vmatpush.msra.mxu0 %v4295
    %4472 = vmatpush.msra.mxu0 %v4291
    %4473 = vmatpush.msra.mxu0 %v4287
    %4474 = vmatpush.msra.mxu0 %v4283
    %4475 = vmatpush.msra.mxu0 %v4279
    %4476 = vmatpush.msra.mxu0 %v4275
    %4477 = vmatpush.msra.mxu0 %v4271
    %4478 = vmatpush.msra.mxu0 %v4267
    %4479 = vmatpush.msra.mxu0 %v4263
    %4480 = vmatpush.msra.mxu0 %v4259
    %4481 = vmatpush.msra.mxu0 %v4255
    %4482 = vmatpush.msra.mxu0 %v4251
    %4483 = vmatmul.f32.gmra.mxu0 %v4248
    %v4484 = vpop.f32.mrf.mxu0
    %v4485 = vadd.f32 %v4381, %v4484
    %4486 = vdwg.mxu0
    %4487 = vmatpush.msra.mxu0 %v4375
    %4488 = vmatpush.msra.mxu0 %v4371
    %4489 = vmatpush.msra.mxu0 %v4367
    %4490 = vmatpush.msra.mxu0 %v4363
    %4491 = vmatpush.msra.mxu0 %v4359
    %4492 = vmatpush.msra.mxu0 %v4355
    %4493 = vmatpush.msra.mxu0 %v4351
    %4494 = vmatpush.msra.mxu0 %v4347
    %4495 = vmatpush.msra.mxu0 %v4343
    %4496 = vmatpush.msra.mxu0 %v4339
    %4497 = vmatpush.msra.mxu0 %v4335
    %4498 = vmatpush.msra.mxu0 %v4331
    %4499 = vmatpush.msra.mxu0 %v4327
    %4500 = vmatpush.msra.mxu0 %v4323
    %4501 = vmatpush.msra.mxu0 %v4319
    %4502 = vmatpush.msra.mxu0 %v4315
    %4503 = vmatmul.f32.gmra.mxu0 %v3843
    %v4504 = vpop.f32.mrf.mxu0
    %v4505 = vadd.f32 %v4485, %v4504
    %4506 = vdwg.mxu0
    %4507 = vmatpush.msra.mxu0 %v4312
    %4508 = vmatpush.msra.mxu0 %v4308
    %4509 = vmatpush.msra.mxu0 %v4304
    %4510 = vmatpush.msra.mxu0 %v4300
    %4511 = vmatpush.msra.mxu0 %v4296
    %4512 = vmatpush.msra.mxu0 %v4292
    %4513 = vmatpush.msra.mxu0 %v4288
    %4514 = vmatpush.msra.mxu0 %v4284
    %4515 = vmatpush.msra.mxu0 %v4280
    %4516 = vmatpush.msra.mxu0 %v4276
    %4517 = vmatpush.msra.mxu0 %v4272
    %4518 = vmatpush.msra.mxu0 %v4268
    %4519 = vmatpush.msra.mxu0 %v4264
    %4520 = vmatpush.msra.mxu0 %v4260
    %4521 = vmatpush.msra.mxu0 %v4256
    %4522 = vmatpush.msra.mxu0 %v4252
    %4523 = vmatmul.f32.gmra.mxu0 %v4248
    %v4524 = vpop.f32.mrf.mxu0
    %v4525 = vadd.f32 %v4382, %v4524
    %4526 = vdwg.mxu0
    %4527 = vmatpush.msra.mxu0 %v4376
    %4528 = vmatpush.msra.mxu0 %v4372
    %4529 = vmatpush.msra.mxu0 %v4368
    %4530 = vmatpush.msra.mxu0 %v4364
    %4531 = vmatpush.msra.mxu0 %v4360
    %4532 = vmatpush.msra.mxu0 %v4356
    %4533 = vmatpush.msra.mxu0 %v4352
    %4534 = vmatpush.msra.mxu0 %v4348
    %4535 = vmatpush.msra.mxu0 %v4344
    %4536 = vmatpush.msra.mxu0 %v4340
    %4537 = vmatpush.msra.mxu0 %v4336
    %4538 = vmatpush.msra.mxu0 %v4332
    %4539 = vmatpush.msra.mxu0 %v4328
    %4540 = vmatpush.msra.mxu0 %v4324
    %4541 = vmatpush.msra.mxu0 %v4320
    %4542 = vmatpush.msra.mxu0 %v4316
    %4543 = vmatmul.f32.gmra.mxu0 %v3843
    %v4544 = vpop.f32.mrf.mxu0
    %v4545 = vadd.f32 %v4525, %v4544
    %4546 = vdwg.mxu0
    %v4547 = vxor.u32 %v4425, 2147483648
    %v4548 = vmul.f32 %v4547, 1.442695
    %v4549 = vpow.pop %v4548
    %v4550 = vadd.f32 %v4549, 1.0
    %v4551 = vrcp.pop %v4550
    %v4552 = vmul.f32 %v4550, %v4551
    %v4553 = vsub.f32 1.0, %v4552
    %v4554 = vmul.f32 %v4551, %v4553
    %v4555 = vadd.f32 %v4551, %v4554
    %vm4556 = vweird.f32 %v4550
    %vm4557 = vweird.f32 %v4551
    %vm4558 = vmor %vm4556, %vm4557
    %v4559 = vsel %vm4558, %v4551, %v4555
    %v4560 = vand.u32 2147483647, %v4550
    %vm4561 = vcmp.eq.f32.partialorder %v4560, 8.507059e+37
    %v4562 = vand.u32 %v4550, 2147483648
    %v4563 = vor.u32 1.1754944e-38, %v4562
    %v4564 = vsel %vm4561, %v4563, %v4559
    %v4565 = vmul.f32 1.0, %v4564
    %v4566 = vxor.u32 %v4465, 2147483648
    %v4567 = vmul.f32 %v4566, 1.442695
    %v4568 = vpow.pop %v4567
    %v4569 = vadd.f32 %v4568, 1.0
    %v4570 = vrcp.pop %v4569
    %v4571 = vmul.f32 %v4569, %v4570
    %v4572 = vsub.f32 1.0, %v4571
    %v4573 = vmul.f32 %v4570, %v4572
    %v4574 = vadd.f32 %v4570, %v4573
    %vm4575 = vweird.f32 %v4569
    %vm4576 = vweird.f32 %v4570
    %vm4577 = vmor %vm4575, %vm4576
    %v4578 = vsel %vm4577, %v4570, %v4574
    %v4579 = vand.u32 2147483647, %v4569
    %vm4580 = vcmp.eq.f32.partialorder %v4579, 8.507059e+37
    %v4581 = vand.u32 %v4569, 2147483648
    %v4582 = vor.u32 1.1754944e-38, %v4581
    %v4583 = vsel %vm4580, %v4582, %v4578
    %v4584 = vmul.f32 1.0, %v4583
    %v4585 = vtanh.pop %v4505
    %v4586 = vxor.u32 %v4545, 2147483648
    %v4587 = vmul.f32 %v4586, 1.442695
    %v4588 = vpow.pop %v4587
    %v4589 = vadd.f32 %v4588, 1.0
    %v4590 = vrcp.pop %v4589
    %v4591 = vmul.f32 %v4589, %v4590
    %v4592 = vsub.f32 1.0, %v4591
    %v4593 = vmul.f32 %v4590, %v4592
    %v4594 = vadd.f32 %v4590, %v4593
    %vm4595 = vweird.f32 %v4589
    %vm4596 = vweird.f32 %v4590
    %vm4597 = vmor %vm4595, %vm4596
    %v4598 = vsel %vm4597, %v4590, %v4594
    %v4599 = vand.u32 2147483647, %v4589
    %vm4600 = vcmp.eq.f32.partialorder %v4599, 8.507059e+37
    %v4601 = vand.u32 %v4589, 2147483648
    %v4602 = vor.u32 1.1754944e-38, %v4601
    %v4603 = vsel %vm4600, %v4602, %v4598
    %v4604 = vmul.f32 1.0, %v4603
    %v4605 = vmul.f32 %v4584, %v3841
    %v4606 = vmul.f32 %v4565, %v4585
    %v4607 = vadd.f32 %v4605, %v4606
    %v4608 = vtanh.pop %v4607
    %v4609 = vmul.f32 %v4604, %v4608
    %v4610 = vld [vmem:[%s5] sm:$0xff]
    %v4611 = vld [vmem:[%s5 + $0x8] sm:$0xff]
    %v4612 = vld [vmem:[%s5 + $0x10] sm:$0xff]
    %v4613 = vld [vmem:[%s5 + $0x18] sm:$0xff]
    %v4614 = vld [vmem:[%s5 + $0x20] sm:$0xff]
    %v4615 = vld [vmem:[%s5 + $0x28] sm:$0xff]
    %v4616 = vld [vmem:[%s5 + $0x30] sm:$0xff]
    %v4617 = vld [vmem:[%s5 + $0x38] sm:$0xff]
    %v4618 = vld [vmem:[%s5 + $0x40] sm:$0xff]
    %v4619 = vld [vmem:[%s5 + $0x48] sm:$0xff]
    %v4620 = vld [vmem:[%s5 + $0x50] sm:$0xff]
    %v4621 = vld [vmem:[%s5 + $0x58] sm:$0xff]
    %v4622 = vld [vmem:[%s5 + $0x60] sm:$0xff]
    %v4623 = vld [vmem:[%s5 + $0x68] sm:$0xff]
    %v4624 = vld [vmem:[%s5 + $0x70] sm:$0xff]
    %v4625 = vld [vmem:[%s5 + $0x78] sm:$0xff]
    %v4626 = vld [vmem:[%s6] sm:$0x1]
    %v4628 = vperm.slane %v4626, 0
    %4630 = vmatpush.msra.mxu0 %v4625
    %4631 = vmatpush.msra.mxu0 %v4624
    %4632 = vmatpush.msra.mxu0 %v4623
    %4633 = vmatpush.msra.mxu0 %v4622
    %4634 = vmatpush.msra.mxu0 %v4621
    %4635 = vmatpush.msra.mxu0 %v4620
    %4636 = vmatpush.msra.mxu0 %v4619
    %4637 = vmatpush.msra.mxu0 %v4618
    %4638 = vmatpush.msra.mxu0 %v4617
    %4639 = vmatpush.msra.mxu0 %v4616
    %4640 = vmatpush.msra.mxu0 %v4615
    %4641 = vmatpush.msra.mxu0 %v4614
    %4642 = vmatpush.msra.mxu0 %v4613
    %4643 = vmatpush.msra.mxu0 %v4612
    %4644 = vmatpush.msra.mxu0 %v4611
    %4645 = vmatpush.msra.mxu0 %v4610
    %4646 = vmatmul.f32.gmra.mxu0 %v4609
    %v4647 = vpop.f32.mrf.mxu0
    %v4648 = vadd.f32 %v4628, %v4647
    %4649 = vdwg.mxu0
    %s4650 = scalar_lea.vmem %s7, 40
    %4651 = vst [vmem:[%s4650] sm:$0xff] %v4648
    %s4652 = scalar_lea.vmem %s0, 48
    %v4653 = vld [vmem:[%s4652] sm:$0xff]
    %v4654 = vld [vmem:[#allocation2] sm:$0xff]
    %v4655 = vld [vmem:[#allocation2 + $0x8] sm:$0xff]
    %v4656 = vld [vmem:[#allocation2 + $0x10] sm:$0xff]
    %v4657 = vld [vmem:[#allocation2 + $0x18] sm:$0xff]
    %v4658 = vld [vmem:[#allocation2 + $0x20] sm:$0xff]
    %v4659 = vld [vmem:[#allocation2 + $0x28] sm:$0xff]
    %v4660 = vld [vmem:[#allocation2 + $0x30] sm:$0xff]
    %v4661 = vld [vmem:[#allocation2 + $0x38] sm:$0xff]
    %v4662 = vld [vmem:[#allocation2 + $0x40] sm:$0xff]
    %v4663 = vld [vmem:[#allocation2 + $0x48] sm:$0xff]
    %v4664 = vld [vmem:[#allocation2 + $0x50] sm:$0xff]
    %v4665 = vld [vmem:[#allocation2 + $0x58] sm:$0xff]
    %v4666 = vld [vmem:[#allocation2 + $0x60] sm:$0xff]
    %v4667 = vld [vmem:[#allocation2 + $0x68] sm:$0xff]
    %v4668 = vld [vmem:[#allocation2 + $0x70] sm:$0xff]
    %v4669 = vld [vmem:[#allocation2 + $0x78] sm:$0xff]
    %v4670 = vld [vmem:[#allocation2 + $0x80] sm:$0xff]
    %v4671 = vld [vmem:[#allocation2 + $0x88] sm:$0xff]
    %v4672 = vld [vmem:[#allocation2 + $0x90] sm:$0xff]
    %v4673 = vld [vmem:[#allocation2 + $0x98] sm:$0xff]
    %v4674 = vld [vmem:[#allocation2 + $0xa0] sm:$0xff]
    %v4675 = vld [vmem:[#allocation2 + $0xa8] sm:$0xff]
    %v4676 = vld [vmem:[#allocation2 + $0xb0] sm:$0xff]
    %v4677 = vld [vmem:[#allocation2 + $0xb8] sm:$0xff]
    %v4678 = vld [vmem:[#allocation2 + $0xc0] sm:$0xff]
    %v4679 = vld [vmem:[#allocation2 + $0xc8] sm:$0xff]
    %v4680 = vld [vmem:[#allocation2 + $0xd0] sm:$0xff]
    %v4681 = vld [vmem:[#allocation2 + $0xd8] sm:$0xff]
    %v4682 = vld [vmem:[#allocation2 + $0xe0] sm:$0xff]
    %v4683 = vld [vmem:[#allocation2 + $0xe8] sm:$0xff]
    %v4684 = vld [vmem:[#allocation2 + $0xf0] sm:$0xff]
    %v4685 = vld [vmem:[#allocation2 + $0xf8] sm:$0xff]
    %v4686 = vld [vmem:[#allocation2 + $0x100] sm:$0xff]
    %v4687 = vld [vmem:[#allocation2 + $0x108] sm:$0xff]
    %v4688 = vld [vmem:[#allocation2 + $0x110] sm:$0xff]
    %v4689 = vld [vmem:[#allocation2 + $0x118] sm:$0xff]
    %v4690 = vld [vmem:[#allocation2 + $0x120] sm:$0xff]
    %v4691 = vld [vmem:[#allocation2 + $0x128] sm:$0xff]
    %v4692 = vld [vmem:[#allocation2 + $0x130] sm:$0xff]
    %v4693 = vld [vmem:[#allocation2 + $0x138] sm:$0xff]
    %v4694 = vld [vmem:[#allocation2 + $0x140] sm:$0xff]
    %v4695 = vld [vmem:[#allocation2 + $0x148] sm:$0xff]
    %v4696 = vld [vmem:[#allocation2 + $0x150] sm:$0xff]
    %v4697 = vld [vmem:[#allocation2 + $0x158] sm:$0xff]
    %v4698 = vld [vmem:[#allocation2 + $0x160] sm:$0xff]
    %v4699 = vld [vmem:[#allocation2 + $0x168] sm:$0xff]
    %v4700 = vld [vmem:[#allocation2 + $0x170] sm:$0xff]
    %v4701 = vld [vmem:[#allocation2 + $0x178] sm:$0xff]
    %v4702 = vld [vmem:[#allocation2 + $0x180] sm:$0xff]
    %v4703 = vld [vmem:[#allocation2 + $0x188] sm:$0xff]
    %v4704 = vld [vmem:[#allocation2 + $0x190] sm:$0xff]
    %v4705 = vld [vmem:[#allocation2 + $0x198] sm:$0xff]
    %v4706 = vld [vmem:[#allocation2 + $0x1a0] sm:$0xff]
    %v4707 = vld [vmem:[#allocation2 + $0x1a8] sm:$0xff]
    %v4708 = vld [vmem:[#allocation2 + $0x1b0] sm:$0xff]
    %v4709 = vld [vmem:[#allocation2 + $0x1b8] sm:$0xff]
    %v4710 = vld [vmem:[#allocation2 + $0x1c0] sm:$0xff]
    %v4711 = vld [vmem:[#allocation2 + $0x1c8] sm:$0xff]
    %v4712 = vld [vmem:[#allocation2 + $0x1d0] sm:$0xff]
    %v4713 = vld [vmem:[#allocation2 + $0x1d8] sm:$0xff]
    %v4714 = vld [vmem:[#allocation2 + $0x1e0] sm:$0xff]
    %v4715 = vld [vmem:[#allocation2 + $0x1e8] sm:$0xff]
    %v4716 = vld [vmem:[#allocation2 + $0x1f0] sm:$0xff]
    %v4717 = vld [vmem:[#allocation2 + $0x1f8] sm:$0xff]
    %v4718 = vld [vmem:[#allocation2 + $0x200] sm:$0xff]
    %v4719 = vld [vmem:[#allocation2 + $0x208] sm:$0xff]
    %v4720 = vld [vmem:[#allocation2 + $0x210] sm:$0xff]
    %v4721 = vld [vmem:[#allocation2 + $0x218] sm:$0xff]
    %v4722 = vld [vmem:[#allocation2 + $0x220] sm:$0xff]
    %v4723 = vld [vmem:[#allocation2 + $0x228] sm:$0xff]
    %v4724 = vld [vmem:[#allocation2 + $0x230] sm:$0xff]
    %v4725 = vld [vmem:[#allocation2 + $0x238] sm:$0xff]
    %v4726 = vld [vmem:[#allocation2 + $0x240] sm:$0xff]
    %v4727 = vld [vmem:[#allocation2 + $0x248] sm:$0xff]
    %v4728 = vld [vmem:[#allocation2 + $0x250] sm:$0xff]
    %v4729 = vld [vmem:[#allocation2 + $0x258] sm:$0xff]
    %v4730 = vld [vmem:[#allocation2 + $0x260] sm:$0xff]
    %v4731 = vld [vmem:[#allocation2 + $0x268] sm:$0xff]
    %v4732 = vld [vmem:[#allocation2 + $0x270] sm:$0xff]
    %v4733 = vld [vmem:[#allocation2 + $0x278] sm:$0xff]
    %v4734 = vld [vmem:[#allocation2 + $0x280] sm:$0xff]
    %v4735 = vld [vmem:[#allocation2 + $0x288] sm:$0xff]
    %v4736 = vld [vmem:[#allocation2 + $0x290] sm:$0xff]
    %v4737 = vld [vmem:[#allocation2 + $0x298] sm:$0xff]
    %v4738 = vld [vmem:[#allocation2 + $0x2a0] sm:$0xff]
    %v4739 = vld [vmem:[#allocation2 + $0x2a8] sm:$0xff]
    %v4740 = vld [vmem:[#allocation2 + $0x2b0] sm:$0xff]
    %v4741 = vld [vmem:[#allocation2 + $0x2b8] sm:$0xff]
    %v4742 = vld [vmem:[#allocation2 + $0x2c0] sm:$0xff]
    %v4743 = vld [vmem:[#allocation2 + $0x2c8] sm:$0xff]
    %v4744 = vld [vmem:[#allocation2 + $0x2d0] sm:$0xff]
    %v4745 = vld [vmem:[#allocation2 + $0x2d8] sm:$0xff]
    %v4746 = vld [vmem:[#allocation2 + $0x2e0] sm:$0xff]
    %v4747 = vld [vmem:[#allocation2 + $0x2e8] sm:$0xff]
    %v4748 = vld [vmem:[#allocation2 + $0x2f0] sm:$0xff]
    %v4749 = vld [vmem:[#allocation2 + $0x2f8] sm:$0xff]
    %v4750 = vld [vmem:[#allocation2 + $0x300] sm:$0xff]
    %v4751 = vld [vmem:[#allocation2 + $0x308] sm:$0xff]
    %v4752 = vld [vmem:[#allocation2 + $0x310] sm:$0xff]
    %v4753 = vld [vmem:[#allocation2 + $0x318] sm:$0xff]
    %v4754 = vld [vmem:[#allocation2 + $0x320] sm:$0xff]
    %v4755 = vld [vmem:[#allocation2 + $0x328] sm:$0xff]
    %v4756 = vld [vmem:[#allocation2 + $0x330] sm:$0xff]
    %v4757 = vld [vmem:[#allocation2 + $0x338] sm:$0xff]
    %v4758 = vld [vmem:[#allocation2 + $0x340] sm:$0xff]
    %v4759 = vld [vmem:[#allocation2 + $0x348] sm:$0xff]
    %v4760 = vld [vmem:[#allocation2 + $0x350] sm:$0xff]
    %v4761 = vld [vmem:[#allocation2 + $0x358] sm:$0xff]
    %v4762 = vld [vmem:[#allocation2 + $0x360] sm:$0xff]
    %v4763 = vld [vmem:[#allocation2 + $0x368] sm:$0xff]
    %v4764 = vld [vmem:[#allocation2 + $0x370] sm:$0xff]
    %v4765 = vld [vmem:[#allocation2 + $0x378] sm:$0xff]
    %v4766 = vld [vmem:[#allocation2 + $0x380] sm:$0xff]
    %v4767 = vld [vmem:[#allocation2 + $0x388] sm:$0xff]
    %v4768 = vld [vmem:[#allocation2 + $0x390] sm:$0xff]
    %v4769 = vld [vmem:[#allocation2 + $0x398] sm:$0xff]
    %v4770 = vld [vmem:[#allocation2 + $0x3a0] sm:$0xff]
    %v4771 = vld [vmem:[#allocation2 + $0x3a8] sm:$0xff]
    %v4772 = vld [vmem:[#allocation2 + $0x3b0] sm:$0xff]
    %v4773 = vld [vmem:[#allocation2 + $0x3b8] sm:$0xff]
    %v4774 = vld [vmem:[#allocation2 + $0x3c0] sm:$0xff]
    %v4775 = vld [vmem:[#allocation2 + $0x3c8] sm:$0xff]
    %v4776 = vld [vmem:[#allocation2 + $0x3d0] sm:$0xff]
    %v4777 = vld [vmem:[#allocation2 + $0x3d8] sm:$0xff]
    %v4778 = vld [vmem:[#allocation2 + $0x3e0] sm:$0xff]
    %v4779 = vld [vmem:[#allocation2 + $0x3e8] sm:$0xff]
    %v4780 = vld [vmem:[#allocation2 + $0x3f0] sm:$0xff]
    %v4781 = vld [vmem:[#allocation2 + $0x3f8] sm:$0xff]
    %v4782 = vld [vmem:[%s2] sm:$0xf]
    %v4784 = vperm.slane %v4782, 0
    %v4785 = vperm.slane %v4782, 1
    %v4786 = vperm.slane %v4782, 2
    %v4787 = vperm.slane %v4782, 3
    %4792 = vmatpush.msra.mxu0 %v4714
    %4793 = vmatpush.msra.mxu0 %v4710
    %4794 = vmatpush.msra.mxu0 %v4706
    %4795 = vmatpush.msra.mxu0 %v4702
    %4796 = vmatpush.msra.mxu0 %v4698
    %4797 = vmatpush.msra.mxu0 %v4694
    %4798 = vmatpush.msra.mxu0 %v4690
    %4799 = vmatpush.msra.mxu0 %v4686
    %4800 = vmatpush.msra.mxu0 %v4682
    %4801 = vmatpush.msra.mxu0 %v4678
    %4802 = vmatpush.msra.mxu0 %v4674
    %4803 = vmatpush.msra.mxu0 %v4670
    %4804 = vmatpush.msra.mxu0 %v4666
    %4805 = vmatpush.msra.mxu0 %v4662
    %4806 = vmatpush.msra.mxu0 %v4658
    %4807 = vmatpush.msra.mxu0 %v4654
    %4808 = vmatmul.f32.gmra.mxu0 %v4653
    %v4809 = vpop.f32.mrf.mxu0
    %v4810 = vadd.f32 %v4784, %v4809
    %4811 = vdwg.mxu0
    %4812 = vmatpush.msra.mxu0 %v4778
    %4813 = vmatpush.msra.mxu0 %v4774
    %4814 = vmatpush.msra.mxu0 %v4770
    %4815 = vmatpush.msra.mxu0 %v4766
    %4816 = vmatpush.msra.mxu0 %v4762
    %4817 = vmatpush.msra.mxu0 %v4758
    %4818 = vmatpush.msra.mxu0 %v4754
    %4819 = vmatpush.msra.mxu0 %v4750
    %4820 = vmatpush.msra.mxu0 %v4746
    %4821 = vmatpush.msra.mxu0 %v4742
    %4822 = vmatpush.msra.mxu0 %v4738
    %4823 = vmatpush.msra.mxu0 %v4734
    %4824 = vmatpush.msra.mxu0 %v4730
    %4825 = vmatpush.msra.mxu0 %v4726
    %4826 = vmatpush.msra.mxu0 %v4722
    %4827 = vmatpush.msra.mxu0 %v4718
    %4828 = vmatmul.f32.gmra.mxu0 %v4248
    %v4829 = vpop.f32.mrf.mxu0
    %v4830 = vadd.f32 %v4810, %v4829
    %4831 = vdwg.mxu0
    %4832 = vmatpush.msra.mxu0 %v4715
    %4833 = vmatpush.msra.mxu0 %v4711
    %4834 = vmatpush.msra.mxu0 %v4707
    %4835 = vmatpush.msra.mxu0 %v4703
    %4836 = vmatpush.msra.mxu0 %v4699
    %4837 = vmatpush.msra.mxu0 %v4695
    %4838 = vmatpush.msra.mxu0 %v4691
    %4839 = vmatpush.msra.mxu0 %v4687
    %4840 = vmatpush.msra.mxu0 %v4683
    %4841 = vmatpush.msra.mxu0 %v4679
    %4842 = vmatpush.msra.mxu0 %v4675
    %4843 = vmatpush.msra.mxu0 %v4671
    %4844 = vmatpush.msra.mxu0 %v4667
    %4845 = vmatpush.msra.mxu0 %v4663
    %4846 = vmatpush.msra.mxu0 %v4659
    %4847 = vmatpush.msra.mxu0 %v4655
    %4848 = vmatmul.f32.gmra.mxu0 %v4653
    %v4849 = vpop.f32.mrf.mxu0
    %v4850 = vadd.f32 %v4785, %v4849
    %4851 = vdwg.mxu0
    %4852 = vmatpush.msra.mxu0 %v4779
    %4853 = vmatpush.msra.mxu0 %v4775
    %4854 = vmatpush.msra.mxu0 %v4771
    %4855 = vmatpush.msra.mxu0 %v4767
    %4856 = vmatpush.msra.mxu0 %v4763
    %4857 = vmatpush.msra.mxu0 %v4759
    %4858 = vmatpush.msra.mxu0 %v4755
    %4859 = vmatpush.msra.mxu0 %v4751
    %4860 = vmatpush.msra.mxu0 %v4747
    %4861 = vmatpush.msra.mxu0 %v4743
    %4862 = vmatpush.msra.mxu0 %v4739
    %4863 = vmatpush.msra.mxu0 %v4735
    %4864 = vmatpush.msra.mxu0 %v4731
    %4865 = vmatpush.msra.mxu0 %v4727
    %4866 = vmatpush.msra.mxu0 %v4723
    %4867 = vmatpush.msra.mxu0 %v4719
    %4868 = vmatmul.f32.gmra.mxu0 %v4248
    %v4869 = vpop.f32.mrf.mxu0
    %v4870 = vadd.f32 %v4850, %v4869
    %4871 = vdwg.mxu0
    %4872 = vmatpush.msra.mxu0 %v4716
    %4873 = vmatpush.msra.mxu0 %v4712
    %4874 = vmatpush.msra.mxu0 %v4708
    %4875 = vmatpush.msra.mxu0 %v4704
    %4876 = vmatpush.msra.mxu0 %v4700
    %4877 = vmatpush.msra.mxu0 %v4696
    %4878 = vmatpush.msra.mxu0 %v4692
    %4879 = vmatpush.msra.mxu0 %v4688
    %4880 = vmatpush.msra.mxu0 %v4684
    %4881 = vmatpush.msra.mxu0 %v4680
    %4882 = vmatpush.msra.mxu0 %v4676
    %4883 = vmatpush.msra.mxu0 %v4672
    %4884 = vmatpush.msra.mxu0 %v4668
    %4885 = vmatpush.msra.mxu0 %v4664
    %4886 = vmatpush.msra.mxu0 %v4660
    %4887 = vmatpush.msra.mxu0 %v4656
    %4888 = vmatmul.f32.gmra.mxu0 %v4653
    %v4889 = vpop.f32.mrf.mxu0
    %v4890 = vadd.f32 %v4786, %v4889
    %4891 = vdwg.mxu0
    %4892 = vmatpush.msra.mxu0 %v4780
    %4893 = vmatpush.msra.mxu0 %v4776
    %4894 = vmatpush.msra.mxu0 %v4772
    %4895 = vmatpush.msra.mxu0 %v4768
    %4896 = vmatpush.msra.mxu0 %v4764
    %4897 = vmatpush.msra.mxu0 %v4760
    %4898 = vmatpush.msra.mxu0 %v4756
    %4899 = vmatpush.msra.mxu0 %v4752
    %4900 = vmatpush.msra.mxu0 %v4748
    %4901 = vmatpush.msra.mxu0 %v4744
    %4902 = vmatpush.msra.mxu0 %v4740
    %4903 = vmatpush.msra.mxu0 %v4736
    %4904 = vmatpush.msra.mxu0 %v4732
    %4905 = vmatpush.msra.mxu0 %v4728
    %4906 = vmatpush.msra.mxu0 %v4724
    %4907 = vmatpush.msra.mxu0 %v4720
    %4908 = vmatmul.f32.gmra.mxu0 %v4248
    %v4909 = vpop.f32.mrf.mxu0
    %v4910 = vadd.f32 %v4890, %v4909
    %4911 = vdwg.mxu0
    %4912 = vmatpush.msra.mxu0 %v4717
    %4913 = vmatpush.msra.mxu0 %v4713
    %4914 = vmatpush.msra.mxu0 %v4709
    %4915 = vmatpush.msra.mxu0 %v4705
    %4916 = vmatpush.msra.mxu0 %v4701
    %4917 = vmatpush.msra.mxu0 %v4697
    %4918 = vmatpush.msra.mxu0 %v4693
    %4919 = vmatpush.msra.mxu0 %v4689
    %4920 = vmatpush.msra.mxu0 %v4685
    %4921 = vmatpush.msra.mxu0 %v4681
    %4922 = vmatpush.msra.mxu0 %v4677
    %4923 = vmatpush.msra.mxu0 %v4673
    %4924 = vmatpush.msra.mxu0 %v4669
    %4925 = vmatpush.msra.mxu0 %v4665
    %4926 = vmatpush.msra.mxu0 %v4661
    %4927 = vmatpush.msra.mxu0 %v4657
    %4928 = vmatmul.f32.gmra.mxu0 %v4653
    %v4929 = vpop.f32.mrf.mxu0
    %v4930 = vadd.f32 %v4787, %v4929
    %4931 = vdwg.mxu0
    %4932 = vmatpush.msra.mxu0 %v4781
    %4933 = vmatpush.msra.mxu0 %v4777
    %4934 = vmatpush.msra.mxu0 %v4773
    %4935 = vmatpush.msra.mxu0 %v4769
    %4936 = vmatpush.msra.mxu0 %v4765
    %4937 = vmatpush.msra.mxu0 %v4761
    %4938 = vmatpush.msra.mxu0 %v4757
    %4939 = vmatpush.msra.mxu0 %v4753
    %4940 = vmatpush.msra.mxu0 %v4749
    %4941 = vmatpush.msra.mxu0 %v4745
    %4942 = vmatpush.msra.mxu0 %v4741
    %4943 = vmatpush.msra.mxu0 %v4737
    %4944 = vmatpush.msra.mxu0 %v4733
    %4945 = vmatpush.msra.mxu0 %v4729
    %4946 = vmatpush.msra.mxu0 %v4725
    %4947 = vmatpush.msra.mxu0 %v4721
    %4948 = vmatmul.f32.gmra.mxu0 %v4248
    %v4949 = vpop.f32.mrf.mxu0
    %v4950 = vadd.f32 %v4930, %v4949
    %4951 = vdwg.mxu0
    %v4952 = vxor.u32 %v4830, 2147483648
    %v4953 = vmul.f32 %v4952, 1.442695
    %v4954 = vpow.pop %v4953
    %v4955 = vadd.f32 %v4954, 1.0
    %v4956 = vrcp.pop %v4955
    %v4957 = vmul.f32 %v4955, %v4956
    %v4958 = vsub.f32 1.0, %v4957
    %v4959 = vmul.f32 %v4956, %v4958
    %v4960 = vadd.f32 %v4956, %v4959
    %vm4961 = vweird.f32 %v4955
    %vm4962 = vweird.f32 %v4956
    %vm4963 = vmor %vm4961, %vm4962
    %v4964 = vsel %vm4963, %v4956, %v4960
    %v4965 = vand.u32 2147483647, %v4955
    %vm4966 = vcmp.eq.f32.partialorder %v4965, 8.507059e+37
    %v4967 = vand.u32 %v4955, 2147483648
    %v4968 = vor.u32 1.1754944e-38, %v4967
    %v4969 = vsel %vm4966, %v4968, %v4964
    %v4970 = vmul.f32 1.0, %v4969
    %v4971 = vxor.u32 %v4870, 2147483648
    %v4972 = vmul.f32 %v4971, 1.442695
    %v4973 = vpow.pop %v4972
    %v4974 = vadd.f32 %v4973, 1.0
    %v4975 = vrcp.pop %v4974
    %v4976 = vmul.f32 %v4974, %v4975
    %v4977 = vsub.f32 1.0, %v4976
    %v4978 = vmul.f32 %v4975, %v4977
    %v4979 = vadd.f32 %v4975, %v4978
    %vm4980 = vweird.f32 %v4974
    %vm4981 = vweird.f32 %v4975
    %vm4982 = vmor %vm4980, %vm4981
    %v4983 = vsel %vm4982, %v4975, %v4979
    %v4984 = vand.u32 2147483647, %v4974
    %vm4985 = vcmp.eq.f32.partialorder %v4984, 8.507059e+37
    %v4986 = vand.u32 %v4974, 2147483648
    %v4987 = vor.u32 1.1754944e-38, %v4986
    %v4988 = vsel %vm4985, %v4987, %v4983
    %v4989 = vmul.f32 1.0, %v4988
    %v4990 = vtanh.pop %v4910
    %v4991 = vxor.u32 %v4950, 2147483648
    %v4992 = vmul.f32 %v4991, 1.442695
    %v4993 = vpow.pop %v4992
    %v4994 = vadd.f32 %v4993, 1.0
    %v4995 = vrcp.pop %v4994
    %v4996 = vmul.f32 %v4994, %v4995
    %v4997 = vsub.f32 1.0, %v4996
    %v4998 = vmul.f32 %v4995, %v4997
    %v4999 = vadd.f32 %v4995, %v4998
    %vm5000 = vweird.f32 %v4994
    %vm5001 = vweird.f32 %v4995
    %vm5002 = vmor %vm5000, %vm5001
    %v5003 = vsel %vm5002, %v4995, %v4999
    %v5004 = vand.u32 2147483647, %v4994
    %vm5005 = vcmp.eq.f32.partialorder %v5004, 8.507059e+37
    %v5006 = vand.u32 %v4994, 2147483648
    %v5007 = vor.u32 1.1754944e-38, %v5006
    %v5008 = vsel %vm5005, %v5007, %v5003
    %v5009 = vmul.f32 1.0, %v5008
    %v5010 = vmul.f32 %v4989, %v4246
    %v5011 = vmul.f32 %v4970, %v4990
    %v5012 = vadd.f32 %v5010, %v5011
    %v5013 = vtanh.pop %v5012
    %v5014 = vmul.f32 %v5009, %v5013
    %v5015 = vld [vmem:[#allocation4] sm:$0xff]
    %v5016 = vld [vmem:[#allocation4 + $0x8] sm:$0xff]
    %v5017 = vld [vmem:[#allocation4 + $0x10] sm:$0xff]
    %v5018 = vld [vmem:[#allocation4 + $0x18] sm:$0xff]
    %v5019 = vld [vmem:[#allocation4 + $0x20] sm:$0xff]
    %v5020 = vld [vmem:[#allocation4 + $0x28] sm:$0xff]
    %v5021 = vld [vmem:[#allocation4 + $0x30] sm:$0xff]
    %v5022 = vld [vmem:[#allocation4 + $0x38] sm:$0xff]
    %v5023 = vld [vmem:[#allocation4 + $0x40] sm:$0xff]
    %v5024 = vld [vmem:[#allocation4 + $0x48] sm:$0xff]
    %v5025 = vld [vmem:[#allocation4 + $0x50] sm:$0xff]
    %v5026 = vld [vmem:[#allocation4 + $0x58] sm:$0xff]
    %v5027 = vld [vmem:[#allocation4 + $0x60] sm:$0xff]
    %v5028 = vld [vmem:[#allocation4 + $0x68] sm:$0xff]
    %v5029 = vld [vmem:[#allocation4 + $0x70] sm:$0xff]
    %v5030 = vld [vmem:[#allocation4 + $0x78] sm:$0xff]
    %v5031 = vld [vmem:[#allocation4 + $0x80] sm:$0xff]
    %v5032 = vld [vmem:[#allocation4 + $0x88] sm:$0xff]
    %v5033 = vld [vmem:[#allocation4 + $0x90] sm:$0xff]
    %v5034 = vld [vmem:[#allocation4 + $0x98] sm:$0xff]
    %v5035 = vld [vmem:[#allocation4 + $0xa0] sm:$0xff]
    %v5036 = vld [vmem:[#allocation4 + $0xa8] sm:$0xff]
    %v5037 = vld [vmem:[#allocation4 + $0xb0] sm:$0xff]
    %v5038 = vld [vmem:[#allocation4 + $0xb8] sm:$0xff]
    %v5039 = vld [vmem:[#allocation4 + $0xc0] sm:$0xff]
    %v5040 = vld [vmem:[#allocation4 + $0xc8] sm:$0xff]
    %v5041 = vld [vmem:[#allocation4 + $0xd0] sm:$0xff]
    %v5042 = vld [vmem:[#allocation4 + $0xd8] sm:$0xff]
    %v5043 = vld [vmem:[#allocation4 + $0xe0] sm:$0xff]
    %v5044 = vld [vmem:[#allocation4 + $0xe8] sm:$0xff]
    %v5045 = vld [vmem:[#allocation4 + $0xf0] sm:$0xff]
    %v5046 = vld [vmem:[#allocation4 + $0xf8] sm:$0xff]
    %v5047 = vld [vmem:[#allocation4 + $0x100] sm:$0xff]
    %v5048 = vld [vmem:[#allocation4 + $0x108] sm:$0xff]
    %v5049 = vld [vmem:[#allocation4 + $0x110] sm:$0xff]
    %v5050 = vld [vmem:[#allocation4 + $0x118] sm:$0xff]
    %v5051 = vld [vmem:[#allocation4 + $0x120] sm:$0xff]
    %v5052 = vld [vmem:[#allocation4 + $0x128] sm:$0xff]
    %v5053 = vld [vmem:[#allocation4 + $0x130] sm:$0xff]
    %v5054 = vld [vmem:[#allocation4 + $0x138] sm:$0xff]
    %v5055 = vld [vmem:[#allocation4 + $0x140] sm:$0xff]
    %v5056 = vld [vmem:[#allocation4 + $0x148] sm:$0xff]
    %v5057 = vld [vmem:[#allocation4 + $0x150] sm:$0xff]
    %v5058 = vld [vmem:[#allocation4 + $0x158] sm:$0xff]
    %v5059 = vld [vmem:[#allocation4 + $0x160] sm:$0xff]
    %v5060 = vld [vmem:[#allocation4 + $0x168] sm:$0xff]
    %v5061 = vld [vmem:[#allocation4 + $0x170] sm:$0xff]
    %v5062 = vld [vmem:[#allocation4 + $0x178] sm:$0xff]
    %v5063 = vld [vmem:[#allocation4 + $0x180] sm:$0xff]
    %v5064 = vld [vmem:[#allocation4 + $0x188] sm:$0xff]
    %v5065 = vld [vmem:[#allocation4 + $0x190] sm:$0xff]
    %v5066 = vld [vmem:[#allocation4 + $0x198] sm:$0xff]
    %v5067 = vld [vmem:[#allocation4 + $0x1a0] sm:$0xff]
    %v5068 = vld [vmem:[#allocation4 + $0x1a8] sm:$0xff]
    %v5069 = vld [vmem:[#allocation4 + $0x1b0] sm:$0xff]
    %v5070 = vld [vmem:[#allocation4 + $0x1b8] sm:$0xff]
    %v5071 = vld [vmem:[#allocation4 + $0x1c0] sm:$0xff]
    %v5072 = vld [vmem:[#allocation4 + $0x1c8] sm:$0xff]
    %v5073 = vld [vmem:[#allocation4 + $0x1d0] sm:$0xff]
    %v5074 = vld [vmem:[#allocation4 + $0x1d8] sm:$0xff]
    %v5075 = vld [vmem:[#allocation4 + $0x1e0] sm:$0xff]
    %v5076 = vld [vmem:[#allocation4 + $0x1e8] sm:$0xff]
    %v5077 = vld [vmem:[#allocation4 + $0x1f0] sm:$0xff]
    %v5078 = vld [vmem:[#allocation4 + $0x1f8] sm:$0xff]
    %v5079 = vld [vmem:[#allocation4 + $0x200] sm:$0xff]
    %v5080 = vld [vmem:[#allocation4 + $0x208] sm:$0xff]
    %v5081 = vld [vmem:[#allocation4 + $0x210] sm:$0xff]
    %v5082 = vld [vmem:[#allocation4 + $0x218] sm:$0xff]
    %v5083 = vld [vmem:[#allocation4 + $0x220] sm:$0xff]
    %v5084 = vld [vmem:[#allocation4 + $0x228] sm:$0xff]
    %v5085 = vld [vmem:[#allocation4 + $0x230] sm:$0xff]
    %v5086 = vld [vmem:[#allocation4 + $0x238] sm:$0xff]
    %v5087 = vld [vmem:[#allocation4 + $0x240] sm:$0xff]
    %v5088 = vld [vmem:[#allocation4 + $0x248] sm:$0xff]
    %v5089 = vld [vmem:[#allocation4 + $0x250] sm:$0xff]
    %v5090 = vld [vmem:[#allocation4 + $0x258] sm:$0xff]
    %v5091 = vld [vmem:[#allocation4 + $0x260] sm:$0xff]
    %v5092 = vld [vmem:[#allocation4 + $0x268] sm:$0xff]
    %v5093 = vld [vmem:[#allocation4 + $0x270] sm:$0xff]
    %v5094 = vld [vmem:[#allocation4 + $0x278] sm:$0xff]
    %v5095 = vld [vmem:[#allocation4 + $0x280] sm:$0xff]
    %v5096 = vld [vmem:[#allocation4 + $0x288] sm:$0xff]
    %v5097 = vld [vmem:[#allocation4 + $0x290] sm:$0xff]
    %v5098 = vld [vmem:[#allocation4 + $0x298] sm:$0xff]
    %v5099 = vld [vmem:[#allocation4 + $0x2a0] sm:$0xff]
    %v5100 = vld [vmem:[#allocation4 + $0x2a8] sm:$0xff]
    %v5101 = vld [vmem:[#allocation4 + $0x2b0] sm:$0xff]
    %v5102 = vld [vmem:[#allocation4 + $0x2b8] sm:$0xff]
    %v5103 = vld [vmem:[#allocation4 + $0x2c0] sm:$0xff]
    %v5104 = vld [vmem:[#allocation4 + $0x2c8] sm:$0xff]
    %v5105 = vld [vmem:[#allocation4 + $0x2d0] sm:$0xff]
    %v5106 = vld [vmem:[#allocation4 + $0x2d8] sm:$0xff]
    %v5107 = vld [vmem:[#allocation4 + $0x2e0] sm:$0xff]
    %v5108 = vld [vmem:[#allocation4 + $0x2e8] sm:$0xff]
    %v5109 = vld [vmem:[#allocation4 + $0x2f0] sm:$0xff]
    %v5110 = vld [vmem:[#allocation4 + $0x2f8] sm:$0xff]
    %v5111 = vld [vmem:[#allocation4 + $0x300] sm:$0xff]
    %v5112 = vld [vmem:[#allocation4 + $0x308] sm:$0xff]
    %v5113 = vld [vmem:[#allocation4 + $0x310] sm:$0xff]
    %v5114 = vld [vmem:[#allocation4 + $0x318] sm:$0xff]
    %v5115 = vld [vmem:[#allocation4 + $0x320] sm:$0xff]
    %v5116 = vld [vmem:[#allocation4 + $0x328] sm:$0xff]
    %v5117 = vld [vmem:[#allocation4 + $0x330] sm:$0xff]
    %v5118 = vld [vmem:[#allocation4 + $0x338] sm:$0xff]
    %v5119 = vld [vmem:[#allocation4 + $0x340] sm:$0xff]
    %v5120 = vld [vmem:[#allocation4 + $0x348] sm:$0xff]
    %v5121 = vld [vmem:[#allocation4 + $0x350] sm:$0xff]
    %v5122 = vld [vmem:[#allocation4 + $0x358] sm:$0xff]
    %v5123 = vld [vmem:[#allocation4 + $0x360] sm:$0xff]
    %v5124 = vld [vmem:[#allocation4 + $0x368] sm:$0xff]
    %v5125 = vld [vmem:[#allocation4 + $0x370] sm:$0xff]
    %v5126 = vld [vmem:[#allocation4 + $0x378] sm:$0xff]
    %v5127 = vld [vmem:[#allocation4 + $0x380] sm:$0xff]
    %v5128 = vld [vmem:[#allocation4 + $0x388] sm:$0xff]
    %v5129 = vld [vmem:[#allocation4 + $0x390] sm:$0xff]
    %v5130 = vld [vmem:[#allocation4 + $0x398] sm:$0xff]
    %v5131 = vld [vmem:[#allocation4 + $0x3a0] sm:$0xff]
    %v5132 = vld [vmem:[#allocation4 + $0x3a8] sm:$0xff]
    %v5133 = vld [vmem:[#allocation4 + $0x3b0] sm:$0xff]
    %v5134 = vld [vmem:[#allocation4 + $0x3b8] sm:$0xff]
    %v5135 = vld [vmem:[#allocation4 + $0x3c0] sm:$0xff]
    %v5136 = vld [vmem:[#allocation4 + $0x3c8] sm:$0xff]
    %v5137 = vld [vmem:[#allocation4 + $0x3d0] sm:$0xff]
    %v5138 = vld [vmem:[#allocation4 + $0x3d8] sm:$0xff]
    %v5139 = vld [vmem:[#allocation4 + $0x3e0] sm:$0xff]
    %v5140 = vld [vmem:[#allocation4 + $0x3e8] sm:$0xff]
    %v5141 = vld [vmem:[#allocation4 + $0x3f0] sm:$0xff]
    %v5142 = vld [vmem:[#allocation4 + $0x3f8] sm:$0xff]
    %v5143 = vld [vmem:[%s4] sm:$0xf]
    %v5145 = vperm.slane %v5143, 0
    %v5146 = vperm.slane %v5143, 1
    %v5147 = vperm.slane %v5143, 2
    %v5148 = vperm.slane %v5143, 3
    %5153 = vmatpush.msra.mxu0 %v5075
    %5154 = vmatpush.msra.mxu0 %v5071
    %5155 = vmatpush.msra.mxu0 %v5067
    %5156 = vmatpush.msra.mxu0 %v5063
    %5157 = vmatpush.msra.mxu0 %v5059
    %5158 = vmatpush.msra.mxu0 %v5055
    %5159 = vmatpush.msra.mxu0 %v5051
    %5160 = vmatpush.msra.mxu0 %v5047
    %5161 = vmatpush.msra.mxu0 %v5043
    %5162 = vmatpush.msra.mxu0 %v5039
    %5163 = vmatpush.msra.mxu0 %v5035
    %5164 = vmatpush.msra.mxu0 %v5031
    %5165 = vmatpush.msra.mxu0 %v5027
    %5166 = vmatpush.msra.mxu0 %v5023
    %5167 = vmatpush.msra.mxu0 %v5019
    %5168 = vmatpush.msra.mxu0 %v5015
    %5169 = vmatmul.f32.gmra.mxu0 %v5014
    %v5170 = vpop.f32.mrf.mxu0
    %v5171 = vadd.f32 %v5145, %v5170
    %5172 = vdwg.mxu0
    %5173 = vmatpush.msra.mxu0 %v5139
    %5174 = vmatpush.msra.mxu0 %v5135
    %5175 = vmatpush.msra.mxu0 %v5131
    %5176 = vmatpush.msra.mxu0 %v5127
    %5177 = vmatpush.msra.mxu0 %v5123
    %5178 = vmatpush.msra.mxu0 %v5119
    %5179 = vmatpush.msra.mxu0 %v5115
    %5180 = vmatpush.msra.mxu0 %v5111
    %5181 = vmatpush.msra.mxu0 %v5107
    %5182 = vmatpush.msra.mxu0 %v5103
    %5183 = vmatpush.msra.mxu0 %v5099
    %5184 = vmatpush.msra.mxu0 %v5095
    %5185 = vmatpush.msra.mxu0 %v5091
    %5186 = vmatpush.msra.mxu0 %v5087
    %5187 = vmatpush.msra.mxu0 %v5083
    %5188 = vmatpush.msra.mxu0 %v5079
    %5189 = vmatmul.f32.gmra.mxu0 %v4609
    %v5190 = vpop.f32.mrf.mxu0
    %v5191 = vadd.f32 %v5171, %v5190
    %5192 = vdwg.mxu0
    %5193 = vmatpush.msra.mxu0 %v5076
    %5194 = vmatpush.msra.mxu0 %v5072
    %5195 = vmatpush.msra.mxu0 %v5068
    %5196 = vmatpush.msra.mxu0 %v5064
    %5197 = vmatpush.msra.mxu0 %v5060
    %5198 = vmatpush.msra.mxu0 %v5056
    %5199 = vmatpush.msra.mxu0 %v5052
    %5200 = vmatpush.msra.mxu0 %v5048
    %5201 = vmatpush.msra.mxu0 %v5044
    %5202 = vmatpush.msra.mxu0 %v5040
    %5203 = vmatpush.msra.mxu0 %v5036
    %5204 = vmatpush.msra.mxu0 %v5032
    %5205 = vmatpush.msra.mxu0 %v5028
    %5206 = vmatpush.msra.mxu0 %v5024
    %5207 = vmatpush.msra.mxu0 %v5020
    %5208 = vmatpush.msra.mxu0 %v5016
    %5209 = vmatmul.f32.gmra.mxu0 %v5014
    %v5210 = vpop.f32.mrf.mxu0
    %v5211 = vadd.f32 %v5146, %v5210
    %5212 = vdwg.mxu0
    %5213 = vmatpush.msra.mxu0 %v5140
    %5214 = vmatpush.msra.mxu0 %v5136
    %5215 = vmatpush.msra.mxu0 %v5132
    %5216 = vmatpush.msra.mxu0 %v5128
    %5217 = vmatpush.msra.mxu0 %v5124
    %5218 = vmatpush.msra.mxu0 %v5120
    %5219 = vmatpush.msra.mxu0 %v5116
    %5220 = vmatpush.msra.mxu0 %v5112
    %5221 = vmatpush.msra.mxu0 %v5108
    %5222 = vmatpush.msra.mxu0 %v5104
    %5223 = vmatpush.msra.mxu0 %v5100
    %5224 = vmatpush.msra.mxu0 %v5096
    %5225 = vmatpush.msra.mxu0 %v5092
    %5226 = vmatpush.msra.mxu0 %v5088
    %5227 = vmatpush.msra.mxu0 %v5084
    %5228 = vmatpush.msra.mxu0 %v5080
    %5229 = vmatmul.f32.gmra.mxu0 %v4609
    %v5230 = vpop.f32.mrf.mxu0
    %v5231 = vadd.f32 %v5211, %v5230
    %5232 = vdwg.mxu0
    %5233 = vmatpush.msra.mxu0 %v5077
    %5234 = vmatpush.msra.mxu0 %v5073
    %5235 = vmatpush.msra.mxu0 %v5069
    %5236 = vmatpush.msra.mxu0 %v5065
    %5237 = vmatpush.msra.mxu0 %v5061
    %5238 = vmatpush.msra.mxu0 %v5057
    %5239 = vmatpush.msra.mxu0 %v5053
    %5240 = vmatpush.msra.mxu0 %v5049
    %5241 = vmatpush.msra.mxu0 %v5045
    %5242 = vmatpush.msra.mxu0 %v5041
    %5243 = vmatpush.msra.mxu0 %v5037
    %5244 = vmatpush.msra.mxu0 %v5033
    %5245 = vmatpush.msra.mxu0 %v5029
    %5246 = vmatpush.msra.mxu0 %v5025
    %5247 = vmatpush.msra.mxu0 %v5021
    %5248 = vmatpush.msra.mxu0 %v5017
    %5249 = vmatmul.f32.gmra.mxu0 %v5014
    %v5250 = vpop.f32.mrf.mxu0
    %v5251 = vadd.f32 %v5147, %v5250
    %5252 = vdwg.mxu0
    %5253 = vmatpush.msra.mxu0 %v5141
    %5254 = vmatpush.msra.mxu0 %v5137
    %5255 = vmatpush.msra.mxu0 %v5133
    %5256 = vmatpush.msra.mxu0 %v5129
    %5257 = vmatpush.msra.mxu0 %v5125
    %5258 = vmatpush.msra.mxu0 %v5121
    %5259 = vmatpush.msra.mxu0 %v5117
    %5260 = vmatpush.msra.mxu0 %v5113
    %5261 = vmatpush.msra.mxu0 %v5109
    %5262 = vmatpush.msra.mxu0 %v5105
    %5263 = vmatpush.msra.mxu0 %v5101
    %5264 = vmatpush.msra.mxu0 %v5097
    %5265 = vmatpush.msra.mxu0 %v5093
    %5266 = vmatpush.msra.mxu0 %v5089
    %5267 = vmatpush.msra.mxu0 %v5085
    %5268 = vmatpush.msra.mxu0 %v5081
    %5269 = vmatmul.f32.gmra.mxu0 %v4609
    %v5270 = vpop.f32.mrf.mxu0
    %v5271 = vadd.f32 %v5251, %v5270
    %5272 = vdwg.mxu0
    %5273 = vmatpush.msra.mxu0 %v5078
    %5274 = vmatpush.msra.mxu0 %v5074
    %5275 = vmatpush.msra.mxu0 %v5070
    %5276 = vmatpush.msra.mxu0 %v5066
    %5277 = vmatpush.msra.mxu0 %v5062
    %5278 = vmatpush.msra.mxu0 %v5058
    %5279 = vmatpush.msra.mxu0 %v5054
    %5280 = vmatpush.msra.mxu0 %v5050
    %5281 = vmatpush.msra.mxu0 %v5046
    %5282 = vmatpush.msra.mxu0 %v5042
    %5283 = vmatpush.msra.mxu0 %v5038
    %5284 = vmatpush.msra.mxu0 %v5034
    %5285 = vmatpush.msra.mxu0 %v5030
    %5286 = vmatpush.msra.mxu0 %v5026
    %5287 = vmatpush.msra.mxu0 %v5022
    %5288 = vmatpush.msra.mxu0 %v5018
    %5289 = vmatmul.f32.gmra.mxu0 %v5014
    %v5290 = vpop.f32.mrf.mxu0
    %v5291 = vadd.f32 %v5148, %v5290
    %5292 = vdwg.mxu0
    %5293 = vmatpush.msra.mxu0 %v5142
    %5294 = vmatpush.msra.mxu0 %v5138
    %5295 = vmatpush.msra.mxu0 %v5134
    %5296 = vmatpush.msra.mxu0 %v5130
    %5297 = vmatpush.msra.mxu0 %v5126
    %5298 = vmatpush.msra.mxu0 %v5122
    %5299 = vmatpush.msra.mxu0 %v5118
    %5300 = vmatpush.msra.mxu0 %v5114
    %5301 = vmatpush.msra.mxu0 %v5110
    %5302 = vmatpush.msra.mxu0 %v5106
    %5303 = vmatpush.msra.mxu0 %v5102
    %5304 = vmatpush.msra.mxu0 %v5098
    %5305 = vmatpush.msra.mxu0 %v5094
    %5306 = vmatpush.msra.mxu0 %v5090
    %5307 = vmatpush.msra.mxu0 %v5086
    %5308 = vmatpush.msra.mxu0 %v5082
    %5309 = vmatmul.f32.gmra.mxu0 %v4609
    %v5310 = vpop.f32.mrf.mxu0
    %v5311 = vadd.f32 %v5291, %v5310
    %5312 = vdwg.mxu0
    %v5313 = vxor.u32 %v5191, 2147483648
    %v5314 = vmul.f32 %v5313, 1.442695
    %v5315 = vpow.pop %v5314
    %v5316 = vadd.f32 %v5315, 1.0
    %v5317 = vrcp.pop %v5316
    %v5318 = vmul.f32 %v5316, %v5317
    %v5319 = vsub.f32 1.0, %v5318
    %v5320 = vmul.f32 %v5317, %v5319
    %v5321 = vadd.f32 %v5317, %v5320
    %vm5322 = vweird.f32 %v5316
    %vm5323 = vweird.f32 %v5317
    %vm5324 = vmor %vm5322, %vm5323
    %v5325 = vsel %vm5324, %v5317, %v5321
    %v5326 = vand.u32 2147483647, %v5316
    %vm5327 = vcmp.eq.f32.partialorder %v5326, 8.507059e+37
    %v5328 = vand.u32 %v5316, 2147483648
    %v5329 = vor.u32 1.1754944e-38, %v5328
    %v5330 = vsel %vm5327, %v5329, %v5325
    %v5331 = vmul.f32 1.0, %v5330
    %v5332 = vxor.u32 %v5231, 2147483648
    %v5333 = vmul.f32 %v5332, 1.442695
    %v5334 = vpow.pop %v5333
    %v5335 = vadd.f32 %v5334, 1.0
    %v5336 = vrcp.pop %v5335
    %v5337 = vmul.f32 %v5335, %v5336
    %v5338 = vsub.f32 1.0, %v5337
    %v5339 = vmul.f32 %v5336, %v5338
    %v5340 = vadd.f32 %v5336, %v5339
    %vm5341 = vweird.f32 %v5335
    %vm5342 = vweird.f32 %v5336
    %vm5343 = vmor %vm5341, %vm5342
    %v5344 = vsel %vm5343, %v5336, %v5340
    %v5345 = vand.u32 2147483647, %v5335
    %vm5346 = vcmp.eq.f32.partialorder %v5345, 8.507059e+37
    %v5347 = vand.u32 %v5335, 2147483648
    %v5348 = vor.u32 1.1754944e-38, %v5347
    %v5349 = vsel %vm5346, %v5348, %v5344
    %v5350 = vmul.f32 1.0, %v5349
    %v5351 = vtanh.pop %v5271
    %v5352 = vxor.u32 %v5311, 2147483648
    %v5353 = vmul.f32 %v5352, 1.442695
    %v5354 = vpow.pop %v5353
    %v5355 = vadd.f32 %v5354, 1.0
    %v5356 = vrcp.pop %v5355
    %v5357 = vmul.f32 %v5355, %v5356
    %v5358 = vsub.f32 1.0, %v5357
    %v5359 = vmul.f32 %v5356, %v5358
    %v5360 = vadd.f32 %v5356, %v5359
    %vm5361 = vweird.f32 %v5355
    %vm5362 = vweird.f32 %v5356
    %vm5363 = vmor %vm5361, %vm5362
    %v5364 = vsel %vm5363, %v5356, %v5360
    %v5365 = vand.u32 2147483647, %v5355
    %vm5366 = vcmp.eq.f32.partialorder %v5365, 8.507059e+37
    %v5367 = vand.u32 %v5355, 2147483648
    %v5368 = vor.u32 1.1754944e-38, %v5367
    %v5369 = vsel %vm5366, %v5368, %v5364
    %v5370 = vmul.f32 1.0, %v5369
    %v5371 = vmul.f32 %v5350, %v4607
    %v5372 = vmul.f32 %v5331, %v5351
    %v5373 = vadd.f32 %v5371, %v5372
    %v5374 = vtanh.pop %v5373
    %v5375 = vmul.f32 %v5370, %v5374
    %v5376 = vld [vmem:[%s5] sm:$0xff]
    %v5377 = vld [vmem:[%s5 + $0x8] sm:$0xff]
    %v5378 = vld [vmem:[%s5 + $0x10] sm:$0xff]
    %v5379 = vld [vmem:[%s5 + $0x18] sm:$0xff]
    %v5380 = vld [vmem:[%s5 + $0x20] sm:$0xff]
    %v5381 = vld [vmem:[%s5 + $0x28] sm:$0xff]
    %v5382 = vld [vmem:[%s5 + $0x30] sm:$0xff]
    %v5383 = vld [vmem:[%s5 + $0x38] sm:$0xff]
    %v5384 = vld [vmem:[%s5 + $0x40] sm:$0xff]
    %v5385 = vld [vmem:[%s5 + $0x48] sm:$0xff]
    %v5386 = vld [vmem:[%s5 + $0x50] sm:$0xff]
    %v5387 = vld [vmem:[%s5 + $0x58] sm:$0xff]
    %v5388 = vld [vmem:[%s5 + $0x60] sm:$0xff]
    %v5389 = vld [vmem:[%s5 + $0x68] sm:$0xff]
    %v5390 = vld [vmem:[%s5 + $0x70] sm:$0xff]
    %v5391 = vld [vmem:[%s5 + $0x78] sm:$0xff]
    %v5392 = vld [vmem:[%s6] sm:$0x1]
    %v5394 = vperm.slane %v5392, 0
    %5396 = vmatpush.msra.mxu0 %v5391
    %5397 = vmatpush.msra.mxu0 %v5390
    %5398 = vmatpush.msra.mxu0 %v5389
    %5399 = vmatpush.msra.mxu0 %v5388
    %5400 = vmatpush.msra.mxu0 %v5387
    %5401 = vmatpush.msra.mxu0 %v5386
    %5402 = vmatpush.msra.mxu0 %v5385
    %5403 = vmatpush.msra.mxu0 %v5384
    %5404 = vmatpush.msra.mxu0 %v5383
    %5405 = vmatpush.msra.mxu0 %v5382
    %5406 = vmatpush.msra.mxu0 %v5381
    %5407 = vmatpush.msra.mxu0 %v5380
    %5408 = vmatpush.msra.mxu0 %v5379
    %5409 = vmatpush.msra.mxu0 %v5378
    %5410 = vmatpush.msra.mxu0 %v5377
    %5411 = vmatpush.msra.mxu0 %v5376
    %5412 = vmatmul.f32.gmra.mxu0 %v5375
    %v5413 = vpop.f32.mrf.mxu0
    %v5414 = vadd.f32 %v5394, %v5413
    %5415 = vdwg.mxu0
    %s5416 = scalar_lea.vmem %s7, 48
    %5417 = vst [vmem:[%s5416] sm:$0xff] %v5414
    %s5418 = scalar_lea.vmem %s0, 56
    %v5419 = vld [vmem:[%s5418] sm:$0xff]
    %v5420 = vld [vmem:[#allocation2] sm:$0xff]
    %v5421 = vld [vmem:[#allocation2 + $0x8] sm:$0xff]
    %v5422 = vld [vmem:[#allocation2 + $0x10] sm:$0xff]
    %v5423 = vld [vmem:[#allocation2 + $0x18] sm:$0xff]
    %v5424 = vld [vmem:[#allocation2 + $0x20] sm:$0xff]
    %v5425 = vld [vmem:[#allocation2 + $0x28] sm:$0xff]
    %v5426 = vld [vmem:[#allocation2 + $0x30] sm:$0xff]
    %v5427 = vld [vmem:[#allocation2 + $0x38] sm:$0xff]
    %v5428 = vld [vmem:[#allocation2 + $0x40] sm:$0xff]
    %v5429 = vld [vmem:[#allocation2 + $0x48] sm:$0xff]
    %v5430 = vld [vmem:[#allocation2 + $0x50] sm:$0xff]
    %v5431 = vld [vmem:[#allocation2 + $0x58] sm:$0xff]
    %v5432 = vld [vmem:[#allocation2 + $0x60] sm:$0xff]
    %v5433 = vld [vmem:[#allocation2 + $0x68] sm:$0xff]
    %v5434 = vld [vmem:[#allocation2 + $0x70] sm:$0xff]
    %v5435 = vld [vmem:[#allocation2 + $0x78] sm:$0xff]
    %v5436 = vld [vmem:[#allocation2 + $0x80] sm:$0xff]
    %v5437 = vld [vmem:[#allocation2 + $0x88] sm:$0xff]
    %v5438 = vld [vmem:[#allocation2 + $0x90] sm:$0xff]
    %v5439 = vld [vmem:[#allocation2 + $0x98] sm:$0xff]
    %v5440 = vld [vmem:[#allocation2 + $0xa0] sm:$0xff]
    %v5441 = vld [vmem:[#allocation2 + $0xa8] sm:$0xff]
    %v5442 = vld [vmem:[#allocation2 + $0xb0] sm:$0xff]
    %v5443 = vld [vmem:[#allocation2 + $0xb8] sm:$0xff]
    %v5444 = vld [vmem:[#allocation2 + $0xc0] sm:$0xff]
    %v5445 = vld [vmem:[#allocation2 + $0xc8] sm:$0xff]
    %v5446 = vld [vmem:[#allocation2 + $0xd0] sm:$0xff]
    %v5447 = vld [vmem:[#allocation2 + $0xd8] sm:$0xff]
    %v5448 = vld [vmem:[#allocation2 + $0xe0] sm:$0xff]
    %v5449 = vld [vmem:[#allocation2 + $0xe8] sm:$0xff]
    %v5450 = vld [vmem:[#allocation2 + $0xf0] sm:$0xff]
    %v5451 = vld [vmem:[#allocation2 + $0xf8] sm:$0xff]
    %v5452 = vld [vmem:[#allocation2 + $0x100] sm:$0xff]
    %v5453 = vld [vmem:[#allocation2 + $0x108] sm:$0xff]
    %v5454 = vld [vmem:[#allocation2 + $0x110] sm:$0xff]
    %v5455 = vld [vmem:[#allocation2 + $0x118] sm:$0xff]
    %v5456 = vld [vmem:[#allocation2 + $0x120] sm:$0xff]
    %v5457 = vld [vmem:[#allocation2 + $0x128] sm:$0xff]
    %v5458 = vld [vmem:[#allocation2 + $0x130] sm:$0xff]
    %v5459 = vld [vmem:[#allocation2 + $0x138] sm:$0xff]
    %v5460 = vld [vmem:[#allocation2 + $0x140] sm:$0xff]
    %v5461 = vld [vmem:[#allocation2 + $0x148] sm:$0xff]
    %v5462 = vld [vmem:[#allocation2 + $0x150] sm:$0xff]
    %v5463 = vld [vmem:[#allocation2 + $0x158] sm:$0xff]
    %v5464 = vld [vmem:[#allocation2 + $0x160] sm:$0xff]
    %v5465 = vld [vmem:[#allocation2 + $0x168] sm:$0xff]
    %v5466 = vld [vmem:[#allocation2 + $0x170] sm:$0xff]
    %v5467 = vld [vmem:[#allocation2 + $0x178] sm:$0xff]
    %v5468 = vld [vmem:[#allocation2 + $0x180] sm:$0xff]
    %v5469 = vld [vmem:[#allocation2 + $0x188] sm:$0xff]
    %v5470 = vld [vmem:[#allocation2 + $0x190] sm:$0xff]
    %v5471 = vld [vmem:[#allocation2 + $0x198] sm:$0xff]
    %v5472 = vld [vmem:[#allocation2 + $0x1a0] sm:$0xff]
    %v5473 = vld [vmem:[#allocation2 + $0x1a8] sm:$0xff]
    %v5474 = vld [vmem:[#allocation2 + $0x1b0] sm:$0xff]
    %v5475 = vld [vmem:[#allocation2 + $0x1b8] sm:$0xff]
    %v5476 = vld [vmem:[#allocation2 + $0x1c0] sm:$0xff]
    %v5477 = vld [vmem:[#allocation2 + $0x1c8] sm:$0xff]
    %v5478 = vld [vmem:[#allocation2 + $0x1d0] sm:$0xff]
    %v5479 = vld [vmem:[#allocation2 + $0x1d8] sm:$0xff]
    %v5480 = vld [vmem:[#allocation2 + $0x1e0] sm:$0xff]
    %v5481 = vld [vmem:[#allocation2 + $0x1e8] sm:$0xff]
    %v5482 = vld [vmem:[#allocation2 + $0x1f0] sm:$0xff]
    %v5483 = vld [vmem:[#allocation2 + $0x1f8] sm:$0xff]
    %v5484 = vld [vmem:[#allocation2 + $0x200] sm:$0xff]
    %v5485 = vld [vmem:[#allocation2 + $0x208] sm:$0xff]
    %v5486 = vld [vmem:[#allocation2 + $0x210] sm:$0xff]
    %v5487 = vld [vmem:[#allocation2 + $0x218] sm:$0xff]
    %v5488 = vld [vmem:[#allocation2 + $0x220] sm:$0xff]
    %v5489 = vld [vmem:[#allocation2 + $0x228] sm:$0xff]
    %v5490 = vld [vmem:[#allocation2 + $0x230] sm:$0xff]
    %v5491 = vld [vmem:[#allocation2 + $0x238] sm:$0xff]
    %v5492 = vld [vmem:[#allocation2 + $0x240] sm:$0xff]
    %v5493 = vld [vmem:[#allocation2 + $0x248] sm:$0xff]
    %v5494 = vld [vmem:[#allocation2 + $0x250] sm:$0xff]
    %v5495 = vld [vmem:[#allocation2 + $0x258] sm:$0xff]
    %v5496 = vld [vmem:[#allocation2 + $0x260] sm:$0xff]
    %v5497 = vld [vmem:[#allocation2 + $0x268] sm:$0xff]
    %v5498 = vld [vmem:[#allocation2 + $0x270] sm:$0xff]
    %v5499 = vld [vmem:[#allocation2 + $0x278] sm:$0xff]
    %v5500 = vld [vmem:[#allocation2 + $0x280] sm:$0xff]
    %v5501 = vld [vmem:[#allocation2 + $0x288] sm:$0xff]
    %v5502 = vld [vmem:[#allocation2 + $0x290] sm:$0xff]
    %v5503 = vld [vmem:[#allocation2 + $0x298] sm:$0xff]
    %v5504 = vld [vmem:[#allocation2 + $0x2a0] sm:$0xff]
    %v5505 = vld [vmem:[#allocation2 + $0x2a8] sm:$0xff]
    %v5506 = vld [vmem:[#allocation2 + $0x2b0] sm:$0xff]
    %v5507 = vld [vmem:[#allocation2 + $0x2b8] sm:$0xff]
    %v5508 = vld [vmem:[#allocation2 + $0x2c0] sm:$0xff]
    %v5509 = vld [vmem:[#allocation2 + $0x2c8] sm:$0xff]
    %v5510 = vld [vmem:[#allocation2 + $0x2d0] sm:$0xff]
    %v5511 = vld [vmem:[#allocation2 + $0x2d8] sm:$0xff]
    %v5512 = vld [vmem:[#allocation2 + $0x2e0] sm:$0xff]
    %v5513 = vld [vmem:[#allocation2 + $0x2e8] sm:$0xff]
    %v5514 = vld [vmem:[#allocation2 + $0x2f0] sm:$0xff]
    %v5515 = vld [vmem:[#allocation2 + $0x2f8] sm:$0xff]
    %v5516 = vld [vmem:[#allocation2 + $0x300] sm:$0xff]
    %v5517 = vld [vmem:[#allocation2 + $0x308] sm:$0xff]
    %v5518 = vld [vmem:[#allocation2 + $0x310] sm:$0xff]
    %v5519 = vld [vmem:[#allocation2 + $0x318] sm:$0xff]
    %v5520 = vld [vmem:[#allocation2 + $0x320] sm:$0xff]
    %v5521 = vld [vmem:[#allocation2 + $0x328] sm:$0xff]
    %v5522 = vld [vmem:[#allocation2 + $0x330] sm:$0xff]
    %v5523 = vld [vmem:[#allocation2 + $0x338] sm:$0xff]
    %v5524 = vld [vmem:[#allocation2 + $0x340] sm:$0xff]
    %v5525 = vld [vmem:[#allocation2 + $0x348] sm:$0xff]
    %v5526 = vld [vmem:[#allocation2 + $0x350] sm:$0xff]
    %v5527 = vld [vmem:[#allocation2 + $0x358] sm:$0xff]
    %v5528 = vld [vmem:[#allocation2 + $0x360] sm:$0xff]
    %v5529 = vld [vmem:[#allocation2 + $0x368] sm:$0xff]
    %v5530 = vld [vmem:[#allocation2 + $0x370] sm:$0xff]
    %v5531 = vld [vmem:[#allocation2 + $0x378] sm:$0xff]
    %v5532 = vld [vmem:[#allocation2 + $0x380] sm:$0xff]
    %v5533 = vld [vmem:[#allocation2 + $0x388] sm:$0xff]
    %v5534 = vld [vmem:[#allocation2 + $0x390] sm:$0xff]
    %v5535 = vld [vmem:[#allocation2 + $0x398] sm:$0xff]
    %v5536 = vld [vmem:[#allocation2 + $0x3a0] sm:$0xff]
    %v5537 = vld [vmem:[#allocation2 + $0x3a8] sm:$0xff]
    %v5538 = vld [vmem:[#allocation2 + $0x3b0] sm:$0xff]
    %v5539 = vld [vmem:[#allocation2 + $0x3b8] sm:$0xff]
    %v5540 = vld [vmem:[#allocation2 + $0x3c0] sm:$0xff]
    %v5541 = vld [vmem:[#allocation2 + $0x3c8] sm:$0xff]
    %v5542 = vld [vmem:[#allocation2 + $0x3d0] sm:$0xff]
    %v5543 = vld [vmem:[#allocation2 + $0x3d8] sm:$0xff]
    %v5544 = vld [vmem:[#allocation2 + $0x3e0] sm:$0xff]
    %v5545 = vld [vmem:[#allocation2 + $0x3e8] sm:$0xff]
    %v5546 = vld [vmem:[#allocation2 + $0x3f0] sm:$0xff]
    %v5547 = vld [vmem:[#allocation2 + $0x3f8] sm:$0xff]
    %v5548 = vld [vmem:[%s2] sm:$0xf]
    %v5550 = vperm.slane %v5548, 0
    %v5551 = vperm.slane %v5548, 1
    %v5552 = vperm.slane %v5548, 2
    %v5553 = vperm.slane %v5548, 3
    %5558 = vmatpush.msra.mxu0 %v5480
    %5559 = vmatpush.msra.mxu0 %v5476
    %5560 = vmatpush.msra.mxu0 %v5472
    %5561 = vmatpush.msra.mxu0 %v5468
    %5562 = vmatpush.msra.mxu0 %v5464
    %5563 = vmatpush.msra.mxu0 %v5460
    %5564 = vmatpush.msra.mxu0 %v5456
    %5565 = vmatpush.msra.mxu0 %v5452
    %5566 = vmatpush.msra.mxu0 %v5448
    %5567 = vmatpush.msra.mxu0 %v5444
    %5568 = vmatpush.msra.mxu0 %v5440
    %5569 = vmatpush.msra.mxu0 %v5436
    %5570 = vmatpush.msra.mxu0 %v5432
    %5571 = vmatpush.msra.mxu0 %v5428
    %5572 = vmatpush.msra.mxu0 %v5424
    %5573 = vmatpush.msra.mxu0 %v5420
    %5574 = vmatmul.f32.gmra.mxu0 %v5419
    %v5575 = vpop.f32.mrf.mxu0
    %v5576 = vadd.f32 %v5550, %v5575
    %5577 = vdwg.mxu0
    %5578 = vmatpush.msra.mxu0 %v5544
    %5579 = vmatpush.msra.mxu0 %v5540
    %5580 = vmatpush.msra.mxu0 %v5536
    %5581 = vmatpush.msra.mxu0 %v5532
    %5582 = vmatpush.msra.mxu0 %v5528
    %5583 = vmatpush.msra.mxu0 %v5524
    %5584 = vmatpush.msra.mxu0 %v5520
    %5585 = vmatpush.msra.mxu0 %v5516
    %5586 = vmatpush.msra.mxu0 %v5512
    %5587 = vmatpush.msra.mxu0 %v5508
    %5588 = vmatpush.msra.mxu0 %v5504
    %5589 = vmatpush.msra.mxu0 %v5500
    %5590 = vmatpush.msra.mxu0 %v5496
    %5591 = vmatpush.msra.mxu0 %v5492
    %5592 = vmatpush.msra.mxu0 %v5488
    %5593 = vmatpush.msra.mxu0 %v5484
    %5594 = vmatmul.f32.gmra.mxu0 %v5014
    %v5595 = vpop.f32.mrf.mxu0
    %v5596 = vadd.f32 %v5576, %v5595
    %5597 = vdwg.mxu0
    %5598 = vmatpush.msra.mxu0 %v5481
    %5599 = vmatpush.msra.mxu0 %v5477
    %5600 = vmatpush.msra.mxu0 %v5473
    %5601 = vmatpush.msra.mxu0 %v5469
    %5602 = vmatpush.msra.mxu0 %v5465
    %5603 = vmatpush.msra.mxu0 %v5461
    %5604 = vmatpush.msra.mxu0 %v5457
    %5605 = vmatpush.msra.mxu0 %v5453
    %5606 = vmatpush.msra.mxu0 %v5449
    %5607 = vmatpush.msra.mxu0 %v5445
    %5608 = vmatpush.msra.mxu0 %v5441
    %5609 = vmatpush.msra.mxu0 %v5437
    %5610 = vmatpush.msra.mxu0 %v5433
    %5611 = vmatpush.msra.mxu0 %v5429
    %5612 = vmatpush.msra.mxu0 %v5425
    %5613 = vmatpush.msra.mxu0 %v5421
    %5614 = vmatmul.f32.gmra.mxu0 %v5419
    %v5615 = vpop.f32.mrf.mxu0
    %v5616 = vadd.f32 %v5551, %v5615
    %5617 = vdwg.mxu0
    %5618 = vmatpush.msra.mxu0 %v5545
    %5619 = vmatpush.msra.mxu0 %v5541
    %5620 = vmatpush.msra.mxu0 %v5537
    %5621 = vmatpush.msra.mxu0 %v5533
    %5622 = vmatpush.msra.mxu0 %v5529
    %5623 = vmatpush.msra.mxu0 %v5525
    %5624 = vmatpush.msra.mxu0 %v5521
    %5625 = vmatpush.msra.mxu0 %v5517
    %5626 = vmatpush.msra.mxu0 %v5513
    %5627 = vmatpush.msra.mxu0 %v5509
    %5628 = vmatpush.msra.mxu0 %v5505
    %5629 = vmatpush.msra.mxu0 %v5501
    %5630 = vmatpush.msra.mxu0 %v5497
    %5631 = vmatpush.msra.mxu0 %v5493
    %5632 = vmatpush.msra.mxu0 %v5489
    %5633 = vmatpush.msra.mxu0 %v5485
    %5634 = vmatmul.f32.gmra.mxu0 %v5014
    %v5635 = vpop.f32.mrf.mxu0
    %v5636 = vadd.f32 %v5616, %v5635
    %5637 = vdwg.mxu0
    %5638 = vmatpush.msra.mxu0 %v5482
    %5639 = vmatpush.msra.mxu0 %v5478
    %5640 = vmatpush.msra.mxu0 %v5474
    %5641 = vmatpush.msra.mxu0 %v5470
    %5642 = vmatpush.msra.mxu0 %v5466
    %5643 = vmatpush.msra.mxu0 %v5462
    %5644 = vmatpush.msra.mxu0 %v5458
    %5645 = vmatpush.msra.mxu0 %v5454
    %5646 = vmatpush.msra.mxu0 %v5450
    %5647 = vmatpush.msra.mxu0 %v5446
    %5648 = vmatpush.msra.mxu0 %v5442
    %5649 = vmatpush.msra.mxu0 %v5438
    %5650 = vmatpush.msra.mxu0 %v5434
    %5651 = vmatpush.msra.mxu0 %v5430
    %5652 = vmatpush.msra.mxu0 %v5426
    %5653 = vmatpush.msra.mxu0 %v5422
    %5654 = vmatmul.f32.gmra.mxu0 %v5419
    %v5655 = vpop.f32.mrf.mxu0
    %v5656 = vadd.f32 %v5552, %v5655
    %5657 = vdwg.mxu0
    %5658 = vmatpush.msra.mxu0 %v5546
    %5659 = vmatpush.msra.mxu0 %v5542
    %5660 = vmatpush.msra.mxu0 %v5538
    %5661 = vmatpush.msra.mxu0 %v5534
    %5662 = vmatpush.msra.mxu0 %v5530
    %5663 = vmatpush.msra.mxu0 %v5526
    %5664 = vmatpush.msra.mxu0 %v5522
    %5665 = vmatpush.msra.mxu0 %v5518
    %5666 = vmatpush.msra.mxu0 %v5514
    %5667 = vmatpush.msra.mxu0 %v5510
    %5668 = vmatpush.msra.mxu0 %v5506
    %5669 = vmatpush.msra.mxu0 %v5502
    %5670 = vmatpush.msra.mxu0 %v5498
    %5671 = vmatpush.msra.mxu0 %v5494
    %5672 = vmatpush.msra.mxu0 %v5490
    %5673 = vmatpush.msra.mxu0 %v5486
    %5674 = vmatmul.f32.gmra.mxu0 %v5014
    %v5675 = vpop.f32.mrf.mxu0
    %v5676 = vadd.f32 %v5656, %v5675
    %5677 = vdwg.mxu0
    %5678 = vmatpush.msra.mxu0 %v5483
    %5679 = vmatpush.msra.mxu0 %v5479
    %5680 = vmatpush.msra.mxu0 %v5475
    %5681 = vmatpush.msra.mxu0 %v5471
    %5682 = vmatpush.msra.mxu0 %v5467
    %5683 = vmatpush.msra.mxu0 %v5463
    %5684 = vmatpush.msra.mxu0 %v5459
    %5685 = vmatpush.msra.mxu0 %v5455
    %5686 = vmatpush.msra.mxu0 %v5451
    %5687 = vmatpush.msra.mxu0 %v5447
    %5688 = vmatpush.msra.mxu0 %v5443
    %5689 = vmatpush.msra.mxu0 %v5439
    %5690 = vmatpush.msra.mxu0 %v5435
    %5691 = vmatpush.msra.mxu0 %v5431
    %5692 = vmatpush.msra.mxu0 %v5427
    %5693 = vmatpush.msra.mxu0 %v5423
    %5694 = vmatmul.f32.gmra.mxu0 %v5419
    %v5695 = vpop.f32.mrf.mxu0
    %v5696 = vadd.f32 %v5553, %v5695
    %5697 = vdwg.mxu0
    %5698 = vmatpush.msra.mxu0 %v5547
    %5699 = vmatpush.msra.mxu0 %v5543
    %5700 = vmatpush.msra.mxu0 %v5539
    %5701 = vmatpush.msra.mxu0 %v5535
    %5702 = vmatpush.msra.mxu0 %v5531
    %5703 = vmatpush.msra.mxu0 %v5527
    %5704 = vmatpush.msra.mxu0 %v5523
    %5705 = vmatpush.msra.mxu0 %v5519
    %5706 = vmatpush.msra.mxu0 %v5515
    %5707 = vmatpush.msra.mxu0 %v5511
    %5708 = vmatpush.msra.mxu0 %v5507
    %5709 = vmatpush.msra.mxu0 %v5503
    %5710 = vmatpush.msra.mxu0 %v5499
    %5711 = vmatpush.msra.mxu0 %v5495
    %5712 = vmatpush.msra.mxu0 %v5491
    %5713 = vmatpush.msra.mxu0 %v5487
    %5714 = vmatmul.f32.gmra.mxu0 %v5014
    %v5715 = vpop.f32.mrf.mxu0
    %v5716 = vadd.f32 %v5696, %v5715
    %5717 = vdwg.mxu0
    %v5718 = vxor.u32 %v5596, 2147483648
    %v5719 = vmul.f32 %v5718, 1.442695
    %v5720 = vpow.pop %v5719
    %v5721 = vadd.f32 %v5720, 1.0
    %v5722 = vrcp.pop %v5721
    %v5723 = vmul.f32 %v5721, %v5722
    %v5724 = vsub.f32 1.0, %v5723
    %v5725 = vmul.f32 %v5722, %v5724
    %v5726 = vadd.f32 %v5722, %v5725
    %vm5727 = vweird.f32 %v5721
    %vm5728 = vweird.f32 %v5722
    %vm5729 = vmor %vm5727, %vm5728
    %v5730 = vsel %vm5729, %v5722, %v5726
    %v5731 = vand.u32 2147483647, %v5721
    %vm5732 = vcmp.eq.f32.partialorder %v5731, 8.507059e+37
    %v5733 = vand.u32 %v5721, 2147483648
    %v5734 = vor.u32 1.1754944e-38, %v5733
    %v5735 = vsel %vm5732, %v5734, %v5730
    %v5736 = vmul.f32 1.0, %v5735
    %v5737 = vxor.u32 %v5636, 2147483648
    %v5738 = vmul.f32 %v5737, 1.442695
    %v5739 = vpow.pop %v5738
    %v5740 = vadd.f32 %v5739, 1.0
    %v5741 = vrcp.pop %v5740
    %v5742 = vmul.f32 %v5740, %v5741
    %v5743 = vsub.f32 1.0, %v5742
    %v5744 = vmul.f32 %v5741, %v5743
    %v5745 = vadd.f32 %v5741, %v5744
    %vm5746 = vweird.f32 %v5740
    %vm5747 = vweird.f32 %v5741
    %vm5748 = vmor %vm5746, %vm5747
    %v5749 = vsel %vm5748, %v5741, %v5745
    %v5750 = vand.u32 2147483647, %v5740
    %vm5751 = vcmp.eq.f32.partialorder %v5750, 8.507059e+37
    %v5752 = vand.u32 %v5740, 2147483648
    %v5753 = vor.u32 1.1754944e-38, %v5752
    %v5754 = vsel %vm5751, %v5753, %v5749
    %v5755 = vmul.f32 1.0, %v5754
    %v5756 = vtanh.pop %v5676
    %v5757 = vxor.u32 %v5716, 2147483648
    %v5758 = vmul.f32 %v5757, 1.442695
    %v5759 = vpow.pop %v5758
    %v5760 = vadd.f32 %v5759, 1.0
    %v5761 = vrcp.pop %v5760
    %v5762 = vmul.f32 %v5760, %v5761
    %v5763 = vsub.f32 1.0, %v5762
    %v5764 = vmul.f32 %v5761, %v5763
    %v5765 = vadd.f32 %v5761, %v5764
    %vm5766 = vweird.f32 %v5760
    %vm5767 = vweird.f32 %v5761
    %vm5768 = vmor %vm5766, %vm5767
    %v5769 = vsel %vm5768, %v5761, %v5765
    %v5770 = vand.u32 2147483647, %v5760
    %vm5771 = vcmp.eq.f32.partialorder %v5770, 8.507059e+37
    %v5772 = vand.u32 %v5760, 2147483648
    %v5773 = vor.u32 1.1754944e-38, %v5772
    %v5774 = vsel %vm5771, %v5773, %v5769
    %v5775 = vmul.f32 1.0, %v5774
    %v5776 = vmul.f32 %v5755, %v5012
    %v5777 = vmul.f32 %v5736, %v5756
    %v5778 = vadd.f32 %v5776, %v5777
    %v5779 = vtanh.pop %v5778
    %v5780 = vmul.f32 %v5775, %v5779
    %v5781 = vld [vmem:[#allocation4] sm:$0xff]
    %v5782 = vld [vmem:[#allocation4 + $0x8] sm:$0xff]
    %v5783 = vld [vmem:[#allocation4 + $0x10] sm:$0xff]
    %v5784 = vld [vmem:[#allocation4 + $0x18] sm:$0xff]
    %v5785 = vld [vmem:[#allocation4 + $0x20] sm:$0xff]
    %v5786 = vld [vmem:[#allocation4 + $0x28] sm:$0xff]
    %v5787 = vld [vmem:[#allocation4 + $0x30] sm:$0xff]
    %v5788 = vld [vmem:[#allocation4 + $0x38] sm:$0xff]
    %v5789 = vld [vmem:[#allocation4 + $0x40] sm:$0xff]
    %v5790 = vld [vmem:[#allocation4 + $0x48] sm:$0xff]
    %v5791 = vld [vmem:[#allocation4 + $0x50] sm:$0xff]
    %v5792 = vld [vmem:[#allocation4 + $0x58] sm:$0xff]
    %v5793 = vld [vmem:[#allocation4 + $0x60] sm:$0xff]
    %v5794 = vld [vmem:[#allocation4 + $0x68] sm:$0xff]
    %v5795 = vld [vmem:[#allocation4 + $0x70] sm:$0xff]
    %v5796 = vld [vmem:[#allocation4 + $0x78] sm:$0xff]
    %v5797 = vld [vmem:[#allocation4 + $0x80] sm:$0xff]
    %v5798 = vld [vmem:[#allocation4 + $0x88] sm:$0xff]
    %v5799 = vld [vmem:[#allocation4 + $0x90] sm:$0xff]
    %v5800 = vld [vmem:[#allocation4 + $0x98] sm:$0xff]
    %v5801 = vld [vmem:[#allocation4 + $0xa0] sm:$0xff]
    %v5802 = vld [vmem:[#allocation4 + $0xa8] sm:$0xff]
    %v5803 = vld [vmem:[#allocation4 + $0xb0] sm:$0xff]
    %v5804 = vld [vmem:[#allocation4 + $0xb8] sm:$0xff]
    %v5805 = vld [vmem:[#allocation4 + $0xc0] sm:$0xff]
    %v5806 = vld [vmem:[#allocation4 + $0xc8] sm:$0xff]
    %v5807 = vld [vmem:[#allocation4 + $0xd0] sm:$0xff]
    %v5808 = vld [vmem:[#allocation4 + $0xd8] sm:$0xff]
    %v5809 = vld [vmem:[#allocation4 + $0xe0] sm:$0xff]
    %v5810 = vld [vmem:[#allocation4 + $0xe8] sm:$0xff]
    %v5811 = vld [vmem:[#allocation4 + $0xf0] sm:$0xff]
    %v5812 = vld [vmem:[#allocation4 + $0xf8] sm:$0xff]
    %v5813 = vld [vmem:[#allocation4 + $0x100] sm:$0xff]
    %v5814 = vld [vmem:[#allocation4 + $0x108] sm:$0xff]
    %v5815 = vld [vmem:[#allocation4 + $0x110] sm:$0xff]
    %v5816 = vld [vmem:[#allocation4 + $0x118] sm:$0xff]
    %v5817 = vld [vmem:[#allocation4 + $0x120] sm:$0xff]
    %v5818 = vld [vmem:[#allocation4 + $0x128] sm:$0xff]
    %v5819 = vld [vmem:[#allocation4 + $0x130] sm:$0xff]
    %v5820 = vld [vmem:[#allocation4 + $0x138] sm:$0xff]
    %v5821 = vld [vmem:[#allocation4 + $0x140] sm:$0xff]
    %v5822 = vld [vmem:[#allocation4 + $0x148] sm:$0xff]
    %v5823 = vld [vmem:[#allocation4 + $0x150] sm:$0xff]
    %v5824 = vld [vmem:[#allocation4 + $0x158] sm:$0xff]
    %v5825 = vld [vmem:[#allocation4 + $0x160] sm:$0xff]
    %v5826 = vld [vmem:[#allocation4 + $0x168] sm:$0xff]
    %v5827 = vld [vmem:[#allocation4 + $0x170] sm:$0xff]
    %v5828 = vld [vmem:[#allocation4 + $0x178] sm:$0xff]
    %v5829 = vld [vmem:[#allocation4 + $0x180] sm:$0xff]
    %v5830 = vld [vmem:[#allocation4 + $0x188] sm:$0xff]
    %v5831 = vld [vmem:[#allocation4 + $0x190] sm:$0xff]
    %v5832 = vld [vmem:[#allocation4 + $0x198] sm:$0xff]
    %v5833 = vld [vmem:[#allocation4 + $0x1a0] sm:$0xff]
    %v5834 = vld [vmem:[#allocation4 + $0x1a8] sm:$0xff]
    %v5835 = vld [vmem:[#allocation4 + $0x1b0] sm:$0xff]
    %v5836 = vld [vmem:[#allocation4 + $0x1b8] sm:$0xff]
    %v5837 = vld [vmem:[#allocation4 + $0x1c0] sm:$0xff]
    %v5838 = vld [vmem:[#allocation4 + $0x1c8] sm:$0xff]
    %v5839 = vld [vmem:[#allocation4 + $0x1d0] sm:$0xff]
    %v5840 = vld [vmem:[#allocation4 + $0x1d8] sm:$0xff]
    %v5841 = vld [vmem:[#allocation4 + $0x1e0] sm:$0xff]
    %v5842 = vld [vmem:[#allocation4 + $0x1e8] sm:$0xff]
    %v5843 = vld [vmem:[#allocation4 + $0x1f0] sm:$0xff]
    %v5844 = vld [vmem:[#allocation4 + $0x1f8] sm:$0xff]
    %v5845 = vld [vmem:[#allocation4 + $0x200] sm:$0xff]
    %v5846 = vld [vmem:[#allocation4 + $0x208] sm:$0xff]
    %v5847 = vld [vmem:[#allocation4 + $0x210] sm:$0xff]
    %v5848 = vld [vmem:[#allocation4 + $0x218] sm:$0xff]
    %v5849 = vld [vmem:[#allocation4 + $0x220] sm:$0xff]
    %v5850 = vld [vmem:[#allocation4 + $0x228] sm:$0xff]
    %v5851 = vld [vmem:[#allocation4 + $0x230] sm:$0xff]
    %v5852 = vld [vmem:[#allocation4 + $0x238] sm:$0xff]
    %v5853 = vld [vmem:[#allocation4 + $0x240] sm:$0xff]
    %v5854 = vld [vmem:[#allocation4 + $0x248] sm:$0xff]
    %v5855 = vld [vmem:[#allocation4 + $0x250] sm:$0xff]
    %v5856 = vld [vmem:[#allocation4 + $0x258] sm:$0xff]
    %v5857 = vld [vmem:[#allocation4 + $0x260] sm:$0xff]
    %v5858 = vld [vmem:[#allocation4 + $0x268] sm:$0xff]
    %v5859 = vld [vmem:[#allocation4 + $0x270] sm:$0xff]
    %v5860 = vld [vmem:[#allocation4 + $0x278] sm:$0xff]
    %v5861 = vld [vmem:[#allocation4 + $0x280] sm:$0xff]
    %v5862 = vld [vmem:[#allocation4 + $0x288] sm:$0xff]
    %v5863 = vld [vmem:[#allocation4 + $0x290] sm:$0xff]
    %v5864 = vld [vmem:[#allocation4 + $0x298] sm:$0xff]
    %v5865 = vld [vmem:[#allocation4 + $0x2a0] sm:$0xff]
    %v5866 = vld [vmem:[#allocation4 + $0x2a8] sm:$0xff]
    %v5867 = vld [vmem:[#allocation4 + $0x2b0] sm:$0xff]
    %v5868 = vld [vmem:[#allocation4 + $0x2b8] sm:$0xff]
    %v5869 = vld [vmem:[#allocation4 + $0x2c0] sm:$0xff]
    %v5870 = vld [vmem:[#allocation4 + $0x2c8] sm:$0xff]
    %v5871 = vld [vmem:[#allocation4 + $0x2d0] sm:$0xff]
    %v5872 = vld [vmem:[#allocation4 + $0x2d8] sm:$0xff]
    %v5873 = vld [vmem:[#allocation4 + $0x2e0] sm:$0xff]
    %v5874 = vld [vmem:[#allocation4 + $0x2e8] sm:$0xff]
    %v5875 = vld [vmem:[#allocation4 + $0x2f0] sm:$0xff]
    %v5876 = vld [vmem:[#allocation4 + $0x2f8] sm:$0xff]
    %v5877 = vld [vmem:[#allocation4 + $0x300] sm:$0xff]
    %v5878 = vld [vmem:[#allocation4 + $0x308] sm:$0xff]
    %v5879 = vld [vmem:[#allocation4 + $0x310] sm:$0xff]
    %v5880 = vld [vmem:[#allocation4 + $0x318] sm:$0xff]
    %v5881 = vld [vmem:[#allocation4 + $0x320] sm:$0xff]
    %v5882 = vld [vmem:[#allocation4 + $0x328] sm:$0xff]
    %v5883 = vld [vmem:[#allocation4 + $0x330] sm:$0xff]
    %v5884 = vld [vmem:[#allocation4 + $0x338] sm:$0xff]
    %v5885 = vld [vmem:[#allocation4 + $0x340] sm:$0xff]
    %v5886 = vld [vmem:[#allocation4 + $0x348] sm:$0xff]
    %v5887 = vld [vmem:[#allocation4 + $0x350] sm:$0xff]
    %v5888 = vld [vmem:[#allocation4 + $0x358] sm:$0xff]
    %v5889 = vld [vmem:[#allocation4 + $0x360] sm:$0xff]
    %v5890 = vld [vmem:[#allocation4 + $0x368] sm:$0xff]
    %v5891 = vld [vmem:[#allocation4 + $0x370] sm:$0xff]
    %v5892 = vld [vmem:[#allocation4 + $0x378] sm:$0xff]
    %v5893 = vld [vmem:[#allocation4 + $0x380] sm:$0xff]
    %v5894 = vld [vmem:[#allocation4 + $0x388] sm:$0xff]
    %v5895 = vld [vmem:[#allocation4 + $0x390] sm:$0xff]
    %v5896 = vld [vmem:[#allocation4 + $0x398] sm:$0xff]
    %v5897 = vld [vmem:[#allocation4 + $0x3a0] sm:$0xff]
    %v5898 = vld [vmem:[#allocation4 + $0x3a8] sm:$0xff]
    %v5899 = vld [vmem:[#allocation4 + $0x3b0] sm:$0xff]
    %v5900 = vld [vmem:[#allocation4 + $0x3b8] sm:$0xff]
    %v5901 = vld [vmem:[#allocation4 + $0x3c0] sm:$0xff]
    %v5902 = vld [vmem:[#allocation4 + $0x3c8] sm:$0xff]
    %v5903 = vld [vmem:[#allocation4 + $0x3d0] sm:$0xff]
    %v5904 = vld [vmem:[#allocation4 + $0x3d8] sm:$0xff]
    %v5905 = vld [vmem:[#allocation4 + $0x3e0] sm:$0xff]
    %v5906 = vld [vmem:[#allocation4 + $0x3e8] sm:$0xff]
    %v5907 = vld [vmem:[#allocation4 + $0x3f0] sm:$0xff]
    %v5908 = vld [vmem:[#allocation4 + $0x3f8] sm:$0xff]
    %v5909 = vld [vmem:[%s4] sm:$0xf]
    %v5911 = vperm.slane %v5909, 0
    %v5912 = vperm.slane %v5909, 1
    %v5913 = vperm.slane %v5909, 2
    %v5914 = vperm.slane %v5909, 3
    %5919 = vmatpush.msra.mxu0 %v5841
    %5920 = vmatpush.msra.mxu0 %v5837
    %5921 = vmatpush.msra.mxu0 %v5833
    %5922 = vmatpush.msra.mxu0 %v5829
    %5923 = vmatpush.msra.mxu0 %v5825
    %5924 = vmatpush.msra.mxu0 %v5821
    %5925 = vmatpush.msra.mxu0 %v5817
    %5926 = vmatpush.msra.mxu0 %v5813
    %5927 = vmatpush.msra.mxu0 %v5809
    %5928 = vmatpush.msra.mxu0 %v5805
    %5929 = vmatpush.msra.mxu0 %v5801
    %5930 = vmatpush.msra.mxu0 %v5797
    %5931 = vmatpush.msra.mxu0 %v5793
    %5932 = vmatpush.msra.mxu0 %v5789
    %5933 = vmatpush.msra.mxu0 %v5785
    %5934 = vmatpush.msra.mxu0 %v5781
    %5935 = vmatmul.f32.gmra.mxu0 %v5780
    %v5936 = vpop.f32.mrf.mxu0
    %v5937 = vadd.f32 %v5911, %v5936
    %5938 = vdwg.mxu0
    %5939 = vmatpush.msra.mxu0 %v5905
    %5940 = vmatpush.msra.mxu0 %v5901
    %5941 = vmatpush.msra.mxu0 %v5897
    %5942 = vmatpush.msra.mxu0 %v5893
    %5943 = vmatpush.msra.mxu0 %v5889
    %5944 = vmatpush.msra.mxu0 %v5885
    %5945 = vmatpush.msra.mxu0 %v5881
    %5946 = vmatpush.msra.mxu0 %v5877
    %5947 = vmatpush.msra.mxu0 %v5873
    %5948 = vmatpush.msra.mxu0 %v5869
    %5949 = vmatpush.msra.mxu0 %v5865
    %5950 = vmatpush.msra.mxu0 %v5861
    %5951 = vmatpush.msra.mxu0 %v5857
    %5952 = vmatpush.msra.mxu0 %v5853
    %5953 = vmatpush.msra.mxu0 %v5849
    %5954 = vmatpush.msra.mxu0 %v5845
    %5955 = vmatmul.f32.gmra.mxu0 %v5375
    %v5956 = vpop.f32.mrf.mxu0
    %v5957 = vadd.f32 %v5937, %v5956
    %5958 = vdwg.mxu0
    %5959 = vmatpush.msra.mxu0 %v5842
    %5960 = vmatpush.msra.mxu0 %v5838
    %5961 = vmatpush.msra.mxu0 %v5834
    %5962 = vmatpush.msra.mxu0 %v5830
    %5963 = vmatpush.msra.mxu0 %v5826
    %5964 = vmatpush.msra.mxu0 %v5822
    %5965 = vmatpush.msra.mxu0 %v5818
    %5966 = vmatpush.msra.mxu0 %v5814
    %5967 = vmatpush.msra.mxu0 %v5810
    %5968 = vmatpush.msra.mxu0 %v5806
    %5969 = vmatpush.msra.mxu0 %v5802
    %5970 = vmatpush.msra.mxu0 %v5798
    %5971 = vmatpush.msra.mxu0 %v5794
    %5972 = vmatpush.msra.mxu0 %v5790
    %5973 = vmatpush.msra.mxu0 %v5786
    %5974 = vmatpush.msra.mxu0 %v5782
    %5975 = vmatmul.f32.gmra.mxu0 %v5780
    %v5976 = vpop.f32.mrf.mxu0
    %v5977 = vadd.f32 %v5912, %v5976
    %5978 = vdwg.mxu0
    %5979 = vmatpush.msra.mxu0 %v5906
    %5980 = vmatpush.msra.mxu0 %v5902
    %5981 = vmatpush.msra.mxu0 %v5898
    %5982 = vmatpush.msra.mxu0 %v5894
    %5983 = vmatpush.msra.mxu0 %v5890
    %5984 = vmatpush.msra.mxu0 %v5886
    %5985 = vmatpush.msra.mxu0 %v5882
    %5986 = vmatpush.msra.mxu0 %v5878
    %5987 = vmatpush.msra.mxu0 %v5874
    %5988 = vmatpush.msra.mxu0 %v5870
    %5989 = vmatpush.msra.mxu0 %v5866
    %5990 = vmatpush.msra.mxu0 %v5862
    %5991 = vmatpush.msra.mxu0 %v5858
    %5992 = vmatpush.msra.mxu0 %v5854
    %5993 = vmatpush.msra.mxu0 %v5850
    %5994 = vmatpush.msra.mxu0 %v5846
    %5995 = vmatmul.f32.gmra.mxu0 %v5375
    %v5996 = vpop.f32.mrf.mxu0
    %v5997 = vadd.f32 %v5977, %v5996
    %5998 = vdwg.mxu0
    %5999 = vmatpush.msra.mxu0 %v5843
    %6000 = vmatpush.msra.mxu0 %v5839
    %6001 = vmatpush.msra.mxu0 %v5835
    %6002 = vmatpush.msra.mxu0 %v5831
    %6003 = vmatpush.msra.mxu0 %v5827
    %6004 = vmatpush.msra.mxu0 %v5823
    %6005 = vmatpush.msra.mxu0 %v5819
    %6006 = vmatpush.msra.mxu0 %v5815
    %6007 = vmatpush.msra.mxu0 %v5811
    %6008 = vmatpush.msra.mxu0 %v5807
    %6009 = vmatpush.msra.mxu0 %v5803
    %6010 = vmatpush.msra.mxu0 %v5799
    %6011 = vmatpush.msra.mxu0 %v5795
    %6012 = vmatpush.msra.mxu0 %v5791
    %6013 = vmatpush.msra.mxu0 %v5787
    %6014 = vmatpush.msra.mxu0 %v5783
    %6015 = vmatmul.f32.gmra.mxu0 %v5780
    %v6016 = vpop.f32.mrf.mxu0
    %v6017 = vadd.f32 %v5913, %v6016
    %6018 = vdwg.mxu0
    %6019 = vmatpush.msra.mxu0 %v5907
    %6020 = vmatpush.msra.mxu0 %v5903
    %6021 = vmatpush.msra.mxu0 %v5899
    %6022 = vmatpush.msra.mxu0 %v5895
    %6023 = vmatpush.msra.mxu0 %v5891
    %6024 = vmatpush.msra.mxu0 %v5887
    %6025 = vmatpush.msra.mxu0 %v5883
    %6026 = vmatpush.msra.mxu0 %v5879
    %6027 = vmatpush.msra.mxu0 %v5875
    %6028 = vmatpush.msra.mxu0 %v5871
    %6029 = vmatpush.msra.mxu0 %v5867
    %6030 = vmatpush.msra.mxu0 %v5863
    %6031 = vmatpush.msra.mxu0 %v5859
    %6032 = vmatpush.msra.mxu0 %v5855
    %6033 = vmatpush.msra.mxu0 %v5851
    %6034 = vmatpush.msra.mxu0 %v5847
    %6035 = vmatmul.f32.gmra.mxu0 %v5375
    %v6036 = vpop.f32.mrf.mxu0
    %v6037 = vadd.f32 %v6017, %v6036
    %6038 = vdwg.mxu0
    %6039 = vmatpush.msra.mxu0 %v5844
    %6040 = vmatpush.msra.mxu0 %v5840
    %6041 = vmatpush.msra.mxu0 %v5836
    %6042 = vmatpush.msra.mxu0 %v5832
    %6043 = vmatpush.msra.mxu0 %v5828
    %6044 = vmatpush.msra.mxu0 %v5824
    %6045 = vmatpush.msra.mxu0 %v5820
    %6046 = vmatpush.msra.mxu0 %v5816
    %6047 = vmatpush.msra.mxu0 %v5812
    %6048 = vmatpush.msra.mxu0 %v5808
    %6049 = vmatpush.msra.mxu0 %v5804
    %6050 = vmatpush.msra.mxu0 %v5800
    %6051 = vmatpush.msra.mxu0 %v5796
    %6052 = vmatpush.msra.mxu0 %v5792
    %6053 = vmatpush.msra.mxu0 %v5788
    %6054 = vmatpush.msra.mxu0 %v5784
    %6055 = vmatmul.f32.gmra.mxu0 %v5780
    %v6056 = vpop.f32.mrf.mxu0
    %v6057 = vadd.f32 %v5914, %v6056
    %6058 = vdwg.mxu0
    %6059 = vmatpush.msra.mxu0 %v5908
    %6060 = vmatpush.msra.mxu0 %v5904
    %6061 = vmatpush.msra.mxu0 %v5900
    %6062 = vmatpush.msra.mxu0 %v5896
    %6063 = vmatpush.msra.mxu0 %v5892
    %6064 = vmatpush.msra.mxu0 %v5888
    %6065 = vmatpush.msra.mxu0 %v5884
    %6066 = vmatpush.msra.mxu0 %v5880
    %6067 = vmatpush.msra.mxu0 %v5876
    %6068 = vmatpush.msra.mxu0 %v5872
    %6069 = vmatpush.msra.mxu0 %v5868
    %6070 = vmatpush.msra.mxu0 %v5864
    %6071 = vmatpush.msra.mxu0 %v5860
    %6072 = vmatpush.msra.mxu0 %v5856
    %6073 = vmatpush.msra.mxu0 %v5852
    %6074 = vmatpush.msra.mxu0 %v5848
    %6075 = vmatmul.f32.gmra.mxu0 %v5375
    %v6076 = vpop.f32.mrf.mxu0
    %v6077 = vadd.f32 %v6057, %v6076
    %6078 = vdwg.mxu0
    %v6079 = vxor.u32 %v5957, 2147483648
    %v6080 = vmul.f32 %v6079, 1.442695
    %v6081 = vpow.pop %v6080
    %v6082 = vadd.f32 %v6081, 1.0
    %v6083 = vrcp.pop %v6082
    %v6084 = vmul.f32 %v6082, %v6083
    %v6085 = vsub.f32 1.0, %v6084
    %v6086 = vmul.f32 %v6083, %v6085
    %v6087 = vadd.f32 %v6083, %v6086
    %vm6088 = vweird.f32 %v6082
    %vm6089 = vweird.f32 %v6083
    %vm6090 = vmor %vm6088, %vm6089
    %v6091 = vsel %vm6090, %v6083, %v6087
    %v6092 = vand.u32 2147483647, %v6082
    %vm6093 = vcmp.eq.f32.partialorder %v6092, 8.507059e+37
    %v6094 = vand.u32 %v6082, 2147483648
    %v6095 = vor.u32 1.1754944e-38, %v6094
    %v6096 = vsel %vm6093, %v6095, %v6091
    %v6097 = vmul.f32 1.0, %v6096
    %v6098 = vxor.u32 %v5997, 2147483648
    %v6099 = vmul.f32 %v6098, 1.442695
    %v6100 = vpow.pop %v6099
    %v6101 = vadd.f32 %v6100, 1.0
    %v6102 = vrcp.pop %v6101
    %v6103 = vmul.f32 %v6101, %v6102
    %v6104 = vsub.f32 1.0, %v6103
    %v6105 = vmul.f32 %v6102, %v6104
    %v6106 = vadd.f32 %v6102, %v6105
    %vm6107 = vweird.f32 %v6101
    %vm6108 = vweird.f32 %v6102
    %vm6109 = vmor %vm6107, %vm6108
    %v6110 = vsel %vm6109, %v6102, %v6106
    %v6111 = vand.u32 2147483647, %v6101
    %vm6112 = vcmp.eq.f32.partialorder %v6111, 8.507059e+37
    %v6113 = vand.u32 %v6101, 2147483648
    %v6114 = vor.u32 1.1754944e-38, %v6113
    %v6115 = vsel %vm6112, %v6114, %v6110
    %v6116 = vmul.f32 1.0, %v6115
    %v6117 = vtanh.pop %v6037
    %v6118 = vxor.u32 %v6077, 2147483648
    %v6119 = vmul.f32 %v6118, 1.442695
    %v6120 = vpow.pop %v6119
    %v6121 = vadd.f32 %v6120, 1.0
    %v6122 = vrcp.pop %v6121
    %v6123 = vmul.f32 %v6121, %v6122
    %v6124 = vsub.f32 1.0, %v6123
    %v6125 = vmul.f32 %v6122, %v6124
    %v6126 = vadd.f32 %v6122, %v6125
    %vm6127 = vweird.f32 %v6121
    %vm6128 = vweird.f32 %v6122
    %vm6129 = vmor %vm6127, %vm6128
    %v6130 = vsel %vm6129, %v6122, %v6126
    %v6131 = vand.u32 2147483647, %v6121
    %vm6132 = vcmp.eq.f32.partialorder %v6131, 8.507059e+37
    %v6133 = vand.u32 %v6121, 2147483648
    %v6134 = vor.u32 1.1754944e-38, %v6133
    %v6135 = vsel %vm6132, %v6134, %v6130
    %v6136 = vmul.f32 1.0, %v6135
    %v6137 = vmul.f32 %v6116, %v5373
    %v6138 = vmul.f32 %v6097, %v6117
    %v6139 = vadd.f32 %v6137, %v6138
    %v6140 = vtanh.pop %v6139
    %v6141 = vmul.f32 %v6136, %v6140
    %v6142 = vld [vmem:[%s5] sm:$0xff]
    %v6143 = vld [vmem:[%s5 + $0x8] sm:$0xff]
    %v6144 = vld [vmem:[%s5 + $0x10] sm:$0xff]
    %v6145 = vld [vmem:[%s5 + $0x18] sm:$0xff]
    %v6146 = vld [vmem:[%s5 + $0x20] sm:$0xff]
    %v6147 = vld [vmem:[%s5 + $0x28] sm:$0xff]
    %v6148 = vld [vmem:[%s5 + $0x30] sm:$0xff]
    %v6149 = vld [vmem:[%s5 + $0x38] sm:$0xff]
    %v6150 = vld [vmem:[%s5 + $0x40] sm:$0xff]
    %v6151 = vld [vmem:[%s5 + $0x48] sm:$0xff]
    %v6152 = vld [vmem:[%s5 + $0x50] sm:$0xff]
    %v6153 = vld [vmem:[%s5 + $0x58] sm:$0xff]
    %v6154 = vld [vmem:[%s5 + $0x60] sm:$0xff]
    %v6155 = vld [vmem:[%s5 + $0x68] sm:$0xff]
    %v6156 = vld [vmem:[%s5 + $0x70] sm:$0xff]
    %v6157 = vld [vmem:[%s5 + $0x78] sm:$0xff]
    %v6158 = vld [vmem:[%s6] sm:$0x1]
    %v6160 = vperm.slane %v6158, 0
    %6162 = vmatpush.msra.mxu0 %v6157
    %6163 = vmatpush.msra.mxu0 %v6156
    %6164 = vmatpush.msra.mxu0 %v6155
    %6165 = vmatpush.msra.mxu0 %v6154
    %6166 = vmatpush.msra.mxu0 %v6153
    %6167 = vmatpush.msra.mxu0 %v6152
    %6168 = vmatpush.msra.mxu0 %v6151
    %6169 = vmatpush.msra.mxu0 %v6150
    %6170 = vmatpush.msra.mxu0 %v6149
    %6171 = vmatpush.msra.mxu0 %v6148
    %6172 = vmatpush.msra.mxu0 %v6147
    %6173 = vmatpush.msra.mxu0 %v6146
    %6174 = vmatpush.msra.mxu0 %v6145
    %6175 = vmatpush.msra.mxu0 %v6144
    %6176 = vmatpush.msra.mxu0 %v6143
    %6177 = vmatpush.msra.mxu0 %v6142
    %6178 = vmatmul.f32.gmra.mxu0 %v6141
    %v6179 = vpop.f32.mrf.mxu0
    %v6180 = vadd.f32 %v6160, %v6179
    %6181 = vdwg.mxu0
    %s6182 = scalar_lea.vmem %s7, 56
    %6183 = vst [vmem:[%s6182] sm:$0xff] %v6180
    // Predicated region
    $region38: #{decoder_forward.1} parent=1 // pred_check
      _
    $region39: #{decoder_forward.1} parent=1 // pred_check_branch
      %6185 = sbr.rel (0) target = $region41
    $region40: #{decoder_forward.1} parent=1 // pred_region
      _
    $region41: #{decoder_forward.1} parent=1 // pred_fallthru
      _
    // Predicated region
    $region42: #{decoder_forward.1} parent=1 // pred_check
      _
    $region43: #{decoder_forward.1} parent=1 // pred_check_branch
      %6187 = sbr.rel (0) target = $region45
    $region44: #{decoder_forward.1} parent=1 // pred_region
      _
    $region45: #{decoder_forward.1} parent=1 // pred_fallthru
      _
    %6188 = vsyncpa [#allocation3], 1
    %6189 = vsyncpa [#allocation5], 1

</llo_original>
